<compile_context>
chip_gen: v6e
topology: v6e:2x2x1
jax: 0.10.0
libtpu: 0.0.40
codegen_flags: <defaults>
</compile_context>

<pallas_src>
import functools

import jax
import jax.numpy as jnp
from jax.experimental import pallas as pl
from jax.experimental.pallas import tpu as pltpu

EPS = 1e-5  # PyTorch BatchNorm2d default eps


# --------------------------------------------------------------------------- #
# Fused matmul + epilogue Pallas kernel (the hot path for every layer)         #
# --------------------------------------------------------------------------- #
def _fused_matmul_kernel(x_ref, w_ref, p_ref, o_ref, *, mode):
    acc = jnp.dot(x_ref[...], w_ref[...], preferred_element_type=jnp.float32)
    if mode == "bn_relu":        # Conv -> BN -> ReLU
        z = jnp.maximum(acc * p_ref[0:1, :] + p_ref[1:2, :], 0.0)
    elif mode == "relu_bn":      # Conv -> ReLU -> BN
        z = jnp.maximum(acc + p_ref[1:2, :], 0.0) * p_ref[0:1, :] + p_ref[2:3, :]
    else:                        # "bias": plain conv bias, no BN / ReLU
        z = acc + p_ref[1:2, :]
    o_ref[...] = z.astype(o_ref.dtype)


def fused_matmul(x, w, packed, mode, out_dtype, row_tile=None):
    """out = epilogue(x @ w); x:(M,K) bf16, w:(K,N) bf16, packed:(3,N) f32.

    Single grid step per layer (full-array blocks); row_tile may split M for
    the one large layer so multiple TensorCores share it."""
    M, K = x.shape
    N = w.shape[1]
    tm = row_tile if (row_tile is not None and M % row_tile == 0) else M
    return pl.pallas_call(
        functools.partial(_fused_matmul_kernel, mode=mode),
        out_shape=jax.ShapeDtypeStruct((M, N), out_dtype),
        grid=(M // tm,),
        in_specs=[
            pl.BlockSpec((tm, K), lambda i: (i, 0)),
            pl.BlockSpec((K, N), lambda i: (0, 0)),
            pl.BlockSpec((3, N), lambda i: (0, 0)),
        ],
        out_specs=pl.BlockSpec((tm, N), lambda i: (i, 0)),
        compiler_params=pltpu.CompilerParams(
            dimension_semantics=("parallel",),
            allow_input_fusion=[True, False, False],
            vmem_limit_bytes=32 * 1024 * 1024,
        ),
    )(x, w, packed)


# --------------------------------------------------------------------------- #
# Conv / ConvTranspose / MaxPool wrappers (im2col & pooling are thin glue)     #
# --------------------------------------------------------------------------- #
def _im2col(x, k, stride, pad):
    """x: (B,H,W,C) NHWC -> (B*OH*OW, C*k*k); feature order [c, kh, kw]."""
    B, H, W, C = x.shape
    if pad:
        x = jnp.pad(x, ((0, 0), (pad, pad), (pad, pad), (0, 0)))
    OH = (H + 2 * pad - k) // stride + 1
    OW = (W + 2 * pad - k) // stride + 1
    taps = [x[:, kh:kh + stride * (OH - 1) + 1:stride,
              kw:kw + stride * (OW - 1) + 1:stride, :]
            for kh in range(k) for kw in range(k)]
    cols = jnp.stack(taps, axis=-1)                       # (B, OH, OW, C, k*k)
    return cols.reshape(B * OH * OW, C * k * k), (B, OH, OW)


def conv_block(x, wmat, packed, mode, *, k, stride, pad,
               out_dtype=jnp.bfloat16, row_tile=None):
    """Conv2d(+BN+ReLU) as im2col + fused matmul.  Returns NHWC."""
    cols, (B, OH, OW) = _im2col(x, k, stride, pad)
    out = fused_matmul(cols, wmat, packed, mode, out_dtype, row_tile)
    return out.reshape(B, OH, OW, out.shape[1])


def tconv_block(x, wmat, packed, mode, *, tpad, out_hw,
                out_dtype=jnp.bfloat16, row_tile=None):
    """ConvTranspose2d(k in {3,4}, stride=2, padding=tpad) via sub-pixel decomposition.

    A 2x2-window stride-1 conv over the (optionally 1-padded) undilated input
    produces all four output parities packed along channels; then interleave
    the parities spatially and crop to the true output size."""
    pad = 1 - tpad // 2
    cols, (B, T, _) = _im2col(x, 2, 1, pad)
    out = fused_matmul(cols, wmat, packed, mode, out_dtype, row_tile)  # (B*T*T, 4*Cout)
    cout = out.shape[1] // 4
    out = out.reshape(B, T, T, 2, 2, cout)                 # (b, ty, tx, dy, dx, c)
    out = out.transpose(0, 1, 3, 2, 4, 5).reshape(B, 2 * T, 2 * T, cout)
    return out[:, :out_hw, :out_hw, :]


def maxpool2d(x, k, stride, pad=0):
    """MaxPool2d on NHWC (tiny spatial sizes -> plain JAX glue; -inf padding
    matches PyTorch MaxPool2d semantics)."""
    B, H, W, C = x.shape
    if pad:
        x = jnp.pad(x, ((0, 0), (pad, pad), (pad, pad), (0, 0)),
                    constant_values=-jnp.inf)
    OH = (H + 2 * pad - k) // stride + 1
    OW = (W + 2 * pad - k) // stride + 1
    vals = [x[:, kh:kh + stride * (OH - 1) + 1:stride,
              kw:kw + stride * (OW - 1) + 1:stride, :]
            for kh in range(k) for kw in range(k)]
    return jnp.max(jnp.stack(vals, axis=0), axis=0)


# --------------------------------------------------------------------------- #
# Weight / epilogue preparation (runs once, outside jit)                       #
# --------------------------------------------------------------------------- #
def _conv_weight_matrix(w):
    """torch Conv2d weight (Cout, Cin, k, k) -> (Cin*k*k, Cout) bf16 (im2col order)."""
    cout = w.shape[0]
    return w.reshape(cout, -1).T.astype(jnp.bfloat16)


def _subpixel_weight_matrix(wt):
    """torch ConvTranspose2d weight (Cin, Cout, k, k), stride 2 -> (Cin*4, 4*Cout) bf16.

    Rows = 2x2-window im2col features [cin, r, c]; columns pack the four output
    parities (dy, dx) x Cout.  Window offset r/c maps to kernel tap
    k_off = parity + 2*(1 - offset); taps outside the kernel are zero."""
    cin, cout, k, _ = wt.shape
    zero = jnp.zeros((cin, cout), jnp.float32)

    def tap(ky, kx):
        return wt[:, :, ky, kx].astype(jnp.float32) if (ky < k and kx < k) else zero

    rows = []
    for r in range(2):
        for c in range(2):
            cols_ = [tap(dy + 2 * (1 - r), dx + 2 * (1 - c))
                     for dy in range(2) for dx in range(2)]
            rows.append(jnp.concatenate(cols_, axis=1))    # (Cin, 4*Cout)
    return jnp.stack(rows, axis=1).reshape(cin * 4, 4 * cout).astype(jnp.bfloat16)


def _pack_bn_relu(conv_bias, bn):
    """Conv -> BN -> ReLU  ==>  relu(acc*a + b)."""
    g, beta, mean, var = bn
    a = g * jax.lax.rsqrt(var + EPS)
    return jnp.stack([a, conv_bias * a + beta - mean * a,
                      jnp.zeros_like(a)]).astype(jnp.float32)


def _pack_relu_bn(conv_bias, bn):
    """Conv -> ReLU -> BN  ==>  relu(acc + b)*a + c."""
    g, beta, mean, var = bn
    a = g * jax.lax.rsqrt(var + EPS)
    return jnp.stack([a, conv_bias, beta - mean * a]).astype(jnp.float32)


def _pack_bias(conv_bias):
    return jnp.stack([jnp.ones_like(conv_bias), conv_bias,
                      jnp.zeros_like(conv_bias)]).astype(jnp.float32)


def prepare(p):
    """Fold BN / bias and reshape weights into matmul-ready bf16 matrices."""
    t4 = lambda a: jnp.tile(a, (1, 4))  # replicate per-Cout epilogue over 4 parities
    q = {}
    q["e1_w"] = _conv_weight_matrix(p["e1_w"]); q["e1_p"] = _pack_bn_relu(p["e1_b"], p["bn1"])
    q["e2_w"] = _conv_weight_matrix(p["e2_w"]); q["e2_p"] = _pack_relu_bn(p["e2_b"], p["bn2"])
    q["e3_w"] = _conv_weight_matrix(p["e3_w"]); q["e3_p"] = _pack_relu_bn(p["e3_b"], p["bn3"])
    q["e4_w"] = _conv_weight_matrix(p["e4_w"]); q["e4_p"] = _pack_bn_relu(p["e4_b"], p["bn4"])
    q["d1_w"] = _subpixel_weight_matrix(p["d1_w"]); q["d1_p"] = t4(_pack_bn_relu(p["d1_b"], p["bn5"]))
    q["d2_w"] = _subpixel_weight_matrix(p["d2_w"]); q["d2_p"] = t4(_pack_bn_relu(p["d2_b"], p["bn6"]))
    q["d3_w"] = _subpixel_weight_matrix(p["d3_w"]); q["d3_p"] = t4(_pack_bn_relu(p["d3_b"], p["bn7"]))
    q["d4_w"] = _subpixel_weight_matrix(p["d4_w"]); q["d4_p"] = t4(_pack_bias(p["d4_b"]))
    return q


# --------------------------------------------------------------------------- #
# Deterministic parameter initialization (synthetic, matches module shapes)    #
# --------------------------------------------------------------------------- #
def init_params():
    keys = iter(jax.random.split(jax.random.PRNGKey(42), 64))

    def u(shape, bound):
        return jax.random.uniform(next(keys), shape, jnp.float32, -bound, bound)

    def conv(cout, cin, k):
        bound = (cin * k * k) ** -0.5
        return u((cout, cin, k, k), bound), u((cout,), bound)

    def convt(cin, cout, k):
        bound = (cout * k * k) ** -0.5
        return u((cin, cout, k, k), bound), u((cout,), bound)

    def bn(c):
        gamma = 1.0 + 0.1 * jax.random.normal(next(keys), (c,), jnp.float32)
        beta = 0.1 * jax.random.normal(next(keys), (c,), jnp.float32)
        mean = 0.1 * jax.random.normal(next(keys), (c,), jnp.float32)
        var = 1.0 + 0.1 * jnp.abs(jax.random.normal(next(keys), (c,), jnp.float32))
        return gamma, beta, mean, var

    p = {}
    p["e1_w"], p["e1_b"] = conv(64, 1, 3);     p["bn1"] = bn(64)
    p["e2_w"], p["e2_b"] = conv(128, 64, 3);   p["bn2"] = bn(128)
    p["e3_w"], p["e3_b"] = conv(256, 128, 3);  p["bn3"] = bn(256)
    p["e4_w"], p["e4_b"] = conv(256, 256, 3);  p["bn4"] = bn(256)
    p["d1_w"], p["d1_b"] = convt(256, 128, 3); p["bn5"] = bn(128)
    p["d2_w"], p["d2_b"] = convt(128, 64, 3);  p["bn6"] = bn(64)
    p["d3_w"], p["d3_b"] = convt(64, 32, 3);   p["bn7"] = bn(32)
    p["d4_w"], p["d4_b"] = convt(32, 1, 4)
    return p


# --------------------------------------------------------------------------- #
# Full forward pass (mirrors autoencoder_1111.forward)                         #
# --------------------------------------------------------------------------- #
def autoencoder_forward(x_nchw, prep):
    q = prep
    x = jnp.transpose(x_nchw, (0, 2, 3, 1)).astype(jnp.bfloat16)   # NCHW -> NHWC

    # ---------------- encoder ----------------
    x = conv_block(x, q["e1_w"], q["e1_p"], "bn_relu", k=3, stride=3, pad=1)  # 28 -> 10
    x = maxpool2d(x, 2, 2)                                                    # 10 -> 5
    x = conv_block(x, q["e2_w"], q["e2_p"], "relu_bn", k=3, stride=2, pad=1)  # 5 -> 3
    x = maxpool2d(x, 2, 1)                                                    # 3 -> 2
    x = conv_block(x, q["e3_w"], q["e3_p"], "relu_bn", k=3, stride=1, pad=1)  # 2 -> 2
    x = maxpool2d(x, 2, 1, pad=1)                                             # 2 -> 3
    x = conv_block(x, q["e4_w"], q["e4_p"], "bn_relu", k=3, stride=2, pad=1)  # 3 -> 2

    # mean over H then W (keepdim) -> (B,1,1,256); tiny reduction left in JAX glue
    latent = jnp.mean(x.astype(jnp.float32), axis=(1, 2), keepdims=True)
    z = jnp.tile(latent, (1, 3, 3, 1))                                        # repeat(1,1,3,3)

    # ---------------- decoder (sub-pixel ConvTranspose) ----------------
    y = tconv_block(z.astype(jnp.bfloat16), q["d1_w"], q["d1_p"], "bn_relu",
                    tpad=0, out_hw=7)                                         # 3 -> 7
    y = tconv_block(y, q["d2_w"], q["d2_p"], "bn_relu", tpad=0, out_hw=15)    # 7 -> 15
    y = tconv_block(y, q["d3_w"], q["d3_p"], "bn_relu", tpad=2, out_hw=27)    # 15 -> 27
    y = tconv_block(y, q["d4_w"], q["d4_p"], "bias", tpad=0, out_hw=56,
                    out_dtype=jnp.float32, row_tile=784)                      # 27 -> 56

    to_nchw = lambda a: jnp.transpose(a, (0, 3, 1, 2))
    return to_nchw(y), to_nchw(z), to_nchw(latent)


if __name__ == "__main__":
    params = init_params()
    prep = prepare(params)
    x = jax.random.normal(jax.random.PRNGKey(0), (2, 1, 28, 28), jnp.float32)

    fwd = jax.jit(functools.partial(autoencoder_forward, prep=prep))
    out, z, latent = fwd(x)
    jax.block_until_ready((out, z, latent))

    assert out.shape == (2, 1, 56, 56), out.shape
    assert z.shape == (2, 256, 3, 3), z.shape
    assert latent.shape == (2, 256, 1, 1), latent.shape
    assert jnp.all(jnp.isfinite(out)) and jnp.all(jnp.isfinite(z))
    print("KERNEL_OK")
</pallas_src>

<mosaic_0001>
module attributes {stable_mosaic.version = 11 : i64} {
  func.func @_fused_matmul_kernel(%arg0: i32, %arg1: memref<200x9xbf16, #tpu.memory_space<vmem>>, %arg2: memref<9x64xbf16, #tpu.memory_space<vmem>>, %arg3: memref<3x64xf32, #tpu.memory_space<vmem>>, %arg4: memref<200x64xbf16, #tpu.memory_space<vmem>>) attributes {dimension_semantics = [#tpu.dimension_semantics<parallel>], iteration_bounds = array<i64: 1>, scalar_prefetch = 0 : i64, scratch_operands = 0 : i64, tpu.core_type = #tpu.core_type<tc>, window_params = [{transform_indices = @transform_0, window_bounds = array<i64: 200, 9>}, {pipeline_mode = #tpu.pipeline_mode<synchronous>, transform_indices = @transform_1, window_bounds = array<i64: 9, 64>}, {pipeline_mode = #tpu.pipeline_mode<synchronous>, transform_indices = @transform_2, window_bounds = array<i64: 3, 64>}, {transform_indices = @transform_3, window_bounds = array<i64: 200, 64>}]} {
    %c0 = arith.constant 0 : index
    %c0_0 = arith.constant 0 : index
    %0 = vector.load %arg1[%c0, %c0_0] : memref<200x9xbf16, #tpu.memory_space<vmem>>, vector<200x9xbf16>
    %c0_1 = arith.constant 0 : index
    %c0_2 = arith.constant 0 : index
    %1 = vector.load %arg2[%c0_1, %c0_2] : memref<9x64xbf16, #tpu.memory_space<vmem>>, vector<9x64xbf16>
    %cst = arith.constant dense<0.000000e+00> : vector<200x64xf32>
    %2 = tpu.matmul %0, %1, %cst {dimension_numbers = #tpu.dot_dimension_numbers<[1], [0], [0], [1], [0, 0, 1, 1], [], []>} : vector<200x9xbf16>, vector<9x64xbf16>, vector<200x64xf32> -> vector<200x64xf32>
    %c0_3 = arith.constant 0 : index
    %c0_4 = arith.constant 0 : index
    %3 = vector.load %arg3[%c0_3, %c0_4] : memref<3x64xf32, #tpu.memory_space<vmem>>, vector<1x64xf32>
    %4 = vector.broadcast %3 : vector<1x64xf32> to vector<200x64xf32>
    %5 = arith.mulf %2, %4 : vector<200x64xf32>
    %c1 = arith.constant 1 : index
    %c0_5 = arith.constant 0 : index
    %6 = vector.load %arg3[%c1, %c0_5] : memref<3x64xf32, #tpu.memory_space<vmem>>, vector<1x64xf32>
    %7 = vector.broadcast %6 : vector<1x64xf32> to vector<200x64xf32>
    %8 = arith.addf %5, %7 : vector<200x64xf32>
    %cst_6 = arith.constant 0.000000e+00 : f32
    %9 = vector.broadcast %cst_6 : f32 to vector<200x64xf32>
    %10 = arith.maximumf %8, %9 : vector<200x64xf32>
    %11 = arith.truncf %10 : vector<200x64xf32> to vector<200x64xbf16>
    %c0_7 = arith.constant 0 : index
    %c0_8 = arith.constant 0 : index
    %12 = vector.load %arg4[%c0_7, %c0_8] : memref<200x64xbf16, #tpu.memory_space<vmem>>, vector<200x64xbf16>
    tpu.vector_store %arg4[%c0_7, %c0_8], %11 {strides = array<i32>} : memref<200x64xbf16, #tpu.memory_space<vmem>>, vector<200x64xbf16>,
    return
  }
  func.func @transform_0(%arg0: i32) -> (i32, i32) {
    %c0_i32 = arith.constant 0 : i32
    %c0_i32_0 = arith.constant 0 : i32
    return %arg0, %c0_i32 : i32, i32
  }
  func.func @transform_1(%arg0: i32) -> (i32, i32) {
    %c0_i32 = arith.constant 0 : i32
    %c0_i32_0 = arith.constant 0 : i32
    %c0_i32_1 = arith.constant 0 : i32
    return %c0_i32, %c0_i32_0 : i32, i32
  }
  func.func @transform_2(%arg0: i32) -> (i32, i32) {
    %c0_i32 = arith.constant 0 : i32
    %c0_i32_0 = arith.constant 0 : i32
    %c0_i32_1 = arith.constant 0 : i32
    return %c0_i32, %c0_i32_0 : i32, i32
  }
  func.func @transform_3(%arg0: i32) -> (i32, i32) {
    %c0_i32 = arith.constant 0 : i32
    %c0_i32_0 = arith.constant 0 : i32
    return %arg0, %c0_i32 : i32, i32
  }
}

module attributes {stable_mosaic.version = 11 : i64} {
  func.func @_fused_matmul_kernel(%arg0: i32, %arg1: memref<18x576xbf16, #tpu.memory_space<vmem>>, %arg2: memref<576x128xbf16, #tpu.memory_space<vmem>>, %arg3: memref<3x128xf32, #tpu.memory_space<vmem>>, %arg4: memref<18x128xbf16, #tpu.memory_space<vmem>>) attributes {dimension_semantics = [#tpu.dimension_semantics<parallel>], iteration_bounds = array<i64: 1>, scalar_prefetch = 0 : i64, scratch_operands = 0 : i64, tpu.core_type = #tpu.core_type<tc>, window_params = [{transform_indices = @transform_0, window_bounds = array<i64: 18, 576>}, {pipeline_mode = #tpu.pipeline_mode<synchronous>, transform_indices = @transform_1, window_bounds = array<i64: 576, 128>}, {pipeline_mode = #tpu.pipeline_mode<synchronous>, transform_indices = @transform_2, window_bounds = array<i64: 3, 128>}, {transform_indices = @transform_3, window_bounds = array<i64: 18, 128>}]} {
    %c0 = arith.constant 0 : index
    %c0_0 = arith.constant 0 : index
    %0 = vector.load %arg1[%c0, %c0_0] : memref<18x576xbf16, #tpu.memory_space<vmem>>, vector<18x576xbf16>
    %c0_1 = arith.constant 0 : index
    %c0_2 = arith.constant 0 : index
    %1 = vector.load %arg2[%c0_1, %c0_2] : memref<576x128xbf16, #tpu.memory_space<vmem>>, vector<576x128xbf16>
    %cst = arith.constant dense<0.000000e+00> : vector<18x128xf32>
    %2 = tpu.matmul %0, %1, %cst {dimension_numbers = #tpu.dot_dimension_numbers<[1], [0], [0], [1], [0, 0, 1, 1], [], []>} : vector<18x576xbf16>, vector<576x128xbf16>, vector<18x128xf32> -> vector<18x128xf32>
    %c1 = arith.constant 1 : index
    %c0_3 = arith.constant 0 : index
    %3 = vector.load %arg3[%c1, %c0_3] : memref<3x128xf32, #tpu.memory_space<vmem>>, vector<1x128xf32>
    %4 = vector.broadcast %3 : vector<1x128xf32> to vector<18x128xf32>
    %5 = arith.addf %2, %4 : vector<18x128xf32>
    %cst_4 = arith.constant 0.000000e+00 : f32
    %6 = vector.broadcast %cst_4 : f32 to vector<18x128xf32>
    %7 = arith.maximumf %5, %6 : vector<18x128xf32>
    %c0_5 = arith.constant 0 : index
    %c0_6 = arith.constant 0 : index
    %8 = vector.load %arg3[%c0_5, %c0_6] : memref<3x128xf32, #tpu.memory_space<vmem>>, vector<1x128xf32>
    %9 = vector.broadcast %8 : vector<1x128xf32> to vector<18x128xf32>
    %10 = arith.mulf %7, %9 : vector<18x128xf32>
    %c2 = arith.constant 2 : index
    %c0_7 = arith.constant 0 : index
    %11 = vector.load %arg3[%c2, %c0_7] : memref<3x128xf32, #tpu.memory_space<vmem>>, vector<1x128xf32>
    %12 = vector.broadcast %11 : vector<1x128xf32> to vector<18x128xf32>
    %13 = arith.addf %10, %12 : vector<18x128xf32>
    %14 = arith.truncf %13 : vector<18x128xf32> to vector<18x128xbf16>
    %c0_8 = arith.constant 0 : index
    %c0_9 = arith.constant 0 : index
    %15 = vector.load %arg4[%c0_8, %c0_9] : memref<18x128xbf16, #tpu.memory_space<vmem>>, vector<18x128xbf16>
    tpu.vector_store %arg4[%c0_8, %c0_9], %14 {strides = array<i32>} : memref<18x128xbf16, #tpu.memory_space<vmem>>, vector<18x128xbf16>,
    return
  }
  func.func @transform_0(%arg0: i32) -> (i32, i32) {
    %c0_i32 = arith.constant 0 : i32
    %c0_i32_0 = arith.constant 0 : i32
    return %arg0, %c0_i32 : i32, i32
  }
  func.func @transform_1(%arg0: i32) -> (i32, i32) {
    %c0_i32 = arith.constant 0 : i32
    %c0_i32_0 = arith.constant 0 : i32
    %c0_i32_1 = arith.constant 0 : i32
    return %c0_i32, %c0_i32_0 : i32, i32
  }
  func.func @transform_2(%arg0: i32) -> (i32, i32) {
    %c0_i32 = arith.constant 0 : i32
    %c0_i32_0 = arith.constant 0 : i32
    %c0_i32_1 = arith.constant 0 : i32
    return %c0_i32, %c0_i32_0 : i32, i32
  }
  func.func @transform_3(%arg0: i32) -> (i32, i32) {
    %c0_i32 = arith.constant 0 : i32
    %c0_i32_0 = arith.constant 0 : i32
    return %arg0, %c0_i32 : i32, i32
  }
}

module attributes {stable_mosaic.version = 11 : i64} {
  func.func @_fused_matmul_kernel(%arg0: i32, %arg1: memref<8x1152xbf16, #tpu.memory_space<vmem>>, %arg2: memref<1152x256xbf16, #tpu.memory_space<vmem>>, %arg3: memref<3x256xf32, #tpu.memory_space<vmem>>, %arg4: memref<8x256xbf16, #tpu.memory_space<vmem>>) attributes {dimension_semantics = [#tpu.dimension_semantics<parallel>], iteration_bounds = array<i64: 1>, scalar_prefetch = 0 : i64, scratch_operands = 0 : i64, tpu.core_type = #tpu.core_type<tc>, window_params = [{transform_indices = @transform_0, window_bounds = array<i64: 8, 1152>}, {pipeline_mode = #tpu.pipeline_mode<synchronous>, transform_indices = @transform_1, window_bounds = array<i64: 1152, 256>}, {pipeline_mode = #tpu.pipeline_mode<synchronous>, transform_indices = @transform_2, window_bounds = array<i64: 3, 256>}, {transform_indices = @transform_3, window_bounds = array<i64: 8, 256>}]} {
    %c0 = arith.constant 0 : index
    %c0_0 = arith.constant 0 : index
    %0 = vector.load %arg1[%c0, %c0_0] : memref<8x1152xbf16, #tpu.memory_space<vmem>>, vector<8x1152xbf16>
    %c0_1 = arith.constant 0 : index
    %c0_2 = arith.constant 0 : index
    %1 = vector.load %arg2[%c0_1, %c0_2] : memref<1152x256xbf16, #tpu.memory_space<vmem>>, vector<1152x256xbf16>
    %cst = arith.constant dense<0.000000e+00> : vector<8x256xf32>
    %2 = tpu.matmul %0, %1, %cst {dimension_numbers = #tpu.dot_dimension_numbers<[1], [0], [0], [1], [0, 0, 1, 1], [], []>} : vector<8x1152xbf16>, vector<1152x256xbf16>, vector<8x256xf32> -> vector<8x256xf32>
    %c1 = arith.constant 1 : index
    %c0_3 = arith.constant 0 : index
    %3 = vector.load %arg3[%c1, %c0_3] : memref<3x256xf32, #tpu.memory_space<vmem>>, vector<1x256xf32>
    %4 = vector.broadcast %3 : vector<1x256xf32> to vector<8x256xf32>
    %5 = arith.addf %2, %4 : vector<8x256xf32>
    %cst_4 = arith.constant 0.000000e+00 : f32
    %6 = vector.broadcast %cst_4 : f32 to vector<8x256xf32>
    %7 = arith.maximumf %5, %6 : vector<8x256xf32>
    %c0_5 = arith.constant 0 : index
    %c0_6 = arith.constant 0 : index
    %8 = vector.load %arg3[%c0_5, %c0_6] : memref<3x256xf32, #tpu.memory_space<vmem>>, vector<1x256xf32>
    %9 = vector.broadcast %8 : vector<1x256xf32> to vector<8x256xf32>
    %10 = arith.mulf %7, %9 : vector<8x256xf32>
    %c2 = arith.constant 2 : index
    %c0_7 = arith.constant 0 : index
    %11 = vector.load %arg3[%c2, %c0_7] : memref<3x256xf32, #tpu.memory_space<vmem>>, vector<1x256xf32>
    %12 = vector.broadcast %11 : vector<1x256xf32> to vector<8x256xf32>
    %13 = arith.addf %10, %12 : vector<8x256xf32>
    %14 = arith.truncf %13 : vector<8x256xf32> to vector<8x256xbf16>
    %c0_8 = arith.constant 0 : index
    %c0_9 = arith.constant 0 : index
    %15 = vector.load %arg4[%c0_8, %c0_9] : memref<8x256xbf16, #tpu.memory_space<vmem>>, vector<8x256xbf16>
    tpu.vector_store %arg4[%c0_8, %c0_9], %14 {strides = array<i32>} : memref<8x256xbf16, #tpu.memory_space<vmem>>, vector<8x256xbf16>,
    return
  }
  func.func @transform_0(%arg0: i32) -> (i32, i32) {
    %c0_i32 = arith.constant 0 : i32
    %c0_i32_0 = arith.constant 0 : i32
    return %arg0, %c0_i32 : i32, i32
  }
  func.func @transform_1(%arg0: i32) -> (i32, i32) {
    %c0_i32 = arith.constant 0 : i32
    %c0_i32_0 = arith.constant 0 : i32
    %c0_i32_1 = arith.constant 0 : i32
    return %c0_i32, %c0_i32_0 : i32, i32
  }
  func.func @transform_2(%arg0: i32) -> (i32, i32) {
    %c0_i32 = arith.constant 0 : i32
    %c0_i32_0 = arith.constant 0 : i32
    %c0_i32_1 = arith.constant 0 : i32
    return %c0_i32, %c0_i32_0 : i32, i32
  }
  func.func @transform_3(%arg0: i32) -> (i32, i32) {
    %c0_i32 = arith.constant 0 : i32
    %c0_i32_0 = arith.constant 0 : i32
    return %arg0, %c0_i32 : i32, i32
  }
}

module attributes {stable_mosaic.version = 11 : i64} {
  func.func @_fused_matmul_kernel(%arg0: i32, %arg1: memref<8x2304xbf16, #tpu.memory_space<vmem>>, %arg2: memref<2304x256xbf16, #tpu.memory_space<vmem>>, %arg3: memref<3x256xf32, #tpu.memory_space<vmem>>, %arg4: memref<8x256xbf16, #tpu.memory_space<vmem>>) attributes {dimension_semantics = [#tpu.dimension_semantics<parallel>], iteration_bounds = array<i64: 1>, scalar_prefetch = 0 : i64, scratch_operands = 0 : i64, tpu.core_type = #tpu.core_type<tc>, window_params = [{transform_indices = @transform_0, window_bounds = array<i64: 8, 2304>}, {pipeline_mode = #tpu.pipeline_mode<synchronous>, transform_indices = @transform_1, window_bounds = array<i64: 2304, 256>}, {pipeline_mode = #tpu.pipeline_mode<synchronous>, transform_indices = @transform_2, window_bounds = array<i64: 3, 256>}, {transform_indices = @transform_3, window_bounds = array<i64: 8, 256>}]} {
    %c0 = arith.constant 0 : index
    %c0_0 = arith.constant 0 : index
    %0 = vector.load %arg1[%c0, %c0_0] : memref<8x2304xbf16, #tpu.memory_space<vmem>>, vector<8x2304xbf16>
    %c0_1 = arith.constant 0 : index
    %c0_2 = arith.constant 0 : index
    %1 = vector.load %arg2[%c0_1, %c0_2] : memref<2304x256xbf16, #tpu.memory_space<vmem>>, vector<2304x256xbf16>
    %cst = arith.constant dense<0.000000e+00> : vector<8x256xf32>
    %2 = tpu.matmul %0, %1, %cst {dimension_numbers = #tpu.dot_dimension_numbers<[1], [0], [0], [1], [0, 0, 1, 1], [], []>} : vector<8x2304xbf16>, vector<2304x256xbf16>, vector<8x256xf32> -> vector<8x256xf32>
    %c0_3 = arith.constant 0 : index
    %c0_4 = arith.constant 0 : index
    %3 = vector.load %arg3[%c0_3, %c0_4] : memref<3x256xf32, #tpu.memory_space<vmem>>, vector<1x256xf32>
    %4 = vector.broadcast %3 : vector<1x256xf32> to vector<8x256xf32>
    %5 = arith.mulf %2, %4 : vector<8x256xf32>
    %c1 = arith.constant 1 : index
    %c0_5 = arith.constant 0 : index
    %6 = vector.load %arg3[%c1, %c0_5] : memref<3x256xf32, #tpu.memory_space<vmem>>, vector<1x256xf32>
    %7 = vector.broadcast %6 : vector<1x256xf32> to vector<8x256xf32>
    %8 = arith.addf %5, %7 : vector<8x256xf32>
    %cst_6 = arith.constant 0.000000e+00 : f32
    %9 = vector.broadcast %cst_6 : f32 to vector<8x256xf32>
    %10 = arith.maximumf %8, %9 : vector<8x256xf32>
    %11 = arith.truncf %10 : vector<8x256xf32> to vector<8x256xbf16>
    %c0_7 = arith.constant 0 : index
    %c0_8 = arith.constant 0 : index
    %12 = vector.load %arg4[%c0_7, %c0_8] : memref<8x256xbf16, #tpu.memory_space<vmem>>, vector<8x256xbf16>
    tpu.vector_store %arg4[%c0_7, %c0_8], %11 {strides = array<i32>} : memref<8x256xbf16, #tpu.memory_space<vmem>>, vector<8x256xbf16>,
    return
  }
  func.func @transform_0(%arg0: i32) -> (i32, i32) {
    %c0_i32 = arith.constant 0 : i32
    %c0_i32_0 = arith.constant 0 : i32
    return %arg0, %c0_i32 : i32, i32
  }
  func.func @transform_1(%arg0: i32) -> (i32, i32) {
    %c0_i32 = arith.constant 0 : i32
    %c0_i32_0 = arith.constant 0 : i32
    %c0_i32_1 = arith.constant 0 : i32
    return %c0_i32, %c0_i32_0 : i32, i32
  }
  func.func @transform_2(%arg0: i32) -> (i32, i32) {
    %c0_i32 = arith.constant 0 : i32
    %c0_i32_0 = arith.constant 0 : i32
    %c0_i32_1 = arith.constant 0 : i32
    return %c0_i32, %c0_i32_0 : i32, i32
  }
  func.func @transform_3(%arg0: i32) -> (i32, i32) {
    %c0_i32 = arith.constant 0 : i32
    %c0_i32_0 = arith.constant 0 : i32
    return %arg0, %c0_i32 : i32, i32
  }
}

module attributes {stable_mosaic.version = 11 : i64} {
  func.func @_fused_matmul_kernel(%arg0: i32, %arg1: memref<32x1024xbf16, #tpu.memory_space<vmem>>, %arg2: memref<1024x512xbf16, #tpu.memory_space<vmem>>, %arg3: memref<3x512xf32, #tpu.memory_space<vmem>>, %arg4: memref<32x512xbf16, #tpu.memory_space<vmem>>) attributes {dimension_semantics = [#tpu.dimension_semantics<parallel>], iteration_bounds = array<i64: 1>, scalar_prefetch = 0 : i64, scratch_operands = 0 : i64, tpu.core_type = #tpu.core_type<tc>, window_params = [{transform_indices = @transform_0, window_bounds = array<i64: 32, 1024>}, {pipeline_mode = #tpu.pipeline_mode<synchronous>, transform_indices = @transform_1, window_bounds = array<i64: 1024, 512>}, {pipeline_mode = #tpu.pipeline_mode<synchronous>, transform_indices = @transform_2, window_bounds = array<i64: 3, 512>}, {transform_indices = @transform_3, window_bounds = array<i64: 32, 512>}]} {
    %c0 = arith.constant 0 : index
    %c0_0 = arith.constant 0 : index
    %0 = vector.load %arg1[%c0, %c0_0] : memref<32x1024xbf16, #tpu.memory_space<vmem>>, vector<32x1024xbf16>
    %c0_1 = arith.constant 0 : index
    %c0_2 = arith.constant 0 : index
    %1 = vector.load %arg2[%c0_1, %c0_2] : memref<1024x512xbf16, #tpu.memory_space<vmem>>, vector<1024x512xbf16>
    %cst = arith.constant dense<0.000000e+00> : vector<32x512xf32>
    %2 = tpu.matmul %0, %1, %cst {dimension_numbers = #tpu.dot_dimension_numbers<[1], [0], [0], [1], [0, 0, 1, 1], [], []>} : vector<32x1024xbf16>, vector<1024x512xbf16>, vector<32x512xf32> -> vector<32x512xf32>
    %c0_3 = arith.constant 0 : index
    %c0_4 = arith.constant 0 : index
    %3 = vector.load %arg3[%c0_3, %c0_4] : memref<3x512xf32, #tpu.memory_space<vmem>>, vector<1x512xf32>
    %4 = vector.broadcast %3 : vector<1x512xf32> to vector<32x512xf32>
    %5 = arith.mulf %2, %4 : vector<32x512xf32>
    %c1 = arith.constant 1 : index
    %c0_5 = arith.constant 0 : index
    %6 = vector.load %arg3[%c1, %c0_5] : memref<3x512xf32, #tpu.memory_space<vmem>>, vector<1x512xf32>
    %7 = vector.broadcast %6 : vector<1x512xf32> to vector<32x512xf32>
    %8 = arith.addf %5, %7 : vector<32x512xf32>
    %cst_6 = arith.constant 0.000000e+00 : f32
    %9 = vector.broadcast %cst_6 : f32 to vector<32x512xf32>
    %10 = arith.maximumf %8, %9 : vector<32x512xf32>
    %11 = arith.truncf %10 : vector<32x512xf32> to vector<32x512xbf16>
    %c0_7 = arith.constant 0 : index
    %c0_8 = arith.constant 0 : index
    %12 = vector.load %arg4[%c0_7, %c0_8] : memref<32x512xbf16, #tpu.memory_space<vmem>>, vector<32x512xbf16>
    tpu.vector_store %arg4[%c0_7, %c0_8], %11 {strides = array<i32>} : memref<32x512xbf16, #tpu.memory_space<vmem>>, vector<32x512xbf16>,
    return
  }
  func.func @transform_0(%arg0: i32) -> (i32, i32) {
    %c0_i32 = arith.constant 0 : i32
    %c0_i32_0 = arith.constant 0 : i32
    return %arg0, %c0_i32 : i32, i32
  }
  func.func @transform_1(%arg0: i32) -> (i32, i32) {
    %c0_i32 = arith.constant 0 : i32
    %c0_i32_0 = arith.constant 0 : i32
    %c0_i32_1 = arith.constant 0 : i32
    return %c0_i32, %c0_i32_0 : i32, i32
  }
  func.func @transform_2(%arg0: i32) -> (i32, i32) {
    %c0_i32 = arith.constant 0 : i32
    %c0_i32_0 = arith.constant 0 : i32
    %c0_i32_1 = arith.constant 0 : i32
    return %c0_i32, %c0_i32_0 : i32, i32
  }
  func.func @transform_3(%arg0: i32) -> (i32, i32) {
    %c0_i32 = arith.constant 0 : i32
    %c0_i32_0 = arith.constant 0 : i32
    return %arg0, %c0_i32 : i32, i32
  }
}

module attributes {stable_mosaic.version = 11 : i64} {
  func.func @_fused_matmul_kernel(%arg0: i32, %arg1: memref<128x512xbf16, #tpu.memory_space<vmem>>, %arg2: memref<512x256xbf16, #tpu.memory_space<vmem>>, %arg3: memref<3x256xf32, #tpu.memory_space<vmem>>, %arg4: memref<128x256xbf16, #tpu.memory_space<vmem>>) attributes {dimension_semantics = [#tpu.dimension_semantics<parallel>], iteration_bounds = array<i64: 1>, scalar_prefetch = 0 : i64, scratch_operands = 0 : i64, tpu.core_type = #tpu.core_type<tc>, window_params = [{transform_indices = @transform_0, window_bounds = array<i64: 128, 512>}, {pipeline_mode = #tpu.pipeline_mode<synchronous>, transform_indices = @transform_1, window_bounds = array<i64: 512, 256>}, {pipeline_mode = #tpu.pipeline_mode<synchronous>, transform_indices = @transform_2, window_bounds = array<i64: 3, 256>}, {transform_indices = @transform_3, window_bounds = array<i64: 128, 256>}]} {
    %c0 = arith.constant 0 : index
    %c0_0 = arith.constant 0 : index
    %0 = vector.load %arg1[%c0, %c0_0] : memref<128x512xbf16, #tpu.memory_space<vmem>>, vector<128x512xbf16>
    %c0_1 = arith.constant 0 : index
    %c0_2 = arith.constant 0 : index
    %1 = vector.load %arg2[%c0_1, %c0_2] : memref<512x256xbf16, #tpu.memory_space<vmem>>, vector<512x256xbf16>
    %cst = arith.constant dense<0.000000e+00> : vector<128x256xf32>
    %2 = tpu.matmul %0, %1, %cst {dimension_numbers = #tpu.dot_dimension_numbers<[1], [0], [0], [1], [0, 0, 1, 1], [], []>} : vector<128x512xbf16>, vector<512x256xbf16>, vector<128x256xf32> -> vector<128x256xf32>
    %c0_3 = arith.constant 0 : index
    %c0_4 = arith.constant 0 : index
    %3 = vector.load %arg3[%c0_3, %c0_4] : memref<3x256xf32, #tpu.memory_space<vmem>>, vector<1x256xf32>
    %4 = vector.broadcast %3 : vector<1x256xf32> to vector<128x256xf32>
    %5 = arith.mulf %2, %4 : vector<128x256xf32>
    %c1 = arith.constant 1 : index
    %c0_5 = arith.constant 0 : index
    %6 = vector.load %arg3[%c1, %c0_5] : memref<3x256xf32, #tpu.memory_space<vmem>>, vector<1x256xf32>
    %7 = vector.broadcast %6 : vector<1x256xf32> to vector<128x256xf32>
    %8 = arith.addf %5, %7 : vector<128x256xf32>
    %cst_6 = arith.constant 0.000000e+00 : f32
    %9 = vector.broadcast %cst_6 : f32 to vector<128x256xf32>
    %10 = arith.maximumf %8, %9 : vector<128x256xf32>
    %11 = arith.truncf %10 : vector<128x256xf32> to vector<128x256xbf16>
    %c0_7 = arith.constant 0 : index
    %c0_8 = arith.constant 0 : index
    %12 = vector.load %arg4[%c0_7, %c0_8] : memref<128x256xbf16, #tpu.memory_space<vmem>>, vector<128x256xbf16>
    tpu.vector_store %arg4[%c0_7, %c0_8], %11 {strides = array<i32>} : memref<128x256xbf16, #tpu.memory_space<vmem>>, vector<128x256xbf16>,
    return
  }
  func.func @transform_0(%arg0: i32) -> (i32, i32) {
    %c0_i32 = arith.constant 0 : i32
    %c0_i32_0 = arith.constant 0 : i32
    return %arg0, %c0_i32 : i32, i32
  }
  func.func @transform_1(%arg0: i32) -> (i32, i32) {
    %c0_i32 = arith.constant 0 : i32
    %c0_i32_0 = arith.constant 0 : i32
    %c0_i32_1 = arith.constant 0 : i32
    return %c0_i32, %c0_i32_0 : i32, i32
  }
  func.func @transform_2(%arg0: i32) -> (i32, i32) {
    %c0_i32 = arith.constant 0 : i32
    %c0_i32_0 = arith.constant 0 : i32
    %c0_i32_1 = arith.constant 0 : i32
    return %c0_i32, %c0_i32_0 : i32, i32
  }
  func.func @transform_3(%arg0: i32) -> (i32, i32) {
    %c0_i32 = arith.constant 0 : i32
    %c0_i32_0 = arith.constant 0 : i32
    return %arg0, %c0_i32 : i32, i32
  }
}

module attributes {stable_mosaic.version = 11 : i64} {
  func.func @_fused_matmul_kernel(%arg0: i32, %arg1: memref<392x256xbf16, #tpu.memory_space<vmem>>, %arg2: memref<256x128xbf16, #tpu.memory_space<vmem>>, %arg3: memref<3x128xf32, #tpu.memory_space<vmem>>, %arg4: memref<392x128xbf16, #tpu.memory_space<vmem>>) attributes {dimension_semantics = [#tpu.dimension_semantics<parallel>], iteration_bounds = array<i64: 1>, scalar_prefetch = 0 : i64, scratch_operands = 0 : i64, tpu.core_type = #tpu.core_type<tc>, window_params = [{transform_indices = @transform_0, window_bounds = array<i64: 392, 256>}, {pipeline_mode = #tpu.pipeline_mode<synchronous>, transform_indices = @transform_1, window_bounds = array<i64: 256, 128>}, {pipeline_mode = #tpu.pipeline_mode<synchronous>, transform_indices = @transform_2, window_bounds = array<i64: 3, 128>}, {transform_indices = @transform_3, window_bounds = array<i64: 392, 128>}]} {
    %c0 = arith.constant 0 : index
    %c0_0 = arith.constant 0 : index
    %0 = vector.load %arg1[%c0, %c0_0] : memref<392x256xbf16, #tpu.memory_space<vmem>>, vector<392x256xbf16>
    %c0_1 = arith.constant 0 : index
    %c0_2 = arith.constant 0 : index
    %1 = vector.load %arg2[%c0_1, %c0_2] : memref<256x128xbf16, #tpu.memory_space<vmem>>, vector<256x128xbf16>
    %cst = arith.constant dense<0.000000e+00> : vector<392x128xf32>
    %2 = tpu.matmul %0, %1, %cst {dimension_numbers = #tpu.dot_dimension_numbers<[1], [0], [0], [1], [0, 0, 1, 1], [], []>} : vector<392x256xbf16>, vector<256x128xbf16>, vector<392x128xf32> -> vector<392x128xf32>
    %c0_3 = arith.constant 0 : index
    %c0_4 = arith.constant 0 : index
    %3 = vector.load %arg3[%c0_3, %c0_4] : memref<3x128xf32, #tpu.memory_space<vmem>>, vector<1x128xf32>
    %4 = vector.broadcast %3 : vector<1x128xf32> to vector<392x128xf32>
    %5 = arith.mulf %2, %4 : vector<392x128xf32>
    %c1 = arith.constant 1 : index
    %c0_5 = arith.constant 0 : index
    %6 = vector.load %arg3[%c1, %c0_5] : memref<3x128xf32, #tpu.memory_space<vmem>>, vector<1x128xf32>
    %7 = vector.broadcast %6 : vector<1x128xf32> to vector<392x128xf32>
    %8 = arith.addf %5, %7 : vector<392x128xf32>
    %cst_6 = arith.constant 0.000000e+00 : f32
    %9 = vector.broadcast %cst_6 : f32 to vector<392x128xf32>
    %10 = arith.maximumf %8, %9 : vector<392x128xf32>
    %11 = arith.truncf %10 : vector<392x128xf32> to vector<392x128xbf16>
    %c0_7 = arith.constant 0 : index
    %c0_8 = arith.constant 0 : index
    %12 = vector.load %arg4[%c0_7, %c0_8] : memref<392x128xbf16, #tpu.memory_space<vmem>>, vector<392x128xbf16>
    tpu.vector_store %arg4[%c0_7, %c0_8], %11 {strides = array<i32>} : memref<392x128xbf16, #tpu.memory_space<vmem>>, vector<392x128xbf16>,
    return
  }
  func.func @transform_0(%arg0: i32) -> (i32, i32) {
    %c0_i32 = arith.constant 0 : i32
    %c0_i32_0 = arith.constant 0 : i32
    return %arg0, %c0_i32 : i32, i32
  }
  func.func @transform_1(%arg0: i32) -> (i32, i32) {
    %c0_i32 = arith.constant 0 : i32
    %c0_i32_0 = arith.constant 0 : i32
    %c0_i32_1 = arith.constant 0 : i32
    return %c0_i32, %c0_i32_0 : i32, i32
  }
  func.func @transform_2(%arg0: i32) -> (i32, i32) {
    %c0_i32 = arith.constant 0 : i32
    %c0_i32_0 = arith.constant 0 : i32
    %c0_i32_1 = arith.constant 0 : i32
    return %c0_i32, %c0_i32_0 : i32, i32
  }
  func.func @transform_3(%arg0: i32) -> (i32, i32) {
    %c0_i32 = arith.constant 0 : i32
    %c0_i32_0 = arith.constant 0 : i32
    return %arg0, %c0_i32 : i32, i32
  }
}

module attributes {stable_mosaic.version = 11 : i64} {
  func.func @_fused_matmul_kernel(%arg0: i32, %arg1: memref<784x128xbf16, #tpu.memory_space<vmem>>, %arg2: memref<128x4xbf16, #tpu.memory_space<vmem>>, %arg3: memref<3x4xf32, #tpu.memory_space<vmem>>, %arg4: memref<784x4xf32, #tpu.memory_space<vmem>>) attributes {dimension_semantics = [#tpu.dimension_semantics<parallel>], iteration_bounds = array<i64: 2>, scalar_prefetch = 0 : i64, scratch_operands = 0 : i64, tpu.core_type = #tpu.core_type<tc>, window_params = [{transform_indices = @transform_0, window_bounds = array<i64: 784, 128>}, {pipeline_mode = #tpu.pipeline_mode<synchronous>, transform_indices = @transform_1, window_bounds = array<i64: 128, 4>}, {pipeline_mode = #tpu.pipeline_mode<synchronous>, transform_indices = @transform_2, window_bounds = array<i64: 3, 4>}, {transform_indices = @transform_3, window_bounds = array<i64: 784, 4>}]} {
    %c0 = arith.constant 0 : index
    %c0_0 = arith.constant 0 : index
    %0 = vector.load %arg1[%c0, %c0_0] : memref<784x128xbf16, #tpu.memory_space<vmem>>, vector<784x128xbf16>
    %c0_1 = arith.constant 0 : index
    %c0_2 = arith.constant 0 : index
    %1 = vector.load %arg2[%c0_1, %c0_2] : memref<128x4xbf16, #tpu.memory_space<vmem>>, vector<128x4xbf16>
    %cst = arith.constant dense<0.000000e+00> : vector<784x4xf32>
    %2 = tpu.matmul %0, %1, %cst {dimension_numbers = #tpu.dot_dimension_numbers<[1], [0], [0], [1], [0, 0, 1, 1], [], []>} : vector<784x128xbf16>, vector<128x4xbf16>, vector<784x4xf32> -> vector<784x4xf32>
    %c1 = arith.constant 1 : index
    %c0_3 = arith.constant 0 : index
    %3 = vector.load %arg3[%c1, %c0_3] : memref<3x4xf32, #tpu.memory_space<vmem>>, vector<1x4xf32>
    %4 = vector.broadcast %3 : vector<1x4xf32> to vector<784x4xf32>
    %5 = arith.addf %2, %4 : vector<784x4xf32>
    %c0_4 = arith.constant 0 : index
    %c0_5 = arith.constant 0 : index
    %6 = vector.load %arg4[%c0_4, %c0_5] : memref<784x4xf32, #tpu.memory_space<vmem>>, vector<784x4xf32>
    tpu.vector_store %arg4[%c0_4, %c0_5], %5 {strides = array<i32>} : memref<784x4xf32, #tpu.memory_space<vmem>>, vector<784x4xf32>,
    return
  }
  func.func @transform_0(%arg0: i32) -> (i32, i32) {
    %c0_i32 = arith.constant 0 : i32
    %c0_i32_0 = arith.constant 0 : i32
    return %arg0, %c0_i32 : i32, i32
  }
  func.func @transform_1(%arg0: i32) -> (i32, i32) {
    %c0_i32 = arith.constant 0 : i32
    %c0_i32_0 = arith.constant 0 : i32
    %c0_i32_1 = arith.constant 0 : i32
    return %c0_i32, %c0_i32_0 : i32, i32
  }
  func.func @transform_2(%arg0: i32) -> (i32, i32) {
    %c0_i32 = arith.constant 0 : i32
    %c0_i32_0 = arith.constant 0 : i32
    %c0_i32_1 = arith.constant 0 : i32
    return %c0_i32, %c0_i32_0 : i32, i32
  }
  func.func @transform_3(%arg0: i32) -> (i32, i32) {
    %c0_i32 = arith.constant 0 : i32
    %c0_i32_0 = arith.constant 0 : i32
    return %arg0, %c0_i32 : i32, i32
  }
}

</mosaic_0001>

<llo_original>
// kernel: autoencoder_forward.8
$region0: #{autoencoder_forward.8}
  #allocation0 [shape = 'u32[]', space=smem, size = 0x4, offset = 0x4, fixed_abs, tag = 'smem constant byte address 0x4 - core index']
  #allocation1 [shape = 'u32[144,128]{1,0:T(1,128)}', space=vmem, size = 0x12000, scoped, tag = 'internal scratch']
  %s0 = inlined_call_operand.vmem [shape: bf16[200,9], index: 0, kind: input, shape index: {}]
  %s1 = inlined_call_operand.hbm [shape: bf16[9,64], index: 1, kind: input, shape index: {}]
  %s2 = inlined_call_operand.hbm [shape: f32[3,64], index: 2, kind: input, shape index: {}]
  %s3 = inlined_call_operand.vmem [shape: bf16[200,64], index: 3, kind: output, shape index: {}]
  %s4 = sld [smem:[#allocation0]]
  $region30: #{autoencoder_forward.8} parent=0
    _
  %s6 = ssub.s32 1, %s4
  %s7 = scalar_select 0, %s6, %s4
  $region1: #{autoencoder_forward.8} parent=0
    #allocation2 [shape = 'u8[4096]{0}', space=vmem, size = 0x1000, scoped, tag = 'input window, operand 1, single buffered']
    #allocation3 [shape = 's32[1]{0}', space=sflag, size = 0x4, scoped, tag = 'scoped memory for autoencoder_forward.8']
    #allocation4 [shape = 'u8[2048]{0}', space=vmem, size = 0x800, scoped, tag = 'input window, operand 2, single buffered']
    #allocation5 [shape = 's32[1]{0}', space=sflag, size = 0x4, scoped, tag = 'scoped memory for autoencoder_forward.8']
    %8 = vsyncpa [#allocation3], 0
    %9 = vsyncpa [#allocation5], 0
    // Predicated region
    $region2: #{autoencoder_forward.8} parent=1 // pred_check
      _
    $region3: #{autoencoder_forward.8} parent=1 // pred_check_branch
      %11 = sbr.rel (0) target = $region5
    $region4: #{autoencoder_forward.8} parent=1 // pred_region
      _
    $region5: #{autoencoder_forward.8} parent=1 // pred_fallthru
      _
    // Predicated region
    $region6: #{autoencoder_forward.8} parent=1 // pred_check
      _
    $region7: #{autoencoder_forward.8} parent=1 // pred_check_branch
      %13 = sbr.rel (0) target = $region9
    $region8: #{autoencoder_forward.8} parent=1 // pred_region
      %s15 = ssub.s32 128, 128
      %16 = vsyncadd [#allocation3], %s15
      %s17 = sshll.u32 [#allocation2], 4
      %s18 = int_to_ptr.vmem [resolvable:$true] %s17
      %23 = dma.hbm_to_vmem [thread:$0]  %s1, 128, %s18, [#allocation3], 64, 64, 4
    $region9: #{autoencoder_forward.8} parent=1 // pred_fallthru
      _
    // Predicated region
    $region10: #{autoencoder_forward.8} parent=1 // pred_check
      _
    $region11: #{autoencoder_forward.8} parent=1 // pred_check_branch
      %25 = sbr.rel (0) target = $region13
    $region12: #{autoencoder_forward.8} parent=1 // pred_region
      %s27 = ssub.s32 64, 64
      %28 = vsyncadd [#allocation5], %s27
      %s30 = sshll.u32 [#allocation4], 4
      %s31 = int_to_ptr.vmem [resolvable:$true] %s30
      %33 = dma.hbm_to_vmem [thread:$0]  %s2, 64, %s31, [#allocation5]
    $region13: #{autoencoder_forward.8} parent=1 // pred_fallthru
      _
    // Predicated region
    $region14: #{autoencoder_forward.8} parent=1 // pred_check
      _
    $region15: #{autoencoder_forward.8} parent=1 // pred_check_branch
      %35 = sbr.rel (0) target = $region17
    $region16: #{autoencoder_forward.8} parent=1 // pred_region
      %36 = dma.done [#allocation3], 128
    $region17: #{autoencoder_forward.8} parent=1 // pred_fallthru
      _
    // Predicated region
    $region18: #{autoencoder_forward.8} parent=1 // pred_check
      _
    $region19: #{autoencoder_forward.8} parent=1 // pred_check_branch
      %38 = sbr.rel (0) target = $region21
    $region20: #{autoencoder_forward.8} parent=1 // pred_region
      %39 = dma.done [#allocation5], 64
    $region21: #{autoencoder_forward.8} parent=1 // pred_fallthru
      _
    %v41 = vld [vmem:[%s0] sm:$0xf]
    %v42 = vld [vmem:[%s0 + $0x4] sm:$0xf]
    %v43 = vld [vmem:[%s0 + $0x8] sm:$0xf]
    %v44 = vld [vmem:[%s0 + $0xc] sm:$0xf]
    %v45 = vld [vmem:[%s0 + $0x10] sm:$0xf]
    %v46 = vld [vmem:[%s0 + $0x14] sm:$0xf]
    %v47 = vld [vmem:[%s0 + $0x18] sm:$0xf]
    %v48 = vld [vmem:[%s0 + $0x1c] sm:$0xf]
    %v49 = vld [vmem:[%s0 + $0x20] sm:$0xf]
    %v50 = vld [vmem:[%s0 + $0x24] sm:$0xf]
    %v51 = vld [vmem:[%s0 + $0x28] sm:$0xf]
    %v52 = vld [vmem:[%s0 + $0x2c] sm:$0xf]
    %v53 = vld [vmem:[%s0 + $0x30] sm:$0xf]
    %v54 = vld [vmem:[%s0 + $0x34] sm:$0xf]
    %v55 = vld [vmem:[%s0 + $0x38] sm:$0xf]
    %v56 = vld [vmem:[%s0 + $0x3c] sm:$0xf]
    %v57 = vld [vmem:[%s0 + $0x40] sm:$0xf]
    %v58 = vld [vmem:[%s0 + $0x44] sm:$0xf]
    %v59 = vld [vmem:[%s0 + $0x48] sm:$0xf]
    %v60 = vld [vmem:[%s0 + $0x4c] sm:$0xf]
    %v61 = vld [vmem:[%s0 + $0x50] sm:$0xf]
    %v62 = vld [vmem:[%s0 + $0x54] sm:$0xf]
    %v63 = vld [vmem:[%s0 + $0x58] sm:$0xf]
    %v64 = vld [vmem:[%s0 + $0x5c] sm:$0xf]
    %v65 = vld [vmem:[%s0 + $0x60] sm:$0xf]
    %v66 = vld [vmem:[#allocation2] sm:$0xf]
    %v67 = vld [vmem:[#allocation2 + $0x4] sm:$0x1]
    %v93 = vunpack.c.l.b16 %v41
    %v94 = vunpack.c.l.b16 %v42
    %v95 = vunpack.c.l.b16 %v43
    %v96 = vunpack.c.l.b16 %v44
    %v97 = vunpack.c.l.b16 %v45
    %v98 = vunpack.c.l.b16 %v46
    %v99 = vunpack.c.l.b16 %v47
    %v100 = vunpack.c.l.b16 %v48
    %v101 = vunpack.c.l.b16 %v49
    %v102 = vunpack.c.l.b16 %v50
    %v103 = vunpack.c.l.b16 %v51
    %v104 = vunpack.c.l.b16 %v52
    %v105 = vunpack.c.l.b16 %v53
    %v106 = vunpack.c.l.b16 %v54
    %v107 = vunpack.c.l.b16 %v55
    %v108 = vunpack.c.l.b16 %v56
    %v109 = vunpack.c.l.b16 %v57
    %v110 = vunpack.c.l.b16 %v58
    %v111 = vunpack.c.l.b16 %v59
    %v112 = vunpack.c.l.b16 %v60
    %v113 = vunpack.c.l.b16 %v61
    %v114 = vunpack.c.l.b16 %v62
    %v115 = vunpack.c.l.b16 %v63
    %v116 = vunpack.c.l.b16 %v64
    %v117 = vunpack.c.l.b16 %v65
    %v118 = vpack.c.b16 %v94, %v93
    %v119 = vpack.c.b16 %v96, %v95
    %v120 = vpack.c.b16 %v98, %v97
    %v121 = vpack.c.b16 %v100, %v99
    %v122 = vpack.c.b16 %v102, %v101
    %v123 = vpack.c.b16 %v104, %v103
    %v124 = vpack.c.b16 %v106, %v105
    %v125 = vpack.c.b16 %v108, %v107
    %v126 = vpack.c.b16 %v110, %v109
    %v127 = vpack.c.b16 %v112, %v111
    %v128 = vpack.c.b16 %v114, %v113
    %v129 = vpack.c.b16 %v116, %v115
    %v130 = vpack.c.b16 %v117, %v117
    %v133 = vunpack.c.l.b16 %v66
    %v134 = vunpack.c.l.b16 %v67
    %v135 = vpack.c.b16 %v134, %v133
    %vm136 = vcmask 72704
    %v138 = vsel %vm136, %v118, 0
    %v141 = vsel %vm136, %v119, 0
    %v144 = vsel %vm136, %v120, 0
    %v147 = vsel %vm136, %v121, 0
    %v150 = vsel %vm136, %v122, 0
    %v153 = vsel %vm136, %v123, 0
    %v156 = vsel %vm136, %v124, 0
    %v159 = vsel %vm136, %v125, 0
    %v162 = vsel %vm136, %v126, 0
    %v165 = vsel %vm136, %v127, 0
    %v168 = vsel %vm136, %v128, 0
    %v171 = vsel %vm136, %v129, 0
    %v174 = vsel %vm136, %v130, 0
    %vm176 = vcmask 1043456
    %vm177 = vcmask 1044480
    %v178 = vsel %vm176, 4294967295, 65535
    %v179 = vsel %vm177, %v178, 0
    %v181 = vand.u32 %v135, %v179
    %183 = vmatprep.subr.bf16.mxu0 0
    %184 = vmatpush1.bf16.msra.mxu0 0
    %185 = vmatprep.subr.bf16.mxu0 0
    %186 = vmatpush1.bf16.msra.mxu0 0
    %187 = vmatprep.subr.bf16.mxu0 0
    %188 = vmatpush1.bf16.msra.mxu0 0
    %189 = vmatprep.subr.bf16.mxu0 0
    %190 = vmatpush1.bf16.msra.mxu0 0
    %191 = vmatprep.subr.bf16.mxu0 0
    %192 = vmatpush1.bf16.msra.mxu0 0
    %193 = vmatprep.subr.bf16.mxu0 0
    %194 = vmatpush1.bf16.msra.mxu0 0
    %195 = vmatprep.subr.bf16.mxu0 0
    %196 = vmatpush1.bf16.msra.mxu0 0
    %197 = vmatprep.subr.bf16.mxu0 0
    %198 = vmatpush1.bf16.msra.mxu0 %v181
    %199 = vmatprep.subr.bf16.mxu0 0
    %200 = vmatpush2.bf16.msra.mxu0 0
    %201 = vmatprep.subr.bf16.mxu0 0
    %202 = vmatpush2.bf16.msra.mxu0 0
    %203 = vmatprep.subr.bf16.mxu0 0
    %204 = vmatpush2.bf16.msra.mxu0 0
    %205 = vmatprep.subr.bf16.mxu0 0
    %206 = vmatpush2.bf16.msra.mxu0 0
    %207 = vmatprep.subr.bf16.mxu0 0
    %208 = vmatpush2.bf16.msra.mxu0 0
    %209 = vmatprep.subr.bf16.mxu0 0
    %210 = vmatpush2.bf16.msra.mxu0 0
    %211 = vmatprep.subr.bf16.mxu0 0
    %212 = vmatpush2.bf16.msra.mxu0 0
    %213 = vmatprep.subr.bf16.mxu0 0
    %214 = vmatpush2.bf16.msra.mxu0 0
    %215 = vmatprep.mubr.bf16.mxu0 0
    %216 = vmatmul.mubr.bf16.gmra.mxu0 %v138
    %v217 = vpop.f32.mrf.mxu0
    %v218 = vadd.f32 0.0, %v217
    %v219 = vpop.f32.mrf.mxu0
    %v220 = vpop.f32.mrf.mxu0
    %v221 = vadd.f32 0.0, %v220
    %v222 = vpop.f32.mrf.mxu0
    %223 = vmatprep.mubr.bf16.mxu0 0
    %224 = vmatmul.mubr.bf16.gmra.mxu0 %v141
    %v225 = vpop.f32.mrf.mxu0
    %v226 = vadd.f32 0.0, %v225
    %v227 = vpop.f32.mrf.mxu0
    %v228 = vpop.f32.mrf.mxu0
    %v229 = vadd.f32 0.0, %v228
    %v230 = vpop.f32.mrf.mxu0
    %231 = vmatprep.mubr.bf16.mxu0 0
    %232 = vmatmul.mubr.bf16.gmra.mxu0 %v144
    %v233 = vpop.f32.mrf.mxu0
    %v234 = vadd.f32 0.0, %v233
    %v235 = vpop.f32.mrf.mxu0
    %v236 = vpop.f32.mrf.mxu0
    %v237 = vadd.f32 0.0, %v236
    %v238 = vpop.f32.mrf.mxu0
    %239 = vmatprep.mubr.bf16.mxu0 0
    %240 = vmatmul.mubr.bf16.gmra.mxu0 %v147
    %v241 = vpop.f32.mrf.mxu0
    %v242 = vadd.f32 0.0, %v241
    %v243 = vpop.f32.mrf.mxu0
    %v244 = vpop.f32.mrf.mxu0
    %v245 = vadd.f32 0.0, %v244
    %v246 = vpop.f32.mrf.mxu0
    %247 = vmatprep.mubr.bf16.mxu0 0
    %248 = vmatmul.mubr.bf16.gmra.mxu0 %v150
    %v249 = vpop.f32.mrf.mxu0
    %v250 = vadd.f32 0.0, %v249
    %v251 = vpop.f32.mrf.mxu0
    %v252 = vpop.f32.mrf.mxu0
    %v253 = vadd.f32 0.0, %v252
    %v254 = vpop.f32.mrf.mxu0
    %255 = vmatprep.mubr.bf16.mxu0 0
    %256 = vmatmul.mubr.bf16.gmra.mxu0 %v153
    %v257 = vpop.f32.mrf.mxu0
    %v258 = vadd.f32 0.0, %v257
    %v259 = vpop.f32.mrf.mxu0
    %v260 = vpop.f32.mrf.mxu0
    %v261 = vadd.f32 0.0, %v260
    %v262 = vpop.f32.mrf.mxu0
    %263 = vmatprep.mubr.bf16.mxu0 0
    %264 = vmatmul.mubr.bf16.gmra.mxu0 %v156
    %v265 = vpop.f32.mrf.mxu0
    %v266 = vadd.f32 0.0, %v265
    %v267 = vpop.f32.mrf.mxu0
    %v268 = vpop.f32.mrf.mxu0
    %v269 = vadd.f32 0.0, %v268
    %v270 = vpop.f32.mrf.mxu0
    %271 = vmatprep.mubr.bf16.mxu0 0
    %272 = vmatmul.mubr.bf16.gmra.mxu0 %v159
    %v273 = vpop.f32.mrf.mxu0
    %v274 = vadd.f32 0.0, %v273
    %v275 = vpop.f32.mrf.mxu0
    %v276 = vpop.f32.mrf.mxu0
    %v277 = vadd.f32 0.0, %v276
    %v278 = vpop.f32.mrf.mxu0
    %279 = vmatprep.mubr.bf16.mxu0 0
    %280 = vmatmul.mubr.bf16.gmra.mxu0 %v162
    %v281 = vpop.f32.mrf.mxu0
    %v282 = vadd.f32 0.0, %v281
    %v283 = vpop.f32.mrf.mxu0
    %v284 = vpop.f32.mrf.mxu0
    %v285 = vadd.f32 0.0, %v284
    %v286 = vpop.f32.mrf.mxu0
    %287 = vmatprep.mubr.bf16.mxu0 0
    %288 = vmatmul.mubr.bf16.gmra.mxu0 %v165
    %v289 = vpop.f32.mrf.mxu0
    %v290 = vadd.f32 0.0, %v289
    %v291 = vpop.f32.mrf.mxu0
    %v292 = vpop.f32.mrf.mxu0
    %v293 = vadd.f32 0.0, %v292
    %v294 = vpop.f32.mrf.mxu0
    %295 = vmatprep.mubr.bf16.mxu0 0
    %296 = vmatmul.mubr.bf16.gmra.mxu0 %v168
    %v297 = vpop.f32.mrf.mxu0
    %v298 = vadd.f32 0.0, %v297
    %v299 = vpop.f32.mrf.mxu0
    %v300 = vpop.f32.mrf.mxu0
    %v301 = vadd.f32 0.0, %v300
    %v302 = vpop.f32.mrf.mxu0
    %303 = vmatprep.mubr.bf16.mxu0 0
    %304 = vmatmul.mubr.bf16.gmra.mxu0 %v171
    %v305 = vpop.f32.mrf.mxu0
    %v306 = vadd.f32 0.0, %v305
    %v307 = vpop.f32.mrf.mxu0
    %v308 = vpop.f32.mrf.mxu0
    %v309 = vadd.f32 0.0, %v308
    %v310 = vpop.f32.mrf.mxu0
    %311 = vmatprep.mubr.bf16.mxu0 0
    %312 = vmatmul.mubr.bf16.gmra.mxu0 %v174
    %v313 = vpop.f32.mrf.mxu0
    %v314 = vadd.f32 0.0, %v313
    %v315 = vpop.f32.mrf.mxu0
    %v316 = vpop.f32.mrf.mxu0
    %v317 = vpop.f32.mrf.mxu0
    %318 = vdwg.mxu0
    %v319 = vld [vmem:[#allocation4] sm:$0x1]
    %v320 = vlaneseq
    %v321 = vshrl.u32 %v320, 7
    %v322 = vsub.s32 0, %v321
    %v323 = vrot.slane %v319, %v322
    %v324 = vmul.f32 %v218, %v323
    %v325 = vmul.f32 %v221, %v323
    %v326 = vmul.f32 %v226, %v323
    %v327 = vmul.f32 %v229, %v323
    %v328 = vmul.f32 %v234, %v323
    %v329 = vmul.f32 %v237, %v323
    %v330 = vmul.f32 %v242, %v323
    %v331 = vmul.f32 %v245, %v323
    %v332 = vmul.f32 %v250, %v323
    %v333 = vmul.f32 %v253, %v323
    %v334 = vmul.f32 %v258, %v323
    %v335 = vmul.f32 %v261, %v323
    %v336 = vmul.f32 %v266, %v323
    %v337 = vmul.f32 %v269, %v323
    %v338 = vmul.f32 %v274, %v323
    %v339 = vmul.f32 %v277, %v323
    %v340 = vmul.f32 %v282, %v323
    %v341 = vmul.f32 %v285, %v323
    %v342 = vmul.f32 %v290, %v323
    %v343 = vmul.f32 %v293, %v323
    %v344 = vmul.f32 %v298, %v323
    %v345 = vmul.f32 %v301, %v323
    %v346 = vmul.f32 %v306, %v323
    %v347 = vmul.f32 %v309, %v323
    %v348 = vmul.f32 %v314, %v323
    %v349 = vld [vmem:[#allocation4 + $0x1] sm:$0x1]
    %v350 = vlaneseq
    %v351 = vshrl.u32 %v350, 7
    %v352 = vsub.s32 0, %v351
    %v353 = vrot.slane %v349, %v352
    %v354 = vadd.f32 %v324, %v353
    %v355 = vadd.f32 %v325, %v353
    %v356 = vadd.f32 %v326, %v353
    %v357 = vadd.f32 %v327, %v353
    %v358 = vadd.f32 %v328, %v353
    %v359 = vadd.f32 %v329, %v353
    %v360 = vadd.f32 %v330, %v353
    %v361 = vadd.f32 %v331, %v353
    %v362 = vadd.f32 %v332, %v353
    %v363 = vadd.f32 %v333, %v353
    %v364 = vadd.f32 %v334, %v353
    %v365 = vadd.f32 %v335, %v353
    %v366 = vadd.f32 %v336, %v353
    %v367 = vadd.f32 %v337, %v353
    %v368 = vadd.f32 %v338, %v353
    %v369 = vadd.f32 %v339, %v353
    %v370 = vadd.f32 %v340, %v353
    %v371 = vadd.f32 %v341, %v353
    %v372 = vadd.f32 %v342, %v353
    %v373 = vadd.f32 %v343, %v353
    %v374 = vadd.f32 %v344, %v353
    %v375 = vadd.f32 %v345, %v353
    %v376 = vadd.f32 %v346, %v353
    %v377 = vadd.f32 %v347, %v353
    %v378 = vadd.f32 %v348, %v353
    %v379 = vmax.f32 %v354, 0.0
    %v380 = vmax.f32 %v355, 0.0
    %v381 = vmax.f32 %v356, 0.0
    %v382 = vmax.f32 %v357, 0.0
    %v383 = vmax.f32 %v358, 0.0
    %v384 = vmax.f32 %v359, 0.0
    %v385 = vmax.f32 %v360, 0.0
    %v386 = vmax.f32 %v361, 0.0
    %v387 = vmax.f32 %v362, 0.0
    %v388 = vmax.f32 %v363, 0.0
    %v389 = vmax.f32 %v364, 0.0
    %v390 = vmax.f32 %v365, 0.0
    %v391 = vmax.f32 %v366, 0.0
    %v392 = vmax.f32 %v367, 0.0
    %v393 = vmax.f32 %v368, 0.0
    %v394 = vmax.f32 %v369, 0.0
    %v395 = vmax.f32 %v370, 0.0
    %v396 = vmax.f32 %v371, 0.0
    %v397 = vmax.f32 %v372, 0.0
    %v398 = vmax.f32 %v373, 0.0
    %v399 = vmax.f32 %v374, 0.0
    %v400 = vmax.f32 %v375, 0.0
    %v401 = vmax.f32 %v376, 0.0
    %v402 = vmax.f32 %v377, 0.0
    %v403 = vmax.f32 %v378, 0.0
    %v404 = vpack.c.bf16 %v380, %v379
    %v405 = vpack.c.bf16 %v382, %v381
    %v406 = vpack.c.bf16 %v384, %v383
    %v407 = vpack.c.bf16 %v386, %v385
    %v408 = vpack.c.bf16 %v388, %v387
    %v409 = vpack.c.bf16 %v390, %v389
    %v410 = vpack.c.bf16 %v392, %v391
    %v411 = vpack.c.bf16 %v394, %v393
    %v412 = vpack.c.bf16 %v396, %v395
    %v413 = vpack.c.bf16 %v398, %v397
    %v414 = vpack.c.bf16 %v400, %v399
    %v415 = vpack.c.bf16 %v402, %v401
    %v416 = vpack.c.bf16 %v403, %v403
    %v430 = vunpack.c.l.b16 %v404
    %v431 = vunpack.c.h.b16 %v404
    %v432 = vunpack.c.l.b16 %v405
    %v433 = vunpack.c.h.b16 %v405
    %v434 = vunpack.c.l.b16 %v406
    %v435 = vunpack.c.h.b16 %v406
    %v436 = vunpack.c.l.b16 %v407
    %v437 = vunpack.c.h.b16 %v407
    %v438 = vunpack.c.l.b16 %v408
    %v439 = vunpack.c.h.b16 %v408
    %v440 = vunpack.c.l.b16 %v409
    %v441 = vunpack.c.h.b16 %v409
    %v442 = vunpack.c.l.b16 %v410
    %v443 = vunpack.c.h.b16 %v410
    %v444 = vunpack.c.l.b16 %v411
    %v445 = vunpack.c.h.b16 %v411
    %v446 = vunpack.c.l.b16 %v412
    %v447 = vunpack.c.h.b16 %v412
    %v448 = vunpack.c.l.b16 %v413
    %v449 = vunpack.c.h.b16 %v413
    %v450 = vunpack.c.l.b16 %v414
    %v451 = vunpack.c.h.b16 %v414
    %v452 = vunpack.c.l.b16 %v415
    %v453 = vunpack.c.h.b16 %v415
    %v454 = vunpack.c.l.b16 %v416
    %v455 = vpack.c.b16 %v430, %v430
    %v456 = vpack.c.b16 %v431, %v431
    %v457 = vpack.c.b16 %v432, %v432
    %v458 = vpack.c.b16 %v433, %v433
    %v459 = vpack.c.b16 %v434, %v434
    %v460 = vpack.c.b16 %v435, %v435
    %v461 = vpack.c.b16 %v436, %v436
    %v462 = vpack.c.b16 %v437, %v437
    %v463 = vpack.c.b16 %v438, %v438
    %v464 = vpack.c.b16 %v439, %v439
    %v465 = vpack.c.b16 %v440, %v440
    %v466 = vpack.c.b16 %v441, %v441
    %v467 = vpack.c.b16 %v442, %v442
    %v468 = vpack.c.b16 %v443, %v443
    %v469 = vpack.c.b16 %v444, %v444
    %v470 = vpack.c.b16 %v445, %v445
    %v471 = vpack.c.b16 %v446, %v446
    %v472 = vpack.c.b16 %v447, %v447
    %v473 = vpack.c.b16 %v448, %v448
    %v474 = vpack.c.b16 %v449, %v449
    %v475 = vpack.c.b16 %v450, %v450
    %v476 = vpack.c.b16 %v451, %v451
    %v477 = vpack.c.b16 %v452, %v452
    %v478 = vpack.c.b16 %v453, %v453
    %v479 = vpack.c.b16 %v454, %v454
    %vm505 = vcmask 519168
    %506 = vst.msk [vmem:[%s3] sm:$0xf] %vm505, %v455
    %507 = vst.msk [vmem:[%s3 + $0x4] sm:$0xf] %vm505, %v456
    %508 = vst.msk [vmem:[%s3 + $0x8] sm:$0xf] %vm505, %v457
    %509 = vst.msk [vmem:[%s3 + $0xc] sm:$0xf] %vm505, %v458
    %510 = vst.msk [vmem:[%s3 + $0x10] sm:$0xf] %vm505, %v459
    %511 = vst.msk [vmem:[%s3 + $0x14] sm:$0xf] %vm505, %v460
    %512 = vst.msk [vmem:[%s3 + $0x18] sm:$0xf] %vm505, %v461
    %513 = vst.msk [vmem:[%s3 + $0x1c] sm:$0xf] %vm505, %v462
    %514 = vst.msk [vmem:[%s3 + $0x20] sm:$0xf] %vm505, %v463
    %515 = vst.msk [vmem:[%s3 + $0x24] sm:$0xf] %vm505, %v464
    %516 = vst.msk [vmem:[%s3 + $0x28] sm:$0xf] %vm505, %v465
    %517 = vst.msk [vmem:[%s3 + $0x2c] sm:$0xf] %vm505, %v466
    %518 = vst.msk [vmem:[%s3 + $0x30] sm:$0xf] %vm505, %v467
    %519 = vst.msk [vmem:[%s3 + $0x34] sm:$0xf] %vm505, %v468
    %520 = vst.msk [vmem:[%s3 + $0x38] sm:$0xf] %vm505, %v469
    %521 = vst.msk [vmem:[%s3 + $0x3c] sm:$0xf] %vm505, %v470
    %522 = vst.msk [vmem:[%s3 + $0x40] sm:$0xf] %vm505, %v471
    %523 = vst.msk [vmem:[%s3 + $0x44] sm:$0xf] %vm505, %v472
    %524 = vst.msk [vmem:[%s3 + $0x48] sm:$0xf] %vm505, %v473
    %525 = vst.msk [vmem:[%s3 + $0x4c] sm:$0xf] %vm505, %v474
    %526 = vst.msk [vmem:[%s3 + $0x50] sm:$0xf] %vm505, %v475
    %527 = vst.msk [vmem:[%s3 + $0x54] sm:$0xf] %vm505, %v476
    %528 = vst.msk [vmem:[%s3 + $0x58] sm:$0xf] %vm505, %v477
    %529 = vst.msk [vmem:[%s3 + $0x5c] sm:$0xf] %vm505, %v478
    %530 = vst.msk [vmem:[%s3 + $0x60] sm:$0xf] %vm505, %v479
    // Predicated region
    $region22: #{autoencoder_forward.8} parent=1 // pred_check
      _
    $region23: #{autoencoder_forward.8} parent=1 // pred_check_branch
      %532 = sbr.rel (0) target = $region25
    $region24: #{autoencoder_forward.8} parent=1 // pred_region
      _
    $region25: #{autoencoder_forward.8} parent=1 // pred_fallthru
      _
    // Predicated region
    $region26: #{autoencoder_forward.8} parent=1 // pred_check
      _
    $region27: #{autoencoder_forward.8} parent=1 // pred_check_branch
      %534 = sbr.rel (0) target = $region29
    $region28: #{autoencoder_forward.8} parent=1 // pred_region
      _
    $region29: #{autoencoder_forward.8} parent=1 // pred_fallthru
      _
    %535 = vsyncpa [#allocation3], 1
    %536 = vsyncpa [#allocation5], 1

// kernel: autoencoder_forward.9
$region0: #{autoencoder_forward.9}
  #allocation0 [shape = 'u32[]', space=smem, size = 0x4, offset = 0x4, fixed_abs, tag = 'smem constant byte address 0x4 - core index']
  #allocation1 [shape = 'u32[144,128]{1,0:T(1,128)}', space=vmem, size = 0x12000, scoped, tag = 'internal scratch']
  %s0 = inlined_call_operand.vmem [shape: bf16[18,576], index: 0, kind: input, shape index: {}]
  %s1 = inlined_call_operand.vmem [shape: bf16[576,128], index: 1, kind: input, shape index: {}]
  %s2 = inlined_call_operand.vmem [shape: f32[3,128], index: 2, kind: input, shape index: {}]
  %s3 = inlined_call_operand.vmem [shape: bf16[18,128], index: 3, kind: output, shape index: {}]
  %s4 = sld [smem:[#allocation0]]
  $region22: #{autoencoder_forward.9} parent=0
    _
  %s6 = ssub.s32 1, %s4
  %s7 = scalar_select 0, %s6, %s4
  // Predicated region
  $region2: #{autoencoder_forward.9} parent=0 // pred_check
    _
  $region3: #{autoencoder_forward.9} parent=0 // pred_check_branch
    %9 = sbr.rel (0) target = $region5
  $region4: #{autoencoder_forward.9} parent=0 // pred_region
    _
  $region5: #{autoencoder_forward.9} parent=0 // pred_fallthru
    _
  // Predicated region
  $region6: #{autoencoder_forward.9} parent=0 // pred_check
    _
  $region7: #{autoencoder_forward.9} parent=0 // pred_check_branch
    %11 = sbr.rel (0) target = $region9
  $region8: #{autoencoder_forward.9} parent=0 // pred_region
    _
  $region9: #{autoencoder_forward.9} parent=0 // pred_fallthru
    _
  // Predicated region
  $region10: #{autoencoder_forward.9} parent=0 // pred_check
    _
  $region11: #{autoencoder_forward.9} parent=0 // pred_check_branch
    %13 = sbr.rel (0) target = $region13
  $region12: #{autoencoder_forward.9} parent=0 // pred_region
    _
  $region13: #{autoencoder_forward.9} parent=0 // pred_fallthru
    _
  %v15 = vld [vmem:[%s0] sm:$0xff]
  %v16 = vld [vmem:[%s0 + $0x8] sm:$0xff]
  %v17 = vld [vmem:[%s0 + $0x10] sm:$0xf]
  %v18 = vld [vmem:[%s0 + $0x14] sm:$0xff]
  %v19 = vld [vmem:[%s0 + $0x1c] sm:$0xff]
  %v20 = vld [vmem:[%s0 + $0x24] sm:$0xf]
  %v21 = vld [vmem:[%s0 + $0x28] sm:$0x11]
  %v22 = vld [vmem:[%s0 + $0x30] sm:$0x11]
  %v23 = vld [vmem:[%s0 + $0x38] sm:$0x1]
  %v24 = vld [vmem:[%s1] sm:$0xf]
  %v25 = vld [vmem:[%s1 + $0x4] sm:$0xf]
  %v26 = vld [vmem:[%s1 + $0x8] sm:$0xf]
  %v27 = vld [vmem:[%s1 + $0xc] sm:$0xf]
  %v28 = vld [vmem:[%s1 + $0x10] sm:$0xf]
  %v29 = vld [vmem:[%s1 + $0x14] sm:$0xf]
  %v30 = vld [vmem:[%s1 + $0x18] sm:$0xf]
  %v31 = vld [vmem:[%s1 + $0x1c] sm:$0xf]
  %v32 = vld [vmem:[%s1 + $0x20] sm:$0xf]
  %v33 = vld [vmem:[%s1 + $0x24] sm:$0xf]
  %v34 = vld [vmem:[%s1 + $0x28] sm:$0xf]
  %v35 = vld [vmem:[%s1 + $0x2c] sm:$0xf]
  %v36 = vld [vmem:[%s1 + $0x30] sm:$0xf]
  %v37 = vld [vmem:[%s1 + $0x34] sm:$0xf]
  %v38 = vld [vmem:[%s1 + $0x38] sm:$0xf]
  %v39 = vld [vmem:[%s1 + $0x3c] sm:$0xf]
  %v40 = vld [vmem:[%s1 + $0x40] sm:$0xf]
  %v41 = vld [vmem:[%s1 + $0x44] sm:$0xf]
  %v42 = vld [vmem:[%s1 + $0x48] sm:$0xf]
  %v43 = vld [vmem:[%s1 + $0x4c] sm:$0xf]
  %v44 = vld [vmem:[%s1 + $0x50] sm:$0xf]
  %v45 = vld [vmem:[%s1 + $0x54] sm:$0xf]
  %v46 = vld [vmem:[%s1 + $0x58] sm:$0xf]
  %v47 = vld [vmem:[%s1 + $0x5c] sm:$0xf]
  %v48 = vld [vmem:[%s1 + $0x60] sm:$0xf]
  %v49 = vld [vmem:[%s1 + $0x64] sm:$0xf]
  %v50 = vld [vmem:[%s1 + $0x68] sm:$0xf]
  %v51 = vld [vmem:[%s1 + $0x6c] sm:$0xf]
  %v52 = vld [vmem:[%s1 + $0x70] sm:$0xf]
  %v53 = vld [vmem:[%s1 + $0x74] sm:$0xf]
  %v54 = vld [vmem:[%s1 + $0x78] sm:$0xf]
  %v55 = vld [vmem:[%s1 + $0x7c] sm:$0xf]
  %v56 = vld [vmem:[%s1 + $0x80] sm:$0xf]
  %v57 = vld [vmem:[%s1 + $0x84] sm:$0xf]
  %v58 = vld [vmem:[%s1 + $0x88] sm:$0xf]
  %v59 = vld [vmem:[%s1 + $0x8c] sm:$0xf]
  %v60 = vld [vmem:[%s1 + $0x90] sm:$0xf]
  %v61 = vld [vmem:[%s1 + $0x94] sm:$0xf]
  %v62 = vld [vmem:[%s1 + $0x98] sm:$0xf]
  %v63 = vld [vmem:[%s1 + $0x9c] sm:$0xf]
  %v64 = vld [vmem:[%s1 + $0xa0] sm:$0xf]
  %v65 = vld [vmem:[%s1 + $0xa4] sm:$0xf]
  %v66 = vld [vmem:[%s1 + $0xa8] sm:$0xf]
  %v67 = vld [vmem:[%s1 + $0xac] sm:$0xf]
  %v68 = vld [vmem:[%s1 + $0xb0] sm:$0xf]
  %v69 = vld [vmem:[%s1 + $0xb4] sm:$0xf]
  %v70 = vld [vmem:[%s1 + $0xb8] sm:$0xf]
  %v71 = vld [vmem:[%s1 + $0xbc] sm:$0xf]
  %v72 = vld [vmem:[%s1 + $0xc0] sm:$0xf]
  %v73 = vld [vmem:[%s1 + $0xc4] sm:$0xf]
  %v74 = vld [vmem:[%s1 + $0xc8] sm:$0xf]
  %v75 = vld [vmem:[%s1 + $0xcc] sm:$0xf]
  %v76 = vld [vmem:[%s1 + $0xd0] sm:$0xf]
  %v77 = vld [vmem:[%s1 + $0xd4] sm:$0xf]
  %v78 = vld [vmem:[%s1 + $0xd8] sm:$0xf]
  %v79 = vld [vmem:[%s1 + $0xdc] sm:$0xf]
  %v80 = vld [vmem:[%s1 + $0xe0] sm:$0xf]
  %v81 = vld [vmem:[%s1 + $0xe4] sm:$0xf]
  %v82 = vld [vmem:[%s1 + $0xe8] sm:$0xf]
  %v83 = vld [vmem:[%s1 + $0xec] sm:$0xf]
  %v84 = vld [vmem:[%s1 + $0xf0] sm:$0xf]
  %v85 = vld [vmem:[%s1 + $0xf4] sm:$0xf]
  %v86 = vld [vmem:[%s1 + $0xf8] sm:$0xf]
  %v87 = vld [vmem:[%s1 + $0xfc] sm:$0xf]
  %v88 = vld [vmem:[%s1 + $0x100] sm:$0xf]
  %v89 = vld [vmem:[%s1 + $0x104] sm:$0xf]
  %v90 = vld [vmem:[%s1 + $0x108] sm:$0xf]
  %v91 = vld [vmem:[%s1 + $0x10c] sm:$0xf]
  %v92 = vld [vmem:[%s1 + $0x110] sm:$0xf]
  %v93 = vld [vmem:[%s1 + $0x114] sm:$0xf]
  %v94 = vld [vmem:[%s1 + $0x118] sm:$0xf]
  %v95 = vld [vmem:[%s1 + $0x11c] sm:$0xf]
  %v96 = vld [vmem:[%s2 + $0x1] sm:$0x1]
  %v97 = vlaneseq
  %v98 = vshrl.u32 %v97, 7
  %v99 = vsub.s32 0, %v98
  %v100 = vrot.slane %v96, %v99
  %v110 = vunpack.c.l.b16 %v15
  %v111 = vunpack.c.h.b16 %v15
  %v112 = vunpack.c.l.b16 %v16
  %v113 = vunpack.c.h.b16 %v16
  %v114 = vunpack.c.l.b16 %v17
  %v115 = vunpack.c.l.b16 %v18
  %v116 = vunpack.c.h.b16 %v18
  %v117 = vunpack.c.l.b16 %v19
  %v118 = vunpack.c.h.b16 %v19
  %v119 = vunpack.c.l.b16 %v20
  %v120 = vunpack.c.l.b16 %v21
  %v121 = vunpack.c.h.b16 %v21
  %v122 = vunpack.c.l.b16 %v22
  %v123 = vunpack.c.h.b16 %v22
  %v124 = vunpack.c.l.b16 %v23
  %v125 = vpack.c.b16 %v115, %v110
  %v126 = vpack.c.b16 %v116, %v111
  %v127 = vpack.c.b16 %v117, %v112
  %v128 = vpack.c.b16 %v118, %v113
  %v129 = vpack.c.b16 %v119, %v114
  %v130 = vpack.c.b16 %v120, %v120
  %v131 = vpack.c.b16 %v121, %v121
  %v132 = vpack.c.b16 %v122, %v122
  %v133 = vpack.c.b16 %v123, %v123
  %v134 = vpack.c.b16 %v124, %v124
  %v215 = vunpack.c.l.b16 %v24
  %v216 = vunpack.c.l.b16 %v25
  %v217 = vunpack.c.l.b16 %v26
  %v218 = vunpack.c.l.b16 %v27
  %v219 = vunpack.c.l.b16 %v28
  %v220 = vunpack.c.l.b16 %v29
  %v221 = vunpack.c.l.b16 %v30
  %v222 = vunpack.c.l.b16 %v31
  %v223 = vunpack.c.l.b16 %v32
  %v224 = vunpack.c.l.b16 %v33
  %v225 = vunpack.c.l.b16 %v34
  %v226 = vunpack.c.l.b16 %v35
  %v227 = vunpack.c.l.b16 %v36
  %v228 = vunpack.c.l.b16 %v37
  %v229 = vunpack.c.l.b16 %v38
  %v230 = vunpack.c.l.b16 %v39
  %v231 = vunpack.c.l.b16 %v40
  %v232 = vunpack.c.l.b16 %v41
  %v233 = vunpack.c.l.b16 %v42
  %v234 = vunpack.c.l.b16 %v43
  %v235 = vunpack.c.l.b16 %v44
  %v236 = vunpack.c.l.b16 %v45
  %v237 = vunpack.c.l.b16 %v46
  %v238 = vunpack.c.l.b16 %v47
  %v239 = vunpack.c.l.b16 %v48
  %v240 = vunpack.c.l.b16 %v49
  %v241 = vunpack.c.l.b16 %v50
  %v242 = vunpack.c.l.b16 %v51
  %v243 = vunpack.c.l.b16 %v52
  %v244 = vunpack.c.l.b16 %v53
  %v245 = vunpack.c.l.b16 %v54
  %v246 = vunpack.c.l.b16 %v55
  %v247 = vunpack.c.l.b16 %v56
  %v248 = vunpack.c.l.b16 %v57
  %v249 = vunpack.c.l.b16 %v58
  %v250 = vunpack.c.l.b16 %v59
  %v251 = vunpack.c.l.b16 %v60
  %v252 = vunpack.c.l.b16 %v61
  %v253 = vunpack.c.l.b16 %v62
  %v254 = vunpack.c.l.b16 %v63
  %v255 = vunpack.c.l.b16 %v64
  %v256 = vunpack.c.l.b16 %v65
  %v257 = vunpack.c.l.b16 %v66
  %v258 = vunpack.c.l.b16 %v67
  %v259 = vunpack.c.l.b16 %v68
  %v260 = vunpack.c.l.b16 %v69
  %v261 = vunpack.c.l.b16 %v70
  %v262 = vunpack.c.l.b16 %v71
  %v263 = vunpack.c.l.b16 %v72
  %v264 = vunpack.c.l.b16 %v73
  %v265 = vunpack.c.l.b16 %v74
  %v266 = vunpack.c.l.b16 %v75
  %v267 = vunpack.c.l.b16 %v76
  %v268 = vunpack.c.l.b16 %v77
  %v269 = vunpack.c.l.b16 %v78
  %v270 = vunpack.c.l.b16 %v79
  %v271 = vunpack.c.l.b16 %v80
  %v272 = vunpack.c.l.b16 %v81
  %v273 = vunpack.c.l.b16 %v82
  %v274 = vunpack.c.l.b16 %v83
  %v275 = vunpack.c.l.b16 %v84
  %v276 = vunpack.c.l.b16 %v85
  %v277 = vunpack.c.l.b16 %v86
  %v278 = vunpack.c.l.b16 %v87
  %v279 = vunpack.c.l.b16 %v88
  %v280 = vunpack.c.l.b16 %v89
  %v281 = vunpack.c.l.b16 %v90
  %v282 = vunpack.c.l.b16 %v91
  %v283 = vunpack.c.l.b16 %v92
  %v284 = vunpack.c.l.b16 %v93
  %v285 = vunpack.c.l.b16 %v94
  %v286 = vunpack.c.l.b16 %v95
  %v287 = vpack.c.b16 %v216, %v215
  %v288 = vpack.c.b16 %v218, %v217
  %v289 = vpack.c.b16 %v220, %v219
  %v290 = vpack.c.b16 %v222, %v221
  %v291 = vpack.c.b16 %v224, %v223
  %v292 = vpack.c.b16 %v226, %v225
  %v293 = vpack.c.b16 %v228, %v227
  %v294 = vpack.c.b16 %v230, %v229
  %v295 = vpack.c.b16 %v232, %v231
  %v296 = vpack.c.b16 %v234, %v233
  %v297 = vpack.c.b16 %v236, %v235
  %v298 = vpack.c.b16 %v238, %v237
  %v299 = vpack.c.b16 %v240, %v239
  %v300 = vpack.c.b16 %v242, %v241
  %v301 = vpack.c.b16 %v244, %v243
  %v302 = vpack.c.b16 %v246, %v245
  %v303 = vpack.c.b16 %v248, %v247
  %v304 = vpack.c.b16 %v250, %v249
  %v305 = vpack.c.b16 %v252, %v251
  %v306 = vpack.c.b16 %v254, %v253
  %v307 = vpack.c.b16 %v256, %v255
  %v308 = vpack.c.b16 %v258, %v257
  %v309 = vpack.c.b16 %v260, %v259
  %v310 = vpack.c.b16 %v262, %v261
  %v311 = vpack.c.b16 %v264, %v263
  %v312 = vpack.c.b16 %v266, %v265
  %v313 = vpack.c.b16 %v268, %v267
  %v314 = vpack.c.b16 %v270, %v269
  %v315 = vpack.c.b16 %v272, %v271
  %v316 = vpack.c.b16 %v274, %v273
  %v317 = vpack.c.b16 %v276, %v275
  %v318 = vpack.c.b16 %v278, %v277
  %v319 = vpack.c.b16 %v280, %v279
  %v320 = vpack.c.b16 %v282, %v281
  %v321 = vpack.c.b16 %v284, %v283
  %v322 = vpack.c.b16 %v286, %v285
  %vm359 = vcmask 523264
  %v361 = vsel %vm359, %v129, 0
  %v364 = vsel %vm359, %v134, 0
  %366 = vmatprep.subr.bf16.mxu0 0
  %367 = vmatpush1.bf16.msra.mxu0 %v294
  %368 = vmatprep.subr.bf16.mxu0 0
  %369 = vmatpush1.bf16.msra.mxu0 %v293
  %370 = vmatprep.subr.bf16.mxu0 0
  %371 = vmatpush1.bf16.msra.mxu0 %v292
  %372 = vmatprep.subr.bf16.mxu0 0
  %373 = vmatpush1.bf16.msra.mxu0 %v291
  %374 = vmatprep.subr.bf16.mxu0 0
  %375 = vmatpush1.bf16.msra.mxu0 %v290
  %376 = vmatprep.subr.bf16.mxu0 0
  %377 = vmatpush1.bf16.msra.mxu0 %v289
  %378 = vmatprep.subr.bf16.mxu0 0
  %379 = vmatpush1.bf16.msra.mxu0 %v288
  %380 = vmatprep.subr.bf16.mxu0 0
  %381 = vmatpush1.bf16.msra.mxu0 %v287
  %382 = vmatprep.subr.bf16.mxu0 0
  %383 = vmatpush2.bf16.msra.mxu0 %v302
  %384 = vmatprep.subr.bf16.mxu0 0
  %385 = vmatpush2.bf16.msra.mxu0 %v301
  %386 = vmatprep.subr.bf16.mxu0 0
  %387 = vmatpush2.bf16.msra.mxu0 %v300
  %388 = vmatprep.subr.bf16.mxu0 0
  %389 = vmatpush2.bf16.msra.mxu0 %v299
  %390 = vmatprep.subr.bf16.mxu0 0
  %391 = vmatpush2.bf16.msra.mxu0 %v298
  %392 = vmatprep.subr.bf16.mxu0 0
  %393 = vmatpush2.bf16.msra.mxu0 %v297
  %394 = vmatprep.subr.bf16.mxu0 0
  %395 = vmatpush2.bf16.msra.mxu0 %v296
  %396 = vmatprep.subr.bf16.mxu0 0
  %397 = vmatpush2.bf16.msra.mxu0 %v295
  %398 = vmatprep.mubr.bf16.mxu0 %v126
  %399 = vmatmul.mubr.bf16.gmra.mxu0 %v125
  %v400 = vpop.f32.mrf.mxu0
  %v401 = vadd.f32 %v100, %v400
  %v402 = vpop.f32.mrf.mxu0
  %v403 = vpop.f32.mrf.mxu0
  %v404 = vadd.f32 %v100, %v403
  %v405 = vpop.f32.mrf.mxu0
  %406 = vmatprep.mubr.bf16.mxu0 %v131
  %407 = vmatmul.mubr.bf16.gmra.mxu0 %v130
  %v408 = vpop.f32.mrf.mxu0
  %v409 = vadd.f32 %v100, %v408
  %v410 = vpop.f32.mrf.mxu0
  %v411 = vpop.f32.mrf.mxu0
  %v412 = vpop.f32.mrf.mxu0
  %413 = vdwg.mxu0
  %414 = vmatprep.subr.bf16.mxu0 0
  %415 = vmatpush1.bf16.msra.mxu0 %v310
  %416 = vmatprep.subr.bf16.mxu0 0
  %417 = vmatpush1.bf16.msra.mxu0 %v309
  %418 = vmatprep.subr.bf16.mxu0 0
  %419 = vmatpush1.bf16.msra.mxu0 %v308
  %420 = vmatprep.subr.bf16.mxu0 0
  %421 = vmatpush1.bf16.msra.mxu0 %v307
  %422 = vmatprep.subr.bf16.mxu0 0
  %423 = vmatpush1.bf16.msra.mxu0 %v306
  %424 = vmatprep.subr.bf16.mxu0 0
  %425 = vmatpush1.bf16.msra.mxu0 %v305
  %426 = vmatprep.subr.bf16.mxu0 0
  %427 = vmatpush1.bf16.msra.mxu0 %v304
  %428 = vmatprep.subr.bf16.mxu0 0
  %429 = vmatpush1.bf16.msra.mxu0 %v303
  %430 = vmatprep.subr.bf16.mxu0 0
  %431 = vmatpush2.bf16.msra.mxu0 %v318
  %432 = vmatprep.subr.bf16.mxu0 0
  %433 = vmatpush2.bf16.msra.mxu0 %v317
  %434 = vmatprep.subr.bf16.mxu0 0
  %435 = vmatpush2.bf16.msra.mxu0 %v316
  %436 = vmatprep.subr.bf16.mxu0 0
  %437 = vmatpush2.bf16.msra.mxu0 %v315
  %438 = vmatprep.subr.bf16.mxu0 0
  %439 = vmatpush2.bf16.msra.mxu0 %v314
  %440 = vmatprep.subr.bf16.mxu0 0
  %441 = vmatpush2.bf16.msra.mxu0 %v313
  %442 = vmatprep.subr.bf16.mxu0 0
  %443 = vmatpush2.bf16.msra.mxu0 %v312
  %444 = vmatprep.subr.bf16.mxu0 0
  %445 = vmatpush2.bf16.msra.mxu0 %v311
  %446 = vmatprep.mubr.bf16.mxu0 %v128
  %447 = vmatmul.mubr.bf16.gmra.mxu0 %v127
  %v448 = vpop.f32.mrf.mxu0
  %v449 = vadd.f32 %v401, %v448
  %v450 = vpop.f32.mrf.mxu0
  %v451 = vpop.f32.mrf.mxu0
  %v452 = vadd.f32 %v404, %v451
  %v453 = vpop.f32.mrf.mxu0
  %454 = vmatprep.mubr.bf16.mxu0 %v133
  %455 = vmatmul.mubr.bf16.gmra.mxu0 %v132
  %v456 = vpop.f32.mrf.mxu0
  %v457 = vadd.f32 %v409, %v456
  %v458 = vpop.f32.mrf.mxu0
  %v459 = vpop.f32.mrf.mxu0
  %v460 = vpop.f32.mrf.mxu0
  %461 = vdwg.mxu0
  %462 = vmatprep.subr.bf16.mxu0 0
  %463 = vmatpush1.bf16.msra.mxu0 0
  %464 = vmatprep.subr.bf16.mxu0 0
  %465 = vmatpush1.bf16.msra.mxu0 0
  %466 = vmatprep.subr.bf16.mxu0 0
  %467 = vmatpush1.bf16.msra.mxu0 0
  %468 = vmatprep.subr.bf16.mxu0 0
  %469 = vmatpush1.bf16.msra.mxu0 0
  %470 = vmatprep.subr.bf16.mxu0 0
  %471 = vmatpush1.bf16.msra.mxu0 %v322
  %472 = vmatprep.subr.bf16.mxu0 0
  %473 = vmatpush1.bf16.msra.mxu0 %v321
  %474 = vmatprep.subr.bf16.mxu0 0
  %475 = vmatpush1.bf16.msra.mxu0 %v320
  %476 = vmatprep.subr.bf16.mxu0 0
  %477 = vmatpush1.bf16.msra.mxu0 %v319
  %478 = vmatprep.subr.bf16.mxu0 0
  %479 = vmatpush2.bf16.msra.mxu0 0
  %480 = vmatprep.subr.bf16.mxu0 0
  %481 = vmatpush2.bf16.msra.mxu0 0
  %482 = vmatprep.subr.bf16.mxu0 0
  %483 = vmatpush2.bf16.msra.mxu0 0
  %484 = vmatprep.subr.bf16.mxu0 0
  %485 = vmatpush2.bf16.msra.mxu0 0
  %486 = vmatprep.subr.bf16.mxu0 0
  %487 = vmatpush2.bf16.msra.mxu0 0
  %488 = vmatprep.subr.bf16.mxu0 0
  %489 = vmatpush2.bf16.msra.mxu0 0
  %490 = vmatprep.subr.bf16.mxu0 0
  %491 = vmatpush2.bf16.msra.mxu0 0
  %492 = vmatprep.subr.bf16.mxu0 0
  %493 = vmatpush2.bf16.msra.mxu0 0
  %494 = vmatprep.mubr.bf16.mxu0 0
  %495 = vmatmul.mubr.bf16.gmra.mxu0 %v361
  %v496 = vpop.f32.mrf.mxu0
  %v497 = vadd.f32 %v449, %v496
  %v498 = vpop.f32.mrf.mxu0
  %v499 = vpop.f32.mrf.mxu0
  %v500 = vadd.f32 %v452, %v499
  %v501 = vpop.f32.mrf.mxu0
  %502 = vmatprep.mubr.bf16.mxu0 0
  %503 = vmatmul.mubr.bf16.gmra.mxu0 %v364
  %v504 = vpop.f32.mrf.mxu0
  %v505 = vadd.f32 %v457, %v504
  %v506 = vpop.f32.mrf.mxu0
  %v507 = vpop.f32.mrf.mxu0
  %v508 = vpop.f32.mrf.mxu0
  %509 = vdwg.mxu0
  %v510 = vmax.f32 %v497, 0.0
  %v511 = vmax.f32 %v500, 0.0
  %v512 = vmax.f32 %v505, 0.0
  %v513 = vld [vmem:[%s2] sm:$0x1]
  %v514 = vlaneseq
  %v515 = vshrl.u32 %v514, 7
  %v516 = vsub.s32 0, %v515
  %v517 = vrot.slane %v513, %v516
  %v518 = vmul.f32 %v510, %v517
  %v519 = vmul.f32 %v511, %v517
  %v520 = vmul.f32 %v512, %v517
  %v521 = vld [vmem:[%s2 + $0x2] sm:$0x1]
  %v522 = vlaneseq
  %v523 = vshrl.u32 %v522, 7
  %v524 = vsub.s32 0, %v523
  %v525 = vrot.slane %v521, %v524
  %v526 = vadd.f32 %v518, %v525
  %v527 = vadd.f32 %v519, %v525
  %v528 = vadd.f32 %v520, %v525
  %v529 = vpack.c.bf16 %v527, %v526
  %v530 = vpack.c.bf16 %v528, %v528
  %v533 = vunpack.c.l.b16 %v529
  %v534 = vunpack.c.h.b16 %v529
  %v535 = vunpack.c.l.b16 %v530
  %v536 = vpack.c.b16 %v533, %v533
  %v537 = vpack.c.b16 %v534, %v534
  %v538 = vpack.c.b16 %v535, %v535
  %542 = vst [vmem:[%s3] sm:$0xf] %v536
  %543 = vst [vmem:[%s3 + $0x4] sm:$0xf] %v537
  %544 = vst [vmem:[%s3 + $0x8] sm:$0x1] %v538
  // Predicated region
  $region14: #{autoencoder_forward.9} parent=0 // pred_check
    _
  $region15: #{autoencoder_forward.9} parent=0 // pred_check_branch
    %546 = sbr.rel (0) target = $region17
  $region16: #{autoencoder_forward.9} parent=0 // pred_region
    _
  $region17: #{autoencoder_forward.9} parent=0 // pred_fallthru
    _
  // Predicated region
  $region18: #{autoencoder_forward.9} parent=0 // pred_check
    _
  $region19: #{autoencoder_forward.9} parent=0 // pred_check_branch
    %548 = sbr.rel (0) target = $region21
  $region20: #{autoencoder_forward.9} parent=0 // pred_region
    _
  $region21: #{autoencoder_forward.9} parent=0 // pred_fallthru
    _

// kernel: autoencoder_forward.10
$region0: #{autoencoder_forward.10}
  #allocation0 [shape = 'u32[]', space=smem, size = 0x4, offset = 0x4, fixed_abs, tag = 'smem constant byte address 0x4 - core index']
  #allocation1 [shape = 'u32[144,128]{1,0:T(1,128)}', space=vmem, size = 0x12000, scoped, tag = 'internal scratch']
  %s0 = inlined_call_operand.vmem [shape: bf16[8,1152], index: 0, kind: input, shape index: {}]
  %s1 = inlined_call_operand.vmem [shape: bf16[1152,256], index: 1, kind: input, shape index: {}]
  %s2 = inlined_call_operand.vmem [shape: f32[3,256], index: 2, kind: input, shape index: {}]
  %s3 = inlined_call_operand.vmem [shape: bf16[8,256], index: 3, kind: output, shape index: {}]
  %s4 = sld [smem:[#allocation0]]
  $region22: #{autoencoder_forward.10} parent=0
    _
  %s6 = ssub.s32 1, %s4
  %s7 = scalar_select 0, %s6, %s4
  // Predicated region
  $region2: #{autoencoder_forward.10} parent=0 // pred_check
    _
  $region3: #{autoencoder_forward.10} parent=0 // pred_check_branch
    %9 = sbr.rel (0) target = $region5
  $region4: #{autoencoder_forward.10} parent=0 // pred_region
    _
  $region5: #{autoencoder_forward.10} parent=0 // pred_fallthru
    _
  // Predicated region
  $region6: #{autoencoder_forward.10} parent=0 // pred_check
    _
  $region7: #{autoencoder_forward.10} parent=0 // pred_check_branch
    %11 = sbr.rel (0) target = $region9
  $region8: #{autoencoder_forward.10} parent=0 // pred_region
    _
  $region9: #{autoencoder_forward.10} parent=0 // pred_fallthru
    _
  // Predicated region
  $region10: #{autoencoder_forward.10} parent=0 // pred_check
    _
  $region11: #{autoencoder_forward.10} parent=0 // pred_check_branch
    %13 = sbr.rel (0) target = $region13
  $region12: #{autoencoder_forward.10} parent=0 // pred_region
    _
  $region13: #{autoencoder_forward.10} parent=0 // pred_fallthru
    _
  %v15 = vld [vmem:[%s0] sm:$0xff]
  %v16 = vld [vmem:[%s0 + $0x8] sm:$0xff]
  %v17 = vld [vmem:[%s0 + $0x10] sm:$0xff]
  %v18 = vld [vmem:[%s0 + $0x18] sm:$0xff]
  %v19 = vld [vmem:[%s0 + $0x20] sm:$0xf]
  %v20 = vld [vmem:[%s1] sm:$0xff]
  %v21 = vld [vmem:[%s1 + $0x8] sm:$0xff]
  %v22 = vld [vmem:[%s1 + $0x10] sm:$0xff]
  %v23 = vld [vmem:[%s1 + $0x18] sm:$0xff]
  %v24 = vld [vmem:[%s1 + $0x20] sm:$0xff]
  %v25 = vld [vmem:[%s1 + $0x28] sm:$0xff]
  %v26 = vld [vmem:[%s1 + $0x30] sm:$0xff]
  %v27 = vld [vmem:[%s1 + $0x38] sm:$0xff]
  %v28 = vld [vmem:[%s1 + $0x40] sm:$0xff]
  %v29 = vld [vmem:[%s1 + $0x48] sm:$0xff]
  %v30 = vld [vmem:[%s1 + $0x50] sm:$0xff]
  %v31 = vld [vmem:[%s1 + $0x58] sm:$0xff]
  %v32 = vld [vmem:[%s1 + $0x60] sm:$0xff]
  %v33 = vld [vmem:[%s1 + $0x68] sm:$0xff]
  %v34 = vld [vmem:[%s1 + $0x70] sm:$0xff]
  %v35 = vld [vmem:[%s1 + $0x78] sm:$0xff]
  %v36 = vld [vmem:[%s1 + $0x80] sm:$0xff]
  %v37 = vld [vmem:[%s1 + $0x88] sm:$0xff]
  %v38 = vld [vmem:[%s1 + $0x90] sm:$0xff]
  %v39 = vld [vmem:[%s1 + $0x98] sm:$0xff]
  %v40 = vld [vmem:[%s1 + $0xa0] sm:$0xff]
  %v41 = vld [vmem:[%s1 + $0xa8] sm:$0xff]
  %v42 = vld [vmem:[%s1 + $0xb0] sm:$0xff]
  %v43 = vld [vmem:[%s1 + $0xb8] sm:$0xff]
  %v44 = vld [vmem:[%s1 + $0xc0] sm:$0xff]
  %v45 = vld [vmem:[%s1 + $0xc8] sm:$0xff]
  %v46 = vld [vmem:[%s1 + $0xd0] sm:$0xff]
  %v47 = vld [vmem:[%s1 + $0xd8] sm:$0xff]
  %v48 = vld [vmem:[%s1 + $0xe0] sm:$0xff]
  %v49 = vld [vmem:[%s1 + $0xe8] sm:$0xff]
  %v50 = vld [vmem:[%s1 + $0xf0] sm:$0xff]
  %v51 = vld [vmem:[%s1 + $0xf8] sm:$0xff]
  %v52 = vld [vmem:[%s1 + $0x100] sm:$0xff]
  %v53 = vld [vmem:[%s1 + $0x108] sm:$0xff]
  %v54 = vld [vmem:[%s1 + $0x110] sm:$0xff]
  %v55 = vld [vmem:[%s1 + $0x118] sm:$0xff]
  %v56 = vld [vmem:[%s1 + $0x120] sm:$0xff]
  %v57 = vld [vmem:[%s1 + $0x128] sm:$0xff]
  %v58 = vld [vmem:[%s1 + $0x130] sm:$0xff]
  %v59 = vld [vmem:[%s1 + $0x138] sm:$0xff]
  %v60 = vld [vmem:[%s1 + $0x140] sm:$0xff]
  %v61 = vld [vmem:[%s1 + $0x148] sm:$0xff]
  %v62 = vld [vmem:[%s1 + $0x150] sm:$0xff]
  %v63 = vld [vmem:[%s1 + $0x158] sm:$0xff]
  %v64 = vld [vmem:[%s1 + $0x160] sm:$0xff]
  %v65 = vld [vmem:[%s1 + $0x168] sm:$0xff]
  %v66 = vld [vmem:[%s1 + $0x170] sm:$0xff]
  %v67 = vld [vmem:[%s1 + $0x178] sm:$0xff]
  %v68 = vld [vmem:[%s1 + $0x180] sm:$0xff]
  %v69 = vld [vmem:[%s1 + $0x188] sm:$0xff]
  %v70 = vld [vmem:[%s1 + $0x190] sm:$0xff]
  %v71 = vld [vmem:[%s1 + $0x198] sm:$0xff]
  %v72 = vld [vmem:[%s1 + $0x1a0] sm:$0xff]
  %v73 = vld [vmem:[%s1 + $0x1a8] sm:$0xff]
  %v74 = vld [vmem:[%s1 + $0x1b0] sm:$0xff]
  %v75 = vld [vmem:[%s1 + $0x1b8] sm:$0xff]
  %v76 = vld [vmem:[%s1 + $0x1c0] sm:$0xff]
  %v77 = vld [vmem:[%s1 + $0x1c8] sm:$0xff]
  %v78 = vld [vmem:[%s1 + $0x1d0] sm:$0xff]
  %v79 = vld [vmem:[%s1 + $0x1d8] sm:$0xff]
  %v80 = vld [vmem:[%s1 + $0x1e0] sm:$0xff]
  %v81 = vld [vmem:[%s1 + $0x1e8] sm:$0xff]
  %v82 = vld [vmem:[%s1 + $0x1f0] sm:$0xff]
  %v83 = vld [vmem:[%s1 + $0x1f8] sm:$0xff]
  %v84 = vld [vmem:[%s1 + $0x200] sm:$0xff]
  %v85 = vld [vmem:[%s1 + $0x208] sm:$0xff]
  %v86 = vld [vmem:[%s1 + $0x210] sm:$0xff]
  %v87 = vld [vmem:[%s1 + $0x218] sm:$0xff]
  %v88 = vld [vmem:[%s1 + $0x220] sm:$0xff]
  %v89 = vld [vmem:[%s1 + $0x228] sm:$0xff]
  %v90 = vld [vmem:[%s1 + $0x230] sm:$0xff]
  %v91 = vld [vmem:[%s1 + $0x238] sm:$0xff]
  %v92 = vld [vmem:[%s1 + $0x240] sm:$0xff]
  %v93 = vld [vmem:[%s1 + $0x248] sm:$0xff]
  %v94 = vld [vmem:[%s1 + $0x250] sm:$0xff]
  %v95 = vld [vmem:[%s1 + $0x258] sm:$0xff]
  %v96 = vld [vmem:[%s1 + $0x260] sm:$0xff]
  %v97 = vld [vmem:[%s1 + $0x268] sm:$0xff]
  %v98 = vld [vmem:[%s1 + $0x270] sm:$0xff]
  %v99 = vld [vmem:[%s1 + $0x278] sm:$0xff]
  %v100 = vld [vmem:[%s1 + $0x280] sm:$0xff]
  %v101 = vld [vmem:[%s1 + $0x288] sm:$0xff]
  %v102 = vld [vmem:[%s1 + $0x290] sm:$0xff]
  %v103 = vld [vmem:[%s1 + $0x298] sm:$0xff]
  %v104 = vld [vmem:[%s1 + $0x2a0] sm:$0xff]
  %v105 = vld [vmem:[%s1 + $0x2a8] sm:$0xff]
  %v106 = vld [vmem:[%s1 + $0x2b0] sm:$0xff]
  %v107 = vld [vmem:[%s1 + $0x2b8] sm:$0xff]
  %v108 = vld [vmem:[%s1 + $0x2c0] sm:$0xff]
  %v109 = vld [vmem:[%s1 + $0x2c8] sm:$0xff]
  %v110 = vld [vmem:[%s1 + $0x2d0] sm:$0xff]
  %v111 = vld [vmem:[%s1 + $0x2d8] sm:$0xff]
  %v112 = vld [vmem:[%s1 + $0x2e0] sm:$0xff]
  %v113 = vld [vmem:[%s1 + $0x2e8] sm:$0xff]
  %v114 = vld [vmem:[%s1 + $0x2f0] sm:$0xff]
  %v115 = vld [vmem:[%s1 + $0x2f8] sm:$0xff]
  %v116 = vld [vmem:[%s1 + $0x300] sm:$0xff]
  %v117 = vld [vmem:[%s1 + $0x308] sm:$0xff]
  %v118 = vld [vmem:[%s1 + $0x310] sm:$0xff]
  %v119 = vld [vmem:[%s1 + $0x318] sm:$0xff]
  %v120 = vld [vmem:[%s1 + $0x320] sm:$0xff]
  %v121 = vld [vmem:[%s1 + $0x328] sm:$0xff]
  %v122 = vld [vmem:[%s1 + $0x330] sm:$0xff]
  %v123 = vld [vmem:[%s1 + $0x338] sm:$0xff]
  %v124 = vld [vmem:[%s1 + $0x340] sm:$0xff]
  %v125 = vld [vmem:[%s1 + $0x348] sm:$0xff]
  %v126 = vld [vmem:[%s1 + $0x350] sm:$0xff]
  %v127 = vld [vmem:[%s1 + $0x358] sm:$0xff]
  %v128 = vld [vmem:[%s1 + $0x360] sm:$0xff]
  %v129 = vld [vmem:[%s1 + $0x368] sm:$0xff]
  %v130 = vld [vmem:[%s1 + $0x370] sm:$0xff]
  %v131 = vld [vmem:[%s1 + $0x378] sm:$0xff]
  %v132 = vld [vmem:[%s1 + $0x380] sm:$0xff]
  %v133 = vld [vmem:[%s1 + $0x388] sm:$0xff]
  %v134 = vld [vmem:[%s1 + $0x390] sm:$0xff]
  %v135 = vld [vmem:[%s1 + $0x398] sm:$0xff]
  %v136 = vld [vmem:[%s1 + $0x3a0] sm:$0xff]
  %v137 = vld [vmem:[%s1 + $0x3a8] sm:$0xff]
  %v138 = vld [vmem:[%s1 + $0x3b0] sm:$0xff]
  %v139 = vld [vmem:[%s1 + $0x3b8] sm:$0xff]
  %v140 = vld [vmem:[%s1 + $0x3c0] sm:$0xff]
  %v141 = vld [vmem:[%s1 + $0x3c8] sm:$0xff]
  %v142 = vld [vmem:[%s1 + $0x3d0] sm:$0xff]
  %v143 = vld [vmem:[%s1 + $0x3d8] sm:$0xff]
  %v144 = vld [vmem:[%s1 + $0x3e0] sm:$0xff]
  %v145 = vld [vmem:[%s1 + $0x3e8] sm:$0xff]
  %v146 = vld [vmem:[%s1 + $0x3f0] sm:$0xff]
  %v147 = vld [vmem:[%s1 + $0x3f8] sm:$0xff]
  %v148 = vld [vmem:[%s1 + $0x400] sm:$0xff]
  %v149 = vld [vmem:[%s1 + $0x408] sm:$0xff]
  %v150 = vld [vmem:[%s1 + $0x410] sm:$0xff]
  %v151 = vld [vmem:[%s1 + $0x418] sm:$0xff]
  %v152 = vld [vmem:[%s1 + $0x420] sm:$0xff]
  %v153 = vld [vmem:[%s1 + $0x428] sm:$0xff]
  %v154 = vld [vmem:[%s1 + $0x430] sm:$0xff]
  %v155 = vld [vmem:[%s1 + $0x438] sm:$0xff]
  %v156 = vld [vmem:[%s1 + $0x440] sm:$0xff]
  %v157 = vld [vmem:[%s1 + $0x448] sm:$0xff]
  %v158 = vld [vmem:[%s1 + $0x450] sm:$0xff]
  %v159 = vld [vmem:[%s1 + $0x458] sm:$0xff]
  %v160 = vld [vmem:[%s1 + $0x460] sm:$0xff]
  %v161 = vld [vmem:[%s1 + $0x468] sm:$0xff]
  %v162 = vld [vmem:[%s1 + $0x470] sm:$0xff]
  %v163 = vld [vmem:[%s1 + $0x478] sm:$0xff]
  %s164 = scalar_lea.vmem %s2, 1
  %v165 = vld [vmem:[%s164] ss:$4 sm:$0x3]
  %v167 = vlaneseq
  %v168 = vshrl.u32 %v167, 7
  %v169 = vsub.s32 0, %v168
  %v170 = vrot.slane %v165, %v169
  %v171 = vlaneseq
  %v172 = vshrl.u32 %v171, 7
  %v173 = vsub.s32 1, %v172
  %v174 = vrot.slane %v165, %v173
  %v182 = vunpack.c.l.b16 %v15
  %v183 = vunpack.c.h.b16 %v15
  %v184 = vunpack.c.l.b16 %v16
  %v185 = vunpack.c.h.b16 %v16
  %v186 = vunpack.c.l.b16 %v17
  %v187 = vunpack.c.h.b16 %v17
  %v188 = vunpack.c.l.b16 %v18
  %v189 = vunpack.c.h.b16 %v18
  %v190 = vunpack.c.l.b16 %v19
  %v191 = vpack.c.b16 %v182, %v182
  %v192 = vpack.c.b16 %v183, %v183
  %v193 = vpack.c.b16 %v184, %v184
  %v194 = vpack.c.b16 %v185, %v185
  %v195 = vpack.c.b16 %v186, %v186
  %v196 = vpack.c.b16 %v187, %v187
  %v197 = vpack.c.b16 %v188, %v188
  %v198 = vpack.c.b16 %v189, %v189
  %v199 = vpack.c.b16 %v190, %v190
  %v353 = vunpack.c.l.b16 %v20
  %v354 = vunpack.c.h.b16 %v20
  %v355 = vunpack.c.l.b16 %v21
  %v356 = vunpack.c.h.b16 %v21
  %v357 = vunpack.c.l.b16 %v22
  %v358 = vunpack.c.h.b16 %v22
  %v359 = vunpack.c.l.b16 %v23
  %v360 = vunpack.c.h.b16 %v23
  %v361 = vunpack.c.l.b16 %v24
  %v362 = vunpack.c.h.b16 %v24
  %v363 = vunpack.c.l.b16 %v25
  %v364 = vunpack.c.h.b16 %v25
  %v365 = vunpack.c.l.b16 %v26
  %v366 = vunpack.c.h.b16 %v26
  %v367 = vunpack.c.l.b16 %v27
  %v368 = vunpack.c.h.b16 %v27
  %v369 = vunpack.c.l.b16 %v28
  %v370 = vunpack.c.h.b16 %v28
  %v371 = vunpack.c.l.b16 %v29
  %v372 = vunpack.c.h.b16 %v29
  %v373 = vunpack.c.l.b16 %v30
  %v374 = vunpack.c.h.b16 %v30
  %v375 = vunpack.c.l.b16 %v31
  %v376 = vunpack.c.h.b16 %v31
  %v377 = vunpack.c.l.b16 %v32
  %v378 = vunpack.c.h.b16 %v32
  %v379 = vunpack.c.l.b16 %v33
  %v380 = vunpack.c.h.b16 %v33
  %v381 = vunpack.c.l.b16 %v34
  %v382 = vunpack.c.h.b16 %v34
  %v383 = vunpack.c.l.b16 %v35
  %v384 = vunpack.c.h.b16 %v35
  %v385 = vunpack.c.l.b16 %v36
  %v386 = vunpack.c.h.b16 %v36
  %v387 = vunpack.c.l.b16 %v37
  %v388 = vunpack.c.h.b16 %v37
  %v389 = vunpack.c.l.b16 %v38
  %v390 = vunpack.c.h.b16 %v38
  %v391 = vunpack.c.l.b16 %v39
  %v392 = vunpack.c.h.b16 %v39
  %v393 = vunpack.c.l.b16 %v40
  %v394 = vunpack.c.h.b16 %v40
  %v395 = vunpack.c.l.b16 %v41
  %v396 = vunpack.c.h.b16 %v41
  %v397 = vunpack.c.l.b16 %v42
  %v398 = vunpack.c.h.b16 %v42
  %v399 = vunpack.c.l.b16 %v43
  %v400 = vunpack.c.h.b16 %v43
  %v401 = vunpack.c.l.b16 %v44
  %v402 = vunpack.c.h.b16 %v44
  %v403 = vunpack.c.l.b16 %v45
  %v404 = vunpack.c.h.b16 %v45
  %v405 = vunpack.c.l.b16 %v46
  %v406 = vunpack.c.h.b16 %v46
  %v407 = vunpack.c.l.b16 %v47
  %v408 = vunpack.c.h.b16 %v47
  %v409 = vunpack.c.l.b16 %v48
  %v410 = vunpack.c.h.b16 %v48
  %v411 = vunpack.c.l.b16 %v49
  %v412 = vunpack.c.h.b16 %v49
  %v413 = vunpack.c.l.b16 %v50
  %v414 = vunpack.c.h.b16 %v50
  %v415 = vunpack.c.l.b16 %v51
  %v416 = vunpack.c.h.b16 %v51
  %v417 = vunpack.c.l.b16 %v52
  %v418 = vunpack.c.h.b16 %v52
  %v419 = vunpack.c.l.b16 %v53
  %v420 = vunpack.c.h.b16 %v53
  %v421 = vunpack.c.l.b16 %v54
  %v422 = vunpack.c.h.b16 %v54
  %v423 = vunpack.c.l.b16 %v55
  %v424 = vunpack.c.h.b16 %v55
  %v425 = vunpack.c.l.b16 %v56
  %v426 = vunpack.c.h.b16 %v56
  %v427 = vunpack.c.l.b16 %v57
  %v428 = vunpack.c.h.b16 %v57
  %v429 = vunpack.c.l.b16 %v58
  %v430 = vunpack.c.h.b16 %v58
  %v431 = vunpack.c.l.b16 %v59
  %v432 = vunpack.c.h.b16 %v59
  %v433 = vunpack.c.l.b16 %v60
  %v434 = vunpack.c.h.b16 %v60
  %v435 = vunpack.c.l.b16 %v61
  %v436 = vunpack.c.h.b16 %v61
  %v437 = vunpack.c.l.b16 %v62
  %v438 = vunpack.c.h.b16 %v62
  %v439 = vunpack.c.l.b16 %v63
  %v440 = vunpack.c.h.b16 %v63
  %v441 = vunpack.c.l.b16 %v64
  %v442 = vunpack.c.h.b16 %v64
  %v443 = vunpack.c.l.b16 %v65
  %v444 = vunpack.c.h.b16 %v65
  %v445 = vunpack.c.l.b16 %v66
  %v446 = vunpack.c.h.b16 %v66
  %v447 = vunpack.c.l.b16 %v67
  %v448 = vunpack.c.h.b16 %v67
  %v449 = vunpack.c.l.b16 %v68
  %v450 = vunpack.c.h.b16 %v68
  %v451 = vunpack.c.l.b16 %v69
  %v452 = vunpack.c.h.b16 %v69
  %v453 = vunpack.c.l.b16 %v70
  %v454 = vunpack.c.h.b16 %v70
  %v455 = vunpack.c.l.b16 %v71
  %v456 = vunpack.c.h.b16 %v71
  %v457 = vunpack.c.l.b16 %v72
  %v458 = vunpack.c.h.b16 %v72
  %v459 = vunpack.c.l.b16 %v73
  %v460 = vunpack.c.h.b16 %v73
  %v461 = vunpack.c.l.b16 %v74
  %v462 = vunpack.c.h.b16 %v74
  %v463 = vunpack.c.l.b16 %v75
  %v464 = vunpack.c.h.b16 %v75
  %v465 = vunpack.c.l.b16 %v76
  %v466 = vunpack.c.h.b16 %v76
  %v467 = vunpack.c.l.b16 %v77
  %v468 = vunpack.c.h.b16 %v77
  %v469 = vunpack.c.l.b16 %v78
  %v470 = vunpack.c.h.b16 %v78
  %v471 = vunpack.c.l.b16 %v79
  %v472 = vunpack.c.h.b16 %v79
  %v473 = vunpack.c.l.b16 %v80
  %v474 = vunpack.c.h.b16 %v80
  %v475 = vunpack.c.l.b16 %v81
  %v476 = vunpack.c.h.b16 %v81
  %v477 = vunpack.c.l.b16 %v82
  %v478 = vunpack.c.h.b16 %v82
  %v479 = vunpack.c.l.b16 %v83
  %v480 = vunpack.c.h.b16 %v83
  %v481 = vunpack.c.l.b16 %v84
  %v482 = vunpack.c.h.b16 %v84
  %v483 = vunpack.c.l.b16 %v85
  %v484 = vunpack.c.h.b16 %v85
  %v485 = vunpack.c.l.b16 %v86
  %v486 = vunpack.c.h.b16 %v86
  %v487 = vunpack.c.l.b16 %v87
  %v488 = vunpack.c.h.b16 %v87
  %v489 = vunpack.c.l.b16 %v88
  %v490 = vunpack.c.h.b16 %v88
  %v491 = vunpack.c.l.b16 %v89
  %v492 = vunpack.c.h.b16 %v89
  %v493 = vunpack.c.l.b16 %v90
  %v494 = vunpack.c.h.b16 %v90
  %v495 = vunpack.c.l.b16 %v91
  %v496 = vunpack.c.h.b16 %v91
  %v497 = vunpack.c.l.b16 %v92
  %v498 = vunpack.c.h.b16 %v92
  %v499 = vunpack.c.l.b16 %v93
  %v500 = vunpack.c.h.b16 %v93
  %v501 = vunpack.c.l.b16 %v94
  %v502 = vunpack.c.h.b16 %v94
  %v503 = vunpack.c.l.b16 %v95
  %v504 = vunpack.c.h.b16 %v95
  %v505 = vunpack.c.l.b16 %v96
  %v506 = vunpack.c.h.b16 %v96
  %v507 = vunpack.c.l.b16 %v97
  %v508 = vunpack.c.h.b16 %v97
  %v509 = vunpack.c.l.b16 %v98
  %v510 = vunpack.c.h.b16 %v98
  %v511 = vunpack.c.l.b16 %v99
  %v512 = vunpack.c.h.b16 %v99
  %v513 = vunpack.c.l.b16 %v100
  %v514 = vunpack.c.h.b16 %v100
  %v515 = vunpack.c.l.b16 %v101
  %v516 = vunpack.c.h.b16 %v101
  %v517 = vunpack.c.l.b16 %v102
  %v518 = vunpack.c.h.b16 %v102
  %v519 = vunpack.c.l.b16 %v103
  %v520 = vunpack.c.h.b16 %v103
  %v521 = vunpack.c.l.b16 %v104
  %v522 = vunpack.c.h.b16 %v104
  %v523 = vunpack.c.l.b16 %v105
  %v524 = vunpack.c.h.b16 %v105
  %v525 = vunpack.c.l.b16 %v106
  %v526 = vunpack.c.h.b16 %v106
  %v527 = vunpack.c.l.b16 %v107
  %v528 = vunpack.c.h.b16 %v107
  %v529 = vunpack.c.l.b16 %v108
  %v530 = vunpack.c.h.b16 %v108
  %v531 = vunpack.c.l.b16 %v109
  %v532 = vunpack.c.h.b16 %v109
  %v533 = vunpack.c.l.b16 %v110
  %v534 = vunpack.c.h.b16 %v110
  %v535 = vunpack.c.l.b16 %v111
  %v536 = vunpack.c.h.b16 %v111
  %v537 = vunpack.c.l.b16 %v112
  %v538 = vunpack.c.h.b16 %v112
  %v539 = vunpack.c.l.b16 %v113
  %v540 = vunpack.c.h.b16 %v113
  %v541 = vunpack.c.l.b16 %v114
  %v542 = vunpack.c.h.b16 %v114
  %v543 = vunpack.c.l.b16 %v115
  %v544 = vunpack.c.h.b16 %v115
  %v545 = vunpack.c.l.b16 %v116
  %v546 = vunpack.c.h.b16 %v116
  %v547 = vunpack.c.l.b16 %v117
  %v548 = vunpack.c.h.b16 %v117
  %v549 = vunpack.c.l.b16 %v118
  %v550 = vunpack.c.h.b16 %v118
  %v551 = vunpack.c.l.b16 %v119
  %v552 = vunpack.c.h.b16 %v119
  %v553 = vunpack.c.l.b16 %v120
  %v554 = vunpack.c.h.b16 %v120
  %v555 = vunpack.c.l.b16 %v121
  %v556 = vunpack.c.h.b16 %v121
  %v557 = vunpack.c.l.b16 %v122
  %v558 = vunpack.c.h.b16 %v122
  %v559 = vunpack.c.l.b16 %v123
  %v560 = vunpack.c.h.b16 %v123
  %v561 = vunpack.c.l.b16 %v124
  %v562 = vunpack.c.h.b16 %v124
  %v563 = vunpack.c.l.b16 %v125
  %v564 = vunpack.c.h.b16 %v125
  %v565 = vunpack.c.l.b16 %v126
  %v566 = vunpack.c.h.b16 %v126
  %v567 = vunpack.c.l.b16 %v127
  %v568 = vunpack.c.h.b16 %v127
  %v569 = vunpack.c.l.b16 %v128
  %v570 = vunpack.c.h.b16 %v128
  %v571 = vunpack.c.l.b16 %v129
  %v572 = vunpack.c.h.b16 %v129
  %v573 = vunpack.c.l.b16 %v130
  %v574 = vunpack.c.h.b16 %v130
  %v575 = vunpack.c.l.b16 %v131
  %v576 = vunpack.c.h.b16 %v131
  %v577 = vunpack.c.l.b16 %v132
  %v578 = vunpack.c.h.b16 %v132
  %v579 = vunpack.c.l.b16 %v133
  %v580 = vunpack.c.h.b16 %v133
  %v581 = vunpack.c.l.b16 %v134
  %v582 = vunpack.c.h.b16 %v134
  %v583 = vunpack.c.l.b16 %v135
  %v584 = vunpack.c.h.b16 %v135
  %v585 = vunpack.c.l.b16 %v136
  %v586 = vunpack.c.h.b16 %v136
  %v587 = vunpack.c.l.b16 %v137
  %v588 = vunpack.c.h.b16 %v137
  %v589 = vunpack.c.l.b16 %v138
  %v590 = vunpack.c.h.b16 %v138
  %v591 = vunpack.c.l.b16 %v139
  %v592 = vunpack.c.h.b16 %v139
  %v593 = vunpack.c.l.b16 %v140
  %v594 = vunpack.c.h.b16 %v140
  %v595 = vunpack.c.l.b16 %v141
  %v596 = vunpack.c.h.b16 %v141
  %v597 = vunpack.c.l.b16 %v142
  %v598 = vunpack.c.h.b16 %v142
  %v599 = vunpack.c.l.b16 %v143
  %v600 = vunpack.c.h.b16 %v143
  %v601 = vunpack.c.l.b16 %v144
  %v602 = vunpack.c.h.b16 %v144
  %v603 = vunpack.c.l.b16 %v145
  %v604 = vunpack.c.h.b16 %v145
  %v605 = vunpack.c.l.b16 %v146
  %v606 = vunpack.c.h.b16 %v146
  %v607 = vunpack.c.l.b16 %v147
  %v608 = vunpack.c.h.b16 %v147
  %v609 = vunpack.c.l.b16 %v148
  %v610 = vunpack.c.h.b16 %v148
  %v611 = vunpack.c.l.b16 %v149
  %v612 = vunpack.c.h.b16 %v149
  %v613 = vunpack.c.l.b16 %v150
  %v614 = vunpack.c.h.b16 %v150
  %v615 = vunpack.c.l.b16 %v151
  %v616 = vunpack.c.h.b16 %v151
  %v617 = vunpack.c.l.b16 %v152
  %v618 = vunpack.c.h.b16 %v152
  %v619 = vunpack.c.l.b16 %v153
  %v620 = vunpack.c.h.b16 %v153
  %v621 = vunpack.c.l.b16 %v154
  %v622 = vunpack.c.h.b16 %v154
  %v623 = vunpack.c.l.b16 %v155
  %v624 = vunpack.c.h.b16 %v155
  %v625 = vunpack.c.l.b16 %v156
  %v626 = vunpack.c.h.b16 %v156
  %v627 = vunpack.c.l.b16 %v157
  %v628 = vunpack.c.h.b16 %v157
  %v629 = vunpack.c.l.b16 %v158
  %v630 = vunpack.c.h.b16 %v158
  %v631 = vunpack.c.l.b16 %v159
  %v632 = vunpack.c.h.b16 %v159
  %v633 = vunpack.c.l.b16 %v160
  %v634 = vunpack.c.h.b16 %v160
  %v635 = vunpack.c.l.b16 %v161
  %v636 = vunpack.c.h.b16 %v161
  %v637 = vunpack.c.l.b16 %v162
  %v638 = vunpack.c.h.b16 %v162
  %v639 = vunpack.c.l.b16 %v163
  %v640 = vunpack.c.h.b16 %v163
  %v641 = vpack.c.b16 %v355, %v353
  %v642 = vpack.c.b16 %v356, %v354
  %v643 = vpack.c.b16 %v359, %v357
  %v644 = vpack.c.b16 %v360, %v358
  %v645 = vpack.c.b16 %v363, %v361
  %v646 = vpack.c.b16 %v364, %v362
  %v647 = vpack.c.b16 %v367, %v365
  %v648 = vpack.c.b16 %v368, %v366
  %v649 = vpack.c.b16 %v371, %v369
  %v650 = vpack.c.b16 %v372, %v370
  %v651 = vpack.c.b16 %v375, %v373
  %v652 = vpack.c.b16 %v376, %v374
  %v653 = vpack.c.b16 %v379, %v377
  %v654 = vpack.c.b16 %v380, %v378
  %v655 = vpack.c.b16 %v383, %v381
  %v656 = vpack.c.b16 %v384, %v382
  %v657 = vpack.c.b16 %v387, %v385
  %v658 = vpack.c.b16 %v388, %v386
  %v659 = vpack.c.b16 %v391, %v389
  %v660 = vpack.c.b16 %v392, %v390
  %v661 = vpack.c.b16 %v395, %v393
  %v662 = vpack.c.b16 %v396, %v394
  %v663 = vpack.c.b16 %v399, %v397
  %v664 = vpack.c.b16 %v400, %v398
  %v665 = vpack.c.b16 %v403, %v401
  %v666 = vpack.c.b16 %v404, %v402
  %v667 = vpack.c.b16 %v407, %v405
  %v668 = vpack.c.b16 %v408, %v406
  %v669 = vpack.c.b16 %v411, %v409
  %v670 = vpack.c.b16 %v412, %v410
  %v671 = vpack.c.b16 %v415, %v413
  %v672 = vpack.c.b16 %v416, %v414
  %v673 = vpack.c.b16 %v419, %v417
  %v674 = vpack.c.b16 %v420, %v418
  %v675 = vpack.c.b16 %v423, %v421
  %v676 = vpack.c.b16 %v424, %v422
  %v677 = vpack.c.b16 %v427, %v425
  %v678 = vpack.c.b16 %v428, %v426
  %v679 = vpack.c.b16 %v431, %v429
  %v680 = vpack.c.b16 %v432, %v430
  %v681 = vpack.c.b16 %v435, %v433
  %v682 = vpack.c.b16 %v436, %v434
  %v683 = vpack.c.b16 %v439, %v437
  %v684 = vpack.c.b16 %v440, %v438
  %v685 = vpack.c.b16 %v443, %v441
  %v686 = vpack.c.b16 %v444, %v442
  %v687 = vpack.c.b16 %v447, %v445
  %v688 = vpack.c.b16 %v448, %v446
  %v689 = vpack.c.b16 %v451, %v449
  %v690 = vpack.c.b16 %v452, %v450
  %v691 = vpack.c.b16 %v455, %v453
  %v692 = vpack.c.b16 %v456, %v454
  %v693 = vpack.c.b16 %v459, %v457
  %v694 = vpack.c.b16 %v460, %v458
  %v695 = vpack.c.b16 %v463, %v461
  %v696 = vpack.c.b16 %v464, %v462
  %v697 = vpack.c.b16 %v467, %v465
  %v698 = vpack.c.b16 %v468, %v466
  %v699 = vpack.c.b16 %v471, %v469
  %v700 = vpack.c.b16 %v472, %v470
  %v701 = vpack.c.b16 %v475, %v473
  %v702 = vpack.c.b16 %v476, %v474
  %v703 = vpack.c.b16 %v479, %v477
  %v704 = vpack.c.b16 %v480, %v478
  %v705 = vpack.c.b16 %v483, %v481
  %v706 = vpack.c.b16 %v484, %v482
  %v707 = vpack.c.b16 %v487, %v485
  %v708 = vpack.c.b16 %v488, %v486
  %v709 = vpack.c.b16 %v491, %v489
  %v710 = vpack.c.b16 %v492, %v490
  %v711 = vpack.c.b16 %v495, %v493
  %v712 = vpack.c.b16 %v496, %v494
  %v713 = vpack.c.b16 %v499, %v497
  %v714 = vpack.c.b16 %v500, %v498
  %v715 = vpack.c.b16 %v503, %v501
  %v716 = vpack.c.b16 %v504, %v502
  %v717 = vpack.c.b16 %v507, %v505
  %v718 = vpack.c.b16 %v508, %v506
  %v719 = vpack.c.b16 %v511, %v509
  %v720 = vpack.c.b16 %v512, %v510
  %v721 = vpack.c.b16 %v515, %v513
  %v722 = vpack.c.b16 %v516, %v514
  %v723 = vpack.c.b16 %v519, %v517
  %v724 = vpack.c.b16 %v520, %v518
  %v725 = vpack.c.b16 %v523, %v521
  %v726 = vpack.c.b16 %v524, %v522
  %v727 = vpack.c.b16 %v527, %v525
  %v728 = vpack.c.b16 %v528, %v526
  %v729 = vpack.c.b16 %v531, %v529
  %v730 = vpack.c.b16 %v532, %v530
  %v731 = vpack.c.b16 %v535, %v533
  %v732 = vpack.c.b16 %v536, %v534
  %v733 = vpack.c.b16 %v539, %v537
  %v734 = vpack.c.b16 %v540, %v538
  %v735 = vpack.c.b16 %v543, %v541
  %v736 = vpack.c.b16 %v544, %v542
  %v737 = vpack.c.b16 %v547, %v545
  %v738 = vpack.c.b16 %v548, %v546
  %v739 = vpack.c.b16 %v551, %v549
  %v740 = vpack.c.b16 %v552, %v550
  %v741 = vpack.c.b16 %v555, %v553
  %v742 = vpack.c.b16 %v556, %v554
  %v743 = vpack.c.b16 %v559, %v557
  %v744 = vpack.c.b16 %v560, %v558
  %v745 = vpack.c.b16 %v563, %v561
  %v746 = vpack.c.b16 %v564, %v562
  %v747 = vpack.c.b16 %v567, %v565
  %v748 = vpack.c.b16 %v568, %v566
  %v749 = vpack.c.b16 %v571, %v569
  %v750 = vpack.c.b16 %v572, %v570
  %v751 = vpack.c.b16 %v575, %v573
  %v752 = vpack.c.b16 %v576, %v574
  %v753 = vpack.c.b16 %v579, %v577
  %v754 = vpack.c.b16 %v580, %v578
  %v755 = vpack.c.b16 %v583, %v581
  %v756 = vpack.c.b16 %v584, %v582
  %v757 = vpack.c.b16 %v587, %v585
  %v758 = vpack.c.b16 %v588, %v586
  %v759 = vpack.c.b16 %v591, %v589
  %v760 = vpack.c.b16 %v592, %v590
  %v761 = vpack.c.b16 %v595, %v593
  %v762 = vpack.c.b16 %v596, %v594
  %v763 = vpack.c.b16 %v599, %v597
  %v764 = vpack.c.b16 %v600, %v598
  %v765 = vpack.c.b16 %v603, %v601
  %v766 = vpack.c.b16 %v604, %v602
  %v767 = vpack.c.b16 %v607, %v605
  %v768 = vpack.c.b16 %v608, %v606
  %v769 = vpack.c.b16 %v611, %v609
  %v770 = vpack.c.b16 %v612, %v610
  %v771 = vpack.c.b16 %v615, %v613
  %v772 = vpack.c.b16 %v616, %v614
  %v773 = vpack.c.b16 %v619, %v617
  %v774 = vpack.c.b16 %v620, %v618
  %v775 = vpack.c.b16 %v623, %v621
  %v776 = vpack.c.b16 %v624, %v622
  %v777 = vpack.c.b16 %v627, %v625
  %v778 = vpack.c.b16 %v628, %v626
  %v779 = vpack.c.b16 %v631, %v629
  %v780 = vpack.c.b16 %v632, %v630
  %v781 = vpack.c.b16 %v635, %v633
  %v782 = vpack.c.b16 %v636, %v634
  %v783 = vpack.c.b16 %v639, %v637
  %v784 = vpack.c.b16 %v640, %v638
  %929 = vmatprep.subr.bf16.mxu0 %v656
  %930 = vmatpush1.bf16.msra.mxu0 %v655
  %931 = vmatprep.subr.bf16.mxu0 %v654
  %932 = vmatpush1.bf16.msra.mxu0 %v653
  %933 = vmatprep.subr.bf16.mxu0 %v652
  %934 = vmatpush1.bf16.msra.mxu0 %v651
  %935 = vmatprep.subr.bf16.mxu0 %v650
  %936 = vmatpush1.bf16.msra.mxu0 %v649
  %937 = vmatprep.subr.bf16.mxu0 %v648
  %938 = vmatpush1.bf16.msra.mxu0 %v647
  %939 = vmatprep.subr.bf16.mxu0 %v646
  %940 = vmatpush1.bf16.msra.mxu0 %v645
  %941 = vmatprep.subr.bf16.mxu0 %v644
  %942 = vmatpush1.bf16.msra.mxu0 %v643
  %943 = vmatprep.subr.bf16.mxu0 %v642
  %944 = vmatpush1.bf16.msra.mxu0 %v641
  %945 = vmatprep.subr.bf16.mxu0 %v672
  %946 = vmatpush2.bf16.msra.mxu0 %v671
  %947 = vmatprep.subr.bf16.mxu0 %v670
  %948 = vmatpush2.bf16.msra.mxu0 %v669
  %949 = vmatprep.subr.bf16.mxu0 %v668
  %950 = vmatpush2.bf16.msra.mxu0 %v667
  %951 = vmatprep.subr.bf16.mxu0 %v666
  %952 = vmatpush2.bf16.msra.mxu0 %v665
  %953 = vmatprep.subr.bf16.mxu0 %v664
  %954 = vmatpush2.bf16.msra.mxu0 %v663
  %955 = vmatprep.subr.bf16.mxu0 %v662
  %956 = vmatpush2.bf16.msra.mxu0 %v661
  %957 = vmatprep.subr.bf16.mxu0 %v660
  %958 = vmatpush2.bf16.msra.mxu0 %v659
  %959 = vmatprep.subr.bf16.mxu0 %v658
  %960 = vmatpush2.bf16.msra.mxu0 %v657
  %961 = vmatprep.mubr.bf16.mxu0 %v192
  %962 = vmatmul.mubr.bf16.gmra.mxu0 %v191
  %v963 = vpop.f32.mrf.mxu0
  %v964 = vadd.f32 %v170, %v963
  %v965 = vpop.f32.mrf.mxu0
  %v966 = vadd.f32 %v174, %v965
  %v967 = vpop.f32.mrf.mxu0
  %v968 = vpop.f32.mrf.mxu0
  %969 = vdwg.mxu0
  %970 = vmatprep.subr.bf16.mxu0 %v688
  %971 = vmatpush1.bf16.msra.mxu0 %v687
  %972 = vmatprep.subr.bf16.mxu0 %v686
  %973 = vmatpush1.bf16.msra.mxu0 %v685
  %974 = vmatprep.subr.bf16.mxu0 %v684
  %975 = vmatpush1.bf16.msra.mxu0 %v683
  %976 = vmatprep.subr.bf16.mxu0 %v682
  %977 = vmatpush1.bf16.msra.mxu0 %v681
  %978 = vmatprep.subr.bf16.mxu0 %v680
  %979 = vmatpush1.bf16.msra.mxu0 %v679
  %980 = vmatprep.subr.bf16.mxu0 %v678
  %981 = vmatpush1.bf16.msra.mxu0 %v677
  %982 = vmatprep.subr.bf16.mxu0 %v676
  %983 = vmatpush1.bf16.msra.mxu0 %v675
  %984 = vmatprep.subr.bf16.mxu0 %v674
  %985 = vmatpush1.bf16.msra.mxu0 %v673
  %986 = vmatprep.subr.bf16.mxu0 %v704
  %987 = vmatpush2.bf16.msra.mxu0 %v703
  %988 = vmatprep.subr.bf16.mxu0 %v702
  %989 = vmatpush2.bf16.msra.mxu0 %v701
  %990 = vmatprep.subr.bf16.mxu0 %v700
  %991 = vmatpush2.bf16.msra.mxu0 %v699
  %992 = vmatprep.subr.bf16.mxu0 %v698
  %993 = vmatpush2.bf16.msra.mxu0 %v697
  %994 = vmatprep.subr.bf16.mxu0 %v696
  %995 = vmatpush2.bf16.msra.mxu0 %v695
  %996 = vmatprep.subr.bf16.mxu0 %v694
  %997 = vmatpush2.bf16.msra.mxu0 %v693
  %998 = vmatprep.subr.bf16.mxu0 %v692
  %999 = vmatpush2.bf16.msra.mxu0 %v691
  %1000 = vmatprep.subr.bf16.mxu0 %v690
  %1001 = vmatpush2.bf16.msra.mxu0 %v689
  %1002 = vmatprep.mubr.bf16.mxu0 %v194
  %1003 = vmatmul.mubr.bf16.gmra.mxu0 %v193
  %v1004 = vpop.f32.mrf.mxu0
  %v1005 = vadd.f32 %v964, %v1004
  %v1006 = vpop.f32.mrf.mxu0
  %v1007 = vadd.f32 %v966, %v1006
  %v1008 = vpop.f32.mrf.mxu0
  %v1009 = vpop.f32.mrf.mxu0
  %1010 = vdwg.mxu0
  %1011 = vmatprep.subr.bf16.mxu0 %v720
  %1012 = vmatpush1.bf16.msra.mxu0 %v719
  %1013 = vmatprep.subr.bf16.mxu0 %v718
  %1014 = vmatpush1.bf16.msra.mxu0 %v717
  %1015 = vmatprep.subr.bf16.mxu0 %v716
  %1016 = vmatpush1.bf16.msra.mxu0 %v715
  %1017 = vmatprep.subr.bf16.mxu0 %v714
  %1018 = vmatpush1.bf16.msra.mxu0 %v713
  %1019 = vmatprep.subr.bf16.mxu0 %v712
  %1020 = vmatpush1.bf16.msra.mxu0 %v711
  %1021 = vmatprep.subr.bf16.mxu0 %v710
  %1022 = vmatpush1.bf16.msra.mxu0 %v709
  %1023 = vmatprep.subr.bf16.mxu0 %v708
  %1024 = vmatpush1.bf16.msra.mxu0 %v707
  %1025 = vmatprep.subr.bf16.mxu0 %v706
  %1026 = vmatpush1.bf16.msra.mxu0 %v705
  %1027 = vmatprep.subr.bf16.mxu0 %v736
  %1028 = vmatpush2.bf16.msra.mxu0 %v735
  %1029 = vmatprep.subr.bf16.mxu0 %v734
  %1030 = vmatpush2.bf16.msra.mxu0 %v733
  %1031 = vmatprep.subr.bf16.mxu0 %v732
  %1032 = vmatpush2.bf16.msra.mxu0 %v731
  %1033 = vmatprep.subr.bf16.mxu0 %v730
  %1034 = vmatpush2.bf16.msra.mxu0 %v729
  %1035 = vmatprep.subr.bf16.mxu0 %v728
  %1036 = vmatpush2.bf16.msra.mxu0 %v727
  %1037 = vmatprep.subr.bf16.mxu0 %v726
  %1038 = vmatpush2.bf16.msra.mxu0 %v725
  %1039 = vmatprep.subr.bf16.mxu0 %v724
  %1040 = vmatpush2.bf16.msra.mxu0 %v723
  %1041 = vmatprep.subr.bf16.mxu0 %v722
  %1042 = vmatpush2.bf16.msra.mxu0 %v721
  %1043 = vmatprep.mubr.bf16.mxu0 %v196
  %1044 = vmatmul.mubr.bf16.gmra.mxu0 %v195
  %v1045 = vpop.f32.mrf.mxu0
  %v1046 = vadd.f32 %v1005, %v1045
  %v1047 = vpop.f32.mrf.mxu0
  %v1048 = vadd.f32 %v1007, %v1047
  %v1049 = vpop.f32.mrf.mxu0
  %v1050 = vpop.f32.mrf.mxu0
  %1051 = vdwg.mxu0
  %1052 = vmatprep.subr.bf16.mxu0 %v752
  %1053 = vmatpush1.bf16.msra.mxu0 %v751
  %1054 = vmatprep.subr.bf16.mxu0 %v750
  %1055 = vmatpush1.bf16.msra.mxu0 %v749
  %1056 = vmatprep.subr.bf16.mxu0 %v748
  %1057 = vmatpush1.bf16.msra.mxu0 %v747
  %1058 = vmatprep.subr.bf16.mxu0 %v746
  %1059 = vmatpush1.bf16.msra.mxu0 %v745
  %1060 = vmatprep.subr.bf16.mxu0 %v744
  %1061 = vmatpush1.bf16.msra.mxu0 %v743
  %1062 = vmatprep.subr.bf16.mxu0 %v742
  %1063 = vmatpush1.bf16.msra.mxu0 %v741
  %1064 = vmatprep.subr.bf16.mxu0 %v740
  %1065 = vmatpush1.bf16.msra.mxu0 %v739
  %1066 = vmatprep.subr.bf16.mxu0 %v738
  %1067 = vmatpush1.bf16.msra.mxu0 %v737
  %1068 = vmatprep.subr.bf16.mxu0 %v768
  %1069 = vmatpush2.bf16.msra.mxu0 %v767
  %1070 = vmatprep.subr.bf16.mxu0 %v766
  %1071 = vmatpush2.bf16.msra.mxu0 %v765
  %1072 = vmatprep.subr.bf16.mxu0 %v764
  %1073 = vmatpush2.bf16.msra.mxu0 %v763
  %1074 = vmatprep.subr.bf16.mxu0 %v762
  %1075 = vmatpush2.bf16.msra.mxu0 %v761
  %1076 = vmatprep.subr.bf16.mxu0 %v760
  %1077 = vmatpush2.bf16.msra.mxu0 %v759
  %1078 = vmatprep.subr.bf16.mxu0 %v758
  %1079 = vmatpush2.bf16.msra.mxu0 %v757
  %1080 = vmatprep.subr.bf16.mxu0 %v756
  %1081 = vmatpush2.bf16.msra.mxu0 %v755
  %1082 = vmatprep.subr.bf16.mxu0 %v754
  %1083 = vmatpush2.bf16.msra.mxu0 %v753
  %1084 = vmatprep.mubr.bf16.mxu0 %v198
  %1085 = vmatmul.mubr.bf16.gmra.mxu0 %v197
  %v1086 = vpop.f32.mrf.mxu0
  %v1087 = vadd.f32 %v1046, %v1086
  %v1088 = vpop.f32.mrf.mxu0
  %v1089 = vadd.f32 %v1048, %v1088
  %v1090 = vpop.f32.mrf.mxu0
  %v1091 = vpop.f32.mrf.mxu0
  %1092 = vdwg.mxu0
  %1093 = vmatprep.subr.bf16.mxu0 %v784
  %1094 = vmatpush1.bf16.msra.mxu0 %v783
  %1095 = vmatprep.subr.bf16.mxu0 %v782
  %1096 = vmatpush1.bf16.msra.mxu0 %v781
  %1097 = vmatprep.subr.bf16.mxu0 %v780
  %1098 = vmatpush1.bf16.msra.mxu0 %v779
  %1099 = vmatprep.subr.bf16.mxu0 %v778
  %1100 = vmatpush1.bf16.msra.mxu0 %v777
  %1101 = vmatprep.subr.bf16.mxu0 %v776
  %1102 = vmatpush1.bf16.msra.mxu0 %v775
  %1103 = vmatprep.subr.bf16.mxu0 %v774
  %1104 = vmatpush1.bf16.msra.mxu0 %v773
  %1105 = vmatprep.subr.bf16.mxu0 %v772
  %1106 = vmatpush1.bf16.msra.mxu0 %v771
  %1107 = vmatprep.subr.bf16.mxu0 %v770
  %1108 = vmatpush1.bf16.msra.mxu0 %v769
  %1109 = vmatprep.subr.bf16.mxu0 0
  %1110 = vmatpush2.bf16.msra.mxu0 0
  %1111 = vmatprep.subr.bf16.mxu0 0
  %1112 = vmatpush2.bf16.msra.mxu0 0
  %1113 = vmatprep.subr.bf16.mxu0 0
  %1114 = vmatpush2.bf16.msra.mxu0 0
  %1115 = vmatprep.subr.bf16.mxu0 0
  %1116 = vmatpush2.bf16.msra.mxu0 0
  %1117 = vmatprep.subr.bf16.mxu0 0
  %1118 = vmatpush2.bf16.msra.mxu0 0
  %1119 = vmatprep.subr.bf16.mxu0 0
  %1120 = vmatpush2.bf16.msra.mxu0 0
  %1121 = vmatprep.subr.bf16.mxu0 0
  %1122 = vmatpush2.bf16.msra.mxu0 0
  %1123 = vmatprep.subr.bf16.mxu0 0
  %1124 = vmatpush2.bf16.msra.mxu0 0
  %1125 = vmatprep.mubr.bf16.mxu0 0
  %1126 = vmatmul.mubr.bf16.gmra.mxu0 %v199
  %v1127 = vpop.f32.mrf.mxu0
  %v1128 = vadd.f32 %v1087, %v1127
  %v1129 = vpop.f32.mrf.mxu0
  %v1130 = vadd.f32 %v1089, %v1129
  %v1131 = vpop.f32.mrf.mxu0
  %v1132 = vpop.f32.mrf.mxu0
  %1133 = vdwg.mxu0
  %v1134 = vmax.f32 %v1128, 0.0
  %v1135 = vmax.f32 %v1130, 0.0
  %v1136 = vld [vmem:[%s2] ss:$4 sm:$0x3]
  %v1138 = vlaneseq
  %v1139 = vshrl.u32 %v1138, 7
  %v1140 = vsub.s32 0, %v1139
  %v1141 = vrot.slane %v1136, %v1140
  %v1142 = vlaneseq
  %v1143 = vshrl.u32 %v1142, 7
  %v1144 = vsub.s32 1, %v1143
  %v1145 = vrot.slane %v1136, %v1144
  %v1148 = vmul.f32 %v1134, %v1141
  %v1149 = vmul.f32 %v1135, %v1145
  %s1150 = scalar_lea.vmem %s2, 2
  %v1151 = vld [vmem:[%s1150] ss:$4 sm:$0x3]
  %v1153 = vlaneseq
  %v1154 = vshrl.u32 %v1153, 7
  %v1155 = vsub.s32 0, %v1154
  %v1156 = vrot.slane %v1151, %v1155
  %v1157 = vlaneseq
  %v1158 = vshrl.u32 %v1157, 7
  %v1159 = vsub.s32 1, %v1158
  %v1160 = vrot.slane %v1151, %v1159
  %v1163 = vadd.f32 %v1148, %v1156
  %v1164 = vadd.f32 %v1149, %v1160
  %v1165 = vpack.c.bf16 %v1163, %v1163
  %v1166 = vpack.c.bf16 %v1164, %v1164
  %v1169 = vunpack.c.l.b16 %v1165
  %v1170 = vunpack.c.l.b16 %v1166
  %v1171 = vpack.c.b16 %v1170, %v1169
  %1173 = vst [vmem:[%s3] sm:$0xff] %v1171
  // Predicated region
  $region14: #{autoencoder_forward.10} parent=0 // pred_check
    _
  $region15: #{autoencoder_forward.10} parent=0 // pred_check_branch
    %1175 = sbr.rel (0) target = $region17
  $region16: #{autoencoder_forward.10} parent=0 // pred_region
    _
  $region17: #{autoencoder_forward.10} parent=0 // pred_fallthru
    _
  // Predicated region
  $region18: #{autoencoder_forward.10} parent=0 // pred_check
    _
  $region19: #{autoencoder_forward.10} parent=0 // pred_check_branch
    %1177 = sbr.rel (0) target = $region21
  $region20: #{autoencoder_forward.10} parent=0 // pred_region
    _
  $region21: #{autoencoder_forward.10} parent=0 // pred_fallthru
    _

// kernel: autoencoder_forward.11
$region0: #{autoencoder_forward.11}
  #allocation0 [shape = 'u32[]', space=smem, size = 0x4, offset = 0x4, fixed_abs, tag = 'smem constant byte address 0x4 - core index']
  #allocation1 [shape = 'u32[144,128]{1,0:T(1,128)}', space=vmem, size = 0x12000, scoped, tag = 'internal scratch']
  %s0 = inlined_call_operand.vmem [shape: bf16[8,2304], index: 0, kind: input, shape index: {}]
  %s1 = inlined_call_operand.vmem [shape: bf16[2304,256], index: 1, kind: input, shape index: {}]
  %s2 = inlined_call_operand.vmem [shape: f32[3,256], index: 2, kind: input, shape index: {}]
  %s3 = inlined_call_operand.vmem [shape: bf16[8,256], index: 3, kind: output, shape index: {}]
  %s4 = sld [smem:[#allocation0]]
  $region22: #{autoencoder_forward.11} parent=0
    _
  %s6 = ssub.s32 1, %s4
  %s7 = scalar_select 0, %s6, %s4
  // Predicated region
  $region2: #{autoencoder_forward.11} parent=0 // pred_check
    _
  $region3: #{autoencoder_forward.11} parent=0 // pred_check_branch
    %9 = sbr.rel (0) target = $region5
  $region4: #{autoencoder_forward.11} parent=0 // pred_region
    _
  $region5: #{autoencoder_forward.11} parent=0 // pred_fallthru
    _
  // Predicated region
  $region6: #{autoencoder_forward.11} parent=0 // pred_check
    _
  $region7: #{autoencoder_forward.11} parent=0 // pred_check_branch
    %11 = sbr.rel (0) target = $region9
  $region8: #{autoencoder_forward.11} parent=0 // pred_region
    _
  $region9: #{autoencoder_forward.11} parent=0 // pred_fallthru
    _
  // Predicated region
  $region10: #{autoencoder_forward.11} parent=0 // pred_check
    _
  $region11: #{autoencoder_forward.11} parent=0 // pred_check_branch
    %13 = sbr.rel (0) target = $region13
  $region12: #{autoencoder_forward.11} parent=0 // pred_region
    _
  $region13: #{autoencoder_forward.11} parent=0 // pred_fallthru
    _
  %v14 = vld [vmem:[%s0] sm:$0xff]
  %v15 = vld [vmem:[%s0 + $0x8] sm:$0xff]
  %v16 = vld [vmem:[%s0 + $0x10] sm:$0xff]
  %v17 = vld [vmem:[%s0 + $0x18] sm:$0xff]
  %v18 = vld [vmem:[%s0 + $0x20] sm:$0xff]
  %v19 = vld [vmem:[%s0 + $0x28] sm:$0xff]
  %v20 = vld [vmem:[%s0 + $0x30] sm:$0xff]
  %v21 = vld [vmem:[%s0 + $0x38] sm:$0xff]
  %v22 = vld [vmem:[%s0 + $0x40] sm:$0xff]
  %v23 = vld [vmem:[%s1] sm:$0xff]
  %v24 = vld [vmem:[%s1 + $0x8] sm:$0xff]
  %v25 = vld [vmem:[%s1 + $0x10] sm:$0xff]
  %v26 = vld [vmem:[%s1 + $0x18] sm:$0xff]
  %v27 = vld [vmem:[%s1 + $0x20] sm:$0xff]
  %v28 = vld [vmem:[%s1 + $0x28] sm:$0xff]
  %v29 = vld [vmem:[%s1 + $0x30] sm:$0xff]
  %v30 = vld [vmem:[%s1 + $0x38] sm:$0xff]
  %v31 = vld [vmem:[%s1 + $0x40] sm:$0xff]
  %v32 = vld [vmem:[%s1 + $0x48] sm:$0xff]
  %v33 = vld [vmem:[%s1 + $0x50] sm:$0xff]
  %v34 = vld [vmem:[%s1 + $0x58] sm:$0xff]
  %v35 = vld [vmem:[%s1 + $0x60] sm:$0xff]
  %v36 = vld [vmem:[%s1 + $0x68] sm:$0xff]
  %v37 = vld [vmem:[%s1 + $0x70] sm:$0xff]
  %v38 = vld [vmem:[%s1 + $0x78] sm:$0xff]
  %v39 = vld [vmem:[%s1 + $0x80] sm:$0xff]
  %v40 = vld [vmem:[%s1 + $0x88] sm:$0xff]
  %v41 = vld [vmem:[%s1 + $0x90] sm:$0xff]
  %v42 = vld [vmem:[%s1 + $0x98] sm:$0xff]
  %v43 = vld [vmem:[%s1 + $0xa0] sm:$0xff]
  %v44 = vld [vmem:[%s1 + $0xa8] sm:$0xff]
  %v45 = vld [vmem:[%s1 + $0xb0] sm:$0xff]
  %v46 = vld [vmem:[%s1 + $0xb8] sm:$0xff]
  %v47 = vld [vmem:[%s1 + $0xc0] sm:$0xff]
  %v48 = vld [vmem:[%s1 + $0xc8] sm:$0xff]
  %v49 = vld [vmem:[%s1 + $0xd0] sm:$0xff]
  %v50 = vld [vmem:[%s1 + $0xd8] sm:$0xff]
  %v51 = vld [vmem:[%s1 + $0xe0] sm:$0xff]
  %v52 = vld [vmem:[%s1 + $0xe8] sm:$0xff]
  %v53 = vld [vmem:[%s1 + $0xf0] sm:$0xff]
  %v54 = vld [vmem:[%s1 + $0xf8] sm:$0xff]
  %v55 = vld [vmem:[%s1 + $0x100] sm:$0xff]
  %v56 = vld [vmem:[%s1 + $0x108] sm:$0xff]
  %v57 = vld [vmem:[%s1 + $0x110] sm:$0xff]
  %v58 = vld [vmem:[%s1 + $0x118] sm:$0xff]
  %v59 = vld [vmem:[%s1 + $0x120] sm:$0xff]
  %v60 = vld [vmem:[%s1 + $0x128] sm:$0xff]
  %v61 = vld [vmem:[%s1 + $0x130] sm:$0xff]
  %v62 = vld [vmem:[%s1 + $0x138] sm:$0xff]
  %v63 = vld [vmem:[%s1 + $0x140] sm:$0xff]
  %v64 = vld [vmem:[%s1 + $0x148] sm:$0xff]
  %v65 = vld [vmem:[%s1 + $0x150] sm:$0xff]
  %v66 = vld [vmem:[%s1 + $0x158] sm:$0xff]
  %v67 = vld [vmem:[%s1 + $0x160] sm:$0xff]
  %v68 = vld [vmem:[%s1 + $0x168] sm:$0xff]
  %v69 = vld [vmem:[%s1 + $0x170] sm:$0xff]
  %v70 = vld [vmem:[%s1 + $0x178] sm:$0xff]
  %v71 = vld [vmem:[%s1 + $0x180] sm:$0xff]
  %v72 = vld [vmem:[%s1 + $0x188] sm:$0xff]
  %v73 = vld [vmem:[%s1 + $0x190] sm:$0xff]
  %v74 = vld [vmem:[%s1 + $0x198] sm:$0xff]
  %v75 = vld [vmem:[%s1 + $0x1a0] sm:$0xff]
  %v76 = vld [vmem:[%s1 + $0x1a8] sm:$0xff]
  %v77 = vld [vmem:[%s1 + $0x1b0] sm:$0xff]
  %v78 = vld [vmem:[%s1 + $0x1b8] sm:$0xff]
  %v79 = vld [vmem:[%s1 + $0x1c0] sm:$0xff]
  %v80 = vld [vmem:[%s1 + $0x1c8] sm:$0xff]
  %v81 = vld [vmem:[%s1 + $0x1d0] sm:$0xff]
  %v82 = vld [vmem:[%s1 + $0x1d8] sm:$0xff]
  %v83 = vld [vmem:[%s1 + $0x1e0] sm:$0xff]
  %v84 = vld [vmem:[%s1 + $0x1e8] sm:$0xff]
  %v85 = vld [vmem:[%s1 + $0x1f0] sm:$0xff]
  %v86 = vld [vmem:[%s1 + $0x1f8] sm:$0xff]
  %v87 = vld [vmem:[%s1 + $0x200] sm:$0xff]
  %v88 = vld [vmem:[%s1 + $0x208] sm:$0xff]
  %v89 = vld [vmem:[%s1 + $0x210] sm:$0xff]
  %v90 = vld [vmem:[%s1 + $0x218] sm:$0xff]
  %v91 = vld [vmem:[%s1 + $0x220] sm:$0xff]
  %v92 = vld [vmem:[%s1 + $0x228] sm:$0xff]
  %v93 = vld [vmem:[%s1 + $0x230] sm:$0xff]
  %v94 = vld [vmem:[%s1 + $0x238] sm:$0xff]
  %v95 = vld [vmem:[%s1 + $0x240] sm:$0xff]
  %v96 = vld [vmem:[%s1 + $0x248] sm:$0xff]
  %v97 = vld [vmem:[%s1 + $0x250] sm:$0xff]
  %v98 = vld [vmem:[%s1 + $0x258] sm:$0xff]
  %v99 = vld [vmem:[%s1 + $0x260] sm:$0xff]
  %v100 = vld [vmem:[%s1 + $0x268] sm:$0xff]
  %v101 = vld [vmem:[%s1 + $0x270] sm:$0xff]
  %v102 = vld [vmem:[%s1 + $0x278] sm:$0xff]
  %v103 = vld [vmem:[%s1 + $0x280] sm:$0xff]
  %v104 = vld [vmem:[%s1 + $0x288] sm:$0xff]
  %v105 = vld [vmem:[%s1 + $0x290] sm:$0xff]
  %v106 = vld [vmem:[%s1 + $0x298] sm:$0xff]
  %v107 = vld [vmem:[%s1 + $0x2a0] sm:$0xff]
  %v108 = vld [vmem:[%s1 + $0x2a8] sm:$0xff]
  %v109 = vld [vmem:[%s1 + $0x2b0] sm:$0xff]
  %v110 = vld [vmem:[%s1 + $0x2b8] sm:$0xff]
  %v111 = vld [vmem:[%s1 + $0x2c0] sm:$0xff]
  %v112 = vld [vmem:[%s1 + $0x2c8] sm:$0xff]
  %v113 = vld [vmem:[%s1 + $0x2d0] sm:$0xff]
  %v114 = vld [vmem:[%s1 + $0x2d8] sm:$0xff]
  %v115 = vld [vmem:[%s1 + $0x2e0] sm:$0xff]
  %v116 = vld [vmem:[%s1 + $0x2e8] sm:$0xff]
  %v117 = vld [vmem:[%s1 + $0x2f0] sm:$0xff]
  %v118 = vld [vmem:[%s1 + $0x2f8] sm:$0xff]
  %v119 = vld [vmem:[%s1 + $0x300] sm:$0xff]
  %v120 = vld [vmem:[%s1 + $0x308] sm:$0xff]
  %v121 = vld [vmem:[%s1 + $0x310] sm:$0xff]
  %v122 = vld [vmem:[%s1 + $0x318] sm:$0xff]
  %v123 = vld [vmem:[%s1 + $0x320] sm:$0xff]
  %v124 = vld [vmem:[%s1 + $0x328] sm:$0xff]
  %v125 = vld [vmem:[%s1 + $0x330] sm:$0xff]
  %v126 = vld [vmem:[%s1 + $0x338] sm:$0xff]
  %v127 = vld [vmem:[%s1 + $0x340] sm:$0xff]
  %v128 = vld [vmem:[%s1 + $0x348] sm:$0xff]
  %v129 = vld [vmem:[%s1 + $0x350] sm:$0xff]
  %v130 = vld [vmem:[%s1 + $0x358] sm:$0xff]
  %v131 = vld [vmem:[%s1 + $0x360] sm:$0xff]
  %v132 = vld [vmem:[%s1 + $0x368] sm:$0xff]
  %v133 = vld [vmem:[%s1 + $0x370] sm:$0xff]
  %v134 = vld [vmem:[%s1 + $0x378] sm:$0xff]
  %v135 = vld [vmem:[%s1 + $0x380] sm:$0xff]
  %v136 = vld [vmem:[%s1 + $0x388] sm:$0xff]
  %v137 = vld [vmem:[%s1 + $0x390] sm:$0xff]
  %v138 = vld [vmem:[%s1 + $0x398] sm:$0xff]
  %v139 = vld [vmem:[%s1 + $0x3a0] sm:$0xff]
  %v140 = vld [vmem:[%s1 + $0x3a8] sm:$0xff]
  %v141 = vld [vmem:[%s1 + $0x3b0] sm:$0xff]
  %v142 = vld [vmem:[%s1 + $0x3b8] sm:$0xff]
  %v143 = vld [vmem:[%s1 + $0x3c0] sm:$0xff]
  %v144 = vld [vmem:[%s1 + $0x3c8] sm:$0xff]
  %v145 = vld [vmem:[%s1 + $0x3d0] sm:$0xff]
  %v146 = vld [vmem:[%s1 + $0x3d8] sm:$0xff]
  %v147 = vld [vmem:[%s1 + $0x3e0] sm:$0xff]
  %v148 = vld [vmem:[%s1 + $0x3e8] sm:$0xff]
  %v149 = vld [vmem:[%s1 + $0x3f0] sm:$0xff]
  %v150 = vld [vmem:[%s1 + $0x3f8] sm:$0xff]
  %v151 = vld [vmem:[%s1 + $0x400] sm:$0xff]
  %v152 = vld [vmem:[%s1 + $0x408] sm:$0xff]
  %v153 = vld [vmem:[%s1 + $0x410] sm:$0xff]
  %v154 = vld [vmem:[%s1 + $0x418] sm:$0xff]
  %v155 = vld [vmem:[%s1 + $0x420] sm:$0xff]
  %v156 = vld [vmem:[%s1 + $0x428] sm:$0xff]
  %v157 = vld [vmem:[%s1 + $0x430] sm:$0xff]
  %v158 = vld [vmem:[%s1 + $0x438] sm:$0xff]
  %v159 = vld [vmem:[%s1 + $0x440] sm:$0xff]
  %v160 = vld [vmem:[%s1 + $0x448] sm:$0xff]
  %v161 = vld [vmem:[%s1 + $0x450] sm:$0xff]
  %v162 = vld [vmem:[%s1 + $0x458] sm:$0xff]
  %v163 = vld [vmem:[%s1 + $0x460] sm:$0xff]
  %v164 = vld [vmem:[%s1 + $0x468] sm:$0xff]
  %v165 = vld [vmem:[%s1 + $0x470] sm:$0xff]
  %v166 = vld [vmem:[%s1 + $0x478] sm:$0xff]
  %v167 = vld [vmem:[%s1 + $0x480] sm:$0xff]
  %v168 = vld [vmem:[%s1 + $0x488] sm:$0xff]
  %v169 = vld [vmem:[%s1 + $0x490] sm:$0xff]
  %v170 = vld [vmem:[%s1 + $0x498] sm:$0xff]
  %v171 = vld [vmem:[%s1 + $0x4a0] sm:$0xff]
  %v172 = vld [vmem:[%s1 + $0x4a8] sm:$0xff]
  %v173 = vld [vmem:[%s1 + $0x4b0] sm:$0xff]
  %v174 = vld [vmem:[%s1 + $0x4b8] sm:$0xff]
  %v175 = vld [vmem:[%s1 + $0x4c0] sm:$0xff]
  %v176 = vld [vmem:[%s1 + $0x4c8] sm:$0xff]
  %v177 = vld [vmem:[%s1 + $0x4d0] sm:$0xff]
  %v178 = vld [vmem:[%s1 + $0x4d8] sm:$0xff]
  %v179 = vld [vmem:[%s1 + $0x4e0] sm:$0xff]
  %v180 = vld [vmem:[%s1 + $0x4e8] sm:$0xff]
  %v181 = vld [vmem:[%s1 + $0x4f0] sm:$0xff]
  %v182 = vld [vmem:[%s1 + $0x4f8] sm:$0xff]
  %v183 = vld [vmem:[%s1 + $0x500] sm:$0xff]
  %v184 = vld [vmem:[%s1 + $0x508] sm:$0xff]
  %v185 = vld [vmem:[%s1 + $0x510] sm:$0xff]
  %v186 = vld [vmem:[%s1 + $0x518] sm:$0xff]
  %v187 = vld [vmem:[%s1 + $0x520] sm:$0xff]
  %v188 = vld [vmem:[%s1 + $0x528] sm:$0xff]
  %v189 = vld [vmem:[%s1 + $0x530] sm:$0xff]
  %v190 = vld [vmem:[%s1 + $0x538] sm:$0xff]
  %v191 = vld [vmem:[%s1 + $0x540] sm:$0xff]
  %v192 = vld [vmem:[%s1 + $0x548] sm:$0xff]
  %v193 = vld [vmem:[%s1 + $0x550] sm:$0xff]
  %v194 = vld [vmem:[%s1 + $0x558] sm:$0xff]
  %v195 = vld [vmem:[%s1 + $0x560] sm:$0xff]
  %v196 = vld [vmem:[%s1 + $0x568] sm:$0xff]
  %v197 = vld [vmem:[%s1 + $0x570] sm:$0xff]
  %v198 = vld [vmem:[%s1 + $0x578] sm:$0xff]
  %v199 = vld [vmem:[%s1 + $0x580] sm:$0xff]
  %v200 = vld [vmem:[%s1 + $0x588] sm:$0xff]
  %v201 = vld [vmem:[%s1 + $0x590] sm:$0xff]
  %v202 = vld [vmem:[%s1 + $0x598] sm:$0xff]
  %v203 = vld [vmem:[%s1 + $0x5a0] sm:$0xff]
  %v204 = vld [vmem:[%s1 + $0x5a8] sm:$0xff]
  %v205 = vld [vmem:[%s1 + $0x5b0] sm:$0xff]
  %v206 = vld [vmem:[%s1 + $0x5b8] sm:$0xff]
  %v207 = vld [vmem:[%s1 + $0x5c0] sm:$0xff]
  %v208 = vld [vmem:[%s1 + $0x5c8] sm:$0xff]
  %v209 = vld [vmem:[%s1 + $0x5d0] sm:$0xff]
  %v210 = vld [vmem:[%s1 + $0x5d8] sm:$0xff]
  %v211 = vld [vmem:[%s1 + $0x5e0] sm:$0xff]
  %v212 = vld [vmem:[%s1 + $0x5e8] sm:$0xff]
  %v213 = vld [vmem:[%s1 + $0x5f0] sm:$0xff]
  %v214 = vld [vmem:[%s1 + $0x5f8] sm:$0xff]
  %v215 = vld [vmem:[%s1 + $0x600] sm:$0xff]
  %v216 = vld [vmem:[%s1 + $0x608] sm:$0xff]
  %v217 = vld [vmem:[%s1 + $0x610] sm:$0xff]
  %v218 = vld [vmem:[%s1 + $0x618] sm:$0xff]
  %v219 = vld [vmem:[%s1 + $0x620] sm:$0xff]
  %v220 = vld [vmem:[%s1 + $0x628] sm:$0xff]
  %v221 = vld [vmem:[%s1 + $0x630] sm:$0xff]
  %v222 = vld [vmem:[%s1 + $0x638] sm:$0xff]
  %v223 = vld [vmem:[%s1 + $0x640] sm:$0xff]
  %v224 = vld [vmem:[%s1 + $0x648] sm:$0xff]
  %v225 = vld [vmem:[%s1 + $0x650] sm:$0xff]
  %v226 = vld [vmem:[%s1 + $0x658] sm:$0xff]
  %v227 = vld [vmem:[%s1 + $0x660] sm:$0xff]
  %v228 = vld [vmem:[%s1 + $0x668] sm:$0xff]
  %v229 = vld [vmem:[%s1 + $0x670] sm:$0xff]
  %v230 = vld [vmem:[%s1 + $0x678] sm:$0xff]
  %v231 = vld [vmem:[%s1 + $0x680] sm:$0xff]
  %v232 = vld [vmem:[%s1 + $0x688] sm:$0xff]
  %v233 = vld [vmem:[%s1 + $0x690] sm:$0xff]
  %v234 = vld [vmem:[%s1 + $0x698] sm:$0xff]
  %v235 = vld [vmem:[%s1 + $0x6a0] sm:$0xff]
  %v236 = vld [vmem:[%s1 + $0x6a8] sm:$0xff]
  %v237 = vld [vmem:[%s1 + $0x6b0] sm:$0xff]
  %v238 = vld [vmem:[%s1 + $0x6b8] sm:$0xff]
  %v239 = vld [vmem:[%s1 + $0x6c0] sm:$0xff]
  %v240 = vld [vmem:[%s1 + $0x6c8] sm:$0xff]
  %v241 = vld [vmem:[%s1 + $0x6d0] sm:$0xff]
  %v242 = vld [vmem:[%s1 + $0x6d8] sm:$0xff]
  %v243 = vld [vmem:[%s1 + $0x6e0] sm:$0xff]
  %v244 = vld [vmem:[%s1 + $0x6e8] sm:$0xff]
  %v245 = vld [vmem:[%s1 + $0x6f0] sm:$0xff]
  %v246 = vld [vmem:[%s1 + $0x6f8] sm:$0xff]
  %v247 = vld [vmem:[%s1 + $0x700] sm:$0xff]
  %v248 = vld [vmem:[%s1 + $0x708] sm:$0xff]
  %v249 = vld [vmem:[%s1 + $0x710] sm:$0xff]
  %v250 = vld [vmem:[%s1 + $0x718] sm:$0xff]
  %v251 = vld [vmem:[%s1 + $0x720] sm:$0xff]
  %v252 = vld [vmem:[%s1 + $0x728] sm:$0xff]
  %v253 = vld [vmem:[%s1 + $0x730] sm:$0xff]
  %v254 = vld [vmem:[%s1 + $0x738] sm:$0xff]
  %v255 = vld [vmem:[%s1 + $0x740] sm:$0xff]
  %v256 = vld [vmem:[%s1 + $0x748] sm:$0xff]
  %v257 = vld [vmem:[%s1 + $0x750] sm:$0xff]
  %v258 = vld [vmem:[%s1 + $0x758] sm:$0xff]
  %v259 = vld [vmem:[%s1 + $0x760] sm:$0xff]
  %v260 = vld [vmem:[%s1 + $0x768] sm:$0xff]
  %v261 = vld [vmem:[%s1 + $0x770] sm:$0xff]
  %v262 = vld [vmem:[%s1 + $0x778] sm:$0xff]
  %v263 = vld [vmem:[%s1 + $0x780] sm:$0xff]
  %v264 = vld [vmem:[%s1 + $0x788] sm:$0xff]
  %v265 = vld [vmem:[%s1 + $0x790] sm:$0xff]
  %v266 = vld [vmem:[%s1 + $0x798] sm:$0xff]
  %v267 = vld [vmem:[%s1 + $0x7a0] sm:$0xff]
  %v268 = vld [vmem:[%s1 + $0x7a8] sm:$0xff]
  %v269 = vld [vmem:[%s1 + $0x7b0] sm:$0xff]
  %v270 = vld [vmem:[%s1 + $0x7b8] sm:$0xff]
  %v271 = vld [vmem:[%s1 + $0x7c0] sm:$0xff]
  %v272 = vld [vmem:[%s1 + $0x7c8] sm:$0xff]
  %v273 = vld [vmem:[%s1 + $0x7d0] sm:$0xff]
  %v274 = vld [vmem:[%s1 + $0x7d8] sm:$0xff]
  %v275 = vld [vmem:[%s1 + $0x7e0] sm:$0xff]
  %v276 = vld [vmem:[%s1 + $0x7e8] sm:$0xff]
  %v277 = vld [vmem:[%s1 + $0x7f0] sm:$0xff]
  %v278 = vld [vmem:[%s1 + $0x7f8] sm:$0xff]
  %v279 = vld [vmem:[%s1 + $0x800] sm:$0xff]
  %v280 = vld [vmem:[%s1 + $0x808] sm:$0xff]
  %v281 = vld [vmem:[%s1 + $0x810] sm:$0xff]
  %v282 = vld [vmem:[%s1 + $0x818] sm:$0xff]
  %v283 = vld [vmem:[%s1 + $0x820] sm:$0xff]
  %v284 = vld [vmem:[%s1 + $0x828] sm:$0xff]
  %v285 = vld [vmem:[%s1 + $0x830] sm:$0xff]
  %v286 = vld [vmem:[%s1 + $0x838] sm:$0xff]
  %v287 = vld [vmem:[%s1 + $0x840] sm:$0xff]
  %v288 = vld [vmem:[%s1 + $0x848] sm:$0xff]
  %v289 = vld [vmem:[%s1 + $0x850] sm:$0xff]
  %v290 = vld [vmem:[%s1 + $0x858] sm:$0xff]
  %v291 = vld [vmem:[%s1 + $0x860] sm:$0xff]
  %v292 = vld [vmem:[%s1 + $0x868] sm:$0xff]
  %v293 = vld [vmem:[%s1 + $0x870] sm:$0xff]
  %v294 = vld [vmem:[%s1 + $0x878] sm:$0xff]
  %v295 = vld [vmem:[%s1 + $0x880] sm:$0xff]
  %v296 = vld [vmem:[%s1 + $0x888] sm:$0xff]
  %v297 = vld [vmem:[%s1 + $0x890] sm:$0xff]
  %v298 = vld [vmem:[%s1 + $0x898] sm:$0xff]
  %v299 = vld [vmem:[%s1 + $0x8a0] sm:$0xff]
  %v300 = vld [vmem:[%s1 + $0x8a8] sm:$0xff]
  %v301 = vld [vmem:[%s1 + $0x8b0] sm:$0xff]
  %v302 = vld [vmem:[%s1 + $0x8b8] sm:$0xff]
  %v303 = vld [vmem:[%s1 + $0x8c0] sm:$0xff]
  %v304 = vld [vmem:[%s1 + $0x8c8] sm:$0xff]
  %v305 = vld [vmem:[%s1 + $0x8d0] sm:$0xff]
  %v306 = vld [vmem:[%s1 + $0x8d8] sm:$0xff]
  %v307 = vld [vmem:[%s1 + $0x8e0] sm:$0xff]
  %v308 = vld [vmem:[%s1 + $0x8e8] sm:$0xff]
  %v309 = vld [vmem:[%s1 + $0x8f0] sm:$0xff]
  %v310 = vld [vmem:[%s1 + $0x8f8] sm:$0xff]
  %v320 = vunpack.c.l.b16 %v14
  %v321 = vunpack.c.h.b16 %v14
  %v322 = vunpack.c.l.b16 %v15
  %v323 = vunpack.c.h.b16 %v15
  %v324 = vunpack.c.l.b16 %v16
  %v325 = vunpack.c.h.b16 %v16
  %v326 = vunpack.c.l.b16 %v17
  %v327 = vunpack.c.h.b16 %v17
  %v328 = vunpack.c.l.b16 %v18
  %v329 = vunpack.c.h.b16 %v18
  %v330 = vunpack.c.l.b16 %v19
  %v331 = vunpack.c.h.b16 %v19
  %v332 = vunpack.c.l.b16 %v20
  %v333 = vunpack.c.h.b16 %v20
  %v334 = vunpack.c.l.b16 %v21
  %v335 = vunpack.c.h.b16 %v21
  %v336 = vunpack.c.l.b16 %v22
  %v337 = vunpack.c.h.b16 %v22
  %v338 = vpack.c.b16 %v320, %v320
  %v339 = vpack.c.b16 %v321, %v321
  %v340 = vpack.c.b16 %v322, %v322
  %v341 = vpack.c.b16 %v323, %v323
  %v342 = vpack.c.b16 %v324, %v324
  %v343 = vpack.c.b16 %v325, %v325
  %v344 = vpack.c.b16 %v326, %v326
  %v345 = vpack.c.b16 %v327, %v327
  %v346 = vpack.c.b16 %v328, %v328
  %v347 = vpack.c.b16 %v329, %v329
  %v348 = vpack.c.b16 %v330, %v330
  %v349 = vpack.c.b16 %v331, %v331
  %v350 = vpack.c.b16 %v332, %v332
  %v351 = vpack.c.b16 %v333, %v333
  %v352 = vpack.c.b16 %v334, %v334
  %v353 = vpack.c.b16 %v335, %v335
  %v354 = vpack.c.b16 %v336, %v336
  %v355 = vpack.c.b16 %v337, %v337
  %v662 = vunpack.c.l.b16 %v23
  %v663 = vunpack.c.h.b16 %v23
  %v664 = vunpack.c.l.b16 %v24
  %v665 = vunpack.c.h.b16 %v24
  %v666 = vunpack.c.l.b16 %v25
  %v667 = vunpack.c.h.b16 %v25
  %v668 = vunpack.c.l.b16 %v26
  %v669 = vunpack.c.h.b16 %v26
  %v670 = vunpack.c.l.b16 %v27
  %v671 = vunpack.c.h.b16 %v27
  %v672 = vunpack.c.l.b16 %v28
  %v673 = vunpack.c.h.b16 %v28
  %v674 = vunpack.c.l.b16 %v29
  %v675 = vunpack.c.h.b16 %v29
  %v676 = vunpack.c.l.b16 %v30
  %v677 = vunpack.c.h.b16 %v30
  %v678 = vunpack.c.l.b16 %v31
  %v679 = vunpack.c.h.b16 %v31
  %v680 = vunpack.c.l.b16 %v32
  %v681 = vunpack.c.h.b16 %v32
  %v682 = vunpack.c.l.b16 %v33
  %v683 = vunpack.c.h.b16 %v33
  %v684 = vunpack.c.l.b16 %v34
  %v685 = vunpack.c.h.b16 %v34
  %v686 = vunpack.c.l.b16 %v35
  %v687 = vunpack.c.h.b16 %v35
  %v688 = vunpack.c.l.b16 %v36
  %v689 = vunpack.c.h.b16 %v36
  %v690 = vunpack.c.l.b16 %v37
  %v691 = vunpack.c.h.b16 %v37
  %v692 = vunpack.c.l.b16 %v38
  %v693 = vunpack.c.h.b16 %v38
  %v694 = vunpack.c.l.b16 %v39
  %v695 = vunpack.c.h.b16 %v39
  %v696 = vunpack.c.l.b16 %v40
  %v697 = vunpack.c.h.b16 %v40
  %v698 = vunpack.c.l.b16 %v41
  %v699 = vunpack.c.h.b16 %v41
  %v700 = vunpack.c.l.b16 %v42
  %v701 = vunpack.c.h.b16 %v42
  %v702 = vunpack.c.l.b16 %v43
  %v703 = vunpack.c.h.b16 %v43
  %v704 = vunpack.c.l.b16 %v44
  %v705 = vunpack.c.h.b16 %v44
  %v706 = vunpack.c.l.b16 %v45
  %v707 = vunpack.c.h.b16 %v45
  %v708 = vunpack.c.l.b16 %v46
  %v709 = vunpack.c.h.b16 %v46
  %v710 = vunpack.c.l.b16 %v47
  %v711 = vunpack.c.h.b16 %v47
  %v712 = vunpack.c.l.b16 %v48
  %v713 = vunpack.c.h.b16 %v48
  %v714 = vunpack.c.l.b16 %v49
  %v715 = vunpack.c.h.b16 %v49
  %v716 = vunpack.c.l.b16 %v50
  %v717 = vunpack.c.h.b16 %v50
  %v718 = vunpack.c.l.b16 %v51
  %v719 = vunpack.c.h.b16 %v51
  %v720 = vunpack.c.l.b16 %v52
  %v721 = vunpack.c.h.b16 %v52
  %v722 = vunpack.c.l.b16 %v53
  %v723 = vunpack.c.h.b16 %v53
  %v724 = vunpack.c.l.b16 %v54
  %v725 = vunpack.c.h.b16 %v54
  %v726 = vunpack.c.l.b16 %v55
  %v727 = vunpack.c.h.b16 %v55
  %v728 = vunpack.c.l.b16 %v56
  %v729 = vunpack.c.h.b16 %v56
  %v730 = vunpack.c.l.b16 %v57
  %v731 = vunpack.c.h.b16 %v57
  %v732 = vunpack.c.l.b16 %v58
  %v733 = vunpack.c.h.b16 %v58
  %v734 = vunpack.c.l.b16 %v59
  %v735 = vunpack.c.h.b16 %v59
  %v736 = vunpack.c.l.b16 %v60
  %v737 = vunpack.c.h.b16 %v60
  %v738 = vunpack.c.l.b16 %v61
  %v739 = vunpack.c.h.b16 %v61
  %v740 = vunpack.c.l.b16 %v62
  %v741 = vunpack.c.h.b16 %v62
  %v742 = vunpack.c.l.b16 %v63
  %v743 = vunpack.c.h.b16 %v63
  %v744 = vunpack.c.l.b16 %v64
  %v745 = vunpack.c.h.b16 %v64
  %v746 = vunpack.c.l.b16 %v65
  %v747 = vunpack.c.h.b16 %v65
  %v748 = vunpack.c.l.b16 %v66
  %v749 = vunpack.c.h.b16 %v66
  %v750 = vunpack.c.l.b16 %v67
  %v751 = vunpack.c.h.b16 %v67
  %v752 = vunpack.c.l.b16 %v68
  %v753 = vunpack.c.h.b16 %v68
  %v754 = vunpack.c.l.b16 %v69
  %v755 = vunpack.c.h.b16 %v69
  %v756 = vunpack.c.l.b16 %v70
  %v757 = vunpack.c.h.b16 %v70
  %v758 = vunpack.c.l.b16 %v71
  %v759 = vunpack.c.h.b16 %v71
  %v760 = vunpack.c.l.b16 %v72
  %v761 = vunpack.c.h.b16 %v72
  %v762 = vunpack.c.l.b16 %v73
  %v763 = vunpack.c.h.b16 %v73
  %v764 = vunpack.c.l.b16 %v74
  %v765 = vunpack.c.h.b16 %v74
  %v766 = vunpack.c.l.b16 %v75
  %v767 = vunpack.c.h.b16 %v75
  %v768 = vunpack.c.l.b16 %v76
  %v769 = vunpack.c.h.b16 %v76
  %v770 = vunpack.c.l.b16 %v77
  %v771 = vunpack.c.h.b16 %v77
  %v772 = vunpack.c.l.b16 %v78
  %v773 = vunpack.c.h.b16 %v78
  %v774 = vunpack.c.l.b16 %v79
  %v775 = vunpack.c.h.b16 %v79
  %v776 = vunpack.c.l.b16 %v80
  %v777 = vunpack.c.h.b16 %v80
  %v778 = vunpack.c.l.b16 %v81
  %v779 = vunpack.c.h.b16 %v81
  %v780 = vunpack.c.l.b16 %v82
  %v781 = vunpack.c.h.b16 %v82
  %v782 = vunpack.c.l.b16 %v83
  %v783 = vunpack.c.h.b16 %v83
  %v784 = vunpack.c.l.b16 %v84
  %v785 = vunpack.c.h.b16 %v84
  %v786 = vunpack.c.l.b16 %v85
  %v787 = vunpack.c.h.b16 %v85
  %v788 = vunpack.c.l.b16 %v86
  %v789 = vunpack.c.h.b16 %v86
  %v790 = vunpack.c.l.b16 %v87
  %v791 = vunpack.c.h.b16 %v87
  %v792 = vunpack.c.l.b16 %v88
  %v793 = vunpack.c.h.b16 %v88
  %v794 = vunpack.c.l.b16 %v89
  %v795 = vunpack.c.h.b16 %v89
  %v796 = vunpack.c.l.b16 %v90
  %v797 = vunpack.c.h.b16 %v90
  %v798 = vunpack.c.l.b16 %v91
  %v799 = vunpack.c.h.b16 %v91
  %v800 = vunpack.c.l.b16 %v92
  %v801 = vunpack.c.h.b16 %v92
  %v802 = vunpack.c.l.b16 %v93
  %v803 = vunpack.c.h.b16 %v93
  %v804 = vunpack.c.l.b16 %v94
  %v805 = vunpack.c.h.b16 %v94
  %v806 = vunpack.c.l.b16 %v95
  %v807 = vunpack.c.h.b16 %v95
  %v808 = vunpack.c.l.b16 %v96
  %v809 = vunpack.c.h.b16 %v96
  %v810 = vunpack.c.l.b16 %v97
  %v811 = vunpack.c.h.b16 %v97
  %v812 = vunpack.c.l.b16 %v98
  %v813 = vunpack.c.h.b16 %v98
  %v814 = vunpack.c.l.b16 %v99
  %v815 = vunpack.c.h.b16 %v99
  %v816 = vunpack.c.l.b16 %v100
  %v817 = vunpack.c.h.b16 %v100
  %v818 = vunpack.c.l.b16 %v101
  %v819 = vunpack.c.h.b16 %v101
  %v820 = vunpack.c.l.b16 %v102
  %v821 = vunpack.c.h.b16 %v102
  %v822 = vunpack.c.l.b16 %v103
  %v823 = vunpack.c.h.b16 %v103
  %v824 = vunpack.c.l.b16 %v104
  %v825 = vunpack.c.h.b16 %v104
  %v826 = vunpack.c.l.b16 %v105
  %v827 = vunpack.c.h.b16 %v105
  %v828 = vunpack.c.l.b16 %v106
  %v829 = vunpack.c.h.b16 %v106
  %v830 = vunpack.c.l.b16 %v107
  %v831 = vunpack.c.h.b16 %v107
  %v832 = vunpack.c.l.b16 %v108
  %v833 = vunpack.c.h.b16 %v108
  %v834 = vunpack.c.l.b16 %v109
  %v835 = vunpack.c.h.b16 %v109
  %v836 = vunpack.c.l.b16 %v110
  %v837 = vunpack.c.h.b16 %v110
  %v838 = vunpack.c.l.b16 %v111
  %v839 = vunpack.c.h.b16 %v111
  %v840 = vunpack.c.l.b16 %v112
  %v841 = vunpack.c.h.b16 %v112
  %v842 = vunpack.c.l.b16 %v113
  %v843 = vunpack.c.h.b16 %v113
  %v844 = vunpack.c.l.b16 %v114
  %v845 = vunpack.c.h.b16 %v114
  %v846 = vunpack.c.l.b16 %v115
  %v847 = vunpack.c.h.b16 %v115
  %v848 = vunpack.c.l.b16 %v116
  %v849 = vunpack.c.h.b16 %v116
  %v850 = vunpack.c.l.b16 %v117
  %v851 = vunpack.c.h.b16 %v117
  %v852 = vunpack.c.l.b16 %v118
  %v853 = vunpack.c.h.b16 %v118
  %v854 = vunpack.c.l.b16 %v119
  %v855 = vunpack.c.h.b16 %v119
  %v856 = vunpack.c.l.b16 %v120
  %v857 = vunpack.c.h.b16 %v120
  %v858 = vunpack.c.l.b16 %v121
  %v859 = vunpack.c.h.b16 %v121
  %v860 = vunpack.c.l.b16 %v122
  %v861 = vunpack.c.h.b16 %v122
  %v862 = vunpack.c.l.b16 %v123
  %v863 = vunpack.c.h.b16 %v123
  %v864 = vunpack.c.l.b16 %v124
  %v865 = vunpack.c.h.b16 %v124
  %v866 = vunpack.c.l.b16 %v125
  %v867 = vunpack.c.h.b16 %v125
  %v868 = vunpack.c.l.b16 %v126
  %v869 = vunpack.c.h.b16 %v126
  %v870 = vunpack.c.l.b16 %v127
  %v871 = vunpack.c.h.b16 %v127
  %v872 = vunpack.c.l.b16 %v128
  %v873 = vunpack.c.h.b16 %v128
  %v874 = vunpack.c.l.b16 %v129
  %v875 = vunpack.c.h.b16 %v129
  %v876 = vunpack.c.l.b16 %v130
  %v877 = vunpack.c.h.b16 %v130
  %v878 = vunpack.c.l.b16 %v131
  %v879 = vunpack.c.h.b16 %v131
  %v880 = vunpack.c.l.b16 %v132
  %v881 = vunpack.c.h.b16 %v132
  %v882 = vunpack.c.l.b16 %v133
  %v883 = vunpack.c.h.b16 %v133
  %v884 = vunpack.c.l.b16 %v134
  %v885 = vunpack.c.h.b16 %v134
  %v886 = vunpack.c.l.b16 %v135
  %v887 = vunpack.c.h.b16 %v135
  %v888 = vunpack.c.l.b16 %v136
  %v889 = vunpack.c.h.b16 %v136
  %v890 = vunpack.c.l.b16 %v137
  %v891 = vunpack.c.h.b16 %v137
  %v892 = vunpack.c.l.b16 %v138
  %v893 = vunpack.c.h.b16 %v138
  %v894 = vunpack.c.l.b16 %v139
  %v895 = vunpack.c.h.b16 %v139
  %v896 = vunpack.c.l.b16 %v140
  %v897 = vunpack.c.h.b16 %v140
  %v898 = vunpack.c.l.b16 %v141
  %v899 = vunpack.c.h.b16 %v141
  %v900 = vunpack.c.l.b16 %v142
  %v901 = vunpack.c.h.b16 %v142
  %v902 = vunpack.c.l.b16 %v143
  %v903 = vunpack.c.h.b16 %v143
  %v904 = vunpack.c.l.b16 %v144
  %v905 = vunpack.c.h.b16 %v144
  %v906 = vunpack.c.l.b16 %v145
  %v907 = vunpack.c.h.b16 %v145
  %v908 = vunpack.c.l.b16 %v146
  %v909 = vunpack.c.h.b16 %v146
  %v910 = vunpack.c.l.b16 %v147
  %v911 = vunpack.c.h.b16 %v147
  %v912 = vunpack.c.l.b16 %v148
  %v913 = vunpack.c.h.b16 %v148
  %v914 = vunpack.c.l.b16 %v149
  %v915 = vunpack.c.h.b16 %v149
  %v916 = vunpack.c.l.b16 %v150
  %v917 = vunpack.c.h.b16 %v150
  %v918 = vunpack.c.l.b16 %v151
  %v919 = vunpack.c.h.b16 %v151
  %v920 = vunpack.c.l.b16 %v152
  %v921 = vunpack.c.h.b16 %v152
  %v922 = vunpack.c.l.b16 %v153
  %v923 = vunpack.c.h.b16 %v153
  %v924 = vunpack.c.l.b16 %v154
  %v925 = vunpack.c.h.b16 %v154
  %v926 = vunpack.c.l.b16 %v155
  %v927 = vunpack.c.h.b16 %v155
  %v928 = vunpack.c.l.b16 %v156
  %v929 = vunpack.c.h.b16 %v156
  %v930 = vunpack.c.l.b16 %v157
  %v931 = vunpack.c.h.b16 %v157
  %v932 = vunpack.c.l.b16 %v158
  %v933 = vunpack.c.h.b16 %v158
  %v934 = vunpack.c.l.b16 %v159
  %v935 = vunpack.c.h.b16 %v159
  %v936 = vunpack.c.l.b16 %v160
  %v937 = vunpack.c.h.b16 %v160
  %v938 = vunpack.c.l.b16 %v161
  %v939 = vunpack.c.h.b16 %v161
  %v940 = vunpack.c.l.b16 %v162
  %v941 = vunpack.c.h.b16 %v162
  %v942 = vunpack.c.l.b16 %v163
  %v943 = vunpack.c.h.b16 %v163
  %v944 = vunpack.c.l.b16 %v164
  %v945 = vunpack.c.h.b16 %v164
  %v946 = vunpack.c.l.b16 %v165
  %v947 = vunpack.c.h.b16 %v165
  %v948 = vunpack.c.l.b16 %v166
  %v949 = vunpack.c.h.b16 %v166
  %v950 = vunpack.c.l.b16 %v167
  %v951 = vunpack.c.h.b16 %v167
  %v952 = vunpack.c.l.b16 %v168
  %v953 = vunpack.c.h.b16 %v168
  %v954 = vunpack.c.l.b16 %v169
  %v955 = vunpack.c.h.b16 %v169
  %v956 = vunpack.c.l.b16 %v170
  %v957 = vunpack.c.h.b16 %v170
  %v958 = vunpack.c.l.b16 %v171
  %v959 = vunpack.c.h.b16 %v171
  %v960 = vunpack.c.l.b16 %v172
  %v961 = vunpack.c.h.b16 %v172
  %v962 = vunpack.c.l.b16 %v173
  %v963 = vunpack.c.h.b16 %v173
  %v964 = vunpack.c.l.b16 %v174
  %v965 = vunpack.c.h.b16 %v174
  %v966 = vunpack.c.l.b16 %v175
  %v967 = vunpack.c.h.b16 %v175
  %v968 = vunpack.c.l.b16 %v176
  %v969 = vunpack.c.h.b16 %v176
  %v970 = vunpack.c.l.b16 %v177
  %v971 = vunpack.c.h.b16 %v177
  %v972 = vunpack.c.l.b16 %v178
  %v973 = vunpack.c.h.b16 %v178
  %v974 = vunpack.c.l.b16 %v179
  %v975 = vunpack.c.h.b16 %v179
  %v976 = vunpack.c.l.b16 %v180
  %v977 = vunpack.c.h.b16 %v180
  %v978 = vunpack.c.l.b16 %v181
  %v979 = vunpack.c.h.b16 %v181
  %v980 = vunpack.c.l.b16 %v182
  %v981 = vunpack.c.h.b16 %v182
  %v982 = vunpack.c.l.b16 %v183
  %v983 = vunpack.c.h.b16 %v183
  %v984 = vunpack.c.l.b16 %v184
  %v985 = vunpack.c.h.b16 %v184
  %v986 = vunpack.c.l.b16 %v185
  %v987 = vunpack.c.h.b16 %v185
  %v988 = vunpack.c.l.b16 %v186
  %v989 = vunpack.c.h.b16 %v186
  %v990 = vunpack.c.l.b16 %v187
  %v991 = vunpack.c.h.b16 %v187
  %v992 = vunpack.c.l.b16 %v188
  %v993 = vunpack.c.h.b16 %v188
  %v994 = vunpack.c.l.b16 %v189
  %v995 = vunpack.c.h.b16 %v189
  %v996 = vunpack.c.l.b16 %v190
  %v997 = vunpack.c.h.b16 %v190
  %v998 = vunpack.c.l.b16 %v191
  %v999 = vunpack.c.h.b16 %v191
  %v1000 = vunpack.c.l.b16 %v192
  %v1001 = vunpack.c.h.b16 %v192
  %v1002 = vunpack.c.l.b16 %v193
  %v1003 = vunpack.c.h.b16 %v193
  %v1004 = vunpack.c.l.b16 %v194
  %v1005 = vunpack.c.h.b16 %v194
  %v1006 = vunpack.c.l.b16 %v195
  %v1007 = vunpack.c.h.b16 %v195
  %v1008 = vunpack.c.l.b16 %v196
  %v1009 = vunpack.c.h.b16 %v196
  %v1010 = vunpack.c.l.b16 %v197
  %v1011 = vunpack.c.h.b16 %v197
  %v1012 = vunpack.c.l.b16 %v198
  %v1013 = vunpack.c.h.b16 %v198
  %v1014 = vunpack.c.l.b16 %v199
  %v1015 = vunpack.c.h.b16 %v199
  %v1016 = vunpack.c.l.b16 %v200
  %v1017 = vunpack.c.h.b16 %v200
  %v1018 = vunpack.c.l.b16 %v201
  %v1019 = vunpack.c.h.b16 %v201
  %v1020 = vunpack.c.l.b16 %v202
  %v1021 = vunpack.c.h.b16 %v202
  %v1022 = vunpack.c.l.b16 %v203
  %v1023 = vunpack.c.h.b16 %v203
  %v1024 = vunpack.c.l.b16 %v204
  %v1025 = vunpack.c.h.b16 %v204
  %v1026 = vunpack.c.l.b16 %v205
  %v1027 = vunpack.c.h.b16 %v205
  %v1028 = vunpack.c.l.b16 %v206
  %v1029 = vunpack.c.h.b16 %v206
  %v1030 = vunpack.c.l.b16 %v207
  %v1031 = vunpack.c.h.b16 %v207
  %v1032 = vunpack.c.l.b16 %v208
  %v1033 = vunpack.c.h.b16 %v208
  %v1034 = vunpack.c.l.b16 %v209
  %v1035 = vunpack.c.h.b16 %v209
  %v1036 = vunpack.c.l.b16 %v210
  %v1037 = vunpack.c.h.b16 %v210
  %v1038 = vunpack.c.l.b16 %v211
  %v1039 = vunpack.c.h.b16 %v211
  %v1040 = vunpack.c.l.b16 %v212
  %v1041 = vunpack.c.h.b16 %v212
  %v1042 = vunpack.c.l.b16 %v213
  %v1043 = vunpack.c.h.b16 %v213
  %v1044 = vunpack.c.l.b16 %v214
  %v1045 = vunpack.c.h.b16 %v214
  %v1046 = vunpack.c.l.b16 %v215
  %v1047 = vunpack.c.h.b16 %v215
  %v1048 = vunpack.c.l.b16 %v216
  %v1049 = vunpack.c.h.b16 %v216
  %v1050 = vunpack.c.l.b16 %v217
  %v1051 = vunpack.c.h.b16 %v217
  %v1052 = vunpack.c.l.b16 %v218
  %v1053 = vunpack.c.h.b16 %v218
  %v1054 = vunpack.c.l.b16 %v219
  %v1055 = vunpack.c.h.b16 %v219
  %v1056 = vunpack.c.l.b16 %v220
  %v1057 = vunpack.c.h.b16 %v220
  %v1058 = vunpack.c.l.b16 %v221
  %v1059 = vunpack.c.h.b16 %v221
  %v1060 = vunpack.c.l.b16 %v222
  %v1061 = vunpack.c.h.b16 %v222
  %v1062 = vunpack.c.l.b16 %v223
  %v1063 = vunpack.c.h.b16 %v223
  %v1064 = vunpack.c.l.b16 %v224
  %v1065 = vunpack.c.h.b16 %v224
  %v1066 = vunpack.c.l.b16 %v225
  %v1067 = vunpack.c.h.b16 %v225
  %v1068 = vunpack.c.l.b16 %v226
  %v1069 = vunpack.c.h.b16 %v226
  %v1070 = vunpack.c.l.b16 %v227
  %v1071 = vunpack.c.h.b16 %v227
  %v1072 = vunpack.c.l.b16 %v228
  %v1073 = vunpack.c.h.b16 %v228
  %v1074 = vunpack.c.l.b16 %v229
  %v1075 = vunpack.c.h.b16 %v229
  %v1076 = vunpack.c.l.b16 %v230
  %v1077 = vunpack.c.h.b16 %v230
  %v1078 = vunpack.c.l.b16 %v231
  %v1079 = vunpack.c.h.b16 %v231
  %v1080 = vunpack.c.l.b16 %v232
  %v1081 = vunpack.c.h.b16 %v232
  %v1082 = vunpack.c.l.b16 %v233
  %v1083 = vunpack.c.h.b16 %v233
  %v1084 = vunpack.c.l.b16 %v234
  %v1085 = vunpack.c.h.b16 %v234
  %v1086 = vunpack.c.l.b16 %v235
  %v1087 = vunpack.c.h.b16 %v235
  %v1088 = vunpack.c.l.b16 %v236
  %v1089 = vunpack.c.h.b16 %v236
  %v1090 = vunpack.c.l.b16 %v237
  %v1091 = vunpack.c.h.b16 %v237
  %v1092 = vunpack.c.l.b16 %v238
  %v1093 = vunpack.c.h.b16 %v238
  %v1094 = vunpack.c.l.b16 %v239
  %v1095 = vunpack.c.h.b16 %v239
  %v1096 = vunpack.c.l.b16 %v240
  %v1097 = vunpack.c.h.b16 %v240
  %v1098 = vunpack.c.l.b16 %v241
  %v1099 = vunpack.c.h.b16 %v241
  %v1100 = vunpack.c.l.b16 %v242
  %v1101 = vunpack.c.h.b16 %v242
  %v1102 = vunpack.c.l.b16 %v243
  %v1103 = vunpack.c.h.b16 %v243
  %v1104 = vunpack.c.l.b16 %v244
  %v1105 = vunpack.c.h.b16 %v244
  %v1106 = vunpack.c.l.b16 %v245
  %v1107 = vunpack.c.h.b16 %v245
  %v1108 = vunpack.c.l.b16 %v246
  %v1109 = vunpack.c.h.b16 %v246
  %v1110 = vunpack.c.l.b16 %v247
  %v1111 = vunpack.c.h.b16 %v247
  %v1112 = vunpack.c.l.b16 %v248
  %v1113 = vunpack.c.h.b16 %v248
  %v1114 = vunpack.c.l.b16 %v249
  %v1115 = vunpack.c.h.b16 %v249
  %v1116 = vunpack.c.l.b16 %v250
  %v1117 = vunpack.c.h.b16 %v250
  %v1118 = vunpack.c.l.b16 %v251
  %v1119 = vunpack.c.h.b16 %v251
  %v1120 = vunpack.c.l.b16 %v252
  %v1121 = vunpack.c.h.b16 %v252
  %v1122 = vunpack.c.l.b16 %v253
  %v1123 = vunpack.c.h.b16 %v253
  %v1124 = vunpack.c.l.b16 %v254
  %v1125 = vunpack.c.h.b16 %v254
  %v1126 = vunpack.c.l.b16 %v255
  %v1127 = vunpack.c.h.b16 %v255
  %v1128 = vunpack.c.l.b16 %v256
  %v1129 = vunpack.c.h.b16 %v256
  %v1130 = vunpack.c.l.b16 %v257
  %v1131 = vunpack.c.h.b16 %v257
  %v1132 = vunpack.c.l.b16 %v258
  %v1133 = vunpack.c.h.b16 %v258
  %v1134 = vunpack.c.l.b16 %v259
  %v1135 = vunpack.c.h.b16 %v259
  %v1136 = vunpack.c.l.b16 %v260
  %v1137 = vunpack.c.h.b16 %v260
  %v1138 = vunpack.c.l.b16 %v261
  %v1139 = vunpack.c.h.b16 %v261
  %v1140 = vunpack.c.l.b16 %v262
  %v1141 = vunpack.c.h.b16 %v262
  %v1142 = vunpack.c.l.b16 %v263
  %v1143 = vunpack.c.h.b16 %v263
  %v1144 = vunpack.c.l.b16 %v264
  %v1145 = vunpack.c.h.b16 %v264
  %v1146 = vunpack.c.l.b16 %v265
  %v1147 = vunpack.c.h.b16 %v265
  %v1148 = vunpack.c.l.b16 %v266
  %v1149 = vunpack.c.h.b16 %v266
  %v1150 = vunpack.c.l.b16 %v267
  %v1151 = vunpack.c.h.b16 %v267
  %v1152 = vunpack.c.l.b16 %v268
  %v1153 = vunpack.c.h.b16 %v268
  %v1154 = vunpack.c.l.b16 %v269
  %v1155 = vunpack.c.h.b16 %v269
  %v1156 = vunpack.c.l.b16 %v270
  %v1157 = vunpack.c.h.b16 %v270
  %v1158 = vunpack.c.l.b16 %v271
  %v1159 = vunpack.c.h.b16 %v271
  %v1160 = vunpack.c.l.b16 %v272
  %v1161 = vunpack.c.h.b16 %v272
  %v1162 = vunpack.c.l.b16 %v273
  %v1163 = vunpack.c.h.b16 %v273
  %v1164 = vunpack.c.l.b16 %v274
  %v1165 = vunpack.c.h.b16 %v274
  %v1166 = vunpack.c.l.b16 %v275
  %v1167 = vunpack.c.h.b16 %v275
  %v1168 = vunpack.c.l.b16 %v276
  %v1169 = vunpack.c.h.b16 %v276
  %v1170 = vunpack.c.l.b16 %v277
  %v1171 = vunpack.c.h.b16 %v277
  %v1172 = vunpack.c.l.b16 %v278
  %v1173 = vunpack.c.h.b16 %v278
  %v1174 = vunpack.c.l.b16 %v279
  %v1175 = vunpack.c.h.b16 %v279
  %v1176 = vunpack.c.l.b16 %v280
  %v1177 = vunpack.c.h.b16 %v280
  %v1178 = vunpack.c.l.b16 %v281
  %v1179 = vunpack.c.h.b16 %v281
  %v1180 = vunpack.c.l.b16 %v282
  %v1181 = vunpack.c.h.b16 %v282
  %v1182 = vunpack.c.l.b16 %v283
  %v1183 = vunpack.c.h.b16 %v283
  %v1184 = vunpack.c.l.b16 %v284
  %v1185 = vunpack.c.h.b16 %v284
  %v1186 = vunpack.c.l.b16 %v285
  %v1187 = vunpack.c.h.b16 %v285
  %v1188 = vunpack.c.l.b16 %v286
  %v1189 = vunpack.c.h.b16 %v286
  %v1190 = vunpack.c.l.b16 %v287
  %v1191 = vunpack.c.h.b16 %v287
  %v1192 = vunpack.c.l.b16 %v288
  %v1193 = vunpack.c.h.b16 %v288
  %v1194 = vunpack.c.l.b16 %v289
  %v1195 = vunpack.c.h.b16 %v289
  %v1196 = vunpack.c.l.b16 %v290
  %v1197 = vunpack.c.h.b16 %v290
  %v1198 = vunpack.c.l.b16 %v291
  %v1199 = vunpack.c.h.b16 %v291
  %v1200 = vunpack.c.l.b16 %v292
  %v1201 = vunpack.c.h.b16 %v292
  %v1202 = vunpack.c.l.b16 %v293
  %v1203 = vunpack.c.h.b16 %v293
  %v1204 = vunpack.c.l.b16 %v294
  %v1205 = vunpack.c.h.b16 %v294
  %v1206 = vunpack.c.l.b16 %v295
  %v1207 = vunpack.c.h.b16 %v295
  %v1208 = vunpack.c.l.b16 %v296
  %v1209 = vunpack.c.h.b16 %v296
  %v1210 = vunpack.c.l.b16 %v297
  %v1211 = vunpack.c.h.b16 %v297
  %v1212 = vunpack.c.l.b16 %v298
  %v1213 = vunpack.c.h.b16 %v298
  %v1214 = vunpack.c.l.b16 %v299
  %v1215 = vunpack.c.h.b16 %v299
  %v1216 = vunpack.c.l.b16 %v300
  %v1217 = vunpack.c.h.b16 %v300
  %v1218 = vunpack.c.l.b16 %v301
  %v1219 = vunpack.c.h.b16 %v301
  %v1220 = vunpack.c.l.b16 %v302
  %v1221 = vunpack.c.h.b16 %v302
  %v1222 = vunpack.c.l.b16 %v303
  %v1223 = vunpack.c.h.b16 %v303
  %v1224 = vunpack.c.l.b16 %v304
  %v1225 = vunpack.c.h.b16 %v304
  %v1226 = vunpack.c.l.b16 %v305
  %v1227 = vunpack.c.h.b16 %v305
  %v1228 = vunpack.c.l.b16 %v306
  %v1229 = vunpack.c.h.b16 %v306
  %v1230 = vunpack.c.l.b16 %v307
  %v1231 = vunpack.c.h.b16 %v307
  %v1232 = vunpack.c.l.b16 %v308
  %v1233 = vunpack.c.h.b16 %v308
  %v1234 = vunpack.c.l.b16 %v309
  %v1235 = vunpack.c.h.b16 %v309
  %v1236 = vunpack.c.l.b16 %v310
  %v1237 = vunpack.c.h.b16 %v310
  %v1238 = vpack.c.b16 %v664, %v662
  %v1239 = vpack.c.b16 %v665, %v663
  %v1240 = vpack.c.b16 %v668, %v666
  %v1241 = vpack.c.b16 %v669, %v667
  %v1242 = vpack.c.b16 %v672, %v670
  %v1243 = vpack.c.b16 %v673, %v671
  %v1244 = vpack.c.b16 %v676, %v674
  %v1245 = vpack.c.b16 %v677, %v675
  %v1246 = vpack.c.b16 %v680, %v678
  %v1247 = vpack.c.b16 %v681, %v679
  %v1248 = vpack.c.b16 %v684, %v682
  %v1249 = vpack.c.b16 %v685, %v683
  %v1250 = vpack.c.b16 %v688, %v686
  %v1251 = vpack.c.b16 %v689, %v687
  %v1252 = vpack.c.b16 %v692, %v690
  %v1253 = vpack.c.b16 %v693, %v691
  %v1254 = vpack.c.b16 %v696, %v694
  %v1255 = vpack.c.b16 %v697, %v695
  %v1256 = vpack.c.b16 %v700, %v698
  %v1257 = vpack.c.b16 %v701, %v699
  %v1258 = vpack.c.b16 %v704, %v702
  %v1259 = vpack.c.b16 %v705, %v703
  %v1260 = vpack.c.b16 %v708, %v706
  %v1261 = vpack.c.b16 %v709, %v707
  %v1262 = vpack.c.b16 %v712, %v710
  %v1263 = vpack.c.b16 %v713, %v711
  %v1264 = vpack.c.b16 %v716, %v714
  %v1265 = vpack.c.b16 %v717, %v715
  %v1266 = vpack.c.b16 %v720, %v718
  %v1267 = vpack.c.b16 %v721, %v719
  %v1268 = vpack.c.b16 %v724, %v722
  %v1269 = vpack.c.b16 %v725, %v723
  %v1270 = vpack.c.b16 %v728, %v726
  %v1271 = vpack.c.b16 %v729, %v727
  %v1272 = vpack.c.b16 %v732, %v730
  %v1273 = vpack.c.b16 %v733, %v731
  %v1274 = vpack.c.b16 %v736, %v734
  %v1275 = vpack.c.b16 %v737, %v735
  %v1276 = vpack.c.b16 %v740, %v738
  %v1277 = vpack.c.b16 %v741, %v739
  %v1278 = vpack.c.b16 %v744, %v742
  %v1279 = vpack.c.b16 %v745, %v743
  %v1280 = vpack.c.b16 %v748, %v746
  %v1281 = vpack.c.b16 %v749, %v747
  %v1282 = vpack.c.b16 %v752, %v750
  %v1283 = vpack.c.b16 %v753, %v751
  %v1284 = vpack.c.b16 %v756, %v754
  %v1285 = vpack.c.b16 %v757, %v755
  %v1286 = vpack.c.b16 %v760, %v758
  %v1287 = vpack.c.b16 %v761, %v759
  %v1288 = vpack.c.b16 %v764, %v762
  %v1289 = vpack.c.b16 %v765, %v763
  %v1290 = vpack.c.b16 %v768, %v766
  %v1291 = vpack.c.b16 %v769, %v767
  %v1292 = vpack.c.b16 %v772, %v770
  %v1293 = vpack.c.b16 %v773, %v771
  %v1294 = vpack.c.b16 %v776, %v774
  %v1295 = vpack.c.b16 %v777, %v775
  %v1296 = vpack.c.b16 %v780, %v778
  %v1297 = vpack.c.b16 %v781, %v779
  %v1298 = vpack.c.b16 %v784, %v782
  %v1299 = vpack.c.b16 %v785, %v783
  %v1300 = vpack.c.b16 %v788, %v786
  %v1301 = vpack.c.b16 %v789, %v787
  %v1302 = vpack.c.b16 %v792, %v790
  %v1303 = vpack.c.b16 %v793, %v791
  %v1304 = vpack.c.b16 %v796, %v794
  %v1305 = vpack.c.b16 %v797, %v795
  %v1306 = vpack.c.b16 %v800, %v798
  %v1307 = vpack.c.b16 %v801, %v799
  %v1308 = vpack.c.b16 %v804, %v802
  %v1309 = vpack.c.b16 %v805, %v803
  %v1310 = vpack.c.b16 %v808, %v806
  %v1311 = vpack.c.b16 %v809, %v807
  %v1312 = vpack.c.b16 %v812, %v810
  %v1313 = vpack.c.b16 %v813, %v811
  %v1314 = vpack.c.b16 %v816, %v814
  %v1315 = vpack.c.b16 %v817, %v815
  %v1316 = vpack.c.b16 %v820, %v818
  %v1317 = vpack.c.b16 %v821, %v819
  %v1318 = vpack.c.b16 %v824, %v822
  %v1319 = vpack.c.b16 %v825, %v823
  %v1320 = vpack.c.b16 %v828, %v826
  %v1321 = vpack.c.b16 %v829, %v827
  %v1322 = vpack.c.b16 %v832, %v830
  %v1323 = vpack.c.b16 %v833, %v831
  %v1324 = vpack.c.b16 %v836, %v834
  %v1325 = vpack.c.b16 %v837, %v835
  %v1326 = vpack.c.b16 %v840, %v838
  %v1327 = vpack.c.b16 %v841, %v839
  %v1328 = vpack.c.b16 %v844, %v842
  %v1329 = vpack.c.b16 %v845, %v843
  %v1330 = vpack.c.b16 %v848, %v846
  %v1331 = vpack.c.b16 %v849, %v847
  %v1332 = vpack.c.b16 %v852, %v850
  %v1333 = vpack.c.b16 %v853, %v851
  %v1334 = vpack.c.b16 %v856, %v854
  %v1335 = vpack.c.b16 %v857, %v855
  %v1336 = vpack.c.b16 %v860, %v858
  %v1337 = vpack.c.b16 %v861, %v859
  %v1338 = vpack.c.b16 %v864, %v862
  %v1339 = vpack.c.b16 %v865, %v863
  %v1340 = vpack.c.b16 %v868, %v866
  %v1341 = vpack.c.b16 %v869, %v867
  %v1342 = vpack.c.b16 %v872, %v870
  %v1343 = vpack.c.b16 %v873, %v871
  %v1344 = vpack.c.b16 %v876, %v874
  %v1345 = vpack.c.b16 %v877, %v875
  %v1346 = vpack.c.b16 %v880, %v878
  %v1347 = vpack.c.b16 %v881, %v879
  %v1348 = vpack.c.b16 %v884, %v882
  %v1349 = vpack.c.b16 %v885, %v883
  %v1350 = vpack.c.b16 %v888, %v886
  %v1351 = vpack.c.b16 %v889, %v887
  %v1352 = vpack.c.b16 %v892, %v890
  %v1353 = vpack.c.b16 %v893, %v891
  %v1354 = vpack.c.b16 %v896, %v894
  %v1355 = vpack.c.b16 %v897, %v895
  %v1356 = vpack.c.b16 %v900, %v898
  %v1357 = vpack.c.b16 %v901, %v899
  %v1358 = vpack.c.b16 %v904, %v902
  %v1359 = vpack.c.b16 %v905, %v903
  %v1360 = vpack.c.b16 %v908, %v906
  %v1361 = vpack.c.b16 %v909, %v907
  %v1362 = vpack.c.b16 %v912, %v910
  %v1363 = vpack.c.b16 %v913, %v911
  %v1364 = vpack.c.b16 %v916, %v914
  %v1365 = vpack.c.b16 %v917, %v915
  %v1366 = vpack.c.b16 %v920, %v918
  %v1367 = vpack.c.b16 %v921, %v919
  %v1368 = vpack.c.b16 %v924, %v922
  %v1369 = vpack.c.b16 %v925, %v923
  %v1370 = vpack.c.b16 %v928, %v926
  %v1371 = vpack.c.b16 %v929, %v927
  %v1372 = vpack.c.b16 %v932, %v930
  %v1373 = vpack.c.b16 %v933, %v931
  %v1374 = vpack.c.b16 %v936, %v934
  %v1375 = vpack.c.b16 %v937, %v935
  %v1376 = vpack.c.b16 %v940, %v938
  %v1377 = vpack.c.b16 %v941, %v939
  %v1378 = vpack.c.b16 %v944, %v942
  %v1379 = vpack.c.b16 %v945, %v943
  %v1380 = vpack.c.b16 %v948, %v946
  %v1381 = vpack.c.b16 %v949, %v947
  %v1382 = vpack.c.b16 %v952, %v950
  %v1383 = vpack.c.b16 %v953, %v951
  %v1384 = vpack.c.b16 %v956, %v954
  %v1385 = vpack.c.b16 %v957, %v955
  %v1386 = vpack.c.b16 %v960, %v958
  %v1387 = vpack.c.b16 %v961, %v959
  %v1388 = vpack.c.b16 %v964, %v962
  %v1389 = vpack.c.b16 %v965, %v963
  %v1390 = vpack.c.b16 %v968, %v966
  %v1391 = vpack.c.b16 %v969, %v967
  %v1392 = vpack.c.b16 %v972, %v970
  %v1393 = vpack.c.b16 %v973, %v971
  %v1394 = vpack.c.b16 %v976, %v974
  %v1395 = vpack.c.b16 %v977, %v975
  %v1396 = vpack.c.b16 %v980, %v978
  %v1397 = vpack.c.b16 %v981, %v979
  %v1398 = vpack.c.b16 %v984, %v982
  %v1399 = vpack.c.b16 %v985, %v983
  %v1400 = vpack.c.b16 %v988, %v986
  %v1401 = vpack.c.b16 %v989, %v987
  %v1402 = vpack.c.b16 %v992, %v990
  %v1403 = vpack.c.b16 %v993, %v991
  %v1404 = vpack.c.b16 %v996, %v994
  %v1405 = vpack.c.b16 %v997, %v995
  %v1406 = vpack.c.b16 %v1000, %v998
  %v1407 = vpack.c.b16 %v1001, %v999
  %v1408 = vpack.c.b16 %v1004, %v1002
  %v1409 = vpack.c.b16 %v1005, %v1003
  %v1410 = vpack.c.b16 %v1008, %v1006
  %v1411 = vpack.c.b16 %v1009, %v1007
  %v1412 = vpack.c.b16 %v1012, %v1010
  %v1413 = vpack.c.b16 %v1013, %v1011
  %v1414 = vpack.c.b16 %v1016, %v1014
  %v1415 = vpack.c.b16 %v1017, %v1015
  %v1416 = vpack.c.b16 %v1020, %v1018
  %v1417 = vpack.c.b16 %v1021, %v1019
  %v1418 = vpack.c.b16 %v1024, %v1022
  %v1419 = vpack.c.b16 %v1025, %v1023
  %v1420 = vpack.c.b16 %v1028, %v1026
  %v1421 = vpack.c.b16 %v1029, %v1027
  %v1422 = vpack.c.b16 %v1032, %v1030
  %v1423 = vpack.c.b16 %v1033, %v1031
  %v1424 = vpack.c.b16 %v1036, %v1034
  %v1425 = vpack.c.b16 %v1037, %v1035
  %v1426 = vpack.c.b16 %v1040, %v1038
  %v1427 = vpack.c.b16 %v1041, %v1039
  %v1428 = vpack.c.b16 %v1044, %v1042
  %v1429 = vpack.c.b16 %v1045, %v1043
  %v1430 = vpack.c.b16 %v1048, %v1046
  %v1431 = vpack.c.b16 %v1049, %v1047
  %v1432 = vpack.c.b16 %v1052, %v1050
  %v1433 = vpack.c.b16 %v1053, %v1051
  %v1434 = vpack.c.b16 %v1056, %v1054
  %v1435 = vpack.c.b16 %v1057, %v1055
  %v1436 = vpack.c.b16 %v1060, %v1058
  %v1437 = vpack.c.b16 %v1061, %v1059
  %v1438 = vpack.c.b16 %v1064, %v1062
  %v1439 = vpack.c.b16 %v1065, %v1063
  %v1440 = vpack.c.b16 %v1068, %v1066
  %v1441 = vpack.c.b16 %v1069, %v1067
  %v1442 = vpack.c.b16 %v1072, %v1070
  %v1443 = vpack.c.b16 %v1073, %v1071
  %v1444 = vpack.c.b16 %v1076, %v1074
  %v1445 = vpack.c.b16 %v1077, %v1075
  %v1446 = vpack.c.b16 %v1080, %v1078
  %v1447 = vpack.c.b16 %v1081, %v1079
  %v1448 = vpack.c.b16 %v1084, %v1082
  %v1449 = vpack.c.b16 %v1085, %v1083
  %v1450 = vpack.c.b16 %v1088, %v1086
  %v1451 = vpack.c.b16 %v1089, %v1087
  %v1452 = vpack.c.b16 %v1092, %v1090
  %v1453 = vpack.c.b16 %v1093, %v1091
  %v1454 = vpack.c.b16 %v1096, %v1094
  %v1455 = vpack.c.b16 %v1097, %v1095
  %v1456 = vpack.c.b16 %v1100, %v1098
  %v1457 = vpack.c.b16 %v1101, %v1099
  %v1458 = vpack.c.b16 %v1104, %v1102
  %v1459 = vpack.c.b16 %v1105, %v1103
  %v1460 = vpack.c.b16 %v1108, %v1106
  %v1461 = vpack.c.b16 %v1109, %v1107
  %v1462 = vpack.c.b16 %v1112, %v1110
  %v1463 = vpack.c.b16 %v1113, %v1111
  %v1464 = vpack.c.b16 %v1116, %v1114
  %v1465 = vpack.c.b16 %v1117, %v1115
  %v1466 = vpack.c.b16 %v1120, %v1118
  %v1467 = vpack.c.b16 %v1121, %v1119
  %v1468 = vpack.c.b16 %v1124, %v1122
  %v1469 = vpack.c.b16 %v1125, %v1123
  %v1470 = vpack.c.b16 %v1128, %v1126
  %v1471 = vpack.c.b16 %v1129, %v1127
  %v1472 = vpack.c.b16 %v1132, %v1130
  %v1473 = vpack.c.b16 %v1133, %v1131
  %v1474 = vpack.c.b16 %v1136, %v1134
  %v1475 = vpack.c.b16 %v1137, %v1135
  %v1476 = vpack.c.b16 %v1140, %v1138
  %v1477 = vpack.c.b16 %v1141, %v1139
  %v1478 = vpack.c.b16 %v1144, %v1142
  %v1479 = vpack.c.b16 %v1145, %v1143
  %v1480 = vpack.c.b16 %v1148, %v1146
  %v1481 = vpack.c.b16 %v1149, %v1147
  %v1482 = vpack.c.b16 %v1152, %v1150
  %v1483 = vpack.c.b16 %v1153, %v1151
  %v1484 = vpack.c.b16 %v1156, %v1154
  %v1485 = vpack.c.b16 %v1157, %v1155
  %v1486 = vpack.c.b16 %v1160, %v1158
  %v1487 = vpack.c.b16 %v1161, %v1159
  %v1488 = vpack.c.b16 %v1164, %v1162
  %v1489 = vpack.c.b16 %v1165, %v1163
  %v1490 = vpack.c.b16 %v1168, %v1166
  %v1491 = vpack.c.b16 %v1169, %v1167
  %v1492 = vpack.c.b16 %v1172, %v1170
  %v1493 = vpack.c.b16 %v1173, %v1171
  %v1494 = vpack.c.b16 %v1176, %v1174
  %v1495 = vpack.c.b16 %v1177, %v1175
  %v1496 = vpack.c.b16 %v1180, %v1178
  %v1497 = vpack.c.b16 %v1181, %v1179
  %v1498 = vpack.c.b16 %v1184, %v1182
  %v1499 = vpack.c.b16 %v1185, %v1183
  %v1500 = vpack.c.b16 %v1188, %v1186
  %v1501 = vpack.c.b16 %v1189, %v1187
  %v1502 = vpack.c.b16 %v1192, %v1190
  %v1503 = vpack.c.b16 %v1193, %v1191
  %v1504 = vpack.c.b16 %v1196, %v1194
  %v1505 = vpack.c.b16 %v1197, %v1195
  %v1506 = vpack.c.b16 %v1200, %v1198
  %v1507 = vpack.c.b16 %v1201, %v1199
  %v1508 = vpack.c.b16 %v1204, %v1202
  %v1509 = vpack.c.b16 %v1205, %v1203
  %v1510 = vpack.c.b16 %v1208, %v1206
  %v1511 = vpack.c.b16 %v1209, %v1207
  %v1512 = vpack.c.b16 %v1212, %v1210
  %v1513 = vpack.c.b16 %v1213, %v1211
  %v1514 = vpack.c.b16 %v1216, %v1214
  %v1515 = vpack.c.b16 %v1217, %v1215
  %v1516 = vpack.c.b16 %v1220, %v1218
  %v1517 = vpack.c.b16 %v1221, %v1219
  %v1518 = vpack.c.b16 %v1224, %v1222
  %v1519 = vpack.c.b16 %v1225, %v1223
  %v1520 = vpack.c.b16 %v1228, %v1226
  %v1521 = vpack.c.b16 %v1229, %v1227
  %v1522 = vpack.c.b16 %v1232, %v1230
  %v1523 = vpack.c.b16 %v1233, %v1231
  %v1524 = vpack.c.b16 %v1236, %v1234
  %v1525 = vpack.c.b16 %v1237, %v1235
  %1814 = vmatprep.subr.bf16.mxu0 %v1253
  %1815 = vmatpush1.bf16.msra.mxu0 %v1252
  %1816 = vmatprep.subr.bf16.mxu0 %v1251
  %1817 = vmatpush1.bf16.msra.mxu0 %v1250
  %1818 = vmatprep.subr.bf16.mxu0 %v1249
  %1819 = vmatpush1.bf16.msra.mxu0 %v1248
  %1820 = vmatprep.subr.bf16.mxu0 %v1247
  %1821 = vmatpush1.bf16.msra.mxu0 %v1246
  %1822 = vmatprep.subr.bf16.mxu0 %v1245
  %1823 = vmatpush1.bf16.msra.mxu0 %v1244
  %1824 = vmatprep.subr.bf16.mxu0 %v1243
  %1825 = vmatpush1.bf16.msra.mxu0 %v1242
  %1826 = vmatprep.subr.bf16.mxu0 %v1241
  %1827 = vmatpush1.bf16.msra.mxu0 %v1240
  %1828 = vmatprep.subr.bf16.mxu0 %v1239
  %1829 = vmatpush1.bf16.msra.mxu0 %v1238
  %1830 = vmatprep.subr.bf16.mxu0 %v1269
  %1831 = vmatpush2.bf16.msra.mxu0 %v1268
  %1832 = vmatprep.subr.bf16.mxu0 %v1267
  %1833 = vmatpush2.bf16.msra.mxu0 %v1266
  %1834 = vmatprep.subr.bf16.mxu0 %v1265
  %1835 = vmatpush2.bf16.msra.mxu0 %v1264
  %1836 = vmatprep.subr.bf16.mxu0 %v1263
  %1837 = vmatpush2.bf16.msra.mxu0 %v1262
  %1838 = vmatprep.subr.bf16.mxu0 %v1261
  %1839 = vmatpush2.bf16.msra.mxu0 %v1260
  %1840 = vmatprep.subr.bf16.mxu0 %v1259
  %1841 = vmatpush2.bf16.msra.mxu0 %v1258
  %1842 = vmatprep.subr.bf16.mxu0 %v1257
  %1843 = vmatpush2.bf16.msra.mxu0 %v1256
  %1844 = vmatprep.subr.bf16.mxu0 %v1255
  %1845 = vmatpush2.bf16.msra.mxu0 %v1254
  %1846 = vmatprep.mubr.bf16.mxu0 %v339
  %1847 = vmatmul.mubr.bf16.gmra.mxu0 %v338
  %v1848 = vpop.f32.mrf.mxu0
  %v1849 = vadd.f32 0.0, %v1848
  %v1850 = vpop.f32.mrf.mxu0
  %v1851 = vadd.f32 0.0, %v1850
  %v1852 = vpop.f32.mrf.mxu0
  %v1853 = vpop.f32.mrf.mxu0
  %1854 = vdwg.mxu0
  %1855 = vmatprep.subr.bf16.mxu0 %v1285
  %1856 = vmatpush1.bf16.msra.mxu0 %v1284
  %1857 = vmatprep.subr.bf16.mxu0 %v1283
  %1858 = vmatpush1.bf16.msra.mxu0 %v1282
  %1859 = vmatprep.subr.bf16.mxu0 %v1281
  %1860 = vmatpush1.bf16.msra.mxu0 %v1280
  %1861 = vmatprep.subr.bf16.mxu0 %v1279
  %1862 = vmatpush1.bf16.msra.mxu0 %v1278
  %1863 = vmatprep.subr.bf16.mxu0 %v1277
  %1864 = vmatpush1.bf16.msra.mxu0 %v1276
  %1865 = vmatprep.subr.bf16.mxu0 %v1275
  %1866 = vmatpush1.bf16.msra.mxu0 %v1274
  %1867 = vmatprep.subr.bf16.mxu0 %v1273
  %1868 = vmatpush1.bf16.msra.mxu0 %v1272
  %1869 = vmatprep.subr.bf16.mxu0 %v1271
  %1870 = vmatpush1.bf16.msra.mxu0 %v1270
  %1871 = vmatprep.subr.bf16.mxu0 %v1301
  %1872 = vmatpush2.bf16.msra.mxu0 %v1300
  %1873 = vmatprep.subr.bf16.mxu0 %v1299
  %1874 = vmatpush2.bf16.msra.mxu0 %v1298
  %1875 = vmatprep.subr.bf16.mxu0 %v1297
  %1876 = vmatpush2.bf16.msra.mxu0 %v1296
  %1877 = vmatprep.subr.bf16.mxu0 %v1295
  %1878 = vmatpush2.bf16.msra.mxu0 %v1294
  %1879 = vmatprep.subr.bf16.mxu0 %v1293
  %1880 = vmatpush2.bf16.msra.mxu0 %v1292
  %1881 = vmatprep.subr.bf16.mxu0 %v1291
  %1882 = vmatpush2.bf16.msra.mxu0 %v1290
  %1883 = vmatprep.subr.bf16.mxu0 %v1289
  %1884 = vmatpush2.bf16.msra.mxu0 %v1288
  %1885 = vmatprep.subr.bf16.mxu0 %v1287
  %1886 = vmatpush2.bf16.msra.mxu0 %v1286
  %1887 = vmatprep.mubr.bf16.mxu0 %v341
  %1888 = vmatmul.mubr.bf16.gmra.mxu0 %v340
  %v1889 = vpop.f32.mrf.mxu0
  %v1890 = vadd.f32 %v1849, %v1889
  %v1891 = vpop.f32.mrf.mxu0
  %v1892 = vadd.f32 %v1851, %v1891
  %v1893 = vpop.f32.mrf.mxu0
  %v1894 = vpop.f32.mrf.mxu0
  %1895 = vdwg.mxu0
  %1896 = vmatprep.subr.bf16.mxu0 %v1317
  %1897 = vmatpush1.bf16.msra.mxu0 %v1316
  %1898 = vmatprep.subr.bf16.mxu0 %v1315
  %1899 = vmatpush1.bf16.msra.mxu0 %v1314
  %1900 = vmatprep.subr.bf16.mxu0 %v1313
  %1901 = vmatpush1.bf16.msra.mxu0 %v1312
  %1902 = vmatprep.subr.bf16.mxu0 %v1311
  %1903 = vmatpush1.bf16.msra.mxu0 %v1310
  %1904 = vmatprep.subr.bf16.mxu0 %v1309
  %1905 = vmatpush1.bf16.msra.mxu0 %v1308
  %1906 = vmatprep.subr.bf16.mxu0 %v1307
  %1907 = vmatpush1.bf16.msra.mxu0 %v1306
  %1908 = vmatprep.subr.bf16.mxu0 %v1305
  %1909 = vmatpush1.bf16.msra.mxu0 %v1304
  %1910 = vmatprep.subr.bf16.mxu0 %v1303
  %1911 = vmatpush1.bf16.msra.mxu0 %v1302
  %1912 = vmatprep.subr.bf16.mxu0 %v1333
  %1913 = vmatpush2.bf16.msra.mxu0 %v1332
  %1914 = vmatprep.subr.bf16.mxu0 %v1331
  %1915 = vmatpush2.bf16.msra.mxu0 %v1330
  %1916 = vmatprep.subr.bf16.mxu0 %v1329
  %1917 = vmatpush2.bf16.msra.mxu0 %v1328
  %1918 = vmatprep.subr.bf16.mxu0 %v1327
  %1919 = vmatpush2.bf16.msra.mxu0 %v1326
  %1920 = vmatprep.subr.bf16.mxu0 %v1325
  %1921 = vmatpush2.bf16.msra.mxu0 %v1324
  %1922 = vmatprep.subr.bf16.mxu0 %v1323
  %1923 = vmatpush2.bf16.msra.mxu0 %v1322
  %1924 = vmatprep.subr.bf16.mxu0 %v1321
  %1925 = vmatpush2.bf16.msra.mxu0 %v1320
  %1926 = vmatprep.subr.bf16.mxu0 %v1319
  %1927 = vmatpush2.bf16.msra.mxu0 %v1318
  %1928 = vmatprep.mubr.bf16.mxu0 %v343
  %1929 = vmatmul.mubr.bf16.gmra.mxu0 %v342
  %v1930 = vpop.f32.mrf.mxu0
  %v1931 = vadd.f32 %v1890, %v1930
  %v1932 = vpop.f32.mrf.mxu0
  %v1933 = vadd.f32 %v1892, %v1932
  %v1934 = vpop.f32.mrf.mxu0
  %v1935 = vpop.f32.mrf.mxu0
  %1936 = vdwg.mxu0
  %1937 = vmatprep.subr.bf16.mxu0 %v1349
  %1938 = vmatpush1.bf16.msra.mxu0 %v1348
  %1939 = vmatprep.subr.bf16.mxu0 %v1347
  %1940 = vmatpush1.bf16.msra.mxu0 %v1346
  %1941 = vmatprep.subr.bf16.mxu0 %v1345
  %1942 = vmatpush1.bf16.msra.mxu0 %v1344
  %1943 = vmatprep.subr.bf16.mxu0 %v1343
  %1944 = vmatpush1.bf16.msra.mxu0 %v1342
  %1945 = vmatprep.subr.bf16.mxu0 %v1341
  %1946 = vmatpush1.bf16.msra.mxu0 %v1340
  %1947 = vmatprep.subr.bf16.mxu0 %v1339
  %1948 = vmatpush1.bf16.msra.mxu0 %v1338
  %1949 = vmatprep.subr.bf16.mxu0 %v1337
  %1950 = vmatpush1.bf16.msra.mxu0 %v1336
  %1951 = vmatprep.subr.bf16.mxu0 %v1335
  %1952 = vmatpush1.bf16.msra.mxu0 %v1334
  %1953 = vmatprep.subr.bf16.mxu0 %v1365
  %1954 = vmatpush2.bf16.msra.mxu0 %v1364
  %1955 = vmatprep.subr.bf16.mxu0 %v1363
  %1956 = vmatpush2.bf16.msra.mxu0 %v1362
  %1957 = vmatprep.subr.bf16.mxu0 %v1361
  %1958 = vmatpush2.bf16.msra.mxu0 %v1360
  %1959 = vmatprep.subr.bf16.mxu0 %v1359
  %1960 = vmatpush2.bf16.msra.mxu0 %v1358
  %1961 = vmatprep.subr.bf16.mxu0 %v1357
  %1962 = vmatpush2.bf16.msra.mxu0 %v1356
  %1963 = vmatprep.subr.bf16.mxu0 %v1355
  %1964 = vmatpush2.bf16.msra.mxu0 %v1354
  %1965 = vmatprep.subr.bf16.mxu0 %v1353
  %1966 = vmatpush2.bf16.msra.mxu0 %v1352
  %1967 = vmatprep.subr.bf16.mxu0 %v1351
  %1968 = vmatpush2.bf16.msra.mxu0 %v1350
  %1969 = vmatprep.mubr.bf16.mxu0 %v345
  %1970 = vmatmul.mubr.bf16.gmra.mxu0 %v344
  %v1971 = vpop.f32.mrf.mxu0
  %v1972 = vadd.f32 %v1931, %v1971
  %v1973 = vpop.f32.mrf.mxu0
  %v1974 = vadd.f32 %v1933, %v1973
  %v1975 = vpop.f32.mrf.mxu0
  %v1976 = vpop.f32.mrf.mxu0
  %1977 = vdwg.mxu0
  %1978 = vmatprep.subr.bf16.mxu0 %v1381
  %1979 = vmatpush1.bf16.msra.mxu0 %v1380
  %1980 = vmatprep.subr.bf16.mxu0 %v1379
  %1981 = vmatpush1.bf16.msra.mxu0 %v1378
  %1982 = vmatprep.subr.bf16.mxu0 %v1377
  %1983 = vmatpush1.bf16.msra.mxu0 %v1376
  %1984 = vmatprep.subr.bf16.mxu0 %v1375
  %1985 = vmatpush1.bf16.msra.mxu0 %v1374
  %1986 = vmatprep.subr.bf16.mxu0 %v1373
  %1987 = vmatpush1.bf16.msra.mxu0 %v1372
  %1988 = vmatprep.subr.bf16.mxu0 %v1371
  %1989 = vmatpush1.bf16.msra.mxu0 %v1370
  %1990 = vmatprep.subr.bf16.mxu0 %v1369
  %1991 = vmatpush1.bf16.msra.mxu0 %v1368
  %1992 = vmatprep.subr.bf16.mxu0 %v1367
  %1993 = vmatpush1.bf16.msra.mxu0 %v1366
  %1994 = vmatprep.subr.bf16.mxu0 %v1397
  %1995 = vmatpush2.bf16.msra.mxu0 %v1396
  %1996 = vmatprep.subr.bf16.mxu0 %v1395
  %1997 = vmatpush2.bf16.msra.mxu0 %v1394
  %1998 = vmatprep.subr.bf16.mxu0 %v1393
  %1999 = vmatpush2.bf16.msra.mxu0 %v1392
  %2000 = vmatprep.subr.bf16.mxu0 %v1391
  %2001 = vmatpush2.bf16.msra.mxu0 %v1390
  %2002 = vmatprep.subr.bf16.mxu0 %v1389
  %2003 = vmatpush2.bf16.msra.mxu0 %v1388
  %2004 = vmatprep.subr.bf16.mxu0 %v1387
  %2005 = vmatpush2.bf16.msra.mxu0 %v1386
  %2006 = vmatprep.subr.bf16.mxu0 %v1385
  %2007 = vmatpush2.bf16.msra.mxu0 %v1384
  %2008 = vmatprep.subr.bf16.mxu0 %v1383
  %2009 = vmatpush2.bf16.msra.mxu0 %v1382
  %2010 = vmatprep.mubr.bf16.mxu0 %v347
  %2011 = vmatmul.mubr.bf16.gmra.mxu0 %v346
  %v2012 = vpop.f32.mrf.mxu0
  %v2013 = vadd.f32 %v1972, %v2012
  %v2014 = vpop.f32.mrf.mxu0
  %v2015 = vadd.f32 %v1974, %v2014
  %v2016 = vpop.f32.mrf.mxu0
  %v2017 = vpop.f32.mrf.mxu0
  %2018 = vdwg.mxu0
  %2019 = vmatprep.subr.bf16.mxu0 %v1413
  %2020 = vmatpush1.bf16.msra.mxu0 %v1412
  %2021 = vmatprep.subr.bf16.mxu0 %v1411
  %2022 = vmatpush1.bf16.msra.mxu0 %v1410
  %2023 = vmatprep.subr.bf16.mxu0 %v1409
  %2024 = vmatpush1.bf16.msra.mxu0 %v1408
  %2025 = vmatprep.subr.bf16.mxu0 %v1407
  %2026 = vmatpush1.bf16.msra.mxu0 %v1406
  %2027 = vmatprep.subr.bf16.mxu0 %v1405
  %2028 = vmatpush1.bf16.msra.mxu0 %v1404
  %2029 = vmatprep.subr.bf16.mxu0 %v1403
  %2030 = vmatpush1.bf16.msra.mxu0 %v1402
  %2031 = vmatprep.subr.bf16.mxu0 %v1401
  %2032 = vmatpush1.bf16.msra.mxu0 %v1400
  %2033 = vmatprep.subr.bf16.mxu0 %v1399
  %2034 = vmatpush1.bf16.msra.mxu0 %v1398
  %2035 = vmatprep.subr.bf16.mxu0 %v1429
  %2036 = vmatpush2.bf16.msra.mxu0 %v1428
  %2037 = vmatprep.subr.bf16.mxu0 %v1427
  %2038 = vmatpush2.bf16.msra.mxu0 %v1426
  %2039 = vmatprep.subr.bf16.mxu0 %v1425
  %2040 = vmatpush2.bf16.msra.mxu0 %v1424
  %2041 = vmatprep.subr.bf16.mxu0 %v1423
  %2042 = vmatpush2.bf16.msra.mxu0 %v1422
  %2043 = vmatprep.subr.bf16.mxu0 %v1421
  %2044 = vmatpush2.bf16.msra.mxu0 %v1420
  %2045 = vmatprep.subr.bf16.mxu0 %v1419
  %2046 = vmatpush2.bf16.msra.mxu0 %v1418
  %2047 = vmatprep.subr.bf16.mxu0 %v1417
  %2048 = vmatpush2.bf16.msra.mxu0 %v1416
  %2049 = vmatprep.subr.bf16.mxu0 %v1415
  %2050 = vmatpush2.bf16.msra.mxu0 %v1414
  %2051 = vmatprep.mubr.bf16.mxu0 %v349
  %2052 = vmatmul.mubr.bf16.gmra.mxu0 %v348
  %v2053 = vpop.f32.mrf.mxu0
  %v2054 = vadd.f32 %v2013, %v2053
  %v2055 = vpop.f32.mrf.mxu0
  %v2056 = vadd.f32 %v2015, %v2055
  %v2057 = vpop.f32.mrf.mxu0
  %v2058 = vpop.f32.mrf.mxu0
  %2059 = vdwg.mxu0
  %2060 = vmatprep.subr.bf16.mxu0 %v1445
  %2061 = vmatpush1.bf16.msra.mxu0 %v1444
  %2062 = vmatprep.subr.bf16.mxu0 %v1443
  %2063 = vmatpush1.bf16.msra.mxu0 %v1442
  %2064 = vmatprep.subr.bf16.mxu0 %v1441
  %2065 = vmatpush1.bf16.msra.mxu0 %v1440
  %2066 = vmatprep.subr.bf16.mxu0 %v1439
  %2067 = vmatpush1.bf16.msra.mxu0 %v1438
  %2068 = vmatprep.subr.bf16.mxu0 %v1437
  %2069 = vmatpush1.bf16.msra.mxu0 %v1436
  %2070 = vmatprep.subr.bf16.mxu0 %v1435
  %2071 = vmatpush1.bf16.msra.mxu0 %v1434
  %2072 = vmatprep.subr.bf16.mxu0 %v1433
  %2073 = vmatpush1.bf16.msra.mxu0 %v1432
  %2074 = vmatprep.subr.bf16.mxu0 %v1431
  %2075 = vmatpush1.bf16.msra.mxu0 %v1430
  %2076 = vmatprep.subr.bf16.mxu0 %v1461
  %2077 = vmatpush2.bf16.msra.mxu0 %v1460
  %2078 = vmatprep.subr.bf16.mxu0 %v1459
  %2079 = vmatpush2.bf16.msra.mxu0 %v1458
  %2080 = vmatprep.subr.bf16.mxu0 %v1457
  %2081 = vmatpush2.bf16.msra.mxu0 %v1456
  %2082 = vmatprep.subr.bf16.mxu0 %v1455
  %2083 = vmatpush2.bf16.msra.mxu0 %v1454
  %2084 = vmatprep.subr.bf16.mxu0 %v1453
  %2085 = vmatpush2.bf16.msra.mxu0 %v1452
  %2086 = vmatprep.subr.bf16.mxu0 %v1451
  %2087 = vmatpush2.bf16.msra.mxu0 %v1450
  %2088 = vmatprep.subr.bf16.mxu0 %v1449
  %2089 = vmatpush2.bf16.msra.mxu0 %v1448
  %2090 = vmatprep.subr.bf16.mxu0 %v1447
  %2091 = vmatpush2.bf16.msra.mxu0 %v1446
  %2092 = vmatprep.mubr.bf16.mxu0 %v351
  %2093 = vmatmul.mubr.bf16.gmra.mxu0 %v350
  %v2094 = vpop.f32.mrf.mxu0
  %v2095 = vadd.f32 %v2054, %v2094
  %v2096 = vpop.f32.mrf.mxu0
  %v2097 = vadd.f32 %v2056, %v2096
  %v2098 = vpop.f32.mrf.mxu0
  %v2099 = vpop.f32.mrf.mxu0
  %2100 = vdwg.mxu0
  %2101 = vmatprep.subr.bf16.mxu0 %v1477
  %2102 = vmatpush1.bf16.msra.mxu0 %v1476
  %2103 = vmatprep.subr.bf16.mxu0 %v1475
  %2104 = vmatpush1.bf16.msra.mxu0 %v1474
  %2105 = vmatprep.subr.bf16.mxu0 %v1473
  %2106 = vmatpush1.bf16.msra.mxu0 %v1472
  %2107 = vmatprep.subr.bf16.mxu0 %v1471
  %2108 = vmatpush1.bf16.msra.mxu0 %v1470
  %2109 = vmatprep.subr.bf16.mxu0 %v1469
  %2110 = vmatpush1.bf16.msra.mxu0 %v1468
  %2111 = vmatprep.subr.bf16.mxu0 %v1467
  %2112 = vmatpush1.bf16.msra.mxu0 %v1466
  %2113 = vmatprep.subr.bf16.mxu0 %v1465
  %2114 = vmatpush1.bf16.msra.mxu0 %v1464
  %2115 = vmatprep.subr.bf16.mxu0 %v1463
  %2116 = vmatpush1.bf16.msra.mxu0 %v1462
  %2117 = vmatprep.subr.bf16.mxu0 %v1493
  %2118 = vmatpush2.bf16.msra.mxu0 %v1492
  %2119 = vmatprep.subr.bf16.mxu0 %v1491
  %2120 = vmatpush2.bf16.msra.mxu0 %v1490
  %2121 = vmatprep.subr.bf16.mxu0 %v1489
  %2122 = vmatpush2.bf16.msra.mxu0 %v1488
  %2123 = vmatprep.subr.bf16.mxu0 %v1487
  %2124 = vmatpush2.bf16.msra.mxu0 %v1486
  %2125 = vmatprep.subr.bf16.mxu0 %v1485
  %2126 = vmatpush2.bf16.msra.mxu0 %v1484
  %2127 = vmatprep.subr.bf16.mxu0 %v1483
  %2128 = vmatpush2.bf16.msra.mxu0 %v1482
  %2129 = vmatprep.subr.bf16.mxu0 %v1481
  %2130 = vmatpush2.bf16.msra.mxu0 %v1480
  %2131 = vmatprep.subr.bf16.mxu0 %v1479
  %2132 = vmatpush2.bf16.msra.mxu0 %v1478
  %2133 = vmatprep.mubr.bf16.mxu0 %v353
  %2134 = vmatmul.mubr.bf16.gmra.mxu0 %v352
  %v2135 = vpop.f32.mrf.mxu0
  %v2136 = vadd.f32 %v2095, %v2135
  %v2137 = vpop.f32.mrf.mxu0
  %v2138 = vadd.f32 %v2097, %v2137
  %v2139 = vpop.f32.mrf.mxu0
  %v2140 = vpop.f32.mrf.mxu0
  %2141 = vdwg.mxu0
  %2142 = vmatprep.subr.bf16.mxu0 %v1509
  %2143 = vmatpush1.bf16.msra.mxu0 %v1508
  %2144 = vmatprep.subr.bf16.mxu0 %v1507
  %2145 = vmatpush1.bf16.msra.mxu0 %v1506
  %2146 = vmatprep.subr.bf16.mxu0 %v1505
  %2147 = vmatpush1.bf16.msra.mxu0 %v1504
  %2148 = vmatprep.subr.bf16.mxu0 %v1503
  %2149 = vmatpush1.bf16.msra.mxu0 %v1502
  %2150 = vmatprep.subr.bf16.mxu0 %v1501
  %2151 = vmatpush1.bf16.msra.mxu0 %v1500
  %2152 = vmatprep.subr.bf16.mxu0 %v1499
  %2153 = vmatpush1.bf16.msra.mxu0 %v1498
  %2154 = vmatprep.subr.bf16.mxu0 %v1497
  %2155 = vmatpush1.bf16.msra.mxu0 %v1496
  %2156 = vmatprep.subr.bf16.mxu0 %v1495
  %2157 = vmatpush1.bf16.msra.mxu0 %v1494
  %2158 = vmatprep.subr.bf16.mxu0 %v1525
  %2159 = vmatpush2.bf16.msra.mxu0 %v1524
  %2160 = vmatprep.subr.bf16.mxu0 %v1523
  %2161 = vmatpush2.bf16.msra.mxu0 %v1522
  %2162 = vmatprep.subr.bf16.mxu0 %v1521
  %2163 = vmatpush2.bf16.msra.mxu0 %v1520
  %2164 = vmatprep.subr.bf16.mxu0 %v1519
  %2165 = vmatpush2.bf16.msra.mxu0 %v1518
  %2166 = vmatprep.subr.bf16.mxu0 %v1517
  %2167 = vmatpush2.bf16.msra.mxu0 %v1516
  %2168 = vmatprep.subr.bf16.mxu0 %v1515
  %2169 = vmatpush2.bf16.msra.mxu0 %v1514
  %2170 = vmatprep.subr.bf16.mxu0 %v1513
  %2171 = vmatpush2.bf16.msra.mxu0 %v1512
  %2172 = vmatprep.subr.bf16.mxu0 %v1511
  %2173 = vmatpush2.bf16.msra.mxu0 %v1510
  %2174 = vmatprep.mubr.bf16.mxu0 %v355
  %2175 = vmatmul.mubr.bf16.gmra.mxu0 %v354
  %v2176 = vpop.f32.mrf.mxu0
  %v2177 = vadd.f32 %v2136, %v2176
  %v2178 = vpop.f32.mrf.mxu0
  %v2179 = vadd.f32 %v2138, %v2178
  %v2180 = vpop.f32.mrf.mxu0
  %v2181 = vpop.f32.mrf.mxu0
  %2182 = vdwg.mxu0
  %v2183 = vld [vmem:[%s2] ss:$4 sm:$0x3]
  %v2185 = vlaneseq
  %v2186 = vshrl.u32 %v2185, 7
  %v2187 = vsub.s32 0, %v2186
  %v2188 = vrot.slane %v2183, %v2187
  %v2189 = vlaneseq
  %v2190 = vshrl.u32 %v2189, 7
  %v2191 = vsub.s32 1, %v2190
  %v2192 = vrot.slane %v2183, %v2191
  %v2195 = vmul.f32 %v2177, %v2188
  %v2196 = vmul.f32 %v2179, %v2192
  %s2197 = scalar_lea.vmem %s2, 1
  %v2198 = vld [vmem:[%s2197] ss:$4 sm:$0x3]
  %v2200 = vlaneseq
  %v2201 = vshrl.u32 %v2200, 7
  %v2202 = vsub.s32 0, %v2201
  %v2203 = vrot.slane %v2198, %v2202
  %v2204 = vlaneseq
  %v2205 = vshrl.u32 %v2204, 7
  %v2206 = vsub.s32 1, %v2205
  %v2207 = vrot.slane %v2198, %v2206
  %v2210 = vadd.f32 %v2195, %v2203
  %v2211 = vadd.f32 %v2196, %v2207
  %v2212 = vmax.f32 %v2210, 0.0
  %v2213 = vmax.f32 %v2211, 0.0
  %v2214 = vpack.c.bf16 %v2212, %v2212
  %v2215 = vpack.c.bf16 %v2213, %v2213
  %v2218 = vunpack.c.l.b16 %v2214
  %v2219 = vunpack.c.l.b16 %v2215
  %v2220 = vpack.c.b16 %v2219, %v2218
  %2222 = vst [vmem:[%s3] sm:$0xff] %v2220
  // Predicated region
  $region14: #{autoencoder_forward.11} parent=0 // pred_check
    _
  $region15: #{autoencoder_forward.11} parent=0 // pred_check_branch
    %2224 = sbr.rel (0) target = $region17
  $region16: #{autoencoder_forward.11} parent=0 // pred_region
    _
  $region17: #{autoencoder_forward.11} parent=0 // pred_fallthru
    _
  // Predicated region
  $region18: #{autoencoder_forward.11} parent=0 // pred_check
    _
  $region19: #{autoencoder_forward.11} parent=0 // pred_check_branch
    %2226 = sbr.rel (0) target = $region21
  $region20: #{autoencoder_forward.11} parent=0 // pred_region
    _
  $region21: #{autoencoder_forward.11} parent=0 // pred_fallthru
    _

// kernel: autoencoder_forward.12
$region0: #{autoencoder_forward.12}
  #allocation0 [shape = 'u32[]', space=smem, size = 0x4, offset = 0x4, fixed_abs, tag = 'smem constant byte address 0x4 - core index']
  #allocation1 [shape = 'u32[144,128]{1,0:T(1,128)}', space=vmem, size = 0x12000, scoped, tag = 'internal scratch']
  %s0 = inlined_call_operand.vmem [shape: bf16[32,1024], index: 0, kind: input, shape index: {}]
  %s1 = inlined_call_operand.vmem [shape: bf16[1024,512], index: 1, kind: input, shape index: {}]
  %s2 = inlined_call_operand.vmem [shape: f32[3,512], index: 2, kind: input, shape index: {}]
  %s3 = inlined_call_operand.vmem [shape: bf16[32,512], index: 3, kind: output, shape index: {}]
  %s4 = sld [smem:[#allocation0]]
  $region22: #{autoencoder_forward.12} parent=0
    _
  %s6 = ssub.s32 1, %s4
  %s7 = scalar_select 0, %s6, %s4
  // Predicated region
  $region2: #{autoencoder_forward.12} parent=0 // pred_check
    _
  $region3: #{autoencoder_forward.12} parent=0 // pred_check_branch
    %9 = sbr.rel (0) target = $region5
  $region4: #{autoencoder_forward.12} parent=0 // pred_region
    _
  $region5: #{autoencoder_forward.12} parent=0 // pred_fallthru
    _
  // Predicated region
  $region6: #{autoencoder_forward.12} parent=0 // pred_check
    _
  $region7: #{autoencoder_forward.12} parent=0 // pred_check_branch
    %11 = sbr.rel (0) target = $region9
  $region8: #{autoencoder_forward.12} parent=0 // pred_region
    _
  $region9: #{autoencoder_forward.12} parent=0 // pred_fallthru
    _
  // Predicated region
  $region10: #{autoencoder_forward.12} parent=0 // pred_check
    _
  $region11: #{autoencoder_forward.12} parent=0 // pred_check_branch
    %13 = sbr.rel (0) target = $region13
  $region12: #{autoencoder_forward.12} parent=0 // pred_region
    _
  $region13: #{autoencoder_forward.12} parent=0 // pred_fallthru
    _
  %v14 = vld [vmem:[%s0] sm:$0xff]
  %v15 = vld [vmem:[%s0 + $0x8] sm:$0xff]
  %v16 = vld [vmem:[%s0 + $0x10] sm:$0xff]
  %v17 = vld [vmem:[%s0 + $0x18] sm:$0xff]
  %v18 = vld [vmem:[%s0 + $0x20] sm:$0xff]
  %v19 = vld [vmem:[%s0 + $0x28] sm:$0xff]
  %v20 = vld [vmem:[%s0 + $0x30] sm:$0xff]
  %v21 = vld [vmem:[%s0 + $0x38] sm:$0xff]
  %v22 = vld [vmem:[%s0 + $0x40] sm:$0xff]
  %v23 = vld [vmem:[%s0 + $0x48] sm:$0xff]
  %v24 = vld [vmem:[%s0 + $0x50] sm:$0xff]
  %v25 = vld [vmem:[%s0 + $0x58] sm:$0xff]
  %v26 = vld [vmem:[%s0 + $0x60] sm:$0xff]
  %v27 = vld [vmem:[%s0 + $0x68] sm:$0xff]
  %v28 = vld [vmem:[%s0 + $0x70] sm:$0xff]
  %v29 = vld [vmem:[%s0 + $0x78] sm:$0xff]
  %v30 = vld [vmem:[%s1] sm:$0xff]
  %v31 = vld [vmem:[%s1 + $0x8] sm:$0xff]
  %v32 = vld [vmem:[%s1 + $0x10] sm:$0xff]
  %v33 = vld [vmem:[%s1 + $0x18] sm:$0xff]
  %v34 = vld [vmem:[%s1 + $0x20] sm:$0xff]
  %v35 = vld [vmem:[%s1 + $0x28] sm:$0xff]
  %v36 = vld [vmem:[%s1 + $0x30] sm:$0xff]
  %v37 = vld [vmem:[%s1 + $0x38] sm:$0xff]
  %v38 = vld [vmem:[%s1 + $0x40] sm:$0xff]
  %v39 = vld [vmem:[%s1 + $0x48] sm:$0xff]
  %v40 = vld [vmem:[%s1 + $0x50] sm:$0xff]
  %v41 = vld [vmem:[%s1 + $0x58] sm:$0xff]
  %v42 = vld [vmem:[%s1 + $0x60] sm:$0xff]
  %v43 = vld [vmem:[%s1 + $0x68] sm:$0xff]
  %v44 = vld [vmem:[%s1 + $0x70] sm:$0xff]
  %v45 = vld [vmem:[%s1 + $0x78] sm:$0xff]
  %v46 = vld [vmem:[%s1 + $0x80] sm:$0xff]
  %v47 = vld [vmem:[%s1 + $0x88] sm:$0xff]
  %v48 = vld [vmem:[%s1 + $0x90] sm:$0xff]
  %v49 = vld [vmem:[%s1 + $0x98] sm:$0xff]
  %v50 = vld [vmem:[%s1 + $0xa0] sm:$0xff]
  %v51 = vld [vmem:[%s1 + $0xa8] sm:$0xff]
  %v52 = vld [vmem:[%s1 + $0xb0] sm:$0xff]
  %v53 = vld [vmem:[%s1 + $0xb8] sm:$0xff]
  %v54 = vld [vmem:[%s1 + $0xc0] sm:$0xff]
  %v55 = vld [vmem:[%s1 + $0xc8] sm:$0xff]
  %v56 = vld [vmem:[%s1 + $0xd0] sm:$0xff]
  %v57 = vld [vmem:[%s1 + $0xd8] sm:$0xff]
  %v58 = vld [vmem:[%s1 + $0xe0] sm:$0xff]
  %v59 = vld [vmem:[%s1 + $0xe8] sm:$0xff]
  %v60 = vld [vmem:[%s1 + $0xf0] sm:$0xff]
  %v61 = vld [vmem:[%s1 + $0xf8] sm:$0xff]
  %v62 = vld [vmem:[%s1 + $0x100] sm:$0xff]
  %v63 = vld [vmem:[%s1 + $0x108] sm:$0xff]
  %v64 = vld [vmem:[%s1 + $0x110] sm:$0xff]
  %v65 = vld [vmem:[%s1 + $0x118] sm:$0xff]
  %v66 = vld [vmem:[%s1 + $0x120] sm:$0xff]
  %v67 = vld [vmem:[%s1 + $0x128] sm:$0xff]
  %v68 = vld [vmem:[%s1 + $0x130] sm:$0xff]
  %v69 = vld [vmem:[%s1 + $0x138] sm:$0xff]
  %v70 = vld [vmem:[%s1 + $0x140] sm:$0xff]
  %v71 = vld [vmem:[%s1 + $0x148] sm:$0xff]
  %v72 = vld [vmem:[%s1 + $0x150] sm:$0xff]
  %v73 = vld [vmem:[%s1 + $0x158] sm:$0xff]
  %v74 = vld [vmem:[%s1 + $0x160] sm:$0xff]
  %v75 = vld [vmem:[%s1 + $0x168] sm:$0xff]
  %v76 = vld [vmem:[%s1 + $0x170] sm:$0xff]
  %v77 = vld [vmem:[%s1 + $0x178] sm:$0xff]
  %v78 = vld [vmem:[%s1 + $0x180] sm:$0xff]
  %v79 = vld [vmem:[%s1 + $0x188] sm:$0xff]
  %v80 = vld [vmem:[%s1 + $0x190] sm:$0xff]
  %v81 = vld [vmem:[%s1 + $0x198] sm:$0xff]
  %v82 = vld [vmem:[%s1 + $0x1a0] sm:$0xff]
  %v83 = vld [vmem:[%s1 + $0x1a8] sm:$0xff]
  %v84 = vld [vmem:[%s1 + $0x1b0] sm:$0xff]
  %v85 = vld [vmem:[%s1 + $0x1b8] sm:$0xff]
  %v86 = vld [vmem:[%s1 + $0x1c0] sm:$0xff]
  %v87 = vld [vmem:[%s1 + $0x1c8] sm:$0xff]
  %v88 = vld [vmem:[%s1 + $0x1d0] sm:$0xff]
  %v89 = vld [vmem:[%s1 + $0x1d8] sm:$0xff]
  %v90 = vld [vmem:[%s1 + $0x1e0] sm:$0xff]
  %v91 = vld [vmem:[%s1 + $0x1e8] sm:$0xff]
  %v92 = vld [vmem:[%s1 + $0x1f0] sm:$0xff]
  %v93 = vld [vmem:[%s1 + $0x1f8] sm:$0xff]
  %v94 = vld [vmem:[%s1 + $0x200] sm:$0xff]
  %v95 = vld [vmem:[%s1 + $0x208] sm:$0xff]
  %v96 = vld [vmem:[%s1 + $0x210] sm:$0xff]
  %v97 = vld [vmem:[%s1 + $0x218] sm:$0xff]
  %v98 = vld [vmem:[%s1 + $0x220] sm:$0xff]
  %v99 = vld [vmem:[%s1 + $0x228] sm:$0xff]
  %v100 = vld [vmem:[%s1 + $0x230] sm:$0xff]
  %v101 = vld [vmem:[%s1 + $0x238] sm:$0xff]
  %v102 = vld [vmem:[%s1 + $0x240] sm:$0xff]
  %v103 = vld [vmem:[%s1 + $0x248] sm:$0xff]
  %v104 = vld [vmem:[%s1 + $0x250] sm:$0xff]
  %v105 = vld [vmem:[%s1 + $0x258] sm:$0xff]
  %v106 = vld [vmem:[%s1 + $0x260] sm:$0xff]
  %v107 = vld [vmem:[%s1 + $0x268] sm:$0xff]
  %v108 = vld [vmem:[%s1 + $0x270] sm:$0xff]
  %v109 = vld [vmem:[%s1 + $0x278] sm:$0xff]
  %v110 = vld [vmem:[%s1 + $0x280] sm:$0xff]
  %v111 = vld [vmem:[%s1 + $0x288] sm:$0xff]
  %v112 = vld [vmem:[%s1 + $0x290] sm:$0xff]
  %v113 = vld [vmem:[%s1 + $0x298] sm:$0xff]
  %v114 = vld [vmem:[%s1 + $0x2a0] sm:$0xff]
  %v115 = vld [vmem:[%s1 + $0x2a8] sm:$0xff]
  %v116 = vld [vmem:[%s1 + $0x2b0] sm:$0xff]
  %v117 = vld [vmem:[%s1 + $0x2b8] sm:$0xff]
  %v118 = vld [vmem:[%s1 + $0x2c0] sm:$0xff]
  %v119 = vld [vmem:[%s1 + $0x2c8] sm:$0xff]
  %v120 = vld [vmem:[%s1 + $0x2d0] sm:$0xff]
  %v121 = vld [vmem:[%s1 + $0x2d8] sm:$0xff]
  %v122 = vld [vmem:[%s1 + $0x2e0] sm:$0xff]
  %v123 = vld [vmem:[%s1 + $0x2e8] sm:$0xff]
  %v124 = vld [vmem:[%s1 + $0x2f0] sm:$0xff]
  %v125 = vld [vmem:[%s1 + $0x2f8] sm:$0xff]
  %v126 = vld [vmem:[%s1 + $0x300] sm:$0xff]
  %v127 = vld [vmem:[%s1 + $0x308] sm:$0xff]
  %v128 = vld [vmem:[%s1 + $0x310] sm:$0xff]
  %v129 = vld [vmem:[%s1 + $0x318] sm:$0xff]
  %v130 = vld [vmem:[%s1 + $0x320] sm:$0xff]
  %v131 = vld [vmem:[%s1 + $0x328] sm:$0xff]
  %v132 = vld [vmem:[%s1 + $0x330] sm:$0xff]
  %v133 = vld [vmem:[%s1 + $0x338] sm:$0xff]
  %v134 = vld [vmem:[%s1 + $0x340] sm:$0xff]
  %v135 = vld [vmem:[%s1 + $0x348] sm:$0xff]
  %v136 = vld [vmem:[%s1 + $0x350] sm:$0xff]
  %v137 = vld [vmem:[%s1 + $0x358] sm:$0xff]
  %v138 = vld [vmem:[%s1 + $0x360] sm:$0xff]
  %v139 = vld [vmem:[%s1 + $0x368] sm:$0xff]
  %v140 = vld [vmem:[%s1 + $0x370] sm:$0xff]
  %v141 = vld [vmem:[%s1 + $0x378] sm:$0xff]
  %v142 = vld [vmem:[%s1 + $0x380] sm:$0xff]
  %v143 = vld [vmem:[%s1 + $0x388] sm:$0xff]
  %v144 = vld [vmem:[%s1 + $0x390] sm:$0xff]
  %v145 = vld [vmem:[%s1 + $0x398] sm:$0xff]
  %v146 = vld [vmem:[%s1 + $0x3a0] sm:$0xff]
  %v147 = vld [vmem:[%s1 + $0x3a8] sm:$0xff]
  %v148 = vld [vmem:[%s1 + $0x3b0] sm:$0xff]
  %v149 = vld [vmem:[%s1 + $0x3b8] sm:$0xff]
  %v150 = vld [vmem:[%s1 + $0x3c0] sm:$0xff]
  %v151 = vld [vmem:[%s1 + $0x3c8] sm:$0xff]
  %v152 = vld [vmem:[%s1 + $0x3d0] sm:$0xff]
  %v153 = vld [vmem:[%s1 + $0x3d8] sm:$0xff]
  %v154 = vld [vmem:[%s1 + $0x3e0] sm:$0xff]
  %v155 = vld [vmem:[%s1 + $0x3e8] sm:$0xff]
  %v156 = vld [vmem:[%s1 + $0x3f0] sm:$0xff]
  %v157 = vld [vmem:[%s1 + $0x3f8] sm:$0xff]
  %v158 = vld [vmem:[%s1 + $0x400] sm:$0xff]
  %v159 = vld [vmem:[%s1 + $0x408] sm:$0xff]
  %v160 = vld [vmem:[%s1 + $0x410] sm:$0xff]
  %v161 = vld [vmem:[%s1 + $0x418] sm:$0xff]
  %v162 = vld [vmem:[%s1 + $0x420] sm:$0xff]
  %v163 = vld [vmem:[%s1 + $0x428] sm:$0xff]
  %v164 = vld [vmem:[%s1 + $0x430] sm:$0xff]
  %v165 = vld [vmem:[%s1 + $0x438] sm:$0xff]
  %v166 = vld [vmem:[%s1 + $0x440] sm:$0xff]
  %v167 = vld [vmem:[%s1 + $0x448] sm:$0xff]
  %v168 = vld [vmem:[%s1 + $0x450] sm:$0xff]
  %v169 = vld [vmem:[%s1 + $0x458] sm:$0xff]
  %v170 = vld [vmem:[%s1 + $0x460] sm:$0xff]
  %v171 = vld [vmem:[%s1 + $0x468] sm:$0xff]
  %v172 = vld [vmem:[%s1 + $0x470] sm:$0xff]
  %v173 = vld [vmem:[%s1 + $0x478] sm:$0xff]
  %v174 = vld [vmem:[%s1 + $0x480] sm:$0xff]
  %v175 = vld [vmem:[%s1 + $0x488] sm:$0xff]
  %v176 = vld [vmem:[%s1 + $0x490] sm:$0xff]
  %v177 = vld [vmem:[%s1 + $0x498] sm:$0xff]
  %v178 = vld [vmem:[%s1 + $0x4a0] sm:$0xff]
  %v179 = vld [vmem:[%s1 + $0x4a8] sm:$0xff]
  %v180 = vld [vmem:[%s1 + $0x4b0] sm:$0xff]
  %v181 = vld [vmem:[%s1 + $0x4b8] sm:$0xff]
  %v182 = vld [vmem:[%s1 + $0x4c0] sm:$0xff]
  %v183 = vld [vmem:[%s1 + $0x4c8] sm:$0xff]
  %v184 = vld [vmem:[%s1 + $0x4d0] sm:$0xff]
  %v185 = vld [vmem:[%s1 + $0x4d8] sm:$0xff]
  %v186 = vld [vmem:[%s1 + $0x4e0] sm:$0xff]
  %v187 = vld [vmem:[%s1 + $0x4e8] sm:$0xff]
  %v188 = vld [vmem:[%s1 + $0x4f0] sm:$0xff]
  %v189 = vld [vmem:[%s1 + $0x4f8] sm:$0xff]
  %v190 = vld [vmem:[%s1 + $0x500] sm:$0xff]
  %v191 = vld [vmem:[%s1 + $0x508] sm:$0xff]
  %v192 = vld [vmem:[%s1 + $0x510] sm:$0xff]
  %v193 = vld [vmem:[%s1 + $0x518] sm:$0xff]
  %v194 = vld [vmem:[%s1 + $0x520] sm:$0xff]
  %v195 = vld [vmem:[%s1 + $0x528] sm:$0xff]
  %v196 = vld [vmem:[%s1 + $0x530] sm:$0xff]
  %v197 = vld [vmem:[%s1 + $0x538] sm:$0xff]
  %v198 = vld [vmem:[%s1 + $0x540] sm:$0xff]
  %v199 = vld [vmem:[%s1 + $0x548] sm:$0xff]
  %v200 = vld [vmem:[%s1 + $0x550] sm:$0xff]
  %v201 = vld [vmem:[%s1 + $0x558] sm:$0xff]
  %v202 = vld [vmem:[%s1 + $0x560] sm:$0xff]
  %v203 = vld [vmem:[%s1 + $0x568] sm:$0xff]
  %v204 = vld [vmem:[%s1 + $0x570] sm:$0xff]
  %v205 = vld [vmem:[%s1 + $0x578] sm:$0xff]
  %v206 = vld [vmem:[%s1 + $0x580] sm:$0xff]
  %v207 = vld [vmem:[%s1 + $0x588] sm:$0xff]
  %v208 = vld [vmem:[%s1 + $0x590] sm:$0xff]
  %v209 = vld [vmem:[%s1 + $0x598] sm:$0xff]
  %v210 = vld [vmem:[%s1 + $0x5a0] sm:$0xff]
  %v211 = vld [vmem:[%s1 + $0x5a8] sm:$0xff]
  %v212 = vld [vmem:[%s1 + $0x5b0] sm:$0xff]
  %v213 = vld [vmem:[%s1 + $0x5b8] sm:$0xff]
  %v214 = vld [vmem:[%s1 + $0x5c0] sm:$0xff]
  %v215 = vld [vmem:[%s1 + $0x5c8] sm:$0xff]
  %v216 = vld [vmem:[%s1 + $0x5d0] sm:$0xff]
  %v217 = vld [vmem:[%s1 + $0x5d8] sm:$0xff]
  %v218 = vld [vmem:[%s1 + $0x5e0] sm:$0xff]
  %v219 = vld [vmem:[%s1 + $0x5e8] sm:$0xff]
  %v220 = vld [vmem:[%s1 + $0x5f0] sm:$0xff]
  %v221 = vld [vmem:[%s1 + $0x5f8] sm:$0xff]
  %v222 = vld [vmem:[%s1 + $0x600] sm:$0xff]
  %v223 = vld [vmem:[%s1 + $0x608] sm:$0xff]
  %v224 = vld [vmem:[%s1 + $0x610] sm:$0xff]
  %v225 = vld [vmem:[%s1 + $0x618] sm:$0xff]
  %v226 = vld [vmem:[%s1 + $0x620] sm:$0xff]
  %v227 = vld [vmem:[%s1 + $0x628] sm:$0xff]
  %v228 = vld [vmem:[%s1 + $0x630] sm:$0xff]
  %v229 = vld [vmem:[%s1 + $0x638] sm:$0xff]
  %v230 = vld [vmem:[%s1 + $0x640] sm:$0xff]
  %v231 = vld [vmem:[%s1 + $0x648] sm:$0xff]
  %v232 = vld [vmem:[%s1 + $0x650] sm:$0xff]
  %v233 = vld [vmem:[%s1 + $0x658] sm:$0xff]
  %v234 = vld [vmem:[%s1 + $0x660] sm:$0xff]
  %v235 = vld [vmem:[%s1 + $0x668] sm:$0xff]
  %v236 = vld [vmem:[%s1 + $0x670] sm:$0xff]
  %v237 = vld [vmem:[%s1 + $0x678] sm:$0xff]
  %v238 = vld [vmem:[%s1 + $0x680] sm:$0xff]
  %v239 = vld [vmem:[%s1 + $0x688] sm:$0xff]
  %v240 = vld [vmem:[%s1 + $0x690] sm:$0xff]
  %v241 = vld [vmem:[%s1 + $0x698] sm:$0xff]
  %v242 = vld [vmem:[%s1 + $0x6a0] sm:$0xff]
  %v243 = vld [vmem:[%s1 + $0x6a8] sm:$0xff]
  %v244 = vld [vmem:[%s1 + $0x6b0] sm:$0xff]
  %v245 = vld [vmem:[%s1 + $0x6b8] sm:$0xff]
  %v246 = vld [vmem:[%s1 + $0x6c0] sm:$0xff]
  %v247 = vld [vmem:[%s1 + $0x6c8] sm:$0xff]
  %v248 = vld [vmem:[%s1 + $0x6d0] sm:$0xff]
  %v249 = vld [vmem:[%s1 + $0x6d8] sm:$0xff]
  %v250 = vld [vmem:[%s1 + $0x6e0] sm:$0xff]
  %v251 = vld [vmem:[%s1 + $0x6e8] sm:$0xff]
  %v252 = vld [vmem:[%s1 + $0x6f0] sm:$0xff]
  %v253 = vld [vmem:[%s1 + $0x6f8] sm:$0xff]
  %v254 = vld [vmem:[%s1 + $0x700] sm:$0xff]
  %v255 = vld [vmem:[%s1 + $0x708] sm:$0xff]
  %v256 = vld [vmem:[%s1 + $0x710] sm:$0xff]
  %v257 = vld [vmem:[%s1 + $0x718] sm:$0xff]
  %v258 = vld [vmem:[%s1 + $0x720] sm:$0xff]
  %v259 = vld [vmem:[%s1 + $0x728] sm:$0xff]
  %v260 = vld [vmem:[%s1 + $0x730] sm:$0xff]
  %v261 = vld [vmem:[%s1 + $0x738] sm:$0xff]
  %v262 = vld [vmem:[%s1 + $0x740] sm:$0xff]
  %v263 = vld [vmem:[%s1 + $0x748] sm:$0xff]
  %v264 = vld [vmem:[%s1 + $0x750] sm:$0xff]
  %v265 = vld [vmem:[%s1 + $0x758] sm:$0xff]
  %v266 = vld [vmem:[%s1 + $0x760] sm:$0xff]
  %v267 = vld [vmem:[%s1 + $0x768] sm:$0xff]
  %v268 = vld [vmem:[%s1 + $0x770] sm:$0xff]
  %v269 = vld [vmem:[%s1 + $0x778] sm:$0xff]
  %v270 = vld [vmem:[%s1 + $0x780] sm:$0xff]
  %v271 = vld [vmem:[%s1 + $0x788] sm:$0xff]
  %v272 = vld [vmem:[%s1 + $0x790] sm:$0xff]
  %v273 = vld [vmem:[%s1 + $0x798] sm:$0xff]
  %v274 = vld [vmem:[%s1 + $0x7a0] sm:$0xff]
  %v275 = vld [vmem:[%s1 + $0x7a8] sm:$0xff]
  %v276 = vld [vmem:[%s1 + $0x7b0] sm:$0xff]
  %v277 = vld [vmem:[%s1 + $0x7b8] sm:$0xff]
  %v278 = vld [vmem:[%s1 + $0x7c0] sm:$0xff]
  %v279 = vld [vmem:[%s1 + $0x7c8] sm:$0xff]
  %v280 = vld [vmem:[%s1 + $0x7d0] sm:$0xff]
  %v281 = vld [vmem:[%s1 + $0x7d8] sm:$0xff]
  %v282 = vld [vmem:[%s1 + $0x7e0] sm:$0xff]
  %v283 = vld [vmem:[%s1 + $0x7e8] sm:$0xff]
  %v284 = vld [vmem:[%s1 + $0x7f0] sm:$0xff]
  %v285 = vld [vmem:[%s1 + $0x7f8] sm:$0xff]
  %v302 = vunpack.c.l.b16 %v14
  %v303 = vunpack.c.h.b16 %v14
  %v304 = vunpack.c.l.b16 %v15
  %v305 = vunpack.c.h.b16 %v15
  %v306 = vunpack.c.l.b16 %v16
  %v307 = vunpack.c.h.b16 %v16
  %v308 = vunpack.c.l.b16 %v17
  %v309 = vunpack.c.h.b16 %v17
  %v310 = vunpack.c.l.b16 %v18
  %v311 = vunpack.c.h.b16 %v18
  %v312 = vunpack.c.l.b16 %v19
  %v313 = vunpack.c.h.b16 %v19
  %v314 = vunpack.c.l.b16 %v20
  %v315 = vunpack.c.h.b16 %v20
  %v316 = vunpack.c.l.b16 %v21
  %v317 = vunpack.c.h.b16 %v21
  %v318 = vunpack.c.l.b16 %v22
  %v319 = vunpack.c.h.b16 %v22
  %v320 = vunpack.c.l.b16 %v23
  %v321 = vunpack.c.h.b16 %v23
  %v322 = vunpack.c.l.b16 %v24
  %v323 = vunpack.c.h.b16 %v24
  %v324 = vunpack.c.l.b16 %v25
  %v325 = vunpack.c.h.b16 %v25
  %v326 = vunpack.c.l.b16 %v26
  %v327 = vunpack.c.h.b16 %v26
  %v328 = vunpack.c.l.b16 %v27
  %v329 = vunpack.c.h.b16 %v27
  %v330 = vunpack.c.l.b16 %v28
  %v331 = vunpack.c.h.b16 %v28
  %v332 = vunpack.c.l.b16 %v29
  %v333 = vunpack.c.h.b16 %v29
  %v334 = vpack.c.b16 %v310, %v302
  %v335 = vpack.c.b16 %v311, %v303
  %v336 = vpack.c.b16 %v312, %v304
  %v337 = vpack.c.b16 %v313, %v305
  %v338 = vpack.c.b16 %v314, %v306
  %v339 = vpack.c.b16 %v315, %v307
  %v340 = vpack.c.b16 %v316, %v308
  %v341 = vpack.c.b16 %v317, %v309
  %v342 = vpack.c.b16 %v326, %v318
  %v343 = vpack.c.b16 %v327, %v319
  %v344 = vpack.c.b16 %v328, %v320
  %v345 = vpack.c.b16 %v329, %v321
  %v346 = vpack.c.b16 %v330, %v322
  %v347 = vpack.c.b16 %v331, %v323
  %v348 = vpack.c.b16 %v332, %v324
  %v349 = vpack.c.b16 %v333, %v325
  %v622 = vunpack.c.l.b16 %v30
  %v623 = vunpack.c.h.b16 %v30
  %v624 = vunpack.c.l.b16 %v31
  %v625 = vunpack.c.h.b16 %v31
  %v626 = vunpack.c.l.b16 %v32
  %v627 = vunpack.c.h.b16 %v32
  %v628 = vunpack.c.l.b16 %v33
  %v629 = vunpack.c.h.b16 %v33
  %v630 = vunpack.c.l.b16 %v34
  %v631 = vunpack.c.h.b16 %v34
  %v632 = vunpack.c.l.b16 %v35
  %v633 = vunpack.c.h.b16 %v35
  %v634 = vunpack.c.l.b16 %v36
  %v635 = vunpack.c.h.b16 %v36
  %v636 = vunpack.c.l.b16 %v37
  %v637 = vunpack.c.h.b16 %v37
  %v638 = vunpack.c.l.b16 %v38
  %v639 = vunpack.c.h.b16 %v38
  %v640 = vunpack.c.l.b16 %v39
  %v641 = vunpack.c.h.b16 %v39
  %v642 = vunpack.c.l.b16 %v40
  %v643 = vunpack.c.h.b16 %v40
  %v644 = vunpack.c.l.b16 %v41
  %v645 = vunpack.c.h.b16 %v41
  %v646 = vunpack.c.l.b16 %v42
  %v647 = vunpack.c.h.b16 %v42
  %v648 = vunpack.c.l.b16 %v43
  %v649 = vunpack.c.h.b16 %v43
  %v650 = vunpack.c.l.b16 %v44
  %v651 = vunpack.c.h.b16 %v44
  %v652 = vunpack.c.l.b16 %v45
  %v653 = vunpack.c.h.b16 %v45
  %v654 = vunpack.c.l.b16 %v46
  %v655 = vunpack.c.h.b16 %v46
  %v656 = vunpack.c.l.b16 %v47
  %v657 = vunpack.c.h.b16 %v47
  %v658 = vunpack.c.l.b16 %v48
  %v659 = vunpack.c.h.b16 %v48
  %v660 = vunpack.c.l.b16 %v49
  %v661 = vunpack.c.h.b16 %v49
  %v662 = vunpack.c.l.b16 %v50
  %v663 = vunpack.c.h.b16 %v50
  %v664 = vunpack.c.l.b16 %v51
  %v665 = vunpack.c.h.b16 %v51
  %v666 = vunpack.c.l.b16 %v52
  %v667 = vunpack.c.h.b16 %v52
  %v668 = vunpack.c.l.b16 %v53
  %v669 = vunpack.c.h.b16 %v53
  %v670 = vunpack.c.l.b16 %v54
  %v671 = vunpack.c.h.b16 %v54
  %v672 = vunpack.c.l.b16 %v55
  %v673 = vunpack.c.h.b16 %v55
  %v674 = vunpack.c.l.b16 %v56
  %v675 = vunpack.c.h.b16 %v56
  %v676 = vunpack.c.l.b16 %v57
  %v677 = vunpack.c.h.b16 %v57
  %v678 = vunpack.c.l.b16 %v58
  %v679 = vunpack.c.h.b16 %v58
  %v680 = vunpack.c.l.b16 %v59
  %v681 = vunpack.c.h.b16 %v59
  %v682 = vunpack.c.l.b16 %v60
  %v683 = vunpack.c.h.b16 %v60
  %v684 = vunpack.c.l.b16 %v61
  %v685 = vunpack.c.h.b16 %v61
  %v686 = vunpack.c.l.b16 %v62
  %v687 = vunpack.c.h.b16 %v62
  %v688 = vunpack.c.l.b16 %v63
  %v689 = vunpack.c.h.b16 %v63
  %v690 = vunpack.c.l.b16 %v64
  %v691 = vunpack.c.h.b16 %v64
  %v692 = vunpack.c.l.b16 %v65
  %v693 = vunpack.c.h.b16 %v65
  %v694 = vunpack.c.l.b16 %v66
  %v695 = vunpack.c.h.b16 %v66
  %v696 = vunpack.c.l.b16 %v67
  %v697 = vunpack.c.h.b16 %v67
  %v698 = vunpack.c.l.b16 %v68
  %v699 = vunpack.c.h.b16 %v68
  %v700 = vunpack.c.l.b16 %v69
  %v701 = vunpack.c.h.b16 %v69
  %v702 = vunpack.c.l.b16 %v70
  %v703 = vunpack.c.h.b16 %v70
  %v704 = vunpack.c.l.b16 %v71
  %v705 = vunpack.c.h.b16 %v71
  %v706 = vunpack.c.l.b16 %v72
  %v707 = vunpack.c.h.b16 %v72
  %v708 = vunpack.c.l.b16 %v73
  %v709 = vunpack.c.h.b16 %v73
  %v710 = vunpack.c.l.b16 %v74
  %v711 = vunpack.c.h.b16 %v74
  %v712 = vunpack.c.l.b16 %v75
  %v713 = vunpack.c.h.b16 %v75
  %v714 = vunpack.c.l.b16 %v76
  %v715 = vunpack.c.h.b16 %v76
  %v716 = vunpack.c.l.b16 %v77
  %v717 = vunpack.c.h.b16 %v77
  %v718 = vunpack.c.l.b16 %v78
  %v719 = vunpack.c.h.b16 %v78
  %v720 = vunpack.c.l.b16 %v79
  %v721 = vunpack.c.h.b16 %v79
  %v722 = vunpack.c.l.b16 %v80
  %v723 = vunpack.c.h.b16 %v80
  %v724 = vunpack.c.l.b16 %v81
  %v725 = vunpack.c.h.b16 %v81
  %v726 = vunpack.c.l.b16 %v82
  %v727 = vunpack.c.h.b16 %v82
  %v728 = vunpack.c.l.b16 %v83
  %v729 = vunpack.c.h.b16 %v83
  %v730 = vunpack.c.l.b16 %v84
  %v731 = vunpack.c.h.b16 %v84
  %v732 = vunpack.c.l.b16 %v85
  %v733 = vunpack.c.h.b16 %v85
  %v734 = vunpack.c.l.b16 %v86
  %v735 = vunpack.c.h.b16 %v86
  %v736 = vunpack.c.l.b16 %v87
  %v737 = vunpack.c.h.b16 %v87
  %v738 = vunpack.c.l.b16 %v88
  %v739 = vunpack.c.h.b16 %v88
  %v740 = vunpack.c.l.b16 %v89
  %v741 = vunpack.c.h.b16 %v89
  %v742 = vunpack.c.l.b16 %v90
  %v743 = vunpack.c.h.b16 %v90
  %v744 = vunpack.c.l.b16 %v91
  %v745 = vunpack.c.h.b16 %v91
  %v746 = vunpack.c.l.b16 %v92
  %v747 = vunpack.c.h.b16 %v92
  %v748 = vunpack.c.l.b16 %v93
  %v749 = vunpack.c.h.b16 %v93
  %v750 = vunpack.c.l.b16 %v94
  %v751 = vunpack.c.h.b16 %v94
  %v752 = vunpack.c.l.b16 %v95
  %v753 = vunpack.c.h.b16 %v95
  %v754 = vunpack.c.l.b16 %v96
  %v755 = vunpack.c.h.b16 %v96
  %v756 = vunpack.c.l.b16 %v97
  %v757 = vunpack.c.h.b16 %v97
  %v758 = vunpack.c.l.b16 %v98
  %v759 = vunpack.c.h.b16 %v98
  %v760 = vunpack.c.l.b16 %v99
  %v761 = vunpack.c.h.b16 %v99
  %v762 = vunpack.c.l.b16 %v100
  %v763 = vunpack.c.h.b16 %v100
  %v764 = vunpack.c.l.b16 %v101
  %v765 = vunpack.c.h.b16 %v101
  %v766 = vunpack.c.l.b16 %v102
  %v767 = vunpack.c.h.b16 %v102
  %v768 = vunpack.c.l.b16 %v103
  %v769 = vunpack.c.h.b16 %v103
  %v770 = vunpack.c.l.b16 %v104
  %v771 = vunpack.c.h.b16 %v104
  %v772 = vunpack.c.l.b16 %v105
  %v773 = vunpack.c.h.b16 %v105
  %v774 = vunpack.c.l.b16 %v106
  %v775 = vunpack.c.h.b16 %v106
  %v776 = vunpack.c.l.b16 %v107
  %v777 = vunpack.c.h.b16 %v107
  %v778 = vunpack.c.l.b16 %v108
  %v779 = vunpack.c.h.b16 %v108
  %v780 = vunpack.c.l.b16 %v109
  %v781 = vunpack.c.h.b16 %v109
  %v782 = vunpack.c.l.b16 %v110
  %v783 = vunpack.c.h.b16 %v110
  %v784 = vunpack.c.l.b16 %v111
  %v785 = vunpack.c.h.b16 %v111
  %v786 = vunpack.c.l.b16 %v112
  %v787 = vunpack.c.h.b16 %v112
  %v788 = vunpack.c.l.b16 %v113
  %v789 = vunpack.c.h.b16 %v113
  %v790 = vunpack.c.l.b16 %v114
  %v791 = vunpack.c.h.b16 %v114
  %v792 = vunpack.c.l.b16 %v115
  %v793 = vunpack.c.h.b16 %v115
  %v794 = vunpack.c.l.b16 %v116
  %v795 = vunpack.c.h.b16 %v116
  %v796 = vunpack.c.l.b16 %v117
  %v797 = vunpack.c.h.b16 %v117
  %v798 = vunpack.c.l.b16 %v118
  %v799 = vunpack.c.h.b16 %v118
  %v800 = vunpack.c.l.b16 %v119
  %v801 = vunpack.c.h.b16 %v119
  %v802 = vunpack.c.l.b16 %v120
  %v803 = vunpack.c.h.b16 %v120
  %v804 = vunpack.c.l.b16 %v121
  %v805 = vunpack.c.h.b16 %v121
  %v806 = vunpack.c.l.b16 %v122
  %v807 = vunpack.c.h.b16 %v122
  %v808 = vunpack.c.l.b16 %v123
  %v809 = vunpack.c.h.b16 %v123
  %v810 = vunpack.c.l.b16 %v124
  %v811 = vunpack.c.h.b16 %v124
  %v812 = vunpack.c.l.b16 %v125
  %v813 = vunpack.c.h.b16 %v125
  %v814 = vunpack.c.l.b16 %v126
  %v815 = vunpack.c.h.b16 %v126
  %v816 = vunpack.c.l.b16 %v127
  %v817 = vunpack.c.h.b16 %v127
  %v818 = vunpack.c.l.b16 %v128
  %v819 = vunpack.c.h.b16 %v128
  %v820 = vunpack.c.l.b16 %v129
  %v821 = vunpack.c.h.b16 %v129
  %v822 = vunpack.c.l.b16 %v130
  %v823 = vunpack.c.h.b16 %v130
  %v824 = vunpack.c.l.b16 %v131
  %v825 = vunpack.c.h.b16 %v131
  %v826 = vunpack.c.l.b16 %v132
  %v827 = vunpack.c.h.b16 %v132
  %v828 = vunpack.c.l.b16 %v133
  %v829 = vunpack.c.h.b16 %v133
  %v830 = vunpack.c.l.b16 %v134
  %v831 = vunpack.c.h.b16 %v134
  %v832 = vunpack.c.l.b16 %v135
  %v833 = vunpack.c.h.b16 %v135
  %v834 = vunpack.c.l.b16 %v136
  %v835 = vunpack.c.h.b16 %v136
  %v836 = vunpack.c.l.b16 %v137
  %v837 = vunpack.c.h.b16 %v137
  %v838 = vunpack.c.l.b16 %v138
  %v839 = vunpack.c.h.b16 %v138
  %v840 = vunpack.c.l.b16 %v139
  %v841 = vunpack.c.h.b16 %v139
  %v842 = vunpack.c.l.b16 %v140
  %v843 = vunpack.c.h.b16 %v140
  %v844 = vunpack.c.l.b16 %v141
  %v845 = vunpack.c.h.b16 %v141
  %v846 = vunpack.c.l.b16 %v142
  %v847 = vunpack.c.h.b16 %v142
  %v848 = vunpack.c.l.b16 %v143
  %v849 = vunpack.c.h.b16 %v143
  %v850 = vunpack.c.l.b16 %v144
  %v851 = vunpack.c.h.b16 %v144
  %v852 = vunpack.c.l.b16 %v145
  %v853 = vunpack.c.h.b16 %v145
  %v854 = vunpack.c.l.b16 %v146
  %v855 = vunpack.c.h.b16 %v146
  %v856 = vunpack.c.l.b16 %v147
  %v857 = vunpack.c.h.b16 %v147
  %v858 = vunpack.c.l.b16 %v148
  %v859 = vunpack.c.h.b16 %v148
  %v860 = vunpack.c.l.b16 %v149
  %v861 = vunpack.c.h.b16 %v149
  %v862 = vunpack.c.l.b16 %v150
  %v863 = vunpack.c.h.b16 %v150
  %v864 = vunpack.c.l.b16 %v151
  %v865 = vunpack.c.h.b16 %v151
  %v866 = vunpack.c.l.b16 %v152
  %v867 = vunpack.c.h.b16 %v152
  %v868 = vunpack.c.l.b16 %v153
  %v869 = vunpack.c.h.b16 %v153
  %v870 = vunpack.c.l.b16 %v154
  %v871 = vunpack.c.h.b16 %v154
  %v872 = vunpack.c.l.b16 %v155
  %v873 = vunpack.c.h.b16 %v155
  %v874 = vunpack.c.l.b16 %v156
  %v875 = vunpack.c.h.b16 %v156
  %v876 = vunpack.c.l.b16 %v157
  %v877 = vunpack.c.h.b16 %v157
  %v878 = vunpack.c.l.b16 %v158
  %v879 = vunpack.c.h.b16 %v158
  %v880 = vunpack.c.l.b16 %v159
  %v881 = vunpack.c.h.b16 %v159
  %v882 = vunpack.c.l.b16 %v160
  %v883 = vunpack.c.h.b16 %v160
  %v884 = vunpack.c.l.b16 %v161
  %v885 = vunpack.c.h.b16 %v161
  %v886 = vunpack.c.l.b16 %v162
  %v887 = vunpack.c.h.b16 %v162
  %v888 = vunpack.c.l.b16 %v163
  %v889 = vunpack.c.h.b16 %v163
  %v890 = vunpack.c.l.b16 %v164
  %v891 = vunpack.c.h.b16 %v164
  %v892 = vunpack.c.l.b16 %v165
  %v893 = vunpack.c.h.b16 %v165
  %v894 = vunpack.c.l.b16 %v166
  %v895 = vunpack.c.h.b16 %v166
  %v896 = vunpack.c.l.b16 %v167
  %v897 = vunpack.c.h.b16 %v167
  %v898 = vunpack.c.l.b16 %v168
  %v899 = vunpack.c.h.b16 %v168
  %v900 = vunpack.c.l.b16 %v169
  %v901 = vunpack.c.h.b16 %v169
  %v902 = vunpack.c.l.b16 %v170
  %v903 = vunpack.c.h.b16 %v170
  %v904 = vunpack.c.l.b16 %v171
  %v905 = vunpack.c.h.b16 %v171
  %v906 = vunpack.c.l.b16 %v172
  %v907 = vunpack.c.h.b16 %v172
  %v908 = vunpack.c.l.b16 %v173
  %v909 = vunpack.c.h.b16 %v173
  %v910 = vunpack.c.l.b16 %v174
  %v911 = vunpack.c.h.b16 %v174
  %v912 = vunpack.c.l.b16 %v175
  %v913 = vunpack.c.h.b16 %v175
  %v914 = vunpack.c.l.b16 %v176
  %v915 = vunpack.c.h.b16 %v176
  %v916 = vunpack.c.l.b16 %v177
  %v917 = vunpack.c.h.b16 %v177
  %v918 = vunpack.c.l.b16 %v178
  %v919 = vunpack.c.h.b16 %v178
  %v920 = vunpack.c.l.b16 %v179
  %v921 = vunpack.c.h.b16 %v179
  %v922 = vunpack.c.l.b16 %v180
  %v923 = vunpack.c.h.b16 %v180
  %v924 = vunpack.c.l.b16 %v181
  %v925 = vunpack.c.h.b16 %v181
  %v926 = vunpack.c.l.b16 %v182
  %v927 = vunpack.c.h.b16 %v182
  %v928 = vunpack.c.l.b16 %v183
  %v929 = vunpack.c.h.b16 %v183
  %v930 = vunpack.c.l.b16 %v184
  %v931 = vunpack.c.h.b16 %v184
  %v932 = vunpack.c.l.b16 %v185
  %v933 = vunpack.c.h.b16 %v185
  %v934 = vunpack.c.l.b16 %v186
  %v935 = vunpack.c.h.b16 %v186
  %v936 = vunpack.c.l.b16 %v187
  %v937 = vunpack.c.h.b16 %v187
  %v938 = vunpack.c.l.b16 %v188
  %v939 = vunpack.c.h.b16 %v188
  %v940 = vunpack.c.l.b16 %v189
  %v941 = vunpack.c.h.b16 %v189
  %v942 = vunpack.c.l.b16 %v190
  %v943 = vunpack.c.h.b16 %v190
  %v944 = vunpack.c.l.b16 %v191
  %v945 = vunpack.c.h.b16 %v191
  %v946 = vunpack.c.l.b16 %v192
  %v947 = vunpack.c.h.b16 %v192
  %v948 = vunpack.c.l.b16 %v193
  %v949 = vunpack.c.h.b16 %v193
  %v950 = vunpack.c.l.b16 %v194
  %v951 = vunpack.c.h.b16 %v194
  %v952 = vunpack.c.l.b16 %v195
  %v953 = vunpack.c.h.b16 %v195
  %v954 = vunpack.c.l.b16 %v196
  %v955 = vunpack.c.h.b16 %v196
  %v956 = vunpack.c.l.b16 %v197
  %v957 = vunpack.c.h.b16 %v197
  %v958 = vunpack.c.l.b16 %v198
  %v959 = vunpack.c.h.b16 %v198
  %v960 = vunpack.c.l.b16 %v199
  %v961 = vunpack.c.h.b16 %v199
  %v962 = vunpack.c.l.b16 %v200
  %v963 = vunpack.c.h.b16 %v200
  %v964 = vunpack.c.l.b16 %v201
  %v965 = vunpack.c.h.b16 %v201
  %v966 = vunpack.c.l.b16 %v202
  %v967 = vunpack.c.h.b16 %v202
  %v968 = vunpack.c.l.b16 %v203
  %v969 = vunpack.c.h.b16 %v203
  %v970 = vunpack.c.l.b16 %v204
  %v971 = vunpack.c.h.b16 %v204
  %v972 = vunpack.c.l.b16 %v205
  %v973 = vunpack.c.h.b16 %v205
  %v974 = vunpack.c.l.b16 %v206
  %v975 = vunpack.c.h.b16 %v206
  %v976 = vunpack.c.l.b16 %v207
  %v977 = vunpack.c.h.b16 %v207
  %v978 = vunpack.c.l.b16 %v208
  %v979 = vunpack.c.h.b16 %v208
  %v980 = vunpack.c.l.b16 %v209
  %v981 = vunpack.c.h.b16 %v209
  %v982 = vunpack.c.l.b16 %v210
  %v983 = vunpack.c.h.b16 %v210
  %v984 = vunpack.c.l.b16 %v211
  %v985 = vunpack.c.h.b16 %v211
  %v986 = vunpack.c.l.b16 %v212
  %v987 = vunpack.c.h.b16 %v212
  %v988 = vunpack.c.l.b16 %v213
  %v989 = vunpack.c.h.b16 %v213
  %v990 = vunpack.c.l.b16 %v214
  %v991 = vunpack.c.h.b16 %v214
  %v992 = vunpack.c.l.b16 %v215
  %v993 = vunpack.c.h.b16 %v215
  %v994 = vunpack.c.l.b16 %v216
  %v995 = vunpack.c.h.b16 %v216
  %v996 = vunpack.c.l.b16 %v217
  %v997 = vunpack.c.h.b16 %v217
  %v998 = vunpack.c.l.b16 %v218
  %v999 = vunpack.c.h.b16 %v218
  %v1000 = vunpack.c.l.b16 %v219
  %v1001 = vunpack.c.h.b16 %v219
  %v1002 = vunpack.c.l.b16 %v220
  %v1003 = vunpack.c.h.b16 %v220
  %v1004 = vunpack.c.l.b16 %v221
  %v1005 = vunpack.c.h.b16 %v221
  %v1006 = vunpack.c.l.b16 %v222
  %v1007 = vunpack.c.h.b16 %v222
  %v1008 = vunpack.c.l.b16 %v223
  %v1009 = vunpack.c.h.b16 %v223
  %v1010 = vunpack.c.l.b16 %v224
  %v1011 = vunpack.c.h.b16 %v224
  %v1012 = vunpack.c.l.b16 %v225
  %v1013 = vunpack.c.h.b16 %v225
  %v1014 = vunpack.c.l.b16 %v226
  %v1015 = vunpack.c.h.b16 %v226
  %v1016 = vunpack.c.l.b16 %v227
  %v1017 = vunpack.c.h.b16 %v227
  %v1018 = vunpack.c.l.b16 %v228
  %v1019 = vunpack.c.h.b16 %v228
  %v1020 = vunpack.c.l.b16 %v229
  %v1021 = vunpack.c.h.b16 %v229
  %v1022 = vunpack.c.l.b16 %v230
  %v1023 = vunpack.c.h.b16 %v230
  %v1024 = vunpack.c.l.b16 %v231
  %v1025 = vunpack.c.h.b16 %v231
  %v1026 = vunpack.c.l.b16 %v232
  %v1027 = vunpack.c.h.b16 %v232
  %v1028 = vunpack.c.l.b16 %v233
  %v1029 = vunpack.c.h.b16 %v233
  %v1030 = vunpack.c.l.b16 %v234
  %v1031 = vunpack.c.h.b16 %v234
  %v1032 = vunpack.c.l.b16 %v235
  %v1033 = vunpack.c.h.b16 %v235
  %v1034 = vunpack.c.l.b16 %v236
  %v1035 = vunpack.c.h.b16 %v236
  %v1036 = vunpack.c.l.b16 %v237
  %v1037 = vunpack.c.h.b16 %v237
  %v1038 = vunpack.c.l.b16 %v238
  %v1039 = vunpack.c.h.b16 %v238
  %v1040 = vunpack.c.l.b16 %v239
  %v1041 = vunpack.c.h.b16 %v239
  %v1042 = vunpack.c.l.b16 %v240
  %v1043 = vunpack.c.h.b16 %v240
  %v1044 = vunpack.c.l.b16 %v241
  %v1045 = vunpack.c.h.b16 %v241
  %v1046 = vunpack.c.l.b16 %v242
  %v1047 = vunpack.c.h.b16 %v242
  %v1048 = vunpack.c.l.b16 %v243
  %v1049 = vunpack.c.h.b16 %v243
  %v1050 = vunpack.c.l.b16 %v244
  %v1051 = vunpack.c.h.b16 %v244
  %v1052 = vunpack.c.l.b16 %v245
  %v1053 = vunpack.c.h.b16 %v245
  %v1054 = vunpack.c.l.b16 %v246
  %v1055 = vunpack.c.h.b16 %v246
  %v1056 = vunpack.c.l.b16 %v247
  %v1057 = vunpack.c.h.b16 %v247
  %v1058 = vunpack.c.l.b16 %v248
  %v1059 = vunpack.c.h.b16 %v248
  %v1060 = vunpack.c.l.b16 %v249
  %v1061 = vunpack.c.h.b16 %v249
  %v1062 = vunpack.c.l.b16 %v250
  %v1063 = vunpack.c.h.b16 %v250
  %v1064 = vunpack.c.l.b16 %v251
  %v1065 = vunpack.c.h.b16 %v251
  %v1066 = vunpack.c.l.b16 %v252
  %v1067 = vunpack.c.h.b16 %v252
  %v1068 = vunpack.c.l.b16 %v253
  %v1069 = vunpack.c.h.b16 %v253
  %v1070 = vunpack.c.l.b16 %v254
  %v1071 = vunpack.c.h.b16 %v254
  %v1072 = vunpack.c.l.b16 %v255
  %v1073 = vunpack.c.h.b16 %v255
  %v1074 = vunpack.c.l.b16 %v256
  %v1075 = vunpack.c.h.b16 %v256
  %v1076 = vunpack.c.l.b16 %v257
  %v1077 = vunpack.c.h.b16 %v257
  %v1078 = vunpack.c.l.b16 %v258
  %v1079 = vunpack.c.h.b16 %v258
  %v1080 = vunpack.c.l.b16 %v259
  %v1081 = vunpack.c.h.b16 %v259
  %v1082 = vunpack.c.l.b16 %v260
  %v1083 = vunpack.c.h.b16 %v260
  %v1084 = vunpack.c.l.b16 %v261
  %v1085 = vunpack.c.h.b16 %v261
  %v1086 = vunpack.c.l.b16 %v262
  %v1087 = vunpack.c.h.b16 %v262
  %v1088 = vunpack.c.l.b16 %v263
  %v1089 = vunpack.c.h.b16 %v263
  %v1090 = vunpack.c.l.b16 %v264
  %v1091 = vunpack.c.h.b16 %v264
  %v1092 = vunpack.c.l.b16 %v265
  %v1093 = vunpack.c.h.b16 %v265
  %v1094 = vunpack.c.l.b16 %v266
  %v1095 = vunpack.c.h.b16 %v266
  %v1096 = vunpack.c.l.b16 %v267
  %v1097 = vunpack.c.h.b16 %v267
  %v1098 = vunpack.c.l.b16 %v268
  %v1099 = vunpack.c.h.b16 %v268
  %v1100 = vunpack.c.l.b16 %v269
  %v1101 = vunpack.c.h.b16 %v269
  %v1102 = vunpack.c.l.b16 %v270
  %v1103 = vunpack.c.h.b16 %v270
  %v1104 = vunpack.c.l.b16 %v271
  %v1105 = vunpack.c.h.b16 %v271
  %v1106 = vunpack.c.l.b16 %v272
  %v1107 = vunpack.c.h.b16 %v272
  %v1108 = vunpack.c.l.b16 %v273
  %v1109 = vunpack.c.h.b16 %v273
  %v1110 = vunpack.c.l.b16 %v274
  %v1111 = vunpack.c.h.b16 %v274
  %v1112 = vunpack.c.l.b16 %v275
  %v1113 = vunpack.c.h.b16 %v275
  %v1114 = vunpack.c.l.b16 %v276
  %v1115 = vunpack.c.h.b16 %v276
  %v1116 = vunpack.c.l.b16 %v277
  %v1117 = vunpack.c.h.b16 %v277
  %v1118 = vunpack.c.l.b16 %v278
  %v1119 = vunpack.c.h.b16 %v278
  %v1120 = vunpack.c.l.b16 %v279
  %v1121 = vunpack.c.h.b16 %v279
  %v1122 = vunpack.c.l.b16 %v280
  %v1123 = vunpack.c.h.b16 %v280
  %v1124 = vunpack.c.l.b16 %v281
  %v1125 = vunpack.c.h.b16 %v281
  %v1126 = vunpack.c.l.b16 %v282
  %v1127 = vunpack.c.h.b16 %v282
  %v1128 = vunpack.c.l.b16 %v283
  %v1129 = vunpack.c.h.b16 %v283
  %v1130 = vunpack.c.l.b16 %v284
  %v1131 = vunpack.c.h.b16 %v284
  %v1132 = vunpack.c.l.b16 %v285
  %v1133 = vunpack.c.h.b16 %v285
  %v1134 = vpack.c.b16 %v626, %v622
  %v1135 = vpack.c.b16 %v627, %v623
  %v1136 = vpack.c.b16 %v628, %v624
  %v1137 = vpack.c.b16 %v629, %v625
  %v1138 = vpack.c.b16 %v634, %v630
  %v1139 = vpack.c.b16 %v635, %v631
  %v1140 = vpack.c.b16 %v636, %v632
  %v1141 = vpack.c.b16 %v637, %v633
  %v1142 = vpack.c.b16 %v642, %v638
  %v1143 = vpack.c.b16 %v643, %v639
  %v1144 = vpack.c.b16 %v644, %v640
  %v1145 = vpack.c.b16 %v645, %v641
  %v1146 = vpack.c.b16 %v650, %v646
  %v1147 = vpack.c.b16 %v651, %v647
  %v1148 = vpack.c.b16 %v652, %v648
  %v1149 = vpack.c.b16 %v653, %v649
  %v1150 = vpack.c.b16 %v658, %v654
  %v1151 = vpack.c.b16 %v659, %v655
  %v1152 = vpack.c.b16 %v660, %v656
  %v1153 = vpack.c.b16 %v661, %v657
  %v1154 = vpack.c.b16 %v666, %v662
  %v1155 = vpack.c.b16 %v667, %v663
  %v1156 = vpack.c.b16 %v668, %v664
  %v1157 = vpack.c.b16 %v669, %v665
  %v1158 = vpack.c.b16 %v674, %v670
  %v1159 = vpack.c.b16 %v675, %v671
  %v1160 = vpack.c.b16 %v676, %v672
  %v1161 = vpack.c.b16 %v677, %v673
  %v1162 = vpack.c.b16 %v682, %v678
  %v1163 = vpack.c.b16 %v683, %v679
  %v1164 = vpack.c.b16 %v684, %v680
  %v1165 = vpack.c.b16 %v685, %v681
  %v1166 = vpack.c.b16 %v690, %v686
  %v1167 = vpack.c.b16 %v691, %v687
  %v1168 = vpack.c.b16 %v692, %v688
  %v1169 = vpack.c.b16 %v693, %v689
  %v1170 = vpack.c.b16 %v698, %v694
  %v1171 = vpack.c.b16 %v699, %v695
  %v1172 = vpack.c.b16 %v700, %v696
  %v1173 = vpack.c.b16 %v701, %v697
  %v1174 = vpack.c.b16 %v706, %v702
  %v1175 = vpack.c.b16 %v707, %v703
  %v1176 = vpack.c.b16 %v708, %v704
  %v1177 = vpack.c.b16 %v709, %v705
  %v1178 = vpack.c.b16 %v714, %v710
  %v1179 = vpack.c.b16 %v715, %v711
  %v1180 = vpack.c.b16 %v716, %v712
  %v1181 = vpack.c.b16 %v717, %v713
  %v1182 = vpack.c.b16 %v722, %v718
  %v1183 = vpack.c.b16 %v723, %v719
  %v1184 = vpack.c.b16 %v724, %v720
  %v1185 = vpack.c.b16 %v725, %v721
  %v1186 = vpack.c.b16 %v730, %v726
  %v1187 = vpack.c.b16 %v731, %v727
  %v1188 = vpack.c.b16 %v732, %v728
  %v1189 = vpack.c.b16 %v733, %v729
  %v1190 = vpack.c.b16 %v738, %v734
  %v1191 = vpack.c.b16 %v739, %v735
  %v1192 = vpack.c.b16 %v740, %v736
  %v1193 = vpack.c.b16 %v741, %v737
  %v1194 = vpack.c.b16 %v746, %v742
  %v1195 = vpack.c.b16 %v747, %v743
  %v1196 = vpack.c.b16 %v748, %v744
  %v1197 = vpack.c.b16 %v749, %v745
  %v1198 = vpack.c.b16 %v754, %v750
  %v1199 = vpack.c.b16 %v755, %v751
  %v1200 = vpack.c.b16 %v756, %v752
  %v1201 = vpack.c.b16 %v757, %v753
  %v1202 = vpack.c.b16 %v762, %v758
  %v1203 = vpack.c.b16 %v763, %v759
  %v1204 = vpack.c.b16 %v764, %v760
  %v1205 = vpack.c.b16 %v765, %v761
  %v1206 = vpack.c.b16 %v770, %v766
  %v1207 = vpack.c.b16 %v771, %v767
  %v1208 = vpack.c.b16 %v772, %v768
  %v1209 = vpack.c.b16 %v773, %v769
  %v1210 = vpack.c.b16 %v778, %v774
  %v1211 = vpack.c.b16 %v779, %v775
  %v1212 = vpack.c.b16 %v780, %v776
  %v1213 = vpack.c.b16 %v781, %v777
  %v1214 = vpack.c.b16 %v786, %v782
  %v1215 = vpack.c.b16 %v787, %v783
  %v1216 = vpack.c.b16 %v788, %v784
  %v1217 = vpack.c.b16 %v789, %v785
  %v1218 = vpack.c.b16 %v794, %v790
  %v1219 = vpack.c.b16 %v795, %v791
  %v1220 = vpack.c.b16 %v796, %v792
  %v1221 = vpack.c.b16 %v797, %v793
  %v1222 = vpack.c.b16 %v802, %v798
  %v1223 = vpack.c.b16 %v803, %v799
  %v1224 = vpack.c.b16 %v804, %v800
  %v1225 = vpack.c.b16 %v805, %v801
  %v1226 = vpack.c.b16 %v810, %v806
  %v1227 = vpack.c.b16 %v811, %v807
  %v1228 = vpack.c.b16 %v812, %v808
  %v1229 = vpack.c.b16 %v813, %v809
  %v1230 = vpack.c.b16 %v818, %v814
  %v1231 = vpack.c.b16 %v819, %v815
  %v1232 = vpack.c.b16 %v820, %v816
  %v1233 = vpack.c.b16 %v821, %v817
  %v1234 = vpack.c.b16 %v826, %v822
  %v1235 = vpack.c.b16 %v827, %v823
  %v1236 = vpack.c.b16 %v828, %v824
  %v1237 = vpack.c.b16 %v829, %v825
  %v1238 = vpack.c.b16 %v834, %v830
  %v1239 = vpack.c.b16 %v835, %v831
  %v1240 = vpack.c.b16 %v836, %v832
  %v1241 = vpack.c.b16 %v837, %v833
  %v1242 = vpack.c.b16 %v842, %v838
  %v1243 = vpack.c.b16 %v843, %v839
  %v1244 = vpack.c.b16 %v844, %v840
  %v1245 = vpack.c.b16 %v845, %v841
  %v1246 = vpack.c.b16 %v850, %v846
  %v1247 = vpack.c.b16 %v851, %v847
  %v1248 = vpack.c.b16 %v852, %v848
  %v1249 = vpack.c.b16 %v853, %v849
  %v1250 = vpack.c.b16 %v858, %v854
  %v1251 = vpack.c.b16 %v859, %v855
  %v1252 = vpack.c.b16 %v860, %v856
  %v1253 = vpack.c.b16 %v861, %v857
  %v1254 = vpack.c.b16 %v866, %v862
  %v1255 = vpack.c.b16 %v867, %v863
  %v1256 = vpack.c.b16 %v868, %v864
  %v1257 = vpack.c.b16 %v869, %v865
  %v1258 = vpack.c.b16 %v874, %v870
  %v1259 = vpack.c.b16 %v875, %v871
  %v1260 = vpack.c.b16 %v876, %v872
  %v1261 = vpack.c.b16 %v877, %v873
  %v1262 = vpack.c.b16 %v882, %v878
  %v1263 = vpack.c.b16 %v883, %v879
  %v1264 = vpack.c.b16 %v884, %v880
  %v1265 = vpack.c.b16 %v885, %v881
  %v1266 = vpack.c.b16 %v890, %v886
  %v1267 = vpack.c.b16 %v891, %v887
  %v1268 = vpack.c.b16 %v892, %v888
  %v1269 = vpack.c.b16 %v893, %v889
  %v1270 = vpack.c.b16 %v898, %v894
  %v1271 = vpack.c.b16 %v899, %v895
  %v1272 = vpack.c.b16 %v900, %v896
  %v1273 = vpack.c.b16 %v901, %v897
  %v1274 = vpack.c.b16 %v906, %v902
  %v1275 = vpack.c.b16 %v907, %v903
  %v1276 = vpack.c.b16 %v908, %v904
  %v1277 = vpack.c.b16 %v909, %v905
  %v1278 = vpack.c.b16 %v914, %v910
  %v1279 = vpack.c.b16 %v915, %v911
  %v1280 = vpack.c.b16 %v916, %v912
  %v1281 = vpack.c.b16 %v917, %v913
  %v1282 = vpack.c.b16 %v922, %v918
  %v1283 = vpack.c.b16 %v923, %v919
  %v1284 = vpack.c.b16 %v924, %v920
  %v1285 = vpack.c.b16 %v925, %v921
  %v1286 = vpack.c.b16 %v930, %v926
  %v1287 = vpack.c.b16 %v931, %v927
  %v1288 = vpack.c.b16 %v932, %v928
  %v1289 = vpack.c.b16 %v933, %v929
  %v1290 = vpack.c.b16 %v938, %v934
  %v1291 = vpack.c.b16 %v939, %v935
  %v1292 = vpack.c.b16 %v940, %v936
  %v1293 = vpack.c.b16 %v941, %v937
  %v1294 = vpack.c.b16 %v946, %v942
  %v1295 = vpack.c.b16 %v947, %v943
  %v1296 = vpack.c.b16 %v948, %v944
  %v1297 = vpack.c.b16 %v949, %v945
  %v1298 = vpack.c.b16 %v954, %v950
  %v1299 = vpack.c.b16 %v955, %v951
  %v1300 = vpack.c.b16 %v956, %v952
  %v1301 = vpack.c.b16 %v957, %v953
  %v1302 = vpack.c.b16 %v962, %v958
  %v1303 = vpack.c.b16 %v963, %v959
  %v1304 = vpack.c.b16 %v964, %v960
  %v1305 = vpack.c.b16 %v965, %v961
  %v1306 = vpack.c.b16 %v970, %v966
  %v1307 = vpack.c.b16 %v971, %v967
  %v1308 = vpack.c.b16 %v972, %v968
  %v1309 = vpack.c.b16 %v973, %v969
  %v1310 = vpack.c.b16 %v978, %v974
  %v1311 = vpack.c.b16 %v979, %v975
  %v1312 = vpack.c.b16 %v980, %v976
  %v1313 = vpack.c.b16 %v981, %v977
  %v1314 = vpack.c.b16 %v986, %v982
  %v1315 = vpack.c.b16 %v987, %v983
  %v1316 = vpack.c.b16 %v988, %v984
  %v1317 = vpack.c.b16 %v989, %v985
  %v1318 = vpack.c.b16 %v994, %v990
  %v1319 = vpack.c.b16 %v995, %v991
  %v1320 = vpack.c.b16 %v996, %v992
  %v1321 = vpack.c.b16 %v997, %v993
  %v1322 = vpack.c.b16 %v1002, %v998
  %v1323 = vpack.c.b16 %v1003, %v999
  %v1324 = vpack.c.b16 %v1004, %v1000
  %v1325 = vpack.c.b16 %v1005, %v1001
  %v1326 = vpack.c.b16 %v1010, %v1006
  %v1327 = vpack.c.b16 %v1011, %v1007
  %v1328 = vpack.c.b16 %v1012, %v1008
  %v1329 = vpack.c.b16 %v1013, %v1009
  %v1330 = vpack.c.b16 %v1018, %v1014
  %v1331 = vpack.c.b16 %v1019, %v1015
  %v1332 = vpack.c.b16 %v1020, %v1016
  %v1333 = vpack.c.b16 %v1021, %v1017
  %v1334 = vpack.c.b16 %v1026, %v1022
  %v1335 = vpack.c.b16 %v1027, %v1023
  %v1336 = vpack.c.b16 %v1028, %v1024
  %v1337 = vpack.c.b16 %v1029, %v1025
  %v1338 = vpack.c.b16 %v1034, %v1030
  %v1339 = vpack.c.b16 %v1035, %v1031
  %v1340 = vpack.c.b16 %v1036, %v1032
  %v1341 = vpack.c.b16 %v1037, %v1033
  %v1342 = vpack.c.b16 %v1042, %v1038
  %v1343 = vpack.c.b16 %v1043, %v1039
  %v1344 = vpack.c.b16 %v1044, %v1040
  %v1345 = vpack.c.b16 %v1045, %v1041
  %v1346 = vpack.c.b16 %v1050, %v1046
  %v1347 = vpack.c.b16 %v1051, %v1047
  %v1348 = vpack.c.b16 %v1052, %v1048
  %v1349 = vpack.c.b16 %v1053, %v1049
  %v1350 = vpack.c.b16 %v1058, %v1054
  %v1351 = vpack.c.b16 %v1059, %v1055
  %v1352 = vpack.c.b16 %v1060, %v1056
  %v1353 = vpack.c.b16 %v1061, %v1057
  %v1354 = vpack.c.b16 %v1066, %v1062
  %v1355 = vpack.c.b16 %v1067, %v1063
  %v1356 = vpack.c.b16 %v1068, %v1064
  %v1357 = vpack.c.b16 %v1069, %v1065
  %v1358 = vpack.c.b16 %v1074, %v1070
  %v1359 = vpack.c.b16 %v1075, %v1071
  %v1360 = vpack.c.b16 %v1076, %v1072
  %v1361 = vpack.c.b16 %v1077, %v1073
  %v1362 = vpack.c.b16 %v1082, %v1078
  %v1363 = vpack.c.b16 %v1083, %v1079
  %v1364 = vpack.c.b16 %v1084, %v1080
  %v1365 = vpack.c.b16 %v1085, %v1081
  %v1366 = vpack.c.b16 %v1090, %v1086
  %v1367 = vpack.c.b16 %v1091, %v1087
  %v1368 = vpack.c.b16 %v1092, %v1088
  %v1369 = vpack.c.b16 %v1093, %v1089
  %v1370 = vpack.c.b16 %v1098, %v1094
  %v1371 = vpack.c.b16 %v1099, %v1095
  %v1372 = vpack.c.b16 %v1100, %v1096
  %v1373 = vpack.c.b16 %v1101, %v1097
  %v1374 = vpack.c.b16 %v1106, %v1102
  %v1375 = vpack.c.b16 %v1107, %v1103
  %v1376 = vpack.c.b16 %v1108, %v1104
  %v1377 = vpack.c.b16 %v1109, %v1105
  %v1378 = vpack.c.b16 %v1114, %v1110
  %v1379 = vpack.c.b16 %v1115, %v1111
  %v1380 = vpack.c.b16 %v1116, %v1112
  %v1381 = vpack.c.b16 %v1117, %v1113
  %v1382 = vpack.c.b16 %v1122, %v1118
  %v1383 = vpack.c.b16 %v1123, %v1119
  %v1384 = vpack.c.b16 %v1124, %v1120
  %v1385 = vpack.c.b16 %v1125, %v1121
  %v1386 = vpack.c.b16 %v1130, %v1126
  %v1387 = vpack.c.b16 %v1131, %v1127
  %v1388 = vpack.c.b16 %v1132, %v1128
  %v1389 = vpack.c.b16 %v1133, %v1129
  %1646 = vmatprep.subr.bf16.mxu0 %v1163
  %1647 = vmatpush1.bf16.msra.mxu0 %v1162
  %1648 = vmatprep.subr.bf16.mxu0 %v1159
  %1649 = vmatpush1.bf16.msra.mxu0 %v1158
  %1650 = vmatprep.subr.bf16.mxu0 %v1155
  %1651 = vmatpush1.bf16.msra.mxu0 %v1154
  %1652 = vmatprep.subr.bf16.mxu0 %v1151
  %1653 = vmatpush1.bf16.msra.mxu0 %v1150
  %1654 = vmatprep.subr.bf16.mxu0 %v1147
  %1655 = vmatpush1.bf16.msra.mxu0 %v1146
  %1656 = vmatprep.subr.bf16.mxu0 %v1143
  %1657 = vmatpush1.bf16.msra.mxu0 %v1142
  %1658 = vmatprep.subr.bf16.mxu0 %v1139
  %1659 = vmatpush1.bf16.msra.mxu0 %v1138
  %1660 = vmatprep.subr.bf16.mxu0 %v1135
  %1661 = vmatpush1.bf16.msra.mxu0 %v1134
  %1662 = vmatprep.subr.bf16.mxu0 %v1195
  %1663 = vmatpush2.bf16.msra.mxu0 %v1194
  %1664 = vmatprep.subr.bf16.mxu0 %v1191
  %1665 = vmatpush2.bf16.msra.mxu0 %v1190
  %1666 = vmatprep.subr.bf16.mxu0 %v1187
  %1667 = vmatpush2.bf16.msra.mxu0 %v1186
  %1668 = vmatprep.subr.bf16.mxu0 %v1183
  %1669 = vmatpush2.bf16.msra.mxu0 %v1182
  %1670 = vmatprep.subr.bf16.mxu0 %v1179
  %1671 = vmatpush2.bf16.msra.mxu0 %v1178
  %1672 = vmatprep.subr.bf16.mxu0 %v1175
  %1673 = vmatpush2.bf16.msra.mxu0 %v1174
  %1674 = vmatprep.subr.bf16.mxu0 %v1171
  %1675 = vmatpush2.bf16.msra.mxu0 %v1170
  %1676 = vmatprep.subr.bf16.mxu0 %v1167
  %1677 = vmatpush2.bf16.msra.mxu0 %v1166
  %1678 = vmatprep.mubr.bf16.mxu0 %v335
  %1679 = vmatmul.mubr.bf16.gmra.mxu0 %v334
  %v1680 = vpop.f32.mrf.mxu0
  %v1681 = vadd.f32 0.0, %v1680
  %v1682 = vpop.f32.mrf.mxu0
  %v1683 = vadd.f32 0.0, %v1682
  %v1684 = vpop.f32.mrf.mxu0
  %v1685 = vadd.f32 0.0, %v1684
  %v1686 = vpop.f32.mrf.mxu0
  %v1687 = vadd.f32 0.0, %v1686
  %1688 = vmatprep.mubr.bf16.mxu0 %v343
  %1689 = vmatmul.mubr.bf16.gmra.mxu0 %v342
  %v1690 = vpop.f32.mrf.mxu0
  %v1691 = vadd.f32 0.0, %v1690
  %v1692 = vpop.f32.mrf.mxu0
  %v1693 = vadd.f32 0.0, %v1692
  %v1694 = vpop.f32.mrf.mxu0
  %v1695 = vadd.f32 0.0, %v1694
  %v1696 = vpop.f32.mrf.mxu0
  %v1697 = vadd.f32 0.0, %v1696
  %1698 = vdwg.mxu0
  %1699 = vmatprep.subr.bf16.mxu0 %v1227
  %1700 = vmatpush1.bf16.msra.mxu0 %v1226
  %1701 = vmatprep.subr.bf16.mxu0 %v1223
  %1702 = vmatpush1.bf16.msra.mxu0 %v1222
  %1703 = vmatprep.subr.bf16.mxu0 %v1219
  %1704 = vmatpush1.bf16.msra.mxu0 %v1218
  %1705 = vmatprep.subr.bf16.mxu0 %v1215
  %1706 = vmatpush1.bf16.msra.mxu0 %v1214
  %1707 = vmatprep.subr.bf16.mxu0 %v1211
  %1708 = vmatpush1.bf16.msra.mxu0 %v1210
  %1709 = vmatprep.subr.bf16.mxu0 %v1207
  %1710 = vmatpush1.bf16.msra.mxu0 %v1206
  %1711 = vmatprep.subr.bf16.mxu0 %v1203
  %1712 = vmatpush1.bf16.msra.mxu0 %v1202
  %1713 = vmatprep.subr.bf16.mxu0 %v1199
  %1714 = vmatpush1.bf16.msra.mxu0 %v1198
  %1715 = vmatprep.subr.bf16.mxu0 %v1259
  %1716 = vmatpush2.bf16.msra.mxu0 %v1258
  %1717 = vmatprep.subr.bf16.mxu0 %v1255
  %1718 = vmatpush2.bf16.msra.mxu0 %v1254
  %1719 = vmatprep.subr.bf16.mxu0 %v1251
  %1720 = vmatpush2.bf16.msra.mxu0 %v1250
  %1721 = vmatprep.subr.bf16.mxu0 %v1247
  %1722 = vmatpush2.bf16.msra.mxu0 %v1246
  %1723 = vmatprep.subr.bf16.mxu0 %v1243
  %1724 = vmatpush2.bf16.msra.mxu0 %v1242
  %1725 = vmatprep.subr.bf16.mxu0 %v1239
  %1726 = vmatpush2.bf16.msra.mxu0 %v1238
  %1727 = vmatprep.subr.bf16.mxu0 %v1235
  %1728 = vmatpush2.bf16.msra.mxu0 %v1234
  %1729 = vmatprep.subr.bf16.mxu0 %v1231
  %1730 = vmatpush2.bf16.msra.mxu0 %v1230
  %1731 = vmatprep.mubr.bf16.mxu0 %v337
  %1732 = vmatmul.mubr.bf16.gmra.mxu0 %v336
  %v1733 = vpop.f32.mrf.mxu0
  %v1734 = vadd.f32 %v1681, %v1733
  %v1735 = vpop.f32.mrf.mxu0
  %v1736 = vadd.f32 %v1683, %v1735
  %v1737 = vpop.f32.mrf.mxu0
  %v1738 = vadd.f32 %v1685, %v1737
  %v1739 = vpop.f32.mrf.mxu0
  %v1740 = vadd.f32 %v1687, %v1739
  %1741 = vmatprep.mubr.bf16.mxu0 %v345
  %1742 = vmatmul.mubr.bf16.gmra.mxu0 %v344
  %v1743 = vpop.f32.mrf.mxu0
  %v1744 = vadd.f32 %v1691, %v1743
  %v1745 = vpop.f32.mrf.mxu0
  %v1746 = vadd.f32 %v1693, %v1745
  %v1747 = vpop.f32.mrf.mxu0
  %v1748 = vadd.f32 %v1695, %v1747
  %v1749 = vpop.f32.mrf.mxu0
  %v1750 = vadd.f32 %v1697, %v1749
  %1751 = vdwg.mxu0
  %1752 = vmatprep.subr.bf16.mxu0 %v1291
  %1753 = vmatpush1.bf16.msra.mxu0 %v1290
  %1754 = vmatprep.subr.bf16.mxu0 %v1287
  %1755 = vmatpush1.bf16.msra.mxu0 %v1286
  %1756 = vmatprep.subr.bf16.mxu0 %v1283
  %1757 = vmatpush1.bf16.msra.mxu0 %v1282
  %1758 = vmatprep.subr.bf16.mxu0 %v1279
  %1759 = vmatpush1.bf16.msra.mxu0 %v1278
  %1760 = vmatprep.subr.bf16.mxu0 %v1275
  %1761 = vmatpush1.bf16.msra.mxu0 %v1274
  %1762 = vmatprep.subr.bf16.mxu0 %v1271
  %1763 = vmatpush1.bf16.msra.mxu0 %v1270
  %1764 = vmatprep.subr.bf16.mxu0 %v1267
  %1765 = vmatpush1.bf16.msra.mxu0 %v1266
  %1766 = vmatprep.subr.bf16.mxu0 %v1263
  %1767 = vmatpush1.bf16.msra.mxu0 %v1262
  %1768 = vmatprep.subr.bf16.mxu0 %v1323
  %1769 = vmatpush2.bf16.msra.mxu0 %v1322
  %1770 = vmatprep.subr.bf16.mxu0 %v1319
  %1771 = vmatpush2.bf16.msra.mxu0 %v1318
  %1772 = vmatprep.subr.bf16.mxu0 %v1315
  %1773 = vmatpush2.bf16.msra.mxu0 %v1314
  %1774 = vmatprep.subr.bf16.mxu0 %v1311
  %1775 = vmatpush2.bf16.msra.mxu0 %v1310
  %1776 = vmatprep.subr.bf16.mxu0 %v1307
  %1777 = vmatpush2.bf16.msra.mxu0 %v1306
  %1778 = vmatprep.subr.bf16.mxu0 %v1303
  %1779 = vmatpush2.bf16.msra.mxu0 %v1302
  %1780 = vmatprep.subr.bf16.mxu0 %v1299
  %1781 = vmatpush2.bf16.msra.mxu0 %v1298
  %1782 = vmatprep.subr.bf16.mxu0 %v1295
  %1783 = vmatpush2.bf16.msra.mxu0 %v1294
  %1784 = vmatprep.mubr.bf16.mxu0 %v339
  %1785 = vmatmul.mubr.bf16.gmra.mxu0 %v338
  %v1786 = vpop.f32.mrf.mxu0
  %v1787 = vadd.f32 %v1734, %v1786
  %v1788 = vpop.f32.mrf.mxu0
  %v1789 = vadd.f32 %v1736, %v1788
  %v1790 = vpop.f32.mrf.mxu0
  %v1791 = vadd.f32 %v1738, %v1790
  %v1792 = vpop.f32.mrf.mxu0
  %v1793 = vadd.f32 %v1740, %v1792
  %1794 = vmatprep.mubr.bf16.mxu0 %v347
  %1795 = vmatmul.mubr.bf16.gmra.mxu0 %v346
  %v1796 = vpop.f32.mrf.mxu0
  %v1797 = vadd.f32 %v1744, %v1796
  %v1798 = vpop.f32.mrf.mxu0
  %v1799 = vadd.f32 %v1746, %v1798
  %v1800 = vpop.f32.mrf.mxu0
  %v1801 = vadd.f32 %v1748, %v1800
  %v1802 = vpop.f32.mrf.mxu0
  %v1803 = vadd.f32 %v1750, %v1802
  %1804 = vdwg.mxu0
  %1805 = vmatprep.subr.bf16.mxu0 %v1355
  %1806 = vmatpush1.bf16.msra.mxu0 %v1354
  %1807 = vmatprep.subr.bf16.mxu0 %v1351
  %1808 = vmatpush1.bf16.msra.mxu0 %v1350
  %1809 = vmatprep.subr.bf16.mxu0 %v1347
  %1810 = vmatpush1.bf16.msra.mxu0 %v1346
  %1811 = vmatprep.subr.bf16.mxu0 %v1343
  %1812 = vmatpush1.bf16.msra.mxu0 %v1342
  %1813 = vmatprep.subr.bf16.mxu0 %v1339
  %1814 = vmatpush1.bf16.msra.mxu0 %v1338
  %1815 = vmatprep.subr.bf16.mxu0 %v1335
  %1816 = vmatpush1.bf16.msra.mxu0 %v1334
  %1817 = vmatprep.subr.bf16.mxu0 %v1331
  %1818 = vmatpush1.bf16.msra.mxu0 %v1330
  %1819 = vmatprep.subr.bf16.mxu0 %v1327
  %1820 = vmatpush1.bf16.msra.mxu0 %v1326
  %1821 = vmatprep.subr.bf16.mxu0 %v1387
  %1822 = vmatpush2.bf16.msra.mxu0 %v1386
  %1823 = vmatprep.subr.bf16.mxu0 %v1383
  %1824 = vmatpush2.bf16.msra.mxu0 %v1382
  %1825 = vmatprep.subr.bf16.mxu0 %v1379
  %1826 = vmatpush2.bf16.msra.mxu0 %v1378
  %1827 = vmatprep.subr.bf16.mxu0 %v1375
  %1828 = vmatpush2.bf16.msra.mxu0 %v1374
  %1829 = vmatprep.subr.bf16.mxu0 %v1371
  %1830 = vmatpush2.bf16.msra.mxu0 %v1370
  %1831 = vmatprep.subr.bf16.mxu0 %v1367
  %1832 = vmatpush2.bf16.msra.mxu0 %v1366
  %1833 = vmatprep.subr.bf16.mxu0 %v1363
  %1834 = vmatpush2.bf16.msra.mxu0 %v1362
  %1835 = vmatprep.subr.bf16.mxu0 %v1359
  %1836 = vmatpush2.bf16.msra.mxu0 %v1358
  %1837 = vmatprep.mubr.bf16.mxu0 %v341
  %1838 = vmatmul.mubr.bf16.gmra.mxu0 %v340
  %v1839 = vpop.f32.mrf.mxu0
  %v1840 = vadd.f32 %v1787, %v1839
  %v1841 = vpop.f32.mrf.mxu0
  %v1842 = vadd.f32 %v1789, %v1841
  %v1843 = vpop.f32.mrf.mxu0
  %v1844 = vadd.f32 %v1791, %v1843
  %v1845 = vpop.f32.mrf.mxu0
  %v1846 = vadd.f32 %v1793, %v1845
  %1847 = vmatprep.mubr.bf16.mxu0 %v349
  %1848 = vmatmul.mubr.bf16.gmra.mxu0 %v348
  %v1849 = vpop.f32.mrf.mxu0
  %v1850 = vadd.f32 %v1797, %v1849
  %v1851 = vpop.f32.mrf.mxu0
  %v1852 = vadd.f32 %v1799, %v1851
  %v1853 = vpop.f32.mrf.mxu0
  %v1854 = vadd.f32 %v1801, %v1853
  %v1855 = vpop.f32.mrf.mxu0
  %v1856 = vadd.f32 %v1803, %v1855
  %1857 = vdwg.mxu0
  %1858 = vmatprep.subr.bf16.mxu0 %v1165
  %1859 = vmatpush1.bf16.msra.mxu0 %v1164
  %1860 = vmatprep.subr.bf16.mxu0 %v1161
  %1861 = vmatpush1.bf16.msra.mxu0 %v1160
  %1862 = vmatprep.subr.bf16.mxu0 %v1157
  %1863 = vmatpush1.bf16.msra.mxu0 %v1156
  %1864 = vmatprep.subr.bf16.mxu0 %v1153
  %1865 = vmatpush1.bf16.msra.mxu0 %v1152
  %1866 = vmatprep.subr.bf16.mxu0 %v1149
  %1867 = vmatpush1.bf16.msra.mxu0 %v1148
  %1868 = vmatprep.subr.bf16.mxu0 %v1145
  %1869 = vmatpush1.bf16.msra.mxu0 %v1144
  %1870 = vmatprep.subr.bf16.mxu0 %v1141
  %1871 = vmatpush1.bf16.msra.mxu0 %v1140
  %1872 = vmatprep.subr.bf16.mxu0 %v1137
  %1873 = vmatpush1.bf16.msra.mxu0 %v1136
  %1874 = vmatprep.subr.bf16.mxu0 %v1197
  %1875 = vmatpush2.bf16.msra.mxu0 %v1196
  %1876 = vmatprep.subr.bf16.mxu0 %v1193
  %1877 = vmatpush2.bf16.msra.mxu0 %v1192
  %1878 = vmatprep.subr.bf16.mxu0 %v1189
  %1879 = vmatpush2.bf16.msra.mxu0 %v1188
  %1880 = vmatprep.subr.bf16.mxu0 %v1185
  %1881 = vmatpush2.bf16.msra.mxu0 %v1184
  %1882 = vmatprep.subr.bf16.mxu0 %v1181
  %1883 = vmatpush2.bf16.msra.mxu0 %v1180
  %1884 = vmatprep.subr.bf16.mxu0 %v1177
  %1885 = vmatpush2.bf16.msra.mxu0 %v1176
  %1886 = vmatprep.subr.bf16.mxu0 %v1173
  %1887 = vmatpush2.bf16.msra.mxu0 %v1172
  %1888 = vmatprep.subr.bf16.mxu0 %v1169
  %1889 = vmatpush2.bf16.msra.mxu0 %v1168
  %1890 = vmatprep.mubr.bf16.mxu0 %v335
  %1891 = vmatmul.mubr.bf16.gmra.mxu0 %v334
  %v1892 = vpop.f32.mrf.mxu0
  %v1893 = vadd.f32 0.0, %v1892
  %v1894 = vpop.f32.mrf.mxu0
  %v1895 = vadd.f32 0.0, %v1894
  %v1896 = vpop.f32.mrf.mxu0
  %v1897 = vadd.f32 0.0, %v1896
  %v1898 = vpop.f32.mrf.mxu0
  %v1899 = vadd.f32 0.0, %v1898
  %1900 = vmatprep.mubr.bf16.mxu0 %v343
  %1901 = vmatmul.mubr.bf16.gmra.mxu0 %v342
  %v1902 = vpop.f32.mrf.mxu0
  %v1903 = vadd.f32 0.0, %v1902
  %v1904 = vpop.f32.mrf.mxu0
  %v1905 = vadd.f32 0.0, %v1904
  %v1906 = vpop.f32.mrf.mxu0
  %v1907 = vadd.f32 0.0, %v1906
  %v1908 = vpop.f32.mrf.mxu0
  %v1909 = vadd.f32 0.0, %v1908
  %1910 = vdwg.mxu0
  %1911 = vmatprep.subr.bf16.mxu0 %v1229
  %1912 = vmatpush1.bf16.msra.mxu0 %v1228
  %1913 = vmatprep.subr.bf16.mxu0 %v1225
  %1914 = vmatpush1.bf16.msra.mxu0 %v1224
  %1915 = vmatprep.subr.bf16.mxu0 %v1221
  %1916 = vmatpush1.bf16.msra.mxu0 %v1220
  %1917 = vmatprep.subr.bf16.mxu0 %v1217
  %1918 = vmatpush1.bf16.msra.mxu0 %v1216
  %1919 = vmatprep.subr.bf16.mxu0 %v1213
  %1920 = vmatpush1.bf16.msra.mxu0 %v1212
  %1921 = vmatprep.subr.bf16.mxu0 %v1209
  %1922 = vmatpush1.bf16.msra.mxu0 %v1208
  %1923 = vmatprep.subr.bf16.mxu0 %v1205
  %1924 = vmatpush1.bf16.msra.mxu0 %v1204
  %1925 = vmatprep.subr.bf16.mxu0 %v1201
  %1926 = vmatpush1.bf16.msra.mxu0 %v1200
  %1927 = vmatprep.subr.bf16.mxu0 %v1261
  %1928 = vmatpush2.bf16.msra.mxu0 %v1260
  %1929 = vmatprep.subr.bf16.mxu0 %v1257
  %1930 = vmatpush2.bf16.msra.mxu0 %v1256
  %1931 = vmatprep.subr.bf16.mxu0 %v1253
  %1932 = vmatpush2.bf16.msra.mxu0 %v1252
  %1933 = vmatprep.subr.bf16.mxu0 %v1249
  %1934 = vmatpush2.bf16.msra.mxu0 %v1248
  %1935 = vmatprep.subr.bf16.mxu0 %v1245
  %1936 = vmatpush2.bf16.msra.mxu0 %v1244
  %1937 = vmatprep.subr.bf16.mxu0 %v1241
  %1938 = vmatpush2.bf16.msra.mxu0 %v1240
  %1939 = vmatprep.subr.bf16.mxu0 %v1237
  %1940 = vmatpush2.bf16.msra.mxu0 %v1236
  %1941 = vmatprep.subr.bf16.mxu0 %v1233
  %1942 = vmatpush2.bf16.msra.mxu0 %v1232
  %1943 = vmatprep.mubr.bf16.mxu0 %v337
  %1944 = vmatmul.mubr.bf16.gmra.mxu0 %v336
  %v1945 = vpop.f32.mrf.mxu0
  %v1946 = vadd.f32 %v1893, %v1945
  %v1947 = vpop.f32.mrf.mxu0
  %v1948 = vadd.f32 %v1895, %v1947
  %v1949 = vpop.f32.mrf.mxu0
  %v1950 = vadd.f32 %v1897, %v1949
  %v1951 = vpop.f32.mrf.mxu0
  %v1952 = vadd.f32 %v1899, %v1951
  %1953 = vmatprep.mubr.bf16.mxu0 %v345
  %1954 = vmatmul.mubr.bf16.gmra.mxu0 %v344
  %v1955 = vpop.f32.mrf.mxu0
  %v1956 = vadd.f32 %v1903, %v1955
  %v1957 = vpop.f32.mrf.mxu0
  %v1958 = vadd.f32 %v1905, %v1957
  %v1959 = vpop.f32.mrf.mxu0
  %v1960 = vadd.f32 %v1907, %v1959
  %v1961 = vpop.f32.mrf.mxu0
  %v1962 = vadd.f32 %v1909, %v1961
  %1963 = vdwg.mxu0
  %1964 = vmatprep.subr.bf16.mxu0 %v1293
  %1965 = vmatpush1.bf16.msra.mxu0 %v1292
  %1966 = vmatprep.subr.bf16.mxu0 %v1289
  %1967 = vmatpush1.bf16.msra.mxu0 %v1288
  %1968 = vmatprep.subr.bf16.mxu0 %v1285
  %1969 = vmatpush1.bf16.msra.mxu0 %v1284
  %1970 = vmatprep.subr.bf16.mxu0 %v1281
  %1971 = vmatpush1.bf16.msra.mxu0 %v1280
  %1972 = vmatprep.subr.bf16.mxu0 %v1277
  %1973 = vmatpush1.bf16.msra.mxu0 %v1276
  %1974 = vmatprep.subr.bf16.mxu0 %v1273
  %1975 = vmatpush1.bf16.msra.mxu0 %v1272
  %1976 = vmatprep.subr.bf16.mxu0 %v1269
  %1977 = vmatpush1.bf16.msra.mxu0 %v1268
  %1978 = vmatprep.subr.bf16.mxu0 %v1265
  %1979 = vmatpush1.bf16.msra.mxu0 %v1264
  %1980 = vmatprep.subr.bf16.mxu0 %v1325
  %1981 = vmatpush2.bf16.msra.mxu0 %v1324
  %1982 = vmatprep.subr.bf16.mxu0 %v1321
  %1983 = vmatpush2.bf16.msra.mxu0 %v1320
  %1984 = vmatprep.subr.bf16.mxu0 %v1317
  %1985 = vmatpush2.bf16.msra.mxu0 %v1316
  %1986 = vmatprep.subr.bf16.mxu0 %v1313
  %1987 = vmatpush2.bf16.msra.mxu0 %v1312
  %1988 = vmatprep.subr.bf16.mxu0 %v1309
  %1989 = vmatpush2.bf16.msra.mxu0 %v1308
  %1990 = vmatprep.subr.bf16.mxu0 %v1305
  %1991 = vmatpush2.bf16.msra.mxu0 %v1304
  %1992 = vmatprep.subr.bf16.mxu0 %v1301
  %1993 = vmatpush2.bf16.msra.mxu0 %v1300
  %1994 = vmatprep.subr.bf16.mxu0 %v1297
  %1995 = vmatpush2.bf16.msra.mxu0 %v1296
  %1996 = vmatprep.mubr.bf16.mxu0 %v339
  %1997 = vmatmul.mubr.bf16.gmra.mxu0 %v338
  %v1998 = vpop.f32.mrf.mxu0
  %v1999 = vadd.f32 %v1946, %v1998
  %v2000 = vpop.f32.mrf.mxu0
  %v2001 = vadd.f32 %v1948, %v2000
  %v2002 = vpop.f32.mrf.mxu0
  %v2003 = vadd.f32 %v1950, %v2002
  %v2004 = vpop.f32.mrf.mxu0
  %v2005 = vadd.f32 %v1952, %v2004
  %2006 = vmatprep.mubr.bf16.mxu0 %v347
  %2007 = vmatmul.mubr.bf16.gmra.mxu0 %v346
  %v2008 = vpop.f32.mrf.mxu0
  %v2009 = vadd.f32 %v1956, %v2008
  %v2010 = vpop.f32.mrf.mxu0
  %v2011 = vadd.f32 %v1958, %v2010
  %v2012 = vpop.f32.mrf.mxu0
  %v2013 = vadd.f32 %v1960, %v2012
  %v2014 = vpop.f32.mrf.mxu0
  %v2015 = vadd.f32 %v1962, %v2014
  %2016 = vdwg.mxu0
  %2017 = vmatprep.subr.bf16.mxu0 %v1357
  %2018 = vmatpush1.bf16.msra.mxu0 %v1356
  %2019 = vmatprep.subr.bf16.mxu0 %v1353
  %2020 = vmatpush1.bf16.msra.mxu0 %v1352
  %2021 = vmatprep.subr.bf16.mxu0 %v1349
  %2022 = vmatpush1.bf16.msra.mxu0 %v1348
  %2023 = vmatprep.subr.bf16.mxu0 %v1345
  %2024 = vmatpush1.bf16.msra.mxu0 %v1344
  %2025 = vmatprep.subr.bf16.mxu0 %v1341
  %2026 = vmatpush1.bf16.msra.mxu0 %v1340
  %2027 = vmatprep.subr.bf16.mxu0 %v1337
  %2028 = vmatpush1.bf16.msra.mxu0 %v1336
  %2029 = vmatprep.subr.bf16.mxu0 %v1333
  %2030 = vmatpush1.bf16.msra.mxu0 %v1332
  %2031 = vmatprep.subr.bf16.mxu0 %v1329
  %2032 = vmatpush1.bf16.msra.mxu0 %v1328
  %2033 = vmatprep.subr.bf16.mxu0 %v1389
  %2034 = vmatpush2.bf16.msra.mxu0 %v1388
  %2035 = vmatprep.subr.bf16.mxu0 %v1385
  %2036 = vmatpush2.bf16.msra.mxu0 %v1384
  %2037 = vmatprep.subr.bf16.mxu0 %v1381
  %2038 = vmatpush2.bf16.msra.mxu0 %v1380
  %2039 = vmatprep.subr.bf16.mxu0 %v1377
  %2040 = vmatpush2.bf16.msra.mxu0 %v1376
  %2041 = vmatprep.subr.bf16.mxu0 %v1373
  %2042 = vmatpush2.bf16.msra.mxu0 %v1372
  %2043 = vmatprep.subr.bf16.mxu0 %v1369
  %2044 = vmatpush2.bf16.msra.mxu0 %v1368
  %2045 = vmatprep.subr.bf16.mxu0 %v1365
  %2046 = vmatpush2.bf16.msra.mxu0 %v1364
  %2047 = vmatprep.subr.bf16.mxu0 %v1361
  %2048 = vmatpush2.bf16.msra.mxu0 %v1360
  %2049 = vmatprep.mubr.bf16.mxu0 %v341
  %2050 = vmatmul.mubr.bf16.gmra.mxu0 %v340
  %v2051 = vpop.f32.mrf.mxu0
  %v2052 = vadd.f32 %v1999, %v2051
  %v2053 = vpop.f32.mrf.mxu0
  %v2054 = vadd.f32 %v2001, %v2053
  %v2055 = vpop.f32.mrf.mxu0
  %v2056 = vadd.f32 %v2003, %v2055
  %v2057 = vpop.f32.mrf.mxu0
  %v2058 = vadd.f32 %v2005, %v2057
  %2059 = vmatprep.mubr.bf16.mxu0 %v349
  %2060 = vmatmul.mubr.bf16.gmra.mxu0 %v348
  %v2061 = vpop.f32.mrf.mxu0
  %v2062 = vadd.f32 %v2009, %v2061
  %v2063 = vpop.f32.mrf.mxu0
  %v2064 = vadd.f32 %v2011, %v2063
  %v2065 = vpop.f32.mrf.mxu0
  %v2066 = vadd.f32 %v2013, %v2065
  %v2067 = vpop.f32.mrf.mxu0
  %v2068 = vadd.f32 %v2015, %v2067
  %2069 = vdwg.mxu0
  %v2070 = vld [vmem:[%s2] ss:$4 sm:$0xf]
  %v2072 = vlaneseq
  %v2073 = vshrl.u32 %v2072, 7
  %v2074 = vsub.s32 0, %v2073
  %v2075 = vrot.slane %v2070, %v2074
  %v2076 = vlaneseq
  %v2077 = vshrl.u32 %v2076, 7
  %v2078 = vsub.s32 1, %v2077
  %v2079 = vrot.slane %v2070, %v2078
  %v2080 = vlaneseq
  %v2081 = vshrl.u32 %v2080, 7
  %v2082 = vsub.s32 2, %v2081
  %v2083 = vrot.slane %v2070, %v2082
  %v2084 = vlaneseq
  %v2085 = vshrl.u32 %v2084, 7
  %v2086 = vsub.s32 3, %v2085
  %v2087 = vrot.slane %v2070, %v2086
  %v2092 = vmul.f32 %v1840, %v2075
  %v2093 = vmul.f32 %v1842, %v2079
  %v2094 = vmul.f32 %v2052, %v2083
  %v2095 = vmul.f32 %v2054, %v2087
  %v2096 = vmul.f32 %v1844, %v2075
  %v2097 = vmul.f32 %v1846, %v2079
  %v2098 = vmul.f32 %v2056, %v2083
  %v2099 = vmul.f32 %v2058, %v2087
  %v2100 = vmul.f32 %v1850, %v2075
  %v2101 = vmul.f32 %v1852, %v2079
  %v2102 = vmul.f32 %v2062, %v2083
  %v2103 = vmul.f32 %v2064, %v2087
  %v2104 = vmul.f32 %v1854, %v2075
  %v2105 = vmul.f32 %v1856, %v2079
  %v2106 = vmul.f32 %v2066, %v2083
  %v2107 = vmul.f32 %v2068, %v2087
  %s2108 = scalar_lea.vmem %s2, 1
  %v2109 = vld [vmem:[%s2108] ss:$4 sm:$0xf]
  %v2111 = vlaneseq
  %v2112 = vshrl.u32 %v2111, 7
  %v2113 = vsub.s32 0, %v2112
  %v2114 = vrot.slane %v2109, %v2113
  %v2115 = vlaneseq
  %v2116 = vshrl.u32 %v2115, 7
  %v2117 = vsub.s32 1, %v2116
  %v2118 = vrot.slane %v2109, %v2117
  %v2119 = vlaneseq
  %v2120 = vshrl.u32 %v2119, 7
  %v2121 = vsub.s32 2, %v2120
  %v2122 = vrot.slane %v2109, %v2121
  %v2123 = vlaneseq
  %v2124 = vshrl.u32 %v2123, 7
  %v2125 = vsub.s32 3, %v2124
  %v2126 = vrot.slane %v2109, %v2125
  %v2131 = vadd.f32 %v2092, %v2114
  %v2132 = vadd.f32 %v2093, %v2118
  %v2133 = vadd.f32 %v2094, %v2122
  %v2134 = vadd.f32 %v2095, %v2126
  %v2135 = vadd.f32 %v2096, %v2114
  %v2136 = vadd.f32 %v2097, %v2118
  %v2137 = vadd.f32 %v2098, %v2122
  %v2138 = vadd.f32 %v2099, %v2126
  %v2139 = vadd.f32 %v2100, %v2114
  %v2140 = vadd.f32 %v2101, %v2118
  %v2141 = vadd.f32 %v2102, %v2122
  %v2142 = vadd.f32 %v2103, %v2126
  %v2143 = vadd.f32 %v2104, %v2114
  %v2144 = vadd.f32 %v2105, %v2118
  %v2145 = vadd.f32 %v2106, %v2122
  %v2146 = vadd.f32 %v2107, %v2126
  %v2147 = vmax.f32 %v2131, 0.0
  %v2148 = vmax.f32 %v2132, 0.0
  %v2149 = vmax.f32 %v2133, 0.0
  %v2150 = vmax.f32 %v2134, 0.0
  %v2151 = vmax.f32 %v2135, 0.0
  %v2152 = vmax.f32 %v2136, 0.0
  %v2153 = vmax.f32 %v2137, 0.0
  %v2154 = vmax.f32 %v2138, 0.0
  %v2155 = vmax.f32 %v2139, 0.0
  %v2156 = vmax.f32 %v2140, 0.0
  %v2157 = vmax.f32 %v2141, 0.0
  %v2158 = vmax.f32 %v2142, 0.0
  %v2159 = vmax.f32 %v2143, 0.0
  %v2160 = vmax.f32 %v2144, 0.0
  %v2161 = vmax.f32 %v2145, 0.0
  %v2162 = vmax.f32 %v2146, 0.0
  %v2163 = vpack.c.bf16 %v2151, %v2147
  %v2164 = vpack.c.bf16 %v2152, %v2148
  %v2165 = vpack.c.bf16 %v2153, %v2149
  %v2166 = vpack.c.bf16 %v2154, %v2150
  %v2167 = vpack.c.bf16 %v2159, %v2155
  %v2168 = vpack.c.bf16 %v2160, %v2156
  %v2169 = vpack.c.bf16 %v2161, %v2157
  %v2170 = vpack.c.bf16 %v2162, %v2158
  %v2179 = vunpack.c.l.b16 %v2163
  %v2180 = vunpack.c.l.b16 %v2164
  %v2181 = vunpack.c.l.b16 %v2165
  %v2182 = vunpack.c.l.b16 %v2166
  %v2183 = vunpack.c.h.b16 %v2163
  %v2184 = vunpack.c.h.b16 %v2164
  %v2185 = vunpack.c.h.b16 %v2165
  %v2186 = vunpack.c.h.b16 %v2166
  %v2187 = vunpack.c.l.b16 %v2167
  %v2188 = vunpack.c.l.b16 %v2168
  %v2189 = vunpack.c.l.b16 %v2169
  %v2190 = vunpack.c.l.b16 %v2170
  %v2191 = vunpack.c.h.b16 %v2167
  %v2192 = vunpack.c.h.b16 %v2168
  %v2193 = vunpack.c.h.b16 %v2169
  %v2194 = vunpack.c.h.b16 %v2170
  %v2195 = vpack.c.b16 %v2180, %v2179
  %v2196 = vpack.c.b16 %v2182, %v2181
  %v2197 = vpack.c.b16 %v2184, %v2183
  %v2198 = vpack.c.b16 %v2186, %v2185
  %v2199 = vpack.c.b16 %v2188, %v2187
  %v2200 = vpack.c.b16 %v2190, %v2189
  %v2201 = vpack.c.b16 %v2192, %v2191
  %v2202 = vpack.c.b16 %v2194, %v2193
  %2211 = vst [vmem:[%s3] sm:$0xff] %v2195
  %2212 = vst [vmem:[%s3 + $0x8] sm:$0xff] %v2196
  %2213 = vst [vmem:[%s3 + $0x10] sm:$0xff] %v2197
  %2214 = vst [vmem:[%s3 + $0x18] sm:$0xff] %v2198
  %2215 = vst [vmem:[%s3 + $0x20] sm:$0xff] %v2199
  %2216 = vst [vmem:[%s3 + $0x28] sm:$0xff] %v2200
  %2217 = vst [vmem:[%s3 + $0x30] sm:$0xff] %v2201
  %2218 = vst [vmem:[%s3 + $0x38] sm:$0xff] %v2202
  // Predicated region
  $region14: #{autoencoder_forward.12} parent=0 // pred_check
    _
  $region15: #{autoencoder_forward.12} parent=0 // pred_check_branch
    %2220 = sbr.rel (0) target = $region17
  $region16: #{autoencoder_forward.12} parent=0 // pred_region
    _
  $region17: #{autoencoder_forward.12} parent=0 // pred_fallthru
    _
  // Predicated region
  $region18: #{autoencoder_forward.12} parent=0 // pred_check
    _
  $region19: #{autoencoder_forward.12} parent=0 // pred_check_branch
    %2222 = sbr.rel (0) target = $region21
  $region20: #{autoencoder_forward.12} parent=0 // pred_region
    _
  $region21: #{autoencoder_forward.12} parent=0 // pred_fallthru
    _

// kernel: autoencoder_forward.13
$region0: #{autoencoder_forward.13}
  #allocation0 [shape = 'u32[]', space=smem, size = 0x4, offset = 0x4, fixed_abs, tag = 'smem constant byte address 0x4 - core index']
  #allocation1 [shape = 'u32[144,128]{1,0:T(1,128)}', space=vmem, size = 0x12000, scoped, tag = 'internal scratch']
  %s0 = inlined_call_operand.vmem [shape: bf16[128,512], index: 0, kind: input, shape index: {}]
  %s1 = inlined_call_operand.vmem [shape: bf16[512,256], index: 1, kind: input, shape index: {}]
  %s2 = inlined_call_operand.vmem [shape: f32[3,256], index: 2, kind: input, shape index: {}]
  %s3 = inlined_call_operand.vmem [shape: bf16[128,256], index: 3, kind: output, shape index: {}]
  %s4 = sld [smem:[#allocation0]]
  $region22: #{autoencoder_forward.13} parent=0
    _
  %s6 = ssub.s32 1, %s4
  %s7 = scalar_select 0, %s6, %s4
  // Predicated region
  $region2: #{autoencoder_forward.13} parent=0 // pred_check
    _
  $region3: #{autoencoder_forward.13} parent=0 // pred_check_branch
    %9 = sbr.rel (0) target = $region5
  $region4: #{autoencoder_forward.13} parent=0 // pred_region
    _
  $region5: #{autoencoder_forward.13} parent=0 // pred_fallthru
    _
  // Predicated region
  $region6: #{autoencoder_forward.13} parent=0 // pred_check
    _
  $region7: #{autoencoder_forward.13} parent=0 // pred_check_branch
    %11 = sbr.rel (0) target = $region9
  $region8: #{autoencoder_forward.13} parent=0 // pred_region
    _
  $region9: #{autoencoder_forward.13} parent=0 // pred_fallthru
    _
  // Predicated region
  $region10: #{autoencoder_forward.13} parent=0 // pred_check
    _
  $region11: #{autoencoder_forward.13} parent=0 // pred_check_branch
    %13 = sbr.rel (0) target = $region13
  $region12: #{autoencoder_forward.13} parent=0 // pred_region
    _
  $region13: #{autoencoder_forward.13} parent=0 // pred_fallthru
    _
  %v14 = vld [vmem:[%s0] sm:$0xff]
  %v15 = vld [vmem:[%s0 + $0x8] sm:$0xff]
  %v16 = vld [vmem:[%s0 + $0x10] sm:$0xff]
  %v17 = vld [vmem:[%s0 + $0x18] sm:$0xff]
  %v18 = vld [vmem:[%s0 + $0x20] sm:$0xff]
  %v19 = vld [vmem:[%s0 + $0x28] sm:$0xff]
  %v20 = vld [vmem:[%s0 + $0x30] sm:$0xff]
  %v21 = vld [vmem:[%s0 + $0x38] sm:$0xff]
  %v22 = vld [vmem:[%s0 + $0x40] sm:$0xff]
  %v23 = vld [vmem:[%s0 + $0x48] sm:$0xff]
  %v24 = vld [vmem:[%s0 + $0x50] sm:$0xff]
  %v25 = vld [vmem:[%s0 + $0x58] sm:$0xff]
  %v26 = vld [vmem:[%s0 + $0x60] sm:$0xff]
  %v27 = vld [vmem:[%s0 + $0x68] sm:$0xff]
  %v28 = vld [vmem:[%s0 + $0x70] sm:$0xff]
  %v29 = vld [vmem:[%s0 + $0x78] sm:$0xff]
  %v30 = vld [vmem:[%s0 + $0x80] sm:$0xff]
  %v31 = vld [vmem:[%s0 + $0x88] sm:$0xff]
  %v32 = vld [vmem:[%s0 + $0x90] sm:$0xff]
  %v33 = vld [vmem:[%s0 + $0x98] sm:$0xff]
  %v34 = vld [vmem:[%s0 + $0xa0] sm:$0xff]
  %v35 = vld [vmem:[%s0 + $0xa8] sm:$0xff]
  %v36 = vld [vmem:[%s0 + $0xb0] sm:$0xff]
  %v37 = vld [vmem:[%s0 + $0xb8] sm:$0xff]
  %v38 = vld [vmem:[%s0 + $0xc0] sm:$0xff]
  %v39 = vld [vmem:[%s0 + $0xc8] sm:$0xff]
  %v40 = vld [vmem:[%s0 + $0xd0] sm:$0xff]
  %v41 = vld [vmem:[%s0 + $0xd8] sm:$0xff]
  %v42 = vld [vmem:[%s0 + $0xe0] sm:$0xff]
  %v43 = vld [vmem:[%s0 + $0xe8] sm:$0xff]
  %v44 = vld [vmem:[%s0 + $0xf0] sm:$0xff]
  %v45 = vld [vmem:[%s0 + $0xf8] sm:$0xff]
  %v46 = vld [vmem:[%s1] sm:$0xff]
  %v47 = vld [vmem:[%s1 + $0x8] sm:$0xff]
  %v48 = vld [vmem:[%s1 + $0x10] sm:$0xff]
  %v49 = vld [vmem:[%s1 + $0x18] sm:$0xff]
  %v50 = vld [vmem:[%s1 + $0x20] sm:$0xff]
  %v51 = vld [vmem:[%s1 + $0x28] sm:$0xff]
  %v52 = vld [vmem:[%s1 + $0x30] sm:$0xff]
  %v53 = vld [vmem:[%s1 + $0x38] sm:$0xff]
  %v54 = vld [vmem:[%s1 + $0x40] sm:$0xff]
  %v55 = vld [vmem:[%s1 + $0x48] sm:$0xff]
  %v56 = vld [vmem:[%s1 + $0x50] sm:$0xff]
  %v57 = vld [vmem:[%s1 + $0x58] sm:$0xff]
  %v58 = vld [vmem:[%s1 + $0x60] sm:$0xff]
  %v59 = vld [vmem:[%s1 + $0x68] sm:$0xff]
  %v60 = vld [vmem:[%s1 + $0x70] sm:$0xff]
  %v61 = vld [vmem:[%s1 + $0x78] sm:$0xff]
  %v62 = vld [vmem:[%s1 + $0x80] sm:$0xff]
  %v63 = vld [vmem:[%s1 + $0x88] sm:$0xff]
  %v64 = vld [vmem:[%s1 + $0x90] sm:$0xff]
  %v65 = vld [vmem:[%s1 + $0x98] sm:$0xff]
  %v66 = vld [vmem:[%s1 + $0xa0] sm:$0xff]
  %v67 = vld [vmem:[%s1 + $0xa8] sm:$0xff]
  %v68 = vld [vmem:[%s1 + $0xb0] sm:$0xff]
  %v69 = vld [vmem:[%s1 + $0xb8] sm:$0xff]
  %v70 = vld [vmem:[%s1 + $0xc0] sm:$0xff]
  %v71 = vld [vmem:[%s1 + $0xc8] sm:$0xff]
  %v72 = vld [vmem:[%s1 + $0xd0] sm:$0xff]
  %v73 = vld [vmem:[%s1 + $0xd8] sm:$0xff]
  %v74 = vld [vmem:[%s1 + $0xe0] sm:$0xff]
  %v75 = vld [vmem:[%s1 + $0xe8] sm:$0xff]
  %v76 = vld [vmem:[%s1 + $0xf0] sm:$0xff]
  %v77 = vld [vmem:[%s1 + $0xf8] sm:$0xff]
  %v78 = vld [vmem:[%s1 + $0x100] sm:$0xff]
  %v79 = vld [vmem:[%s1 + $0x108] sm:$0xff]
  %v80 = vld [vmem:[%s1 + $0x110] sm:$0xff]
  %v81 = vld [vmem:[%s1 + $0x118] sm:$0xff]
  %v82 = vld [vmem:[%s1 + $0x120] sm:$0xff]
  %v83 = vld [vmem:[%s1 + $0x128] sm:$0xff]
  %v84 = vld [vmem:[%s1 + $0x130] sm:$0xff]
  %v85 = vld [vmem:[%s1 + $0x138] sm:$0xff]
  %v86 = vld [vmem:[%s1 + $0x140] sm:$0xff]
  %v87 = vld [vmem:[%s1 + $0x148] sm:$0xff]
  %v88 = vld [vmem:[%s1 + $0x150] sm:$0xff]
  %v89 = vld [vmem:[%s1 + $0x158] sm:$0xff]
  %v90 = vld [vmem:[%s1 + $0x160] sm:$0xff]
  %v91 = vld [vmem:[%s1 + $0x168] sm:$0xff]
  %v92 = vld [vmem:[%s1 + $0x170] sm:$0xff]
  %v93 = vld [vmem:[%s1 + $0x178] sm:$0xff]
  %v94 = vld [vmem:[%s1 + $0x180] sm:$0xff]
  %v95 = vld [vmem:[%s1 + $0x188] sm:$0xff]
  %v96 = vld [vmem:[%s1 + $0x190] sm:$0xff]
  %v97 = vld [vmem:[%s1 + $0x198] sm:$0xff]
  %v98 = vld [vmem:[%s1 + $0x1a0] sm:$0xff]
  %v99 = vld [vmem:[%s1 + $0x1a8] sm:$0xff]
  %v100 = vld [vmem:[%s1 + $0x1b0] sm:$0xff]
  %v101 = vld [vmem:[%s1 + $0x1b8] sm:$0xff]
  %v102 = vld [vmem:[%s1 + $0x1c0] sm:$0xff]
  %v103 = vld [vmem:[%s1 + $0x1c8] sm:$0xff]
  %v104 = vld [vmem:[%s1 + $0x1d0] sm:$0xff]
  %v105 = vld [vmem:[%s1 + $0x1d8] sm:$0xff]
  %v106 = vld [vmem:[%s1 + $0x1e0] sm:$0xff]
  %v107 = vld [vmem:[%s1 + $0x1e8] sm:$0xff]
  %v108 = vld [vmem:[%s1 + $0x1f0] sm:$0xff]
  %v109 = vld [vmem:[%s1 + $0x1f8] sm:$0xff]
  %v142 = vunpack.c.l.b16 %v14
  %v143 = vunpack.c.h.b16 %v14
  %v144 = vunpack.c.l.b16 %v15
  %v145 = vunpack.c.h.b16 %v15
  %v146 = vunpack.c.l.b16 %v16
  %v147 = vunpack.c.h.b16 %v16
  %v148 = vunpack.c.l.b16 %v17
  %v149 = vunpack.c.h.b16 %v17
  %v150 = vunpack.c.l.b16 %v18
  %v151 = vunpack.c.h.b16 %v18
  %v152 = vunpack.c.l.b16 %v19
  %v153 = vunpack.c.h.b16 %v19
  %v154 = vunpack.c.l.b16 %v20
  %v155 = vunpack.c.h.b16 %v20
  %v156 = vunpack.c.l.b16 %v21
  %v157 = vunpack.c.h.b16 %v21
  %v158 = vunpack.c.l.b16 %v22
  %v159 = vunpack.c.h.b16 %v22
  %v160 = vunpack.c.l.b16 %v23
  %v161 = vunpack.c.h.b16 %v23
  %v162 = vunpack.c.l.b16 %v24
  %v163 = vunpack.c.h.b16 %v24
  %v164 = vunpack.c.l.b16 %v25
  %v165 = vunpack.c.h.b16 %v25
  %v166 = vunpack.c.l.b16 %v26
  %v167 = vunpack.c.h.b16 %v26
  %v168 = vunpack.c.l.b16 %v27
  %v169 = vunpack.c.h.b16 %v27
  %v170 = vunpack.c.l.b16 %v28
  %v171 = vunpack.c.h.b16 %v28
  %v172 = vunpack.c.l.b16 %v29
  %v173 = vunpack.c.h.b16 %v29
  %v174 = vunpack.c.l.b16 %v30
  %v175 = vunpack.c.h.b16 %v30
  %v176 = vunpack.c.l.b16 %v31
  %v177 = vunpack.c.h.b16 %v31
  %v178 = vunpack.c.l.b16 %v32
  %v179 = vunpack.c.h.b16 %v32
  %v180 = vunpack.c.l.b16 %v33
  %v181 = vunpack.c.h.b16 %v33
  %v182 = vunpack.c.l.b16 %v34
  %v183 = vunpack.c.h.b16 %v34
  %v184 = vunpack.c.l.b16 %v35
  %v185 = vunpack.c.h.b16 %v35
  %v186 = vunpack.c.l.b16 %v36
  %v187 = vunpack.c.h.b16 %v36
  %v188 = vunpack.c.l.b16 %v37
  %v189 = vunpack.c.h.b16 %v37
  %v190 = vunpack.c.l.b16 %v38
  %v191 = vunpack.c.h.b16 %v38
  %v192 = vunpack.c.l.b16 %v39
  %v193 = vunpack.c.h.b16 %v39
  %v194 = vunpack.c.l.b16 %v40
  %v195 = vunpack.c.h.b16 %v40
  %v196 = vunpack.c.l.b16 %v41
  %v197 = vunpack.c.h.b16 %v41
  %v198 = vunpack.c.l.b16 %v42
  %v199 = vunpack.c.h.b16 %v42
  %v200 = vunpack.c.l.b16 %v43
  %v201 = vunpack.c.h.b16 %v43
  %v202 = vunpack.c.l.b16 %v44
  %v203 = vunpack.c.h.b16 %v44
  %v204 = vunpack.c.l.b16 %v45
  %v205 = vunpack.c.h.b16 %v45
  %v206 = vpack.c.b16 %v146, %v142
  %v207 = vpack.c.b16 %v147, %v143
  %v208 = vpack.c.b16 %v148, %v144
  %v209 = vpack.c.b16 %v149, %v145
  %v210 = vpack.c.b16 %v154, %v150
  %v211 = vpack.c.b16 %v155, %v151
  %v212 = vpack.c.b16 %v156, %v152
  %v213 = vpack.c.b16 %v157, %v153
  %v214 = vpack.c.b16 %v162, %v158
  %v215 = vpack.c.b16 %v163, %v159
  %v216 = vpack.c.b16 %v164, %v160
  %v217 = vpack.c.b16 %v165, %v161
  %v218 = vpack.c.b16 %v170, %v166
  %v219 = vpack.c.b16 %v171, %v167
  %v220 = vpack.c.b16 %v172, %v168
  %v221 = vpack.c.b16 %v173, %v169
  %v222 = vpack.c.b16 %v178, %v174
  %v223 = vpack.c.b16 %v179, %v175
  %v224 = vpack.c.b16 %v180, %v176
  %v225 = vpack.c.b16 %v181, %v177
  %v226 = vpack.c.b16 %v186, %v182
  %v227 = vpack.c.b16 %v187, %v183
  %v228 = vpack.c.b16 %v188, %v184
  %v229 = vpack.c.b16 %v189, %v185
  %v230 = vpack.c.b16 %v194, %v190
  %v231 = vpack.c.b16 %v195, %v191
  %v232 = vpack.c.b16 %v196, %v192
  %v233 = vpack.c.b16 %v197, %v193
  %v234 = vpack.c.b16 %v202, %v198
  %v235 = vpack.c.b16 %v203, %v199
  %v236 = vpack.c.b16 %v204, %v200
  %v237 = vpack.c.b16 %v205, %v201
  %v334 = vunpack.c.l.b16 %v46
  %v335 = vunpack.c.h.b16 %v46
  %v336 = vunpack.c.l.b16 %v47
  %v337 = vunpack.c.h.b16 %v47
  %v338 = vunpack.c.l.b16 %v48
  %v339 = vunpack.c.h.b16 %v48
  %v340 = vunpack.c.l.b16 %v49
  %v341 = vunpack.c.h.b16 %v49
  %v342 = vunpack.c.l.b16 %v50
  %v343 = vunpack.c.h.b16 %v50
  %v344 = vunpack.c.l.b16 %v51
  %v345 = vunpack.c.h.b16 %v51
  %v346 = vunpack.c.l.b16 %v52
  %v347 = vunpack.c.h.b16 %v52
  %v348 = vunpack.c.l.b16 %v53
  %v349 = vunpack.c.h.b16 %v53
  %v350 = vunpack.c.l.b16 %v54
  %v351 = vunpack.c.h.b16 %v54
  %v352 = vunpack.c.l.b16 %v55
  %v353 = vunpack.c.h.b16 %v55
  %v354 = vunpack.c.l.b16 %v56
  %v355 = vunpack.c.h.b16 %v56
  %v356 = vunpack.c.l.b16 %v57
  %v357 = vunpack.c.h.b16 %v57
  %v358 = vunpack.c.l.b16 %v58
  %v359 = vunpack.c.h.b16 %v58
  %v360 = vunpack.c.l.b16 %v59
  %v361 = vunpack.c.h.b16 %v59
  %v362 = vunpack.c.l.b16 %v60
  %v363 = vunpack.c.h.b16 %v60
  %v364 = vunpack.c.l.b16 %v61
  %v365 = vunpack.c.h.b16 %v61
  %v366 = vunpack.c.l.b16 %v62
  %v367 = vunpack.c.h.b16 %v62
  %v368 = vunpack.c.l.b16 %v63
  %v369 = vunpack.c.h.b16 %v63
  %v370 = vunpack.c.l.b16 %v64
  %v371 = vunpack.c.h.b16 %v64
  %v372 = vunpack.c.l.b16 %v65
  %v373 = vunpack.c.h.b16 %v65
  %v374 = vunpack.c.l.b16 %v66
  %v375 = vunpack.c.h.b16 %v66
  %v376 = vunpack.c.l.b16 %v67
  %v377 = vunpack.c.h.b16 %v67
  %v378 = vunpack.c.l.b16 %v68
  %v379 = vunpack.c.h.b16 %v68
  %v380 = vunpack.c.l.b16 %v69
  %v381 = vunpack.c.h.b16 %v69
  %v382 = vunpack.c.l.b16 %v70
  %v383 = vunpack.c.h.b16 %v70
  %v384 = vunpack.c.l.b16 %v71
  %v385 = vunpack.c.h.b16 %v71
  %v386 = vunpack.c.l.b16 %v72
  %v387 = vunpack.c.h.b16 %v72
  %v388 = vunpack.c.l.b16 %v73
  %v389 = vunpack.c.h.b16 %v73
  %v390 = vunpack.c.l.b16 %v74
  %v391 = vunpack.c.h.b16 %v74
  %v392 = vunpack.c.l.b16 %v75
  %v393 = vunpack.c.h.b16 %v75
  %v394 = vunpack.c.l.b16 %v76
  %v395 = vunpack.c.h.b16 %v76
  %v396 = vunpack.c.l.b16 %v77
  %v397 = vunpack.c.h.b16 %v77
  %v398 = vunpack.c.l.b16 %v78
  %v399 = vunpack.c.h.b16 %v78
  %v400 = vunpack.c.l.b16 %v79
  %v401 = vunpack.c.h.b16 %v79
  %v402 = vunpack.c.l.b16 %v80
  %v403 = vunpack.c.h.b16 %v80
  %v404 = vunpack.c.l.b16 %v81
  %v405 = vunpack.c.h.b16 %v81
  %v406 = vunpack.c.l.b16 %v82
  %v407 = vunpack.c.h.b16 %v82
  %v408 = vunpack.c.l.b16 %v83
  %v409 = vunpack.c.h.b16 %v83
  %v410 = vunpack.c.l.b16 %v84
  %v411 = vunpack.c.h.b16 %v84
  %v412 = vunpack.c.l.b16 %v85
  %v413 = vunpack.c.h.b16 %v85
  %v414 = vunpack.c.l.b16 %v86
  %v415 = vunpack.c.h.b16 %v86
  %v416 = vunpack.c.l.b16 %v87
  %v417 = vunpack.c.h.b16 %v87
  %v418 = vunpack.c.l.b16 %v88
  %v419 = vunpack.c.h.b16 %v88
  %v420 = vunpack.c.l.b16 %v89
  %v421 = vunpack.c.h.b16 %v89
  %v422 = vunpack.c.l.b16 %v90
  %v423 = vunpack.c.h.b16 %v90
  %v424 = vunpack.c.l.b16 %v91
  %v425 = vunpack.c.h.b16 %v91
  %v426 = vunpack.c.l.b16 %v92
  %v427 = vunpack.c.h.b16 %v92
  %v428 = vunpack.c.l.b16 %v93
  %v429 = vunpack.c.h.b16 %v93
  %v430 = vunpack.c.l.b16 %v94
  %v431 = vunpack.c.h.b16 %v94
  %v432 = vunpack.c.l.b16 %v95
  %v433 = vunpack.c.h.b16 %v95
  %v434 = vunpack.c.l.b16 %v96
  %v435 = vunpack.c.h.b16 %v96
  %v436 = vunpack.c.l.b16 %v97
  %v437 = vunpack.c.h.b16 %v97
  %v438 = vunpack.c.l.b16 %v98
  %v439 = vunpack.c.h.b16 %v98
  %v440 = vunpack.c.l.b16 %v99
  %v441 = vunpack.c.h.b16 %v99
  %v442 = vunpack.c.l.b16 %v100
  %v443 = vunpack.c.h.b16 %v100
  %v444 = vunpack.c.l.b16 %v101
  %v445 = vunpack.c.h.b16 %v101
  %v446 = vunpack.c.l.b16 %v102
  %v447 = vunpack.c.h.b16 %v102
  %v448 = vunpack.c.l.b16 %v103
  %v449 = vunpack.c.h.b16 %v103
  %v450 = vunpack.c.l.b16 %v104
  %v451 = vunpack.c.h.b16 %v104
  %v452 = vunpack.c.l.b16 %v105
  %v453 = vunpack.c.h.b16 %v105
  %v454 = vunpack.c.l.b16 %v106
  %v455 = vunpack.c.h.b16 %v106
  %v456 = vunpack.c.l.b16 %v107
  %v457 = vunpack.c.h.b16 %v107
  %v458 = vunpack.c.l.b16 %v108
  %v459 = vunpack.c.h.b16 %v108
  %v460 = vunpack.c.l.b16 %v109
  %v461 = vunpack.c.h.b16 %v109
  %v462 = vpack.c.b16 %v336, %v334
  %v463 = vpack.c.b16 %v337, %v335
  %v464 = vpack.c.b16 %v340, %v338
  %v465 = vpack.c.b16 %v341, %v339
  %v466 = vpack.c.b16 %v344, %v342
  %v467 = vpack.c.b16 %v345, %v343
  %v468 = vpack.c.b16 %v348, %v346
  %v469 = vpack.c.b16 %v349, %v347
  %v470 = vpack.c.b16 %v352, %v350
  %v471 = vpack.c.b16 %v353, %v351
  %v472 = vpack.c.b16 %v356, %v354
  %v473 = vpack.c.b16 %v357, %v355
  %v474 = vpack.c.b16 %v360, %v358
  %v475 = vpack.c.b16 %v361, %v359
  %v476 = vpack.c.b16 %v364, %v362
  %v477 = vpack.c.b16 %v365, %v363
  %v478 = vpack.c.b16 %v368, %v366
  %v479 = vpack.c.b16 %v369, %v367
  %v480 = vpack.c.b16 %v372, %v370
  %v481 = vpack.c.b16 %v373, %v371
  %v482 = vpack.c.b16 %v376, %v374
  %v483 = vpack.c.b16 %v377, %v375
  %v484 = vpack.c.b16 %v380, %v378
  %v485 = vpack.c.b16 %v381, %v379
  %v486 = vpack.c.b16 %v384, %v382
  %v487 = vpack.c.b16 %v385, %v383
  %v488 = vpack.c.b16 %v388, %v386
  %v489 = vpack.c.b16 %v389, %v387
  %v490 = vpack.c.b16 %v392, %v390
  %v491 = vpack.c.b16 %v393, %v391
  %v492 = vpack.c.b16 %v396, %v394
  %v493 = vpack.c.b16 %v397, %v395
  %v494 = vpack.c.b16 %v400, %v398
  %v495 = vpack.c.b16 %v401, %v399
  %v496 = vpack.c.b16 %v404, %v402
  %v497 = vpack.c.b16 %v405, %v403
  %v498 = vpack.c.b16 %v408, %v406
  %v499 = vpack.c.b16 %v409, %v407
  %v500 = vpack.c.b16 %v412, %v410
  %v501 = vpack.c.b16 %v413, %v411
  %v502 = vpack.c.b16 %v416, %v414
  %v503 = vpack.c.b16 %v417, %v415
  %v504 = vpack.c.b16 %v420, %v418
  %v505 = vpack.c.b16 %v421, %v419
  %v506 = vpack.c.b16 %v424, %v422
  %v507 = vpack.c.b16 %v425, %v423
  %v508 = vpack.c.b16 %v428, %v426
  %v509 = vpack.c.b16 %v429, %v427
  %v510 = vpack.c.b16 %v432, %v430
  %v511 = vpack.c.b16 %v433, %v431
  %v512 = vpack.c.b16 %v436, %v434
  %v513 = vpack.c.b16 %v437, %v435
  %v514 = vpack.c.b16 %v440, %v438
  %v515 = vpack.c.b16 %v441, %v439
  %v516 = vpack.c.b16 %v444, %v442
  %v517 = vpack.c.b16 %v445, %v443
  %v518 = vpack.c.b16 %v448, %v446
  %v519 = vpack.c.b16 %v449, %v447
  %v520 = vpack.c.b16 %v452, %v450
  %v521 = vpack.c.b16 %v453, %v451
  %v522 = vpack.c.b16 %v456, %v454
  %v523 = vpack.c.b16 %v457, %v455
  %v524 = vpack.c.b16 %v460, %v458
  %v525 = vpack.c.b16 %v461, %v459
  %590 = vmatprep.subr.bf16.mxu0 %v477
  %591 = vmatpush1.bf16.msra.mxu0 %v476
  %592 = vmatprep.subr.bf16.mxu0 %v475
  %593 = vmatpush1.bf16.msra.mxu0 %v474
  %594 = vmatprep.subr.bf16.mxu0 %v473
  %595 = vmatpush1.bf16.msra.mxu0 %v472
  %596 = vmatprep.subr.bf16.mxu0 %v471
  %597 = vmatpush1.bf16.msra.mxu0 %v470
  %598 = vmatprep.subr.bf16.mxu0 %v469
  %599 = vmatpush1.bf16.msra.mxu0 %v468
  %600 = vmatprep.subr.bf16.mxu0 %v467
  %601 = vmatpush1.bf16.msra.mxu0 %v466
  %602 = vmatprep.subr.bf16.mxu0 %v465
  %603 = vmatpush1.bf16.msra.mxu0 %v464
  %604 = vmatprep.subr.bf16.mxu0 %v463
  %605 = vmatpush1.bf16.msra.mxu0 %v462
  %606 = vmatprep.subr.bf16.mxu0 %v493
  %607 = vmatpush2.bf16.msra.mxu0 %v492
  %608 = vmatprep.subr.bf16.mxu0 %v491
  %609 = vmatpush2.bf16.msra.mxu0 %v490
  %610 = vmatprep.subr.bf16.mxu0 %v489
  %611 = vmatpush2.bf16.msra.mxu0 %v488
  %612 = vmatprep.subr.bf16.mxu0 %v487
  %613 = vmatpush2.bf16.msra.mxu0 %v486
  %614 = vmatprep.subr.bf16.mxu0 %v485
  %615 = vmatpush2.bf16.msra.mxu0 %v484
  %616 = vmatprep.subr.bf16.mxu0 %v483
  %617 = vmatpush2.bf16.msra.mxu0 %v482
  %618 = vmatprep.subr.bf16.mxu0 %v481
  %619 = vmatpush2.bf16.msra.mxu0 %v480
  %620 = vmatprep.subr.bf16.mxu0 %v479
  %621 = vmatpush2.bf16.msra.mxu0 %v478
  %622 = vmatprep.mubr.bf16.mxu0 %v207
  %623 = vmatmul.mubr.bf16.gmra.mxu0 %v206
  %v624 = vpop.f32.mrf.mxu0
  %v625 = vadd.f32 0.0, %v624
  %v626 = vpop.f32.mrf.mxu0
  %v627 = vadd.f32 0.0, %v626
  %v628 = vpop.f32.mrf.mxu0
  %v629 = vadd.f32 0.0, %v628
  %v630 = vpop.f32.mrf.mxu0
  %v631 = vadd.f32 0.0, %v630
  %632 = vmatprep.mubr.bf16.mxu0 %v211
  %633 = vmatmul.mubr.bf16.gmra.mxu0 %v210
  %v634 = vpop.f32.mrf.mxu0
  %v635 = vadd.f32 0.0, %v634
  %v636 = vpop.f32.mrf.mxu0
  %v637 = vadd.f32 0.0, %v636
  %v638 = vpop.f32.mrf.mxu0
  %v639 = vadd.f32 0.0, %v638
  %v640 = vpop.f32.mrf.mxu0
  %v641 = vadd.f32 0.0, %v640
  %642 = vmatprep.mubr.bf16.mxu0 %v215
  %643 = vmatmul.mubr.bf16.gmra.mxu0 %v214
  %v644 = vpop.f32.mrf.mxu0
  %v645 = vadd.f32 0.0, %v644
  %v646 = vpop.f32.mrf.mxu0
  %v647 = vadd.f32 0.0, %v646
  %v648 = vpop.f32.mrf.mxu0
  %v649 = vadd.f32 0.0, %v648
  %v650 = vpop.f32.mrf.mxu0
  %v651 = vadd.f32 0.0, %v650
  %652 = vmatprep.mubr.bf16.mxu0 %v219
  %653 = vmatmul.mubr.bf16.gmra.mxu0 %v218
  %v654 = vpop.f32.mrf.mxu0
  %v655 = vadd.f32 0.0, %v654
  %v656 = vpop.f32.mrf.mxu0
  %v657 = vadd.f32 0.0, %v656
  %v658 = vpop.f32.mrf.mxu0
  %v659 = vadd.f32 0.0, %v658
  %v660 = vpop.f32.mrf.mxu0
  %v661 = vadd.f32 0.0, %v660
  %662 = vmatprep.mubr.bf16.mxu0 %v223
  %663 = vmatmul.mubr.bf16.gmra.mxu0 %v222
  %v664 = vpop.f32.mrf.mxu0
  %v665 = vadd.f32 0.0, %v664
  %v666 = vpop.f32.mrf.mxu0
  %v667 = vadd.f32 0.0, %v666
  %v668 = vpop.f32.mrf.mxu0
  %v669 = vadd.f32 0.0, %v668
  %v670 = vpop.f32.mrf.mxu0
  %v671 = vadd.f32 0.0, %v670
  %672 = vmatprep.mubr.bf16.mxu0 %v227
  %673 = vmatmul.mubr.bf16.gmra.mxu0 %v226
  %v674 = vpop.f32.mrf.mxu0
  %v675 = vadd.f32 0.0, %v674
  %v676 = vpop.f32.mrf.mxu0
  %v677 = vadd.f32 0.0, %v676
  %v678 = vpop.f32.mrf.mxu0
  %v679 = vadd.f32 0.0, %v678
  %v680 = vpop.f32.mrf.mxu0
  %v681 = vadd.f32 0.0, %v680
  %682 = vmatprep.mubr.bf16.mxu0 %v231
  %683 = vmatmul.mubr.bf16.gmra.mxu0 %v230
  %v684 = vpop.f32.mrf.mxu0
  %v685 = vadd.f32 0.0, %v684
  %v686 = vpop.f32.mrf.mxu0
  %v687 = vadd.f32 0.0, %v686
  %v688 = vpop.f32.mrf.mxu0
  %v689 = vadd.f32 0.0, %v688
  %v690 = vpop.f32.mrf.mxu0
  %v691 = vadd.f32 0.0, %v690
  %692 = vmatprep.mubr.bf16.mxu0 %v235
  %693 = vmatmul.mubr.bf16.gmra.mxu0 %v234
  %v694 = vpop.f32.mrf.mxu0
  %v695 = vadd.f32 0.0, %v694
  %v696 = vpop.f32.mrf.mxu0
  %v697 = vadd.f32 0.0, %v696
  %v698 = vpop.f32.mrf.mxu0
  %v699 = vadd.f32 0.0, %v698
  %v700 = vpop.f32.mrf.mxu0
  %v701 = vadd.f32 0.0, %v700
  %702 = vdwg.mxu0
  %703 = vmatprep.subr.bf16.mxu0 %v509
  %704 = vmatpush1.bf16.msra.mxu0 %v508
  %705 = vmatprep.subr.bf16.mxu0 %v507
  %706 = vmatpush1.bf16.msra.mxu0 %v506
  %707 = vmatprep.subr.bf16.mxu0 %v505
  %708 = vmatpush1.bf16.msra.mxu0 %v504
  %709 = vmatprep.subr.bf16.mxu0 %v503
  %710 = vmatpush1.bf16.msra.mxu0 %v502
  %711 = vmatprep.subr.bf16.mxu0 %v501
  %712 = vmatpush1.bf16.msra.mxu0 %v500
  %713 = vmatprep.subr.bf16.mxu0 %v499
  %714 = vmatpush1.bf16.msra.mxu0 %v498
  %715 = vmatprep.subr.bf16.mxu0 %v497
  %716 = vmatpush1.bf16.msra.mxu0 %v496
  %717 = vmatprep.subr.bf16.mxu0 %v495
  %718 = vmatpush1.bf16.msra.mxu0 %v494
  %719 = vmatprep.subr.bf16.mxu0 %v525
  %720 = vmatpush2.bf16.msra.mxu0 %v524
  %721 = vmatprep.subr.bf16.mxu0 %v523
  %722 = vmatpush2.bf16.msra.mxu0 %v522
  %723 = vmatprep.subr.bf16.mxu0 %v521
  %724 = vmatpush2.bf16.msra.mxu0 %v520
  %725 = vmatprep.subr.bf16.mxu0 %v519
  %726 = vmatpush2.bf16.msra.mxu0 %v518
  %727 = vmatprep.subr.bf16.mxu0 %v517
  %728 = vmatpush2.bf16.msra.mxu0 %v516
  %729 = vmatprep.subr.bf16.mxu0 %v515
  %730 = vmatpush2.bf16.msra.mxu0 %v514
  %731 = vmatprep.subr.bf16.mxu0 %v513
  %732 = vmatpush2.bf16.msra.mxu0 %v512
  %733 = vmatprep.subr.bf16.mxu0 %v511
  %734 = vmatpush2.bf16.msra.mxu0 %v510
  %735 = vmatprep.mubr.bf16.mxu0 %v209
  %736 = vmatmul.mubr.bf16.gmra.mxu0 %v208
  %v737 = vpop.f32.mrf.mxu0
  %v738 = vadd.f32 %v625, %v737
  %v739 = vpop.f32.mrf.mxu0
  %v740 = vadd.f32 %v627, %v739
  %v741 = vpop.f32.mrf.mxu0
  %v742 = vadd.f32 %v629, %v741
  %v743 = vpop.f32.mrf.mxu0
  %v744 = vadd.f32 %v631, %v743
  %745 = vmatprep.mubr.bf16.mxu0 %v213
  %746 = vmatmul.mubr.bf16.gmra.mxu0 %v212
  %v747 = vpop.f32.mrf.mxu0
  %v748 = vadd.f32 %v635, %v747
  %v749 = vpop.f32.mrf.mxu0
  %v750 = vadd.f32 %v637, %v749
  %v751 = vpop.f32.mrf.mxu0
  %v752 = vadd.f32 %v639, %v751
  %v753 = vpop.f32.mrf.mxu0
  %v754 = vadd.f32 %v641, %v753
  %755 = vmatprep.mubr.bf16.mxu0 %v217
  %756 = vmatmul.mubr.bf16.gmra.mxu0 %v216
  %v757 = vpop.f32.mrf.mxu0
  %v758 = vadd.f32 %v645, %v757
  %v759 = vpop.f32.mrf.mxu0
  %v760 = vadd.f32 %v647, %v759
  %v761 = vpop.f32.mrf.mxu0
  %v762 = vadd.f32 %v649, %v761
  %v763 = vpop.f32.mrf.mxu0
  %v764 = vadd.f32 %v651, %v763
  %765 = vmatprep.mubr.bf16.mxu0 %v221
  %766 = vmatmul.mubr.bf16.gmra.mxu0 %v220
  %v767 = vpop.f32.mrf.mxu0
  %v768 = vadd.f32 %v655, %v767
  %v769 = vpop.f32.mrf.mxu0
  %v770 = vadd.f32 %v657, %v769
  %v771 = vpop.f32.mrf.mxu0
  %v772 = vadd.f32 %v659, %v771
  %v773 = vpop.f32.mrf.mxu0
  %v774 = vadd.f32 %v661, %v773
  %775 = vmatprep.mubr.bf16.mxu0 %v225
  %776 = vmatmul.mubr.bf16.gmra.mxu0 %v224
  %v777 = vpop.f32.mrf.mxu0
  %v778 = vadd.f32 %v665, %v777
  %v779 = vpop.f32.mrf.mxu0
  %v780 = vadd.f32 %v667, %v779
  %v781 = vpop.f32.mrf.mxu0
  %v782 = vadd.f32 %v669, %v781
  %v783 = vpop.f32.mrf.mxu0
  %v784 = vadd.f32 %v671, %v783
  %785 = vmatprep.mubr.bf16.mxu0 %v229
  %786 = vmatmul.mubr.bf16.gmra.mxu0 %v228
  %v787 = vpop.f32.mrf.mxu0
  %v788 = vadd.f32 %v675, %v787
  %v789 = vpop.f32.mrf.mxu0
  %v790 = vadd.f32 %v677, %v789
  %v791 = vpop.f32.mrf.mxu0
  %v792 = vadd.f32 %v679, %v791
  %v793 = vpop.f32.mrf.mxu0
  %v794 = vadd.f32 %v681, %v793
  %795 = vmatprep.mubr.bf16.mxu0 %v233
  %796 = vmatmul.mubr.bf16.gmra.mxu0 %v232
  %v797 = vpop.f32.mrf.mxu0
  %v798 = vadd.f32 %v685, %v797
  %v799 = vpop.f32.mrf.mxu0
  %v800 = vadd.f32 %v687, %v799
  %v801 = vpop.f32.mrf.mxu0
  %v802 = vadd.f32 %v689, %v801
  %v803 = vpop.f32.mrf.mxu0
  %v804 = vadd.f32 %v691, %v803
  %805 = vmatprep.mubr.bf16.mxu0 %v237
  %806 = vmatmul.mubr.bf16.gmra.mxu0 %v236
  %v807 = vpop.f32.mrf.mxu0
  %v808 = vadd.f32 %v695, %v807
  %v809 = vpop.f32.mrf.mxu0
  %v810 = vadd.f32 %v697, %v809
  %v811 = vpop.f32.mrf.mxu0
  %v812 = vadd.f32 %v699, %v811
  %v813 = vpop.f32.mrf.mxu0
  %v814 = vadd.f32 %v701, %v813
  %815 = vdwg.mxu0
  %v816 = vld [vmem:[%s2] ss:$4 sm:$0x3]
  %v818 = vlaneseq
  %v819 = vshrl.u32 %v818, 7
  %v820 = vsub.s32 0, %v819
  %v821 = vrot.slane %v816, %v820
  %v822 = vlaneseq
  %v823 = vshrl.u32 %v822, 7
  %v824 = vsub.s32 1, %v823
  %v825 = vrot.slane %v816, %v824
  %v828 = vmul.f32 %v738, %v821
  %v829 = vmul.f32 %v740, %v825
  %v830 = vmul.f32 %v742, %v821
  %v831 = vmul.f32 %v744, %v825
  %v832 = vmul.f32 %v748, %v821
  %v833 = vmul.f32 %v750, %v825
  %v834 = vmul.f32 %v752, %v821
  %v835 = vmul.f32 %v754, %v825
  %v836 = vmul.f32 %v758, %v821
  %v837 = vmul.f32 %v760, %v825
  %v838 = vmul.f32 %v762, %v821
  %v839 = vmul.f32 %v764, %v825
  %v840 = vmul.f32 %v768, %v821
  %v841 = vmul.f32 %v770, %v825
  %v842 = vmul.f32 %v772, %v821
  %v843 = vmul.f32 %v774, %v825
  %v844 = vmul.f32 %v778, %v821
  %v845 = vmul.f32 %v780, %v825
  %v846 = vmul.f32 %v782, %v821
  %v847 = vmul.f32 %v784, %v825
  %v848 = vmul.f32 %v788, %v821
  %v849 = vmul.f32 %v790, %v825
  %v850 = vmul.f32 %v792, %v821
  %v851 = vmul.f32 %v794, %v825
  %v852 = vmul.f32 %v798, %v821
  %v853 = vmul.f32 %v800, %v825
  %v854 = vmul.f32 %v802, %v821
  %v855 = vmul.f32 %v804, %v825
  %v856 = vmul.f32 %v808, %v821
  %v857 = vmul.f32 %v810, %v825
  %v858 = vmul.f32 %v812, %v821
  %v859 = vmul.f32 %v814, %v825
  %s860 = scalar_lea.vmem %s2, 1
  %v861 = vld [vmem:[%s860] ss:$4 sm:$0x3]
  %v863 = vlaneseq
  %v864 = vshrl.u32 %v863, 7
  %v865 = vsub.s32 0, %v864
  %v866 = vrot.slane %v861, %v865
  %v867 = vlaneseq
  %v868 = vshrl.u32 %v867, 7
  %v869 = vsub.s32 1, %v868
  %v870 = vrot.slane %v861, %v869
  %v873 = vadd.f32 %v828, %v866
  %v874 = vadd.f32 %v829, %v870
  %v875 = vadd.f32 %v830, %v866
  %v876 = vadd.f32 %v831, %v870
  %v877 = vadd.f32 %v832, %v866
  %v878 = vadd.f32 %v833, %v870
  %v879 = vadd.f32 %v834, %v866
  %v880 = vadd.f32 %v835, %v870
  %v881 = vadd.f32 %v836, %v866
  %v882 = vadd.f32 %v837, %v870
  %v883 = vadd.f32 %v838, %v866
  %v884 = vadd.f32 %v839, %v870
  %v885 = vadd.f32 %v840, %v866
  %v886 = vadd.f32 %v841, %v870
  %v887 = vadd.f32 %v842, %v866
  %v888 = vadd.f32 %v843, %v870
  %v889 = vadd.f32 %v844, %v866
  %v890 = vadd.f32 %v845, %v870
  %v891 = vadd.f32 %v846, %v866
  %v892 = vadd.f32 %v847, %v870
  %v893 = vadd.f32 %v848, %v866
  %v894 = vadd.f32 %v849, %v870
  %v895 = vadd.f32 %v850, %v866
  %v896 = vadd.f32 %v851, %v870
  %v897 = vadd.f32 %v852, %v866
  %v898 = vadd.f32 %v853, %v870
  %v899 = vadd.f32 %v854, %v866
  %v900 = vadd.f32 %v855, %v870
  %v901 = vadd.f32 %v856, %v866
  %v902 = vadd.f32 %v857, %v870
  %v903 = vadd.f32 %v858, %v866
  %v904 = vadd.f32 %v859, %v870
  %v905 = vmax.f32 %v873, 0.0
  %v906 = vmax.f32 %v874, 0.0
  %v907 = vmax.f32 %v875, 0.0
  %v908 = vmax.f32 %v876, 0.0
  %v909 = vmax.f32 %v877, 0.0
  %v910 = vmax.f32 %v878, 0.0
  %v911 = vmax.f32 %v879, 0.0
  %v912 = vmax.f32 %v880, 0.0
  %v913 = vmax.f32 %v881, 0.0
  %v914 = vmax.f32 %v882, 0.0
  %v915 = vmax.f32 %v883, 0.0
  %v916 = vmax.f32 %v884, 0.0
  %v917 = vmax.f32 %v885, 0.0
  %v918 = vmax.f32 %v886, 0.0
  %v919 = vmax.f32 %v887, 0.0
  %v920 = vmax.f32 %v888, 0.0
  %v921 = vmax.f32 %v889, 0.0
  %v922 = vmax.f32 %v890, 0.0
  %v923 = vmax.f32 %v891, 0.0
  %v924 = vmax.f32 %v892, 0.0
  %v925 = vmax.f32 %v893, 0.0
  %v926 = vmax.f32 %v894, 0.0
  %v927 = vmax.f32 %v895, 0.0
  %v928 = vmax.f32 %v896, 0.0
  %v929 = vmax.f32 %v897, 0.0
  %v930 = vmax.f32 %v898, 0.0
  %v931 = vmax.f32 %v899, 0.0
  %v932 = vmax.f32 %v900, 0.0
  %v933 = vmax.f32 %v901, 0.0
  %v934 = vmax.f32 %v902, 0.0
  %v935 = vmax.f32 %v903, 0.0
  %v936 = vmax.f32 %v904, 0.0
  %v937 = vpack.c.bf16 %v907, %v905
  %v938 = vpack.c.bf16 %v908, %v906
  %v939 = vpack.c.bf16 %v911, %v909
  %v940 = vpack.c.bf16 %v912, %v910
  %v941 = vpack.c.bf16 %v915, %v913
  %v942 = vpack.c.bf16 %v916, %v914
  %v943 = vpack.c.bf16 %v919, %v917
  %v944 = vpack.c.bf16 %v920, %v918
  %v945 = vpack.c.bf16 %v923, %v921
  %v946 = vpack.c.bf16 %v924, %v922
  %v947 = vpack.c.bf16 %v927, %v925
  %v948 = vpack.c.bf16 %v928, %v926
  %v949 = vpack.c.bf16 %v931, %v929
  %v950 = vpack.c.bf16 %v932, %v930
  %v951 = vpack.c.bf16 %v935, %v933
  %v952 = vpack.c.bf16 %v936, %v934
  %v969 = vunpack.c.l.b16 %v937
  %v970 = vunpack.c.l.b16 %v938
  %v971 = vunpack.c.h.b16 %v937
  %v972 = vunpack.c.h.b16 %v938
  %v973 = vunpack.c.l.b16 %v939
  %v974 = vunpack.c.l.b16 %v940
  %v975 = vunpack.c.h.b16 %v939
  %v976 = vunpack.c.h.b16 %v940
  %v977 = vunpack.c.l.b16 %v941
  %v978 = vunpack.c.l.b16 %v942
  %v979 = vunpack.c.h.b16 %v941
  %v980 = vunpack.c.h.b16 %v942
  %v981 = vunpack.c.l.b16 %v943
  %v982 = vunpack.c.l.b16 %v944
  %v983 = vunpack.c.h.b16 %v943
  %v984 = vunpack.c.h.b16 %v944
  %v985 = vunpack.c.l.b16 %v945
  %v986 = vunpack.c.l.b16 %v946
  %v987 = vunpack.c.h.b16 %v945
  %v988 = vunpack.c.h.b16 %v946
  %v989 = vunpack.c.l.b16 %v947
  %v990 = vunpack.c.l.b16 %v948
  %v991 = vunpack.c.h.b16 %v947
  %v992 = vunpack.c.h.b16 %v948
  %v993 = vunpack.c.l.b16 %v949
  %v994 = vunpack.c.l.b16 %v950
  %v995 = vunpack.c.h.b16 %v949
  %v996 = vunpack.c.h.b16 %v950
  %v997 = vunpack.c.l.b16 %v951
  %v998 = vunpack.c.l.b16 %v952
  %v999 = vunpack.c.h.b16 %v951
  %v1000 = vunpack.c.h.b16 %v952
  %v1001 = vpack.c.b16 %v970, %v969
  %v1002 = vpack.c.b16 %v972, %v971
  %v1003 = vpack.c.b16 %v974, %v973
  %v1004 = vpack.c.b16 %v976, %v975
  %v1005 = vpack.c.b16 %v978, %v977
  %v1006 = vpack.c.b16 %v980, %v979
  %v1007 = vpack.c.b16 %v982, %v981
  %v1008 = vpack.c.b16 %v984, %v983
  %v1009 = vpack.c.b16 %v986, %v985
  %v1010 = vpack.c.b16 %v988, %v987
  %v1011 = vpack.c.b16 %v990, %v989
  %v1012 = vpack.c.b16 %v992, %v991
  %v1013 = vpack.c.b16 %v994, %v993
  %v1014 = vpack.c.b16 %v996, %v995
  %v1015 = vpack.c.b16 %v998, %v997
  %v1016 = vpack.c.b16 %v1000, %v999
  %1033 = vst [vmem:[%s3] sm:$0xff] %v1001
  %1034 = vst [vmem:[%s3 + $0x8] sm:$0xff] %v1002
  %1035 = vst [vmem:[%s3 + $0x10] sm:$0xff] %v1003
  %1036 = vst [vmem:[%s3 + $0x18] sm:$0xff] %v1004
  %1037 = vst [vmem:[%s3 + $0x20] sm:$0xff] %v1005
  %1038 = vst [vmem:[%s3 + $0x28] sm:$0xff] %v1006
  %1039 = vst [vmem:[%s3 + $0x30] sm:$0xff] %v1007
  %1040 = vst [vmem:[%s3 + $0x38] sm:$0xff] %v1008
  %1041 = vst [vmem:[%s3 + $0x40] sm:$0xff] %v1009
  %1042 = vst [vmem:[%s3 + $0x48] sm:$0xff] %v1010
  %1043 = vst [vmem:[%s3 + $0x50] sm:$0xff] %v1011
  %1044 = vst [vmem:[%s3 + $0x58] sm:$0xff] %v1012
  %1045 = vst [vmem:[%s3 + $0x60] sm:$0xff] %v1013
  %1046 = vst [vmem:[%s3 + $0x68] sm:$0xff] %v1014
  %1047 = vst [vmem:[%s3 + $0x70] sm:$0xff] %v1015
  %1048 = vst [vmem:[%s3 + $0x78] sm:$0xff] %v1016
  // Predicated region
  $region14: #{autoencoder_forward.13} parent=0 // pred_check
    _
  $region15: #{autoencoder_forward.13} parent=0 // pred_check_branch
    %1050 = sbr.rel (0) target = $region17
  $region16: #{autoencoder_forward.13} parent=0 // pred_region
    _
  $region17: #{autoencoder_forward.13} parent=0 // pred_fallthru
    _
  // Predicated region
  $region18: #{autoencoder_forward.13} parent=0 // pred_check
    _
  $region19: #{autoencoder_forward.13} parent=0 // pred_check_branch
    %1052 = sbr.rel (0) target = $region21
  $region20: #{autoencoder_forward.13} parent=0 // pred_region
    _
  $region21: #{autoencoder_forward.13} parent=0 // pred_fallthru
    _

// kernel: autoencoder_forward.14
$region0: #{autoencoder_forward.14}
  #allocation0 [shape = 'u32[]', space=smem, size = 0x4, offset = 0x4, fixed_abs, tag = 'smem constant byte address 0x4 - core index']
  #allocation1 [shape = 'u32[144,128]{1,0:T(1,128)}', space=vmem, size = 0x12000, scoped, tag = 'internal scratch']
  %s0 = inlined_call_operand.vmem [shape: bf16[392,256], index: 0, kind: input, shape index: {}]
  %s1 = inlined_call_operand.vmem [shape: bf16[256,128], index: 1, kind: input, shape index: {}]
  %s2 = inlined_call_operand.vmem [shape: f32[3,128], index: 2, kind: input, shape index: {}]
  %s3 = inlined_call_operand.vmem [shape: bf16[392,128], index: 3, kind: output, shape index: {}]
  %s4 = sld [smem:[#allocation0]]
  $region22: #{autoencoder_forward.14} parent=0
    _
  %s6 = ssub.s32 1, %s4
  %s7 = scalar_select 0, %s6, %s4
  // Predicated region
  $region2: #{autoencoder_forward.14} parent=0 // pred_check
    _
  $region3: #{autoencoder_forward.14} parent=0 // pred_check_branch
    %9 = sbr.rel (0) target = $region5
  $region4: #{autoencoder_forward.14} parent=0 // pred_region
    _
  $region5: #{autoencoder_forward.14} parent=0 // pred_fallthru
    _
  // Predicated region
  $region6: #{autoencoder_forward.14} parent=0 // pred_check
    _
  $region7: #{autoencoder_forward.14} parent=0 // pred_check_branch
    %11 = sbr.rel (0) target = $region9
  $region8: #{autoencoder_forward.14} parent=0 // pred_region
    _
  $region9: #{autoencoder_forward.14} parent=0 // pred_fallthru
    _
  // Predicated region
  $region10: #{autoencoder_forward.14} parent=0 // pred_check
    _
  $region11: #{autoencoder_forward.14} parent=0 // pred_check_branch
    %13 = sbr.rel (0) target = $region13
  $region12: #{autoencoder_forward.14} parent=0 // pred_region
    _
  $region13: #{autoencoder_forward.14} parent=0 // pred_fallthru
    _
  %v15 = vld [vmem:[%s0] sm:$0xff]
  %v16 = vld [vmem:[%s0 + $0x8] sm:$0xff]
  %v17 = vld [vmem:[%s0 + $0x10] sm:$0xff]
  %v18 = vld [vmem:[%s0 + $0x18] sm:$0xff]
  %v19 = vld [vmem:[%s0 + $0x20] sm:$0xff]
  %v20 = vld [vmem:[%s0 + $0x28] sm:$0xff]
  %v21 = vld [vmem:[%s0 + $0x30] sm:$0xff]
  %v22 = vld [vmem:[%s0 + $0x38] sm:$0xff]
  %v23 = vld [vmem:[%s0 + $0x40] sm:$0xff]
  %v24 = vld [vmem:[%s0 + $0x48] sm:$0xff]
  %v25 = vld [vmem:[%s0 + $0x50] sm:$0xff]
  %v26 = vld [vmem:[%s0 + $0x58] sm:$0xff]
  %v27 = vld [vmem:[%s0 + $0x60] sm:$0xff]
  %v28 = vld [vmem:[%s0 + $0x68] sm:$0xff]
  %v29 = vld [vmem:[%s0 + $0x70] sm:$0xff]
  %v30 = vld [vmem:[%s0 + $0x78] sm:$0xff]
  %v31 = vld [vmem:[%s0 + $0x80] sm:$0xff]
  %v32 = vld [vmem:[%s0 + $0x88] sm:$0xff]
  %v33 = vld [vmem:[%s0 + $0x90] sm:$0xff]
  %v34 = vld [vmem:[%s0 + $0x98] sm:$0xff]
  %v35 = vld [vmem:[%s0 + $0xa0] sm:$0xff]
  %v36 = vld [vmem:[%s0 + $0xa8] sm:$0xff]
  %v37 = vld [vmem:[%s0 + $0xb0] sm:$0xff]
  %v38 = vld [vmem:[%s0 + $0xb8] sm:$0xff]
  %v39 = vld [vmem:[%s0 + $0xc0] sm:$0xff]
  %v40 = vld [vmem:[%s0 + $0xc8] sm:$0xff]
  %v41 = vld [vmem:[%s0 + $0xd0] sm:$0xff]
  %v42 = vld [vmem:[%s0 + $0xd8] sm:$0xff]
  %v43 = vld [vmem:[%s0 + $0xe0] sm:$0xff]
  %v44 = vld [vmem:[%s0 + $0xe8] sm:$0xff]
  %v45 = vld [vmem:[%s0 + $0xf0] sm:$0xff]
  %v46 = vld [vmem:[%s0 + $0xf8] sm:$0xff]
  %v47 = vld [vmem:[%s0 + $0x100] sm:$0xff]
  %v48 = vld [vmem:[%s0 + $0x108] sm:$0xff]
  %v49 = vld [vmem:[%s0 + $0x110] sm:$0xff]
  %v50 = vld [vmem:[%s0 + $0x118] sm:$0xff]
  %v51 = vld [vmem:[%s0 + $0x120] sm:$0xff]
  %v52 = vld [vmem:[%s0 + $0x128] sm:$0xff]
  %v53 = vld [vmem:[%s0 + $0x130] sm:$0xff]
  %v54 = vld [vmem:[%s0 + $0x138] sm:$0xff]
  %v55 = vld [vmem:[%s0 + $0x140] sm:$0xff]
  %v56 = vld [vmem:[%s0 + $0x148] sm:$0xff]
  %v57 = vld [vmem:[%s0 + $0x150] sm:$0xff]
  %v58 = vld [vmem:[%s0 + $0x158] sm:$0xff]
  %v59 = vld [vmem:[%s0 + $0x160] sm:$0xff]
  %v60 = vld [vmem:[%s0 + $0x168] sm:$0xff]
  %v61 = vld [vmem:[%s0 + $0x170] sm:$0xff]
  %v62 = vld [vmem:[%s0 + $0x178] sm:$0xff]
  %v63 = vld [vmem:[%s0 + $0x180] sm:$0xff]
  %v64 = vld [vmem:[%s1] sm:$0xf]
  %v65 = vld [vmem:[%s1 + $0x4] sm:$0xf]
  %v66 = vld [vmem:[%s1 + $0x8] sm:$0xf]
  %v67 = vld [vmem:[%s1 + $0xc] sm:$0xf]
  %v68 = vld [vmem:[%s1 + $0x10] sm:$0xf]
  %v69 = vld [vmem:[%s1 + $0x14] sm:$0xf]
  %v70 = vld [vmem:[%s1 + $0x18] sm:$0xf]
  %v71 = vld [vmem:[%s1 + $0x1c] sm:$0xf]
  %v72 = vld [vmem:[%s1 + $0x20] sm:$0xf]
  %v73 = vld [vmem:[%s1 + $0x24] sm:$0xf]
  %v74 = vld [vmem:[%s1 + $0x28] sm:$0xf]
  %v75 = vld [vmem:[%s1 + $0x2c] sm:$0xf]
  %v76 = vld [vmem:[%s1 + $0x30] sm:$0xf]
  %v77 = vld [vmem:[%s1 + $0x34] sm:$0xf]
  %v78 = vld [vmem:[%s1 + $0x38] sm:$0xf]
  %v79 = vld [vmem:[%s1 + $0x3c] sm:$0xf]
  %v80 = vld [vmem:[%s1 + $0x40] sm:$0xf]
  %v81 = vld [vmem:[%s1 + $0x44] sm:$0xf]
  %v82 = vld [vmem:[%s1 + $0x48] sm:$0xf]
  %v83 = vld [vmem:[%s1 + $0x4c] sm:$0xf]
  %v84 = vld [vmem:[%s1 + $0x50] sm:$0xf]
  %v85 = vld [vmem:[%s1 + $0x54] sm:$0xf]
  %v86 = vld [vmem:[%s1 + $0x58] sm:$0xf]
  %v87 = vld [vmem:[%s1 + $0x5c] sm:$0xf]
  %v88 = vld [vmem:[%s1 + $0x60] sm:$0xf]
  %v89 = vld [vmem:[%s1 + $0x64] sm:$0xf]
  %v90 = vld [vmem:[%s1 + $0x68] sm:$0xf]
  %v91 = vld [vmem:[%s1 + $0x6c] sm:$0xf]
  %v92 = vld [vmem:[%s1 + $0x70] sm:$0xf]
  %v93 = vld [vmem:[%s1 + $0x74] sm:$0xf]
  %v94 = vld [vmem:[%s1 + $0x78] sm:$0xf]
  %v95 = vld [vmem:[%s1 + $0x7c] sm:$0xf]
  %v145 = vunpack.c.l.b16 %v15
  %v146 = vunpack.c.h.b16 %v15
  %v147 = vunpack.c.l.b16 %v16
  %v148 = vunpack.c.h.b16 %v16
  %v149 = vunpack.c.l.b16 %v17
  %v150 = vunpack.c.h.b16 %v17
  %v151 = vunpack.c.l.b16 %v18
  %v152 = vunpack.c.h.b16 %v18
  %v153 = vunpack.c.l.b16 %v19
  %v154 = vunpack.c.h.b16 %v19
  %v155 = vunpack.c.l.b16 %v20
  %v156 = vunpack.c.h.b16 %v20
  %v157 = vunpack.c.l.b16 %v21
  %v158 = vunpack.c.h.b16 %v21
  %v159 = vunpack.c.l.b16 %v22
  %v160 = vunpack.c.h.b16 %v22
  %v161 = vunpack.c.l.b16 %v23
  %v162 = vunpack.c.h.b16 %v23
  %v163 = vunpack.c.l.b16 %v24
  %v164 = vunpack.c.h.b16 %v24
  %v165 = vunpack.c.l.b16 %v25
  %v166 = vunpack.c.h.b16 %v25
  %v167 = vunpack.c.l.b16 %v26
  %v168 = vunpack.c.h.b16 %v26
  %v169 = vunpack.c.l.b16 %v27
  %v170 = vunpack.c.h.b16 %v27
  %v171 = vunpack.c.l.b16 %v28
  %v172 = vunpack.c.h.b16 %v28
  %v173 = vunpack.c.l.b16 %v29
  %v174 = vunpack.c.h.b16 %v29
  %v175 = vunpack.c.l.b16 %v30
  %v176 = vunpack.c.h.b16 %v30
  %v177 = vunpack.c.l.b16 %v31
  %v178 = vunpack.c.h.b16 %v31
  %v179 = vunpack.c.l.b16 %v32
  %v180 = vunpack.c.h.b16 %v32
  %v181 = vunpack.c.l.b16 %v33
  %v182 = vunpack.c.h.b16 %v33
  %v183 = vunpack.c.l.b16 %v34
  %v184 = vunpack.c.h.b16 %v34
  %v185 = vunpack.c.l.b16 %v35
  %v186 = vunpack.c.h.b16 %v35
  %v187 = vunpack.c.l.b16 %v36
  %v188 = vunpack.c.h.b16 %v36
  %v189 = vunpack.c.l.b16 %v37
  %v190 = vunpack.c.h.b16 %v37
  %v191 = vunpack.c.l.b16 %v38
  %v192 = vunpack.c.h.b16 %v38
  %v193 = vunpack.c.l.b16 %v39
  %v194 = vunpack.c.h.b16 %v39
  %v195 = vunpack.c.l.b16 %v40
  %v196 = vunpack.c.h.b16 %v40
  %v197 = vunpack.c.l.b16 %v41
  %v198 = vunpack.c.h.b16 %v41
  %v199 = vunpack.c.l.b16 %v42
  %v200 = vunpack.c.h.b16 %v42
  %v201 = vunpack.c.l.b16 %v43
  %v202 = vunpack.c.h.b16 %v43
  %v203 = vunpack.c.l.b16 %v44
  %v204 = vunpack.c.h.b16 %v44
  %v205 = vunpack.c.l.b16 %v45
  %v206 = vunpack.c.h.b16 %v45
  %v207 = vunpack.c.l.b16 %v46
  %v208 = vunpack.c.h.b16 %v46
  %v209 = vunpack.c.l.b16 %v47
  %v210 = vunpack.c.h.b16 %v47
  %v211 = vunpack.c.l.b16 %v48
  %v212 = vunpack.c.h.b16 %v48
  %v213 = vunpack.c.l.b16 %v49
  %v214 = vunpack.c.h.b16 %v49
  %v215 = vunpack.c.l.b16 %v50
  %v216 = vunpack.c.h.b16 %v50
  %v217 = vunpack.c.l.b16 %v51
  %v218 = vunpack.c.h.b16 %v51
  %v219 = vunpack.c.l.b16 %v52
  %v220 = vunpack.c.h.b16 %v52
  %v221 = vunpack.c.l.b16 %v53
  %v222 = vunpack.c.h.b16 %v53
  %v223 = vunpack.c.l.b16 %v54
  %v224 = vunpack.c.h.b16 %v54
  %v225 = vunpack.c.l.b16 %v55
  %v226 = vunpack.c.h.b16 %v55
  %v227 = vunpack.c.l.b16 %v56
  %v228 = vunpack.c.h.b16 %v56
  %v229 = vunpack.c.l.b16 %v57
  %v230 = vunpack.c.h.b16 %v57
  %v231 = vunpack.c.l.b16 %v58
  %v232 = vunpack.c.h.b16 %v58
  %v233 = vunpack.c.l.b16 %v59
  %v234 = vunpack.c.h.b16 %v59
  %v235 = vunpack.c.l.b16 %v60
  %v236 = vunpack.c.h.b16 %v60
  %v237 = vunpack.c.l.b16 %v61
  %v238 = vunpack.c.h.b16 %v61
  %v239 = vunpack.c.l.b16 %v62
  %v240 = vunpack.c.h.b16 %v62
  %v241 = vunpack.c.l.b16 %v63
  %v242 = vunpack.c.h.b16 %v63
  %v243 = vpack.c.b16 %v147, %v145
  %v244 = vpack.c.b16 %v148, %v146
  %v245 = vpack.c.b16 %v151, %v149
  %v246 = vpack.c.b16 %v152, %v150
  %v247 = vpack.c.b16 %v155, %v153
  %v248 = vpack.c.b16 %v156, %v154
  %v249 = vpack.c.b16 %v159, %v157
  %v250 = vpack.c.b16 %v160, %v158
  %v251 = vpack.c.b16 %v163, %v161
  %v252 = vpack.c.b16 %v164, %v162
  %v253 = vpack.c.b16 %v167, %v165
  %v254 = vpack.c.b16 %v168, %v166
  %v255 = vpack.c.b16 %v171, %v169
  %v256 = vpack.c.b16 %v172, %v170
  %v257 = vpack.c.b16 %v175, %v173
  %v258 = vpack.c.b16 %v176, %v174
  %v259 = vpack.c.b16 %v179, %v177
  %v260 = vpack.c.b16 %v180, %v178
  %v261 = vpack.c.b16 %v183, %v181
  %v262 = vpack.c.b16 %v184, %v182
  %v263 = vpack.c.b16 %v187, %v185
  %v264 = vpack.c.b16 %v188, %v186
  %v265 = vpack.c.b16 %v191, %v189
  %v266 = vpack.c.b16 %v192, %v190
  %v267 = vpack.c.b16 %v195, %v193
  %v268 = vpack.c.b16 %v196, %v194
  %v269 = vpack.c.b16 %v199, %v197
  %v270 = vpack.c.b16 %v200, %v198
  %v271 = vpack.c.b16 %v203, %v201
  %v272 = vpack.c.b16 %v204, %v202
  %v273 = vpack.c.b16 %v207, %v205
  %v274 = vpack.c.b16 %v208, %v206
  %v275 = vpack.c.b16 %v211, %v209
  %v276 = vpack.c.b16 %v212, %v210
  %v277 = vpack.c.b16 %v215, %v213
  %v278 = vpack.c.b16 %v216, %v214
  %v279 = vpack.c.b16 %v219, %v217
  %v280 = vpack.c.b16 %v220, %v218
  %v281 = vpack.c.b16 %v223, %v221
  %v282 = vpack.c.b16 %v224, %v222
  %v283 = vpack.c.b16 %v227, %v225
  %v284 = vpack.c.b16 %v228, %v226
  %v285 = vpack.c.b16 %v231, %v229
  %v286 = vpack.c.b16 %v232, %v230
  %v287 = vpack.c.b16 %v235, %v233
  %v288 = vpack.c.b16 %v236, %v234
  %v289 = vpack.c.b16 %v239, %v237
  %v290 = vpack.c.b16 %v240, %v238
  %v291 = vpack.c.b16 %v241, %v241
  %v292 = vpack.c.b16 %v242, %v242
  %v375 = vunpack.c.l.b16 %v64
  %v376 = vunpack.c.l.b16 %v65
  %v377 = vunpack.c.l.b16 %v66
  %v378 = vunpack.c.l.b16 %v67
  %v379 = vunpack.c.l.b16 %v68
  %v380 = vunpack.c.l.b16 %v69
  %v381 = vunpack.c.l.b16 %v70
  %v382 = vunpack.c.l.b16 %v71
  %v383 = vunpack.c.l.b16 %v72
  %v384 = vunpack.c.l.b16 %v73
  %v385 = vunpack.c.l.b16 %v74
  %v386 = vunpack.c.l.b16 %v75
  %v387 = vunpack.c.l.b16 %v76
  %v388 = vunpack.c.l.b16 %v77
  %v389 = vunpack.c.l.b16 %v78
  %v390 = vunpack.c.l.b16 %v79
  %v391 = vunpack.c.l.b16 %v80
  %v392 = vunpack.c.l.b16 %v81
  %v393 = vunpack.c.l.b16 %v82
  %v394 = vunpack.c.l.b16 %v83
  %v395 = vunpack.c.l.b16 %v84
  %v396 = vunpack.c.l.b16 %v85
  %v397 = vunpack.c.l.b16 %v86
  %v398 = vunpack.c.l.b16 %v87
  %v399 = vunpack.c.l.b16 %v88
  %v400 = vunpack.c.l.b16 %v89
  %v401 = vunpack.c.l.b16 %v90
  %v402 = vunpack.c.l.b16 %v91
  %v403 = vunpack.c.l.b16 %v92
  %v404 = vunpack.c.l.b16 %v93
  %v405 = vunpack.c.l.b16 %v94
  %v406 = vunpack.c.l.b16 %v95
  %v407 = vpack.c.b16 %v376, %v375
  %v408 = vpack.c.b16 %v378, %v377
  %v409 = vpack.c.b16 %v380, %v379
  %v410 = vpack.c.b16 %v382, %v381
  %v411 = vpack.c.b16 %v384, %v383
  %v412 = vpack.c.b16 %v386, %v385
  %v413 = vpack.c.b16 %v388, %v387
  %v414 = vpack.c.b16 %v390, %v389
  %v415 = vpack.c.b16 %v392, %v391
  %v416 = vpack.c.b16 %v394, %v393
  %v417 = vpack.c.b16 %v396, %v395
  %v418 = vpack.c.b16 %v398, %v397
  %v419 = vpack.c.b16 %v400, %v399
  %v420 = vpack.c.b16 %v402, %v401
  %v421 = vpack.c.b16 %v404, %v403
  %v422 = vpack.c.b16 %v406, %v405
  %439 = vmatprep.subr.bf16.mxu0 0
  %440 = vmatpush1.bf16.msra.mxu0 %v414
  %441 = vmatprep.subr.bf16.mxu0 0
  %442 = vmatpush1.bf16.msra.mxu0 %v413
  %443 = vmatprep.subr.bf16.mxu0 0
  %444 = vmatpush1.bf16.msra.mxu0 %v412
  %445 = vmatprep.subr.bf16.mxu0 0
  %446 = vmatpush1.bf16.msra.mxu0 %v411
  %447 = vmatprep.subr.bf16.mxu0 0
  %448 = vmatpush1.bf16.msra.mxu0 %v410
  %449 = vmatprep.subr.bf16.mxu0 0
  %450 = vmatpush1.bf16.msra.mxu0 %v409
  %451 = vmatprep.subr.bf16.mxu0 0
  %452 = vmatpush1.bf16.msra.mxu0 %v408
  %453 = vmatprep.subr.bf16.mxu0 0
  %454 = vmatpush1.bf16.msra.mxu0 %v407
  %455 = vmatprep.subr.bf16.mxu0 0
  %456 = vmatpush2.bf16.msra.mxu0 %v422
  %457 = vmatprep.subr.bf16.mxu0 0
  %458 = vmatpush2.bf16.msra.mxu0 %v421
  %459 = vmatprep.subr.bf16.mxu0 0
  %460 = vmatpush2.bf16.msra.mxu0 %v420
  %461 = vmatprep.subr.bf16.mxu0 0
  %462 = vmatpush2.bf16.msra.mxu0 %v419
  %463 = vmatprep.subr.bf16.mxu0 0
  %464 = vmatpush2.bf16.msra.mxu0 %v418
  %465 = vmatprep.subr.bf16.mxu0 0
  %466 = vmatpush2.bf16.msra.mxu0 %v417
  %467 = vmatprep.subr.bf16.mxu0 0
  %468 = vmatpush2.bf16.msra.mxu0 %v416
  %469 = vmatprep.subr.bf16.mxu0 0
  %470 = vmatpush2.bf16.msra.mxu0 %v415
  %471 = vmatprep.mubr.bf16.mxu0 %v244
  %472 = vmatmul.mubr.bf16.gmra.mxu0 %v243
  %v473 = vpop.f32.mrf.mxu0
  %v474 = vadd.f32 0.0, %v473
  %v475 = vpop.f32.mrf.mxu0
  %v476 = vpop.f32.mrf.mxu0
  %v477 = vadd.f32 0.0, %v476
  %v478 = vpop.f32.mrf.mxu0
  %479 = vmatprep.mubr.bf16.mxu0 %v246
  %480 = vmatmul.mubr.bf16.gmra.mxu0 %v245
  %v481 = vpop.f32.mrf.mxu0
  %v482 = vadd.f32 0.0, %v481
  %v483 = vpop.f32.mrf.mxu0
  %v484 = vpop.f32.mrf.mxu0
  %v485 = vadd.f32 0.0, %v484
  %v486 = vpop.f32.mrf.mxu0
  %487 = vmatprep.mubr.bf16.mxu0 %v248
  %488 = vmatmul.mubr.bf16.gmra.mxu0 %v247
  %v489 = vpop.f32.mrf.mxu0
  %v490 = vadd.f32 0.0, %v489
  %v491 = vpop.f32.mrf.mxu0
  %v492 = vpop.f32.mrf.mxu0
  %v493 = vadd.f32 0.0, %v492
  %v494 = vpop.f32.mrf.mxu0
  %495 = vmatprep.mubr.bf16.mxu0 %v250
  %496 = vmatmul.mubr.bf16.gmra.mxu0 %v249
  %v497 = vpop.f32.mrf.mxu0
  %v498 = vadd.f32 0.0, %v497
  %v499 = vpop.f32.mrf.mxu0
  %v500 = vpop.f32.mrf.mxu0
  %v501 = vadd.f32 0.0, %v500
  %v502 = vpop.f32.mrf.mxu0
  %503 = vmatprep.mubr.bf16.mxu0 %v252
  %504 = vmatmul.mubr.bf16.gmra.mxu0 %v251
  %v505 = vpop.f32.mrf.mxu0
  %v506 = vadd.f32 0.0, %v505
  %v507 = vpop.f32.mrf.mxu0
  %v508 = vpop.f32.mrf.mxu0
  %v509 = vadd.f32 0.0, %v508
  %v510 = vpop.f32.mrf.mxu0
  %511 = vmatprep.mubr.bf16.mxu0 %v254
  %512 = vmatmul.mubr.bf16.gmra.mxu0 %v253
  %v513 = vpop.f32.mrf.mxu0
  %v514 = vadd.f32 0.0, %v513
  %v515 = vpop.f32.mrf.mxu0
  %v516 = vpop.f32.mrf.mxu0
  %v517 = vadd.f32 0.0, %v516
  %v518 = vpop.f32.mrf.mxu0
  %519 = vmatprep.mubr.bf16.mxu0 %v256
  %520 = vmatmul.mubr.bf16.gmra.mxu0 %v255
  %v521 = vpop.f32.mrf.mxu0
  %v522 = vadd.f32 0.0, %v521
  %v523 = vpop.f32.mrf.mxu0
  %v524 = vpop.f32.mrf.mxu0
  %v525 = vadd.f32 0.0, %v524
  %v526 = vpop.f32.mrf.mxu0
  %527 = vmatprep.mubr.bf16.mxu0 %v258
  %528 = vmatmul.mubr.bf16.gmra.mxu0 %v257
  %v529 = vpop.f32.mrf.mxu0
  %v530 = vadd.f32 0.0, %v529
  %v531 = vpop.f32.mrf.mxu0
  %v532 = vpop.f32.mrf.mxu0
  %v533 = vadd.f32 0.0, %v532
  %v534 = vpop.f32.mrf.mxu0
  %535 = vmatprep.mubr.bf16.mxu0 %v260
  %536 = vmatmul.mubr.bf16.gmra.mxu0 %v259
  %v537 = vpop.f32.mrf.mxu0
  %v538 = vadd.f32 0.0, %v537
  %v539 = vpop.f32.mrf.mxu0
  %v540 = vpop.f32.mrf.mxu0
  %v541 = vadd.f32 0.0, %v540
  %v542 = vpop.f32.mrf.mxu0
  %543 = vmatprep.mubr.bf16.mxu0 %v262
  %544 = vmatmul.mubr.bf16.gmra.mxu0 %v261
  %v545 = vpop.f32.mrf.mxu0
  %v546 = vadd.f32 0.0, %v545
  %v547 = vpop.f32.mrf.mxu0
  %v548 = vpop.f32.mrf.mxu0
  %v549 = vadd.f32 0.0, %v548
  %v550 = vpop.f32.mrf.mxu0
  %551 = vmatprep.mubr.bf16.mxu0 %v264
  %552 = vmatmul.mubr.bf16.gmra.mxu0 %v263
  %v553 = vpop.f32.mrf.mxu0
  %v554 = vadd.f32 0.0, %v553
  %v555 = vpop.f32.mrf.mxu0
  %v556 = vpop.f32.mrf.mxu0
  %v557 = vadd.f32 0.0, %v556
  %v558 = vpop.f32.mrf.mxu0
  %559 = vmatprep.mubr.bf16.mxu0 %v266
  %560 = vmatmul.mubr.bf16.gmra.mxu0 %v265
  %v561 = vpop.f32.mrf.mxu0
  %v562 = vadd.f32 0.0, %v561
  %v563 = vpop.f32.mrf.mxu0
  %v564 = vpop.f32.mrf.mxu0
  %v565 = vadd.f32 0.0, %v564
  %v566 = vpop.f32.mrf.mxu0
  %567 = vmatprep.mubr.bf16.mxu0 %v268
  %568 = vmatmul.mubr.bf16.gmra.mxu0 %v267
  %v569 = vpop.f32.mrf.mxu0
  %v570 = vadd.f32 0.0, %v569
  %v571 = vpop.f32.mrf.mxu0
  %v572 = vpop.f32.mrf.mxu0
  %v573 = vadd.f32 0.0, %v572
  %v574 = vpop.f32.mrf.mxu0
  %575 = vmatprep.mubr.bf16.mxu0 %v270
  %576 = vmatmul.mubr.bf16.gmra.mxu0 %v269
  %v577 = vpop.f32.mrf.mxu0
  %v578 = vadd.f32 0.0, %v577
  %v579 = vpop.f32.mrf.mxu0
  %v580 = vpop.f32.mrf.mxu0
  %v581 = vadd.f32 0.0, %v580
  %v582 = vpop.f32.mrf.mxu0
  %583 = vmatprep.mubr.bf16.mxu0 %v272
  %584 = vmatmul.mubr.bf16.gmra.mxu0 %v271
  %v585 = vpop.f32.mrf.mxu0
  %v586 = vadd.f32 0.0, %v585
  %v587 = vpop.f32.mrf.mxu0
  %v588 = vpop.f32.mrf.mxu0
  %v589 = vadd.f32 0.0, %v588
  %v590 = vpop.f32.mrf.mxu0
  %591 = vmatprep.mubr.bf16.mxu0 %v274
  %592 = vmatmul.mubr.bf16.gmra.mxu0 %v273
  %v593 = vpop.f32.mrf.mxu0
  %v594 = vadd.f32 0.0, %v593
  %v595 = vpop.f32.mrf.mxu0
  %v596 = vpop.f32.mrf.mxu0
  %v597 = vadd.f32 0.0, %v596
  %v598 = vpop.f32.mrf.mxu0
  %599 = vmatprep.mubr.bf16.mxu0 %v276
  %600 = vmatmul.mubr.bf16.gmra.mxu0 %v275
  %v601 = vpop.f32.mrf.mxu0
  %v602 = vadd.f32 0.0, %v601
  %v603 = vpop.f32.mrf.mxu0
  %v604 = vpop.f32.mrf.mxu0
  %v605 = vadd.f32 0.0, %v604
  %v606 = vpop.f32.mrf.mxu0
  %607 = vmatprep.mubr.bf16.mxu0 %v278
  %608 = vmatmul.mubr.bf16.gmra.mxu0 %v277
  %v609 = vpop.f32.mrf.mxu0
  %v610 = vadd.f32 0.0, %v609
  %v611 = vpop.f32.mrf.mxu0
  %v612 = vpop.f32.mrf.mxu0
  %v613 = vadd.f32 0.0, %v612
  %v614 = vpop.f32.mrf.mxu0
  %615 = vmatprep.mubr.bf16.mxu0 %v280
  %616 = vmatmul.mubr.bf16.gmra.mxu0 %v279
  %v617 = vpop.f32.mrf.mxu0
  %v618 = vadd.f32 0.0, %v617
  %v619 = vpop.f32.mrf.mxu0
  %v620 = vpop.f32.mrf.mxu0
  %v621 = vadd.f32 0.0, %v620
  %v622 = vpop.f32.mrf.mxu0
  %623 = vmatprep.mubr.bf16.mxu0 %v282
  %624 = vmatmul.mubr.bf16.gmra.mxu0 %v281
  %v625 = vpop.f32.mrf.mxu0
  %v626 = vadd.f32 0.0, %v625
  %v627 = vpop.f32.mrf.mxu0
  %v628 = vpop.f32.mrf.mxu0
  %v629 = vadd.f32 0.0, %v628
  %v630 = vpop.f32.mrf.mxu0
  %631 = vmatprep.mubr.bf16.mxu0 %v284
  %632 = vmatmul.mubr.bf16.gmra.mxu0 %v283
  %v633 = vpop.f32.mrf.mxu0
  %v634 = vadd.f32 0.0, %v633
  %v635 = vpop.f32.mrf.mxu0
  %v636 = vpop.f32.mrf.mxu0
  %v637 = vadd.f32 0.0, %v636
  %v638 = vpop.f32.mrf.mxu0
  %639 = vmatprep.mubr.bf16.mxu0 %v286
  %640 = vmatmul.mubr.bf16.gmra.mxu0 %v285
  %v641 = vpop.f32.mrf.mxu0
  %v642 = vadd.f32 0.0, %v641
  %v643 = vpop.f32.mrf.mxu0
  %v644 = vpop.f32.mrf.mxu0
  %v645 = vadd.f32 0.0, %v644
  %v646 = vpop.f32.mrf.mxu0
  %647 = vmatprep.mubr.bf16.mxu0 %v288
  %648 = vmatmul.mubr.bf16.gmra.mxu0 %v287
  %v649 = vpop.f32.mrf.mxu0
  %v650 = vadd.f32 0.0, %v649
  %v651 = vpop.f32.mrf.mxu0
  %v652 = vpop.f32.mrf.mxu0
  %v653 = vadd.f32 0.0, %v652
  %v654 = vpop.f32.mrf.mxu0
  %655 = vmatprep.mubr.bf16.mxu0 %v290
  %656 = vmatmul.mubr.bf16.gmra.mxu0 %v289
  %v657 = vpop.f32.mrf.mxu0
  %v658 = vadd.f32 0.0, %v657
  %v659 = vpop.f32.mrf.mxu0
  %v660 = vpop.f32.mrf.mxu0
  %v661 = vadd.f32 0.0, %v660
  %v662 = vpop.f32.mrf.mxu0
  %663 = vmatprep.mubr.bf16.mxu0 %v292
  %664 = vmatmul.mubr.bf16.gmra.mxu0 %v291
  %v665 = vpop.f32.mrf.mxu0
  %v666 = vadd.f32 0.0, %v665
  %v667 = vpop.f32.mrf.mxu0
  %v668 = vpop.f32.mrf.mxu0
  %v669 = vpop.f32.mrf.mxu0
  %670 = vdwg.mxu0
  %v671 = vld [vmem:[%s2] sm:$0x1]
  %v672 = vlaneseq
  %v673 = vshrl.u32 %v672, 7
  %v674 = vsub.s32 0, %v673
  %v675 = vrot.slane %v671, %v674
  %v676 = vmul.f32 %v474, %v675
  %v677 = vmul.f32 %v477, %v675
  %v678 = vmul.f32 %v482, %v675
  %v679 = vmul.f32 %v485, %v675
  %v680 = vmul.f32 %v490, %v675
  %v681 = vmul.f32 %v493, %v675
  %v682 = vmul.f32 %v498, %v675
  %v683 = vmul.f32 %v501, %v675
  %v684 = vmul.f32 %v506, %v675
  %v685 = vmul.f32 %v509, %v675
  %v686 = vmul.f32 %v514, %v675
  %v687 = vmul.f32 %v517, %v675
  %v688 = vmul.f32 %v522, %v675
  %v689 = vmul.f32 %v525, %v675
  %v690 = vmul.f32 %v530, %v675
  %v691 = vmul.f32 %v533, %v675
  %v692 = vmul.f32 %v538, %v675
  %v693 = vmul.f32 %v541, %v675
  %v694 = vmul.f32 %v546, %v675
  %v695 = vmul.f32 %v549, %v675
  %v696 = vmul.f32 %v554, %v675
  %v697 = vmul.f32 %v557, %v675
  %v698 = vmul.f32 %v562, %v675
  %v699 = vmul.f32 %v565, %v675
  %v700 = vmul.f32 %v570, %v675
  %v701 = vmul.f32 %v573, %v675
  %v702 = vmul.f32 %v578, %v675
  %v703 = vmul.f32 %v581, %v675
  %v704 = vmul.f32 %v586, %v675
  %v705 = vmul.f32 %v589, %v675
  %v706 = vmul.f32 %v594, %v675
  %v707 = vmul.f32 %v597, %v675
  %v708 = vmul.f32 %v602, %v675
  %v709 = vmul.f32 %v605, %v675
  %v710 = vmul.f32 %v610, %v675
  %v711 = vmul.f32 %v613, %v675
  %v712 = vmul.f32 %v618, %v675
  %v713 = vmul.f32 %v621, %v675
  %v714 = vmul.f32 %v626, %v675
  %v715 = vmul.f32 %v629, %v675
  %v716 = vmul.f32 %v634, %v675
  %v717 = vmul.f32 %v637, %v675
  %v718 = vmul.f32 %v642, %v675
  %v719 = vmul.f32 %v645, %v675
  %v720 = vmul.f32 %v650, %v675
  %v721 = vmul.f32 %v653, %v675
  %v722 = vmul.f32 %v658, %v675
  %v723 = vmul.f32 %v661, %v675
  %v724 = vmul.f32 %v666, %v675
  %v725 = vld [vmem:[%s2 + $0x1] sm:$0x1]
  %v726 = vlaneseq
  %v727 = vshrl.u32 %v726, 7
  %v728 = vsub.s32 0, %v727
  %v729 = vrot.slane %v725, %v728
  %v730 = vadd.f32 %v676, %v729
  %v731 = vadd.f32 %v677, %v729
  %v732 = vadd.f32 %v678, %v729
  %v733 = vadd.f32 %v679, %v729
  %v734 = vadd.f32 %v680, %v729
  %v735 = vadd.f32 %v681, %v729
  %v736 = vadd.f32 %v682, %v729
  %v737 = vadd.f32 %v683, %v729
  %v738 = vadd.f32 %v684, %v729
  %v739 = vadd.f32 %v685, %v729
  %v740 = vadd.f32 %v686, %v729
  %v741 = vadd.f32 %v687, %v729
  %v742 = vadd.f32 %v688, %v729
  %v743 = vadd.f32 %v689, %v729
  %v744 = vadd.f32 %v690, %v729
  %v745 = vadd.f32 %v691, %v729
  %v746 = vadd.f32 %v692, %v729
  %v747 = vadd.f32 %v693, %v729
  %v748 = vadd.f32 %v694, %v729
  %v749 = vadd.f32 %v695, %v729
  %v750 = vadd.f32 %v696, %v729
  %v751 = vadd.f32 %v697, %v729
  %v752 = vadd.f32 %v698, %v729
  %v753 = vadd.f32 %v699, %v729
  %v754 = vadd.f32 %v700, %v729
  %v755 = vadd.f32 %v701, %v729
  %v756 = vadd.f32 %v702, %v729
  %v757 = vadd.f32 %v703, %v729
  %v758 = vadd.f32 %v704, %v729
  %v759 = vadd.f32 %v705, %v729
  %v760 = vadd.f32 %v706, %v729
  %v761 = vadd.f32 %v707, %v729
  %v762 = vadd.f32 %v708, %v729
  %v763 = vadd.f32 %v709, %v729
  %v764 = vadd.f32 %v710, %v729
  %v765 = vadd.f32 %v711, %v729
  %v766 = vadd.f32 %v712, %v729
  %v767 = vadd.f32 %v713, %v729
  %v768 = vadd.f32 %v714, %v729
  %v769 = vadd.f32 %v715, %v729
  %v770 = vadd.f32 %v716, %v729
  %v771 = vadd.f32 %v717, %v729
  %v772 = vadd.f32 %v718, %v729
  %v773 = vadd.f32 %v719, %v729
  %v774 = vadd.f32 %v720, %v729
  %v775 = vadd.f32 %v721, %v729
  %v776 = vadd.f32 %v722, %v729
  %v777 = vadd.f32 %v723, %v729
  %v778 = vadd.f32 %v724, %v729
  %v779 = vmax.f32 %v730, 0.0
  %v780 = vmax.f32 %v731, 0.0
  %v781 = vmax.f32 %v732, 0.0
  %v782 = vmax.f32 %v733, 0.0
  %v783 = vmax.f32 %v734, 0.0
  %v784 = vmax.f32 %v735, 0.0
  %v785 = vmax.f32 %v736, 0.0
  %v786 = vmax.f32 %v737, 0.0
  %v787 = vmax.f32 %v738, 0.0
  %v788 = vmax.f32 %v739, 0.0
  %v789 = vmax.f32 %v740, 0.0
  %v790 = vmax.f32 %v741, 0.0
  %v791 = vmax.f32 %v742, 0.0
  %v792 = vmax.f32 %v743, 0.0
  %v793 = vmax.f32 %v744, 0.0
  %v794 = vmax.f32 %v745, 0.0
  %v795 = vmax.f32 %v746, 0.0
  %v796 = vmax.f32 %v747, 0.0
  %v797 = vmax.f32 %v748, 0.0
  %v798 = vmax.f32 %v749, 0.0
  %v799 = vmax.f32 %v750, 0.0
  %v800 = vmax.f32 %v751, 0.0
  %v801 = vmax.f32 %v752, 0.0
  %v802 = vmax.f32 %v753, 0.0
  %v803 = vmax.f32 %v754, 0.0
  %v804 = vmax.f32 %v755, 0.0
  %v805 = vmax.f32 %v756, 0.0
  %v806 = vmax.f32 %v757, 0.0
  %v807 = vmax.f32 %v758, 0.0
  %v808 = vmax.f32 %v759, 0.0
  %v809 = vmax.f32 %v760, 0.0
  %v810 = vmax.f32 %v761, 0.0
  %v811 = vmax.f32 %v762, 0.0
  %v812 = vmax.f32 %v763, 0.0
  %v813 = vmax.f32 %v764, 0.0
  %v814 = vmax.f32 %v765, 0.0
  %v815 = vmax.f32 %v766, 0.0
  %v816 = vmax.f32 %v767, 0.0
  %v817 = vmax.f32 %v768, 0.0
  %v818 = vmax.f32 %v769, 0.0
  %v819 = vmax.f32 %v770, 0.0
  %v820 = vmax.f32 %v771, 0.0
  %v821 = vmax.f32 %v772, 0.0
  %v822 = vmax.f32 %v773, 0.0
  %v823 = vmax.f32 %v774, 0.0
  %v824 = vmax.f32 %v775, 0.0
  %v825 = vmax.f32 %v776, 0.0
  %v826 = vmax.f32 %v777, 0.0
  %v827 = vmax.f32 %v778, 0.0
  %v828 = vpack.c.bf16 %v780, %v779
  %v829 = vpack.c.bf16 %v782, %v781
  %v830 = vpack.c.bf16 %v784, %v783
  %v831 = vpack.c.bf16 %v786, %v785
  %v832 = vpack.c.bf16 %v788, %v787
  %v833 = vpack.c.bf16 %v790, %v789
  %v834 = vpack.c.bf16 %v792, %v791
  %v835 = vpack.c.bf16 %v794, %v793
  %v836 = vpack.c.bf16 %v796, %v795
  %v837 = vpack.c.bf16 %v798, %v797
  %v838 = vpack.c.bf16 %v800, %v799
  %v839 = vpack.c.bf16 %v802, %v801
  %v840 = vpack.c.bf16 %v804, %v803
  %v841 = vpack.c.bf16 %v806, %v805
  %v842 = vpack.c.bf16 %v808, %v807
  %v843 = vpack.c.bf16 %v810, %v809
  %v844 = vpack.c.bf16 %v812, %v811
  %v845 = vpack.c.bf16 %v814, %v813
  %v846 = vpack.c.bf16 %v816, %v815
  %v847 = vpack.c.bf16 %v818, %v817
  %v848 = vpack.c.bf16 %v820, %v819
  %v849 = vpack.c.bf16 %v822, %v821
  %v850 = vpack.c.bf16 %v824, %v823
  %v851 = vpack.c.bf16 %v826, %v825
  %v852 = vpack.c.bf16 %v827, %v827
  %v878 = vunpack.c.l.b16 %v828
  %v879 = vunpack.c.h.b16 %v828
  %v880 = vunpack.c.l.b16 %v829
  %v881 = vunpack.c.h.b16 %v829
  %v882 = vunpack.c.l.b16 %v830
  %v883 = vunpack.c.h.b16 %v830
  %v884 = vunpack.c.l.b16 %v831
  %v885 = vunpack.c.h.b16 %v831
  %v886 = vunpack.c.l.b16 %v832
  %v887 = vunpack.c.h.b16 %v832
  %v888 = vunpack.c.l.b16 %v833
  %v889 = vunpack.c.h.b16 %v833
  %v890 = vunpack.c.l.b16 %v834
  %v891 = vunpack.c.h.b16 %v834
  %v892 = vunpack.c.l.b16 %v835
  %v893 = vunpack.c.h.b16 %v835
  %v894 = vunpack.c.l.b16 %v836
  %v895 = vunpack.c.h.b16 %v836
  %v896 = vunpack.c.l.b16 %v837
  %v897 = vunpack.c.h.b16 %v837
  %v898 = vunpack.c.l.b16 %v838
  %v899 = vunpack.c.h.b16 %v838
  %v900 = vunpack.c.l.b16 %v839
  %v901 = vunpack.c.h.b16 %v839
  %v902 = vunpack.c.l.b16 %v840
  %v903 = vunpack.c.h.b16 %v840
  %v904 = vunpack.c.l.b16 %v841
  %v905 = vunpack.c.h.b16 %v841
  %v906 = vunpack.c.l.b16 %v842
  %v907 = vunpack.c.h.b16 %v842
  %v908 = vunpack.c.l.b16 %v843
  %v909 = vunpack.c.h.b16 %v843
  %v910 = vunpack.c.l.b16 %v844
  %v911 = vunpack.c.h.b16 %v844
  %v912 = vunpack.c.l.b16 %v845
  %v913 = vunpack.c.h.b16 %v845
  %v914 = vunpack.c.l.b16 %v846
  %v915 = vunpack.c.h.b16 %v846
  %v916 = vunpack.c.l.b16 %v847
  %v917 = vunpack.c.h.b16 %v847
  %v918 = vunpack.c.l.b16 %v848
  %v919 = vunpack.c.h.b16 %v848
  %v920 = vunpack.c.l.b16 %v849
  %v921 = vunpack.c.h.b16 %v849
  %v922 = vunpack.c.l.b16 %v850
  %v923 = vunpack.c.h.b16 %v850
  %v924 = vunpack.c.l.b16 %v851
  %v925 = vunpack.c.h.b16 %v851
  %v926 = vunpack.c.l.b16 %v852
  %v927 = vpack.c.b16 %v878, %v878
  %v928 = vpack.c.b16 %v879, %v879
  %v929 = vpack.c.b16 %v880, %v880
  %v930 = vpack.c.b16 %v881, %v881
  %v931 = vpack.c.b16 %v882, %v882
  %v932 = vpack.c.b16 %v883, %v883
  %v933 = vpack.c.b16 %v884, %v884
  %v934 = vpack.c.b16 %v885, %v885
  %v935 = vpack.c.b16 %v886, %v886
  %v936 = vpack.c.b16 %v887, %v887
  %v937 = vpack.c.b16 %v888, %v888
  %v938 = vpack.c.b16 %v889, %v889
  %v939 = vpack.c.b16 %v890, %v890
  %v940 = vpack.c.b16 %v891, %v891
  %v941 = vpack.c.b16 %v892, %v892
  %v942 = vpack.c.b16 %v893, %v893
  %v943 = vpack.c.b16 %v894, %v894
  %v944 = vpack.c.b16 %v895, %v895
  %v945 = vpack.c.b16 %v896, %v896
  %v946 = vpack.c.b16 %v897, %v897
  %v947 = vpack.c.b16 %v898, %v898
  %v948 = vpack.c.b16 %v899, %v899
  %v949 = vpack.c.b16 %v900, %v900
  %v950 = vpack.c.b16 %v901, %v901
  %v951 = vpack.c.b16 %v902, %v902
  %v952 = vpack.c.b16 %v903, %v903
  %v953 = vpack.c.b16 %v904, %v904
  %v954 = vpack.c.b16 %v905, %v905
  %v955 = vpack.c.b16 %v906, %v906
  %v956 = vpack.c.b16 %v907, %v907
  %v957 = vpack.c.b16 %v908, %v908
  %v958 = vpack.c.b16 %v909, %v909
  %v959 = vpack.c.b16 %v910, %v910
  %v960 = vpack.c.b16 %v911, %v911
  %v961 = vpack.c.b16 %v912, %v912
  %v962 = vpack.c.b16 %v913, %v913
  %v963 = vpack.c.b16 %v914, %v914
  %v964 = vpack.c.b16 %v915, %v915
  %v965 = vpack.c.b16 %v916, %v916
  %v966 = vpack.c.b16 %v917, %v917
  %v967 = vpack.c.b16 %v918, %v918
  %v968 = vpack.c.b16 %v919, %v919
  %v969 = vpack.c.b16 %v920, %v920
  %v970 = vpack.c.b16 %v921, %v921
  %v971 = vpack.c.b16 %v922, %v922
  %v972 = vpack.c.b16 %v923, %v923
  %v973 = vpack.c.b16 %v924, %v924
  %v974 = vpack.c.b16 %v925, %v925
  %v975 = vpack.c.b16 %v926, %v926
  %1025 = vst [vmem:[%s3] sm:$0xf] %v927
  %1026 = vst [vmem:[%s3 + $0x4] sm:$0xf] %v928
  %1027 = vst [vmem:[%s3 + $0x8] sm:$0xf] %v929
  %1028 = vst [vmem:[%s3 + $0xc] sm:$0xf] %v930
  %1029 = vst [vmem:[%s3 + $0x10] sm:$0xf] %v931
  %1030 = vst [vmem:[%s3 + $0x14] sm:$0xf] %v932
  %1031 = vst [vmem:[%s3 + $0x18] sm:$0xf] %v933
  %1032 = vst [vmem:[%s3 + $0x1c] sm:$0xf] %v934
  %1033 = vst [vmem:[%s3 + $0x20] sm:$0xf] %v935
  %1034 = vst [vmem:[%s3 + $0x24] sm:$0xf] %v936
  %1035 = vst [vmem:[%s3 + $0x28] sm:$0xf] %v937
  %1036 = vst [vmem:[%s3 + $0x2c] sm:$0xf] %v938
  %1037 = vst [vmem:[%s3 + $0x30] sm:$0xf] %v939
  %1038 = vst [vmem:[%s3 + $0x34] sm:$0xf] %v940
  %1039 = vst [vmem:[%s3 + $0x38] sm:$0xf] %v941
  %1040 = vst [vmem:[%s3 + $0x3c] sm:$0xf] %v942
  %1041 = vst [vmem:[%s3 + $0x40] sm:$0xf] %v943
  %1042 = vst [vmem:[%s3 + $0x44] sm:$0xf] %v944
  %1043 = vst [vmem:[%s3 + $0x48] sm:$0xf] %v945
  %1044 = vst [vmem:[%s3 + $0x4c] sm:$0xf] %v946
  %1045 = vst [vmem:[%s3 + $0x50] sm:$0xf] %v947
  %1046 = vst [vmem:[%s3 + $0x54] sm:$0xf] %v948
  %1047 = vst [vmem:[%s3 + $0x58] sm:$0xf] %v949
  %1048 = vst [vmem:[%s3 + $0x5c] sm:$0xf] %v950
  %1049 = vst [vmem:[%s3 + $0x60] sm:$0xf] %v951
  %1050 = vst [vmem:[%s3 + $0x64] sm:$0xf] %v952
  %1051 = vst [vmem:[%s3 + $0x68] sm:$0xf] %v953
  %1052 = vst [vmem:[%s3 + $0x6c] sm:$0xf] %v954
  %1053 = vst [vmem:[%s3 + $0x70] sm:$0xf] %v955
  %1054 = vst [vmem:[%s3 + $0x74] sm:$0xf] %v956
  %1055 = vst [vmem:[%s3 + $0x78] sm:$0xf] %v957
  %1056 = vst [vmem:[%s3 + $0x7c] sm:$0xf] %v958
  %1057 = vst [vmem:[%s3 + $0x80] sm:$0xf] %v959
  %1058 = vst [vmem:[%s3 + $0x84] sm:$0xf] %v960
  %1059 = vst [vmem:[%s3 + $0x88] sm:$0xf] %v961
  %1060 = vst [vmem:[%s3 + $0x8c] sm:$0xf] %v962
  %1061 = vst [vmem:[%s3 + $0x90] sm:$0xf] %v963
  %1062 = vst [vmem:[%s3 + $0x94] sm:$0xf] %v964
  %1063 = vst [vmem:[%s3 + $0x98] sm:$0xf] %v965
  %1064 = vst [vmem:[%s3 + $0x9c] sm:$0xf] %v966
  %1065 = vst [vmem:[%s3 + $0xa0] sm:$0xf] %v967
  %1066 = vst [vmem:[%s3 + $0xa4] sm:$0xf] %v968
  %1067 = vst [vmem:[%s3 + $0xa8] sm:$0xf] %v969
  %1068 = vst [vmem:[%s3 + $0xac] sm:$0xf] %v970
  %1069 = vst [vmem:[%s3 + $0xb0] sm:$0xf] %v971
  %1070 = vst [vmem:[%s3 + $0xb4] sm:$0xf] %v972
  %1071 = vst [vmem:[%s3 + $0xb8] sm:$0xf] %v973
  %1072 = vst [vmem:[%s3 + $0xbc] sm:$0xf] %v974
  %1073 = vst [vmem:[%s3 + $0xc0] sm:$0xf] %v975
  // Predicated region
  $region14: #{autoencoder_forward.14} parent=0 // pred_check
    _
  $region15: #{autoencoder_forward.14} parent=0 // pred_check_branch
    %1075 = sbr.rel (0) target = $region17
  $region16: #{autoencoder_forward.14} parent=0 // pred_region
    _
  $region17: #{autoencoder_forward.14} parent=0 // pred_fallthru
    _
  // Predicated region
  $region18: #{autoencoder_forward.14} parent=0 // pred_check
    _
  $region19: #{autoencoder_forward.14} parent=0 // pred_check_branch
    %1077 = sbr.rel (0) target = $region21
  $region20: #{autoencoder_forward.14} parent=0 // pred_region
    _
  $region21: #{autoencoder_forward.14} parent=0 // pred_fallthru
    _

// kernel: autoencoder_forward.15
$region0: #{autoencoder_forward.15}
  #allocation0 [shape = 'u32[]', space=smem, size = 0x4, offset = 0x4, fixed_abs, tag = 'smem constant byte address 0x4 - core index']
  #allocation1 [shape = 'u32[144,128]{1,0:T(1,128)}', space=vmem, size = 0x12000, scoped, tag = 'internal scratch']
  %s0 = inlined_call_operand.vmem [shape: bf16[1568,128], index: 0, kind: input, shape index: {}]
  %s1 = inlined_call_operand.vmem [shape: bf16[128,4], index: 1, kind: input, shape index: {}]
  %s2 = inlined_call_operand.vmem [shape: f32[3,4], index: 2, kind: input, shape index: {}]
  %s3 = inlined_call_operand.vmem [shape: f32[1568,4], index: 3, kind: output, shape index: {}]
  %s4 = sld [smem:[#allocation0]]
  $region45: #{autoencoder_forward.15} parent=0
    _
  %s6 = ssub.s32 1, %s4
  %s7 = scalar_select 0, %s6, %s4
  loop: start=0, step=1, limit=4
  $region2: #{autoencoder_forward.15} parent=0 // loop_pre_header
    _
  $region3: #{autoencoder_forward.15} parent=0 // loop_header
    %s9 = sphi 0, %s13
    %p10 = scmp.ge.s32.totalorder %s9, 4
    %s19 = sphi 0, %s21
    %s22 = sphi 0, %s19
    %s23 = sphi 0, %s22
    %s39 = sphi 0, %s23
    %s43 = sphi 0, %s43
    %s45 = sphi 0, %s43
    %s46 = sphi 0, %s45
    %s60 = sphi 0, %s46
    %s64 = sphi 0, %s64
    %s66 = sphi 0, %s64
    %s67 = sphi 0, %s66
    %s81 = sphi 0, %s67
    %s87 = sphi 0, %s89
    %s90 = sphi 0, %s87
    %s91 = sphi 0, %s90
    %s107 = sphi 0, %s91
  $region4: #{autoencoder_forward.15} parent=0 // loop_header_branch
    %12 = sbr.rel (%p10) target = $region8
  $region5: #{autoencoder_forward.15} parent=0 // loop_body
    %s14 = ssub.s32 %s9, 1
    %s15 = ssub.s32 %s9, 2
    %s16 = sadd.s32 %s9, 1
    %s17 = ssub.s32 %s9, %s16
    %p18 = scmp.eq.s32.totalorder %s17, 0
    %s20 = sadd.s32 %s19, 1
    %s21 = scalar_select %p18, %s19, %s20
    %p24 = pneg %p18
    %p25 = scmp.eq.s32.totalorder %s9, 1
    %p26 = por %p24, %p25
    %p27 = scmp.ne.s32.totalorder %s19, %s22
    %p28 = scmp.eq.s32.totalorder %s9, 0
    %p29 = por %p27, %p28
    %p30 = scmp.ne.s32.totalorder %s19, %s22
    %p31 = scmp.eq.s32.totalorder %s14, 1
    %p32 = por %p30, %p31
    %p33 = scmp.ne.s32.totalorder %s22, %s23
    %p34 = scmp.eq.s32.totalorder %s14, 0
    %p35 = por %p33, %p34
    %p36 = scmp.ne.s32.totalorder %s22, %s23
    %p37 = scmp.eq.s32.totalorder %s15, 1
    %p38 = por %p36, %p37
    %p40 = scmp.ne.s32.totalorder %s23, %s39
    %p41 = scmp.eq.s32.totalorder %s15, 0
    %p42 = por %p40, %p41
    %s44 = sadd.s32 %s43, 1
    %p47 = scmp.eq.s32.totalorder %s9, 1
    %p48 = scmp.ne.s32.totalorder %s43, %s45
    %p49 = scmp.eq.s32.totalorder %s9, 0
    %p50 = por %p48, %p49
    %p51 = scmp.ne.s32.totalorder %s43, %s45
    %p52 = scmp.eq.s32.totalorder %s14, 1
    %p53 = por %p51, %p52
    %p54 = scmp.ne.s32.totalorder %s45, %s46
    %p55 = scmp.eq.s32.totalorder %s14, 0
    %p56 = por %p54, %p55
    %p57 = scmp.ne.s32.totalorder %s45, %s46
    %p58 = scmp.eq.s32.totalorder %s15, 1
    %p59 = por %p57, %p58
    %p61 = scmp.ne.s32.totalorder %s46, %s60
    %p62 = scmp.eq.s32.totalorder %s15, 0
    %p63 = por %p61, %p62
    %s65 = sadd.s32 %s64, 1
    %p68 = scmp.eq.s32.totalorder %s9, 1
    %p69 = scmp.ne.s32.totalorder %s64, %s66
    %p70 = scmp.eq.s32.totalorder %s9, 0
    %p71 = por %p69, %p70
    %p72 = scmp.ne.s32.totalorder %s64, %s66
    %p73 = scmp.eq.s32.totalorder %s14, 1
    %p74 = por %p72, %p73
    %p75 = scmp.ne.s32.totalorder %s66, %s67
    %p76 = scmp.eq.s32.totalorder %s14, 0
    %p77 = por %p75, %p76
    %p78 = scmp.ne.s32.totalorder %s66, %s67
    %p79 = scmp.eq.s32.totalorder %s15, 1
    %p80 = por %p78, %p79
    %p82 = scmp.ne.s32.totalorder %s67, %s81
    %p83 = scmp.eq.s32.totalorder %s15, 0
    %p84 = por %p82, %p83
    %s85 = ssub.s32 %s9, %s16
    %p86 = scmp.eq.s32.totalorder %s85, 0
    %s88 = sadd.s32 %s87, 1
    %s89 = scalar_select %p86, %s87, %s88
    %p92 = pneg %p86
    %p93 = scmp.eq.s32.totalorder %s9, 1
    %p94 = por %p92, %p93
    %p95 = scmp.ne.s32.totalorder %s87, %s90
    %p96 = scmp.eq.s32.totalorder %s9, 0
    %p97 = por %p95, %p96
    %p98 = scmp.ne.s32.totalorder %s87, %s90
    %p99 = scmp.eq.s32.totalorder %s14, 1
    %p100 = por %p98, %p99
    %p101 = scmp.ne.s32.totalorder %s90, %s91
    %p102 = scmp.eq.s32.totalorder %s14, 0
    %p103 = por %p101, %p102
    %p104 = scmp.ne.s32.totalorder %s90, %s91
    %p105 = scmp.eq.s32.totalorder %s15, 1
    %p106 = por %p104, %p105
    %p108 = scmp.ne.s32.totalorder %s91, %s107
    %p109 = scmp.eq.s32.totalorder %s15, 0
    %p110 = por %p108, %p109
    %p111 = scmp.le.s32.totalorder 1, %s9
    %p112 = scmp.lt.s32.totalorder %s9, 3
    %p113 = pnand %p111, %p112
    %p114 = pneg %p113
    // Predicated region
    $region9: #{autoencoder_forward.15} parent=5 // pred_check
      _
    $region10: #{autoencoder_forward.15} parent=5 // pred_check_branch
      %116 = sbr.rel (%p113) target = $region12
    $region11: #{autoencoder_forward.15} parent=5 // pred_region
      %s117 = ssub.s32 %s9, 1
      // Predicated region
      $region13: #{autoencoder_forward.15} parent=11 // pred_check
        %p118 = pneg %p56
      $region14: #{autoencoder_forward.15} parent=11 // pred_check_branch
        %120 = sbr.rel (%p118) target = $region16
      $region15: #{autoencoder_forward.15} parent=11 // pred_region
        _
      $region16: #{autoencoder_forward.15} parent=11 // pred_fallthru
        _
      // Predicated region
      $region17: #{autoencoder_forward.15} parent=11 // pred_check
        %p121 = pneg %p77
      $region18: #{autoencoder_forward.15} parent=11 // pred_check_branch
        %123 = sbr.rel (%p121) target = $region20
      $region19: #{autoencoder_forward.15} parent=11 // pred_region
        _
      $region20: #{autoencoder_forward.15} parent=11 // pred_fallthru
        _
    $region12: #{autoencoder_forward.15} parent=5 // pred_fallthru
      _
    %p124 = scmp.lt.s32.totalorder %s9, 2
    // Predicated region
    $region21: #{autoencoder_forward.15} parent=5 // pred_check
      %p125 = pneg %p124
    $region22: #{autoencoder_forward.15} parent=5 // pred_check_branch
      %127 = sbr.rel (%p125) target = $region24
    $region23: #{autoencoder_forward.15} parent=5 // pred_region
      // Predicated region
      $region25: #{autoencoder_forward.15} parent=23 // pred_check
        %p128 = pneg %p29
      $region26: #{autoencoder_forward.15} parent=23 // pred_check_branch
        %130 = sbr.rel (%p128) target = $region28
      $region27: #{autoencoder_forward.15} parent=23 // pred_region
        %s131 = smul.u32 98, %s9
        %p132 = scmp.lt.s32.totalorder %s131, 195
        %s133 = scalar_select %p132, %s131, 195
        %s134 = smul.addr %s133, 4
        %s135 = scalar_lea.vmem %s0, %s134
        %s136 = smul.u32 98, %s9
      $region28: #{autoencoder_forward.15} parent=23 // pred_fallthru
        _
    $region24: #{autoencoder_forward.15} parent=5 // pred_fallthru
      _
    %p137 = scmp.le.s32.totalorder 1, %s9
    %p138 = scmp.lt.s32.totalorder %s9, 3
    %p139 = pnand %p137, %p138
    %p140 = pneg %p139
    // Predicated region
    $region29: #{autoencoder_forward.15} parent=5 // pred_check
      _
    $region30: #{autoencoder_forward.15} parent=5 // pred_check_branch
      %142 = sbr.rel (%p139) target = $region32
    $region31: #{autoencoder_forward.15} parent=5 // pred_region
      %s143 = ssub.s32 %s9, 1
      %s144 = smul.u32 98, %s14
      %p145 = scmp.lt.s32.totalorder %s144, 195
      %s146 = scalar_select %p145, %s144, 195
      %s147 = smul.addr %s146, 4
      %s148 = scalar_lea.vmem %s0, %s147
      %p149 = pneg %p35
      %p150 = pneg %p32
      %p151 = pneg %p56
      %p152 = pneg %p53
      %p153 = pneg %p77
      %p154 = pneg %p74
      %p155 = pneg %p103
      %p156 = pneg %p100
      %s157 = smul.u32 98, %s14
      %p158 = scmp.lt.s32.totalorder %s157, 195
      %s159 = scalar_select %p158, %s157, 195
      %s160 = smul.addr %s159, 8
      %s161 = scalar_lea.vmem %s3, %s160
      %s162 = smul.u32 98, %s14
      %p163 = scmp.lt.s32.totalorder %s162, 195
      %s164 = scalar_select %p163, %s162, 195
      %s165 = smul.addr %s164, 4
      %s166 = scalar_lea.vmem %s0, %s165
      %s167 = smul.u32 98, %s14
      %s168 = smul.u32 98, %s14
      %p169 = scmp.lt.s32.totalorder %s168, 195
      %s170 = scalar_select %p169, %s168, 195
      %s171 = smul.addr %s170, 8
      %s172 = scalar_lea.vmem %s3, %s171
      %s173 = smul.u32 98, %s14
      %v175 = vld [vmem:[%s166] sm:$0xf]
      %v176 = vld [vmem:[%s166 + $0x4] sm:$0xf]
      %v177 = vld [vmem:[%s166 + $0x8] sm:$0xf]
      %v178 = vld [vmem:[%s166 + $0xc] sm:$0xf]
      %v179 = vld [vmem:[%s166 + $0x10] sm:$0xf]
      %v180 = vld [vmem:[%s166 + $0x14] sm:$0xf]
      %v181 = vld [vmem:[%s166 + $0x18] sm:$0xf]
      %v182 = vld [vmem:[%s166 + $0x1c] sm:$0xf]
      %v183 = vld [vmem:[%s166 + $0x20] sm:$0xf]
      %v184 = vld [vmem:[%s166 + $0x24] sm:$0xf]
      %v185 = vld [vmem:[%s166 + $0x28] sm:$0xf]
      %v186 = vld [vmem:[%s166 + $0x2c] sm:$0xf]
      %v187 = vld [vmem:[%s166 + $0x30] sm:$0xf]
      %v188 = vld [vmem:[%s166 + $0x34] sm:$0xf]
      %v189 = vld [vmem:[%s166 + $0x38] sm:$0xf]
      %v190 = vld [vmem:[%s166 + $0x3c] sm:$0xf]
      %v191 = vld [vmem:[%s166 + $0x40] sm:$0xf]
      %v192 = vld [vmem:[%s166 + $0x44] sm:$0xf]
      %v193 = vld [vmem:[%s166 + $0x48] sm:$0xf]
      %v194 = vld [vmem:[%s166 + $0x4c] sm:$0xf]
      %v195 = vld [vmem:[%s166 + $0x50] sm:$0xf]
      %v196 = vld [vmem:[%s166 + $0x54] sm:$0xf]
      %v197 = vld [vmem:[%s166 + $0x58] sm:$0xf]
      %v198 = vld [vmem:[%s166 + $0x5c] sm:$0xf]
      %v199 = vld [vmem:[%s166 + $0x60] sm:$0xf]
      %v200 = vld [vmem:[%s166 + $0x64] sm:$0xf]
      %v201 = vld [vmem:[%s166 + $0x68] sm:$0xf]
      %v202 = vld [vmem:[%s166 + $0x6c] sm:$0xf]
      %v203 = vld [vmem:[%s166 + $0x70] sm:$0xf]
      %v204 = vld [vmem:[%s166 + $0x74] sm:$0xf]
      %v205 = vld [vmem:[%s166 + $0x78] sm:$0xf]
      %v206 = vld [vmem:[%s166 + $0x7c] sm:$0xf]
      %v207 = vld [vmem:[%s166 + $0x80] sm:$0xf]
      %v208 = vld [vmem:[%s166 + $0x84] sm:$0xf]
      %v209 = vld [vmem:[%s166 + $0x88] sm:$0xf]
      %v210 = vld [vmem:[%s166 + $0x8c] sm:$0xf]
      %v211 = vld [vmem:[%s166 + $0x90] sm:$0xf]
      %v212 = vld [vmem:[%s166 + $0x94] sm:$0xf]
      %v213 = vld [vmem:[%s166 + $0x98] sm:$0xf]
      %v214 = vld [vmem:[%s166 + $0x9c] sm:$0xf]
      %v215 = vld [vmem:[%s166 + $0xa0] sm:$0xf]
      %v216 = vld [vmem:[%s166 + $0xa4] sm:$0xf]
      %v217 = vld [vmem:[%s166 + $0xa8] sm:$0xf]
      %v218 = vld [vmem:[%s166 + $0xac] sm:$0xf]
      %v219 = vld [vmem:[%s166 + $0xb0] sm:$0xf]
      %v220 = vld [vmem:[%s166 + $0xb4] sm:$0xf]
      %v221 = vld [vmem:[%s166 + $0xb8] sm:$0xf]
      %v222 = vld [vmem:[%s166 + $0xbc] sm:$0xf]
      %v223 = vld [vmem:[%s166 + $0xc0] sm:$0xf]
      %v224 = vld [vmem:[%s166 + $0xc4] sm:$0xf]
      %v225 = vld [vmem:[%s166 + $0xc8] sm:$0xf]
      %v226 = vld [vmem:[%s166 + $0xcc] sm:$0xf]
      %v227 = vld [vmem:[%s166 + $0xd0] sm:$0xf]
      %v228 = vld [vmem:[%s166 + $0xd4] sm:$0xf]
      %v229 = vld [vmem:[%s166 + $0xd8] sm:$0xf]
      %v230 = vld [vmem:[%s166 + $0xdc] sm:$0xf]
      %v231 = vld [vmem:[%s166 + $0xe0] sm:$0xf]
      %v232 = vld [vmem:[%s166 + $0xe4] sm:$0xf]
      %v233 = vld [vmem:[%s166 + $0xe8] sm:$0xf]
      %v234 = vld [vmem:[%s166 + $0xec] sm:$0xf]
      %v235 = vld [vmem:[%s166 + $0xf0] sm:$0xf]
      %v236 = vld [vmem:[%s166 + $0xf4] sm:$0xf]
      %v237 = vld [vmem:[%s166 + $0xf8] sm:$0xf]
      %v238 = vld [vmem:[%s166 + $0xfc] sm:$0xf]
      %v239 = vld [vmem:[%s166 + $0x100] sm:$0xf]
      %v240 = vld [vmem:[%s166 + $0x104] sm:$0xf]
      %v241 = vld [vmem:[%s166 + $0x108] sm:$0xf]
      %v242 = vld [vmem:[%s166 + $0x10c] sm:$0xf]
      %v243 = vld [vmem:[%s166 + $0x110] sm:$0xf]
      %v244 = vld [vmem:[%s166 + $0x114] sm:$0xf]
      %v245 = vld [vmem:[%s166 + $0x118] sm:$0xf]
      %v246 = vld [vmem:[%s166 + $0x11c] sm:$0xf]
      %v247 = vld [vmem:[%s166 + $0x120] sm:$0xf]
      %v248 = vld [vmem:[%s166 + $0x124] sm:$0xf]
      %v249 = vld [vmem:[%s166 + $0x128] sm:$0xf]
      %v250 = vld [vmem:[%s166 + $0x12c] sm:$0xf]
      %v251 = vld [vmem:[%s166 + $0x130] sm:$0xf]
      %v252 = vld [vmem:[%s166 + $0x134] sm:$0xf]
      %v253 = vld [vmem:[%s166 + $0x138] sm:$0xf]
      %v254 = vld [vmem:[%s166 + $0x13c] sm:$0xf]
      %v255 = vld [vmem:[%s166 + $0x140] sm:$0xf]
      %v256 = vld [vmem:[%s166 + $0x144] sm:$0xf]
      %v257 = vld [vmem:[%s166 + $0x148] sm:$0xf]
      %v258 = vld [vmem:[%s166 + $0x14c] sm:$0xf]
      %v259 = vld [vmem:[%s166 + $0x150] sm:$0xf]
      %v260 = vld [vmem:[%s166 + $0x154] sm:$0xf]
      %v261 = vld [vmem:[%s166 + $0x158] sm:$0xf]
      %v262 = vld [vmem:[%s166 + $0x15c] sm:$0xf]
      %v263 = vld [vmem:[%s166 + $0x160] sm:$0xf]
      %v264 = vld [vmem:[%s166 + $0x164] sm:$0xf]
      %v265 = vld [vmem:[%s166 + $0x168] sm:$0xf]
      %v266 = vld [vmem:[%s166 + $0x16c] sm:$0xf]
      %v267 = vld [vmem:[%s166 + $0x170] sm:$0xf]
      %v268 = vld [vmem:[%s166 + $0x174] sm:$0xf]
      %v269 = vld [vmem:[%s166 + $0x178] sm:$0xf]
      %v270 = vld [vmem:[%s166 + $0x17c] sm:$0xf]
      %v271 = vld [vmem:[%s166 + $0x180] sm:$0xf]
      %v272 = vld [vmem:[%s166 + $0x184] sm:$0xf]
      %v273 = vld [vmem:[%s1] sm:$0xf]
      %v274 = vld [vmem:[%s1 + $0x4] sm:$0xf]
      %v275 = vld [vmem:[%s1 + $0x8] sm:$0xf]
      %v276 = vld [vmem:[%s1 + $0xc] sm:$0xf]
      %v277 = vld [vmem:[%s1 + $0x10] sm:$0xf]
      %v278 = vld [vmem:[%s1 + $0x14] sm:$0xf]
      %v279 = vld [vmem:[%s1 + $0x18] sm:$0xf]
      %v280 = vld [vmem:[%s1 + $0x1c] sm:$0xf]
      %v281 = vld [vmem:[%s1 + $0x20] sm:$0xf]
      %v282 = vld [vmem:[%s1 + $0x24] sm:$0xf]
      %v283 = vld [vmem:[%s1 + $0x28] sm:$0xf]
      %v284 = vld [vmem:[%s1 + $0x2c] sm:$0xf]
      %v285 = vld [vmem:[%s1 + $0x30] sm:$0xf]
      %v286 = vld [vmem:[%s1 + $0x34] sm:$0xf]
      %v287 = vld [vmem:[%s1 + $0x38] sm:$0xf]
      %v288 = vld [vmem:[%s1 + $0x3c] sm:$0xf]
      %v289 = vld [vmem:[%s2 + $0x1] sm:$0x1]
      %v290 = vlaneseq
      %v291 = vshrl.u32 %v290, 7
      %v292 = vsub.s32 0, %v291
      %v293 = vrot.slane %v289, %v292
      %v392 = vunpack.c.l.b16 %v175
      %v393 = vunpack.c.l.b16 %v176
      %v394 = vunpack.c.l.b16 %v177
      %v395 = vunpack.c.l.b16 %v178
      %v396 = vunpack.c.l.b16 %v179
      %v397 = vunpack.c.l.b16 %v180
      %v398 = vunpack.c.l.b16 %v181
      %v399 = vunpack.c.l.b16 %v182
      %v400 = vunpack.c.l.b16 %v183
      %v401 = vunpack.c.l.b16 %v184
      %v402 = vunpack.c.l.b16 %v185
      %v403 = vunpack.c.l.b16 %v186
      %v404 = vunpack.c.l.b16 %v187
      %v405 = vunpack.c.l.b16 %v188
      %v406 = vunpack.c.l.b16 %v189
      %v407 = vunpack.c.l.b16 %v190
      %v408 = vunpack.c.l.b16 %v191
      %v409 = vunpack.c.l.b16 %v192
      %v410 = vunpack.c.l.b16 %v193
      %v411 = vunpack.c.l.b16 %v194
      %v412 = vunpack.c.l.b16 %v195
      %v413 = vunpack.c.l.b16 %v196
      %v414 = vunpack.c.l.b16 %v197
      %v415 = vunpack.c.l.b16 %v198
      %v416 = vunpack.c.l.b16 %v199
      %v417 = vunpack.c.l.b16 %v200
      %v418 = vunpack.c.l.b16 %v201
      %v419 = vunpack.c.l.b16 %v202
      %v420 = vunpack.c.l.b16 %v203
      %v421 = vunpack.c.l.b16 %v204
      %v422 = vunpack.c.l.b16 %v205
      %v423 = vunpack.c.l.b16 %v206
      %v424 = vunpack.c.l.b16 %v207
      %v425 = vunpack.c.l.b16 %v208
      %v426 = vunpack.c.l.b16 %v209
      %v427 = vunpack.c.l.b16 %v210
      %v428 = vunpack.c.l.b16 %v211
      %v429 = vunpack.c.l.b16 %v212
      %v430 = vunpack.c.l.b16 %v213
      %v431 = vunpack.c.l.b16 %v214
      %v432 = vunpack.c.l.b16 %v215
      %v433 = vunpack.c.l.b16 %v216
      %v434 = vunpack.c.l.b16 %v217
      %v435 = vunpack.c.l.b16 %v218
      %v436 = vunpack.c.l.b16 %v219
      %v437 = vunpack.c.l.b16 %v220
      %v438 = vunpack.c.l.b16 %v221
      %v439 = vunpack.c.l.b16 %v222
      %v440 = vunpack.c.l.b16 %v223
      %v441 = vunpack.c.l.b16 %v224
      %v442 = vunpack.c.l.b16 %v225
      %v443 = vunpack.c.l.b16 %v226
      %v444 = vunpack.c.l.b16 %v227
      %v445 = vunpack.c.l.b16 %v228
      %v446 = vunpack.c.l.b16 %v229
      %v447 = vunpack.c.l.b16 %v230
      %v448 = vunpack.c.l.b16 %v231
      %v449 = vunpack.c.l.b16 %v232
      %v450 = vunpack.c.l.b16 %v233
      %v451 = vunpack.c.l.b16 %v234
      %v452 = vunpack.c.l.b16 %v235
      %v453 = vunpack.c.l.b16 %v236
      %v454 = vunpack.c.l.b16 %v237
      %v455 = vunpack.c.l.b16 %v238
      %v456 = vunpack.c.l.b16 %v239
      %v457 = vunpack.c.l.b16 %v240
      %v458 = vunpack.c.l.b16 %v241
      %v459 = vunpack.c.l.b16 %v242
      %v460 = vunpack.c.l.b16 %v243
      %v461 = vunpack.c.l.b16 %v244
      %v462 = vunpack.c.l.b16 %v245
      %v463 = vunpack.c.l.b16 %v246
      %v464 = vunpack.c.l.b16 %v247
      %v465 = vunpack.c.l.b16 %v248
      %v466 = vunpack.c.l.b16 %v249
      %v467 = vunpack.c.l.b16 %v250
      %v468 = vunpack.c.l.b16 %v251
      %v469 = vunpack.c.l.b16 %v252
      %v470 = vunpack.c.l.b16 %v253
      %v471 = vunpack.c.l.b16 %v254
      %v472 = vunpack.c.l.b16 %v255
      %v473 = vunpack.c.l.b16 %v256
      %v474 = vunpack.c.l.b16 %v257
      %v475 = vunpack.c.l.b16 %v258
      %v476 = vunpack.c.l.b16 %v259
      %v477 = vunpack.c.l.b16 %v260
      %v478 = vunpack.c.l.b16 %v261
      %v479 = vunpack.c.l.b16 %v262
      %v480 = vunpack.c.l.b16 %v263
      %v481 = vunpack.c.l.b16 %v264
      %v482 = vunpack.c.l.b16 %v265
      %v483 = vunpack.c.l.b16 %v266
      %v484 = vunpack.c.l.b16 %v267
      %v485 = vunpack.c.l.b16 %v268
      %v486 = vunpack.c.l.b16 %v269
      %v487 = vunpack.c.l.b16 %v270
      %v488 = vunpack.c.l.b16 %v271
      %v489 = vunpack.c.l.b16 %v272
      %v490 = vpack.c.b16 %v393, %v392
      %v491 = vpack.c.b16 %v395, %v394
      %v492 = vpack.c.b16 %v397, %v396
      %v493 = vpack.c.b16 %v399, %v398
      %v494 = vpack.c.b16 %v401, %v400
      %v495 = vpack.c.b16 %v403, %v402
      %v496 = vpack.c.b16 %v405, %v404
      %v497 = vpack.c.b16 %v407, %v406
      %v498 = vpack.c.b16 %v409, %v408
      %v499 = vpack.c.b16 %v411, %v410
      %v500 = vpack.c.b16 %v413, %v412
      %v501 = vpack.c.b16 %v415, %v414
      %v502 = vpack.c.b16 %v417, %v416
      %v503 = vpack.c.b16 %v419, %v418
      %v504 = vpack.c.b16 %v421, %v420
      %v505 = vpack.c.b16 %v423, %v422
      %v506 = vpack.c.b16 %v425, %v424
      %v507 = vpack.c.b16 %v427, %v426
      %v508 = vpack.c.b16 %v429, %v428
      %v509 = vpack.c.b16 %v431, %v430
      %v510 = vpack.c.b16 %v433, %v432
      %v511 = vpack.c.b16 %v435, %v434
      %v512 = vpack.c.b16 %v437, %v436
      %v513 = vpack.c.b16 %v439, %v438
      %v514 = vpack.c.b16 %v441, %v440
      %v515 = vpack.c.b16 %v443, %v442
      %v516 = vpack.c.b16 %v445, %v444
      %v517 = vpack.c.b16 %v447, %v446
      %v518 = vpack.c.b16 %v449, %v448
      %v519 = vpack.c.b16 %v451, %v450
      %v520 = vpack.c.b16 %v453, %v452
      %v521 = vpack.c.b16 %v455, %v454
      %v522 = vpack.c.b16 %v457, %v456
      %v523 = vpack.c.b16 %v459, %v458
      %v524 = vpack.c.b16 %v461, %v460
      %v525 = vpack.c.b16 %v463, %v462
      %v526 = vpack.c.b16 %v465, %v464
      %v527 = vpack.c.b16 %v467, %v466
      %v528 = vpack.c.b16 %v469, %v468
      %v529 = vpack.c.b16 %v471, %v470
      %v530 = vpack.c.b16 %v473, %v472
      %v531 = vpack.c.b16 %v475, %v474
      %v532 = vpack.c.b16 %v477, %v476
      %v533 = vpack.c.b16 %v479, %v478
      %v534 = vpack.c.b16 %v481, %v480
      %v535 = vpack.c.b16 %v483, %v482
      %v536 = vpack.c.b16 %v485, %v484
      %v537 = vpack.c.b16 %v487, %v486
      %v538 = vpack.c.b16 %v489, %v488
      %v604 = vunpack.c.l.b16 %v273
      %v605 = vunpack.c.l.b16 %v274
      %v606 = vunpack.c.l.b16 %v275
      %v607 = vunpack.c.l.b16 %v276
      %v608 = vunpack.c.l.b16 %v277
      %v609 = vunpack.c.l.b16 %v278
      %v610 = vunpack.c.l.b16 %v279
      %v611 = vunpack.c.l.b16 %v280
      %v612 = vunpack.c.l.b16 %v281
      %v613 = vunpack.c.l.b16 %v282
      %v614 = vunpack.c.l.b16 %v283
      %v615 = vunpack.c.l.b16 %v284
      %v616 = vunpack.c.l.b16 %v285
      %v617 = vunpack.c.l.b16 %v286
      %v618 = vunpack.c.l.b16 %v287
      %v619 = vunpack.c.l.b16 %v288
      %v620 = vpack.c.b16 %v605, %v604
      %v621 = vpack.c.b16 %v607, %v606
      %v622 = vpack.c.b16 %v609, %v608
      %v623 = vpack.c.b16 %v611, %v610
      %v624 = vpack.c.b16 %v613, %v612
      %v625 = vpack.c.b16 %v615, %v614
      %v626 = vpack.c.b16 %v617, %v616
      %v627 = vpack.c.b16 %v619, %v618
      %636 = vmatprep.subr.bf16.mxu0 0
      %637 = vmatpush1.bf16.msra.mxu0 %v627
      %638 = vmatprep.subr.bf16.mxu0 0
      %639 = vmatpush1.bf16.msra.mxu0 %v626
      %640 = vmatprep.subr.bf16.mxu0 0
      %641 = vmatpush1.bf16.msra.mxu0 %v625
      %642 = vmatprep.subr.bf16.mxu0 0
      %643 = vmatpush1.bf16.msra.mxu0 %v624
      %644 = vmatprep.subr.bf16.mxu0 0
      %645 = vmatpush1.bf16.msra.mxu0 %v623
      %646 = vmatprep.subr.bf16.mxu0 0
      %647 = vmatpush1.bf16.msra.mxu0 %v622
      %648 = vmatprep.subr.bf16.mxu0 0
      %649 = vmatpush1.bf16.msra.mxu0 %v621
      %650 = vmatprep.subr.bf16.mxu0 0
      %651 = vmatpush1.bf16.msra.mxu0 %v620
      %652 = vmatprep.subr.bf16.mxu0 0
      %653 = vmatpush2.bf16.msra.mxu0 0
      %654 = vmatprep.subr.bf16.mxu0 0
      %655 = vmatpush2.bf16.msra.mxu0 0
      %656 = vmatprep.subr.bf16.mxu0 0
      %657 = vmatpush2.bf16.msra.mxu0 0
      %658 = vmatprep.subr.bf16.mxu0 0
      %659 = vmatpush2.bf16.msra.mxu0 0
      %660 = vmatprep.subr.bf16.mxu0 0
      %661 = vmatpush2.bf16.msra.mxu0 0
      %662 = vmatprep.subr.bf16.mxu0 0
      %663 = vmatpush2.bf16.msra.mxu0 0
      %664 = vmatprep.subr.bf16.mxu0 0
      %665 = vmatpush2.bf16.msra.mxu0 0
      %666 = vmatprep.subr.bf16.mxu0 0
      %667 = vmatpush2.bf16.msra.mxu0 0
      %668 = vmatprep.mubr.bf16.mxu0 0
      %669 = vmatmul.mubr.bf16.gmra.mxu0 %v490
      %v670 = vpop.f32.mrf.mxu0
      %v671 = vadd.f32 %v293, %v670
      %v672 = vpop.f32.mrf.mxu0
      %v673 = vpop.f32.mrf.mxu0
      %v674 = vadd.f32 %v293, %v673
      %v675 = vpop.f32.mrf.mxu0
      %676 = vmatprep.mubr.bf16.mxu0 0
      %677 = vmatmul.mubr.bf16.gmra.mxu0 %v491
      %v678 = vpop.f32.mrf.mxu0
      %v679 = vadd.f32 %v293, %v678
      %v680 = vpop.f32.mrf.mxu0
      %v681 = vpop.f32.mrf.mxu0
      %v682 = vadd.f32 %v293, %v681
      %v683 = vpop.f32.mrf.mxu0
      %684 = vmatprep.mubr.bf16.mxu0 0
      %685 = vmatmul.mubr.bf16.gmra.mxu0 %v492
      %v686 = vpop.f32.mrf.mxu0
      %v687 = vadd.f32 %v293, %v686
      %v688 = vpop.f32.mrf.mxu0
      %v689 = vpop.f32.mrf.mxu0
      %v690 = vadd.f32 %v293, %v689
      %v691 = vpop.f32.mrf.mxu0
      %692 = vmatprep.mubr.bf16.mxu0 0
      %693 = vmatmul.mubr.bf16.gmra.mxu0 %v493
      %v694 = vpop.f32.mrf.mxu0
      %v695 = vadd.f32 %v293, %v694
      %v696 = vpop.f32.mrf.mxu0
      %v697 = vpop.f32.mrf.mxu0
      %v698 = vadd.f32 %v293, %v697
      %v699 = vpop.f32.mrf.mxu0
      %700 = vmatprep.mubr.bf16.mxu0 0
      %701 = vmatmul.mubr.bf16.gmra.mxu0 %v494
      %v702 = vpop.f32.mrf.mxu0
      %v703 = vadd.f32 %v293, %v702
      %v704 = vpop.f32.mrf.mxu0
      %v705 = vpop.f32.mrf.mxu0
      %v706 = vadd.f32 %v293, %v705
      %v707 = vpop.f32.mrf.mxu0
      %708 = vmatprep.mubr.bf16.mxu0 0
      %709 = vmatmul.mubr.bf16.gmra.mxu0 %v495
      %v710 = vpop.f32.mrf.mxu0
      %v711 = vadd.f32 %v293, %v710
      %v712 = vpop.f32.mrf.mxu0
      %v713 = vpop.f32.mrf.mxu0
      %v714 = vadd.f32 %v293, %v713
      %v715 = vpop.f32.mrf.mxu0
      %716 = vmatprep.mubr.bf16.mxu0 0
      %717 = vmatmul.mubr.bf16.gmra.mxu0 %v496
      %v718 = vpop.f32.mrf.mxu0
      %v719 = vadd.f32 %v293, %v718
      %v720 = vpop.f32.mrf.mxu0
      %v721 = vpop.f32.mrf.mxu0
      %v722 = vadd.f32 %v293, %v721
      %v723 = vpop.f32.mrf.mxu0
      %724 = vmatprep.mubr.bf16.mxu0 0
      %725 = vmatmul.mubr.bf16.gmra.mxu0 %v497
      %v726 = vpop.f32.mrf.mxu0
      %v727 = vadd.f32 %v293, %v726
      %v728 = vpop.f32.mrf.mxu0
      %v729 = vpop.f32.mrf.mxu0
      %v730 = vadd.f32 %v293, %v729
      %v731 = vpop.f32.mrf.mxu0
      %732 = vmatprep.mubr.bf16.mxu0 0
      %733 = vmatmul.mubr.bf16.gmra.mxu0 %v498
      %v734 = vpop.f32.mrf.mxu0
      %v735 = vadd.f32 %v293, %v734
      %v736 = vpop.f32.mrf.mxu0
      %v737 = vpop.f32.mrf.mxu0
      %v738 = vadd.f32 %v293, %v737
      %v739 = vpop.f32.mrf.mxu0
      %740 = vmatprep.mubr.bf16.mxu0 0
      %741 = vmatmul.mubr.bf16.gmra.mxu0 %v499
      %v742 = vpop.f32.mrf.mxu0
      %v743 = vadd.f32 %v293, %v742
      %v744 = vpop.f32.mrf.mxu0
      %v745 = vpop.f32.mrf.mxu0
      %v746 = vadd.f32 %v293, %v745
      %v747 = vpop.f32.mrf.mxu0
      %748 = vmatprep.mubr.bf16.mxu0 0
      %749 = vmatmul.mubr.bf16.gmra.mxu0 %v500
      %v750 = vpop.f32.mrf.mxu0
      %v751 = vadd.f32 %v293, %v750
      %v752 = vpop.f32.mrf.mxu0
      %v753 = vpop.f32.mrf.mxu0
      %v754 = vadd.f32 %v293, %v753
      %v755 = vpop.f32.mrf.mxu0
      %756 = vmatprep.mubr.bf16.mxu0 0
      %757 = vmatmul.mubr.bf16.gmra.mxu0 %v501
      %v758 = vpop.f32.mrf.mxu0
      %v759 = vadd.f32 %v293, %v758
      %v760 = vpop.f32.mrf.mxu0
      %v761 = vpop.f32.mrf.mxu0
      %v762 = vadd.f32 %v293, %v761
      %v763 = vpop.f32.mrf.mxu0
      %764 = vmatprep.mubr.bf16.mxu0 0
      %765 = vmatmul.mubr.bf16.gmra.mxu0 %v502
      %v766 = vpop.f32.mrf.mxu0
      %v767 = vadd.f32 %v293, %v766
      %v768 = vpop.f32.mrf.mxu0
      %v769 = vpop.f32.mrf.mxu0
      %v770 = vadd.f32 %v293, %v769
      %v771 = vpop.f32.mrf.mxu0
      %772 = vmatprep.mubr.bf16.mxu0 0
      %773 = vmatmul.mubr.bf16.gmra.mxu0 %v503
      %v774 = vpop.f32.mrf.mxu0
      %v775 = vadd.f32 %v293, %v774
      %v776 = vpop.f32.mrf.mxu0
      %v777 = vpop.f32.mrf.mxu0
      %v778 = vadd.f32 %v293, %v777
      %v779 = vpop.f32.mrf.mxu0
      %780 = vmatprep.mubr.bf16.mxu0 0
      %781 = vmatmul.mubr.bf16.gmra.mxu0 %v504
      %v782 = vpop.f32.mrf.mxu0
      %v783 = vadd.f32 %v293, %v782
      %v784 = vpop.f32.mrf.mxu0
      %v785 = vpop.f32.mrf.mxu0
      %v786 = vadd.f32 %v293, %v785
      %v787 = vpop.f32.mrf.mxu0
      %788 = vmatprep.mubr.bf16.mxu0 0
      %789 = vmatmul.mubr.bf16.gmra.mxu0 %v505
      %v790 = vpop.f32.mrf.mxu0
      %v791 = vadd.f32 %v293, %v790
      %v792 = vpop.f32.mrf.mxu0
      %v793 = vpop.f32.mrf.mxu0
      %v794 = vadd.f32 %v293, %v793
      %v795 = vpop.f32.mrf.mxu0
      %796 = vmatprep.mubr.bf16.mxu0 0
      %797 = vmatmul.mubr.bf16.gmra.mxu0 %v506
      %v798 = vpop.f32.mrf.mxu0
      %v799 = vadd.f32 %v293, %v798
      %v800 = vpop.f32.mrf.mxu0
      %v801 = vpop.f32.mrf.mxu0
      %v802 = vadd.f32 %v293, %v801
      %v803 = vpop.f32.mrf.mxu0
      %804 = vmatprep.mubr.bf16.mxu0 0
      %805 = vmatmul.mubr.bf16.gmra.mxu0 %v507
      %v806 = vpop.f32.mrf.mxu0
      %v807 = vadd.f32 %v293, %v806
      %v808 = vpop.f32.mrf.mxu0
      %v809 = vpop.f32.mrf.mxu0
      %v810 = vadd.f32 %v293, %v809
      %v811 = vpop.f32.mrf.mxu0
      %812 = vmatprep.mubr.bf16.mxu0 0
      %813 = vmatmul.mubr.bf16.gmra.mxu0 %v508
      %v814 = vpop.f32.mrf.mxu0
      %v815 = vadd.f32 %v293, %v814
      %v816 = vpop.f32.mrf.mxu0
      %v817 = vpop.f32.mrf.mxu0
      %v818 = vadd.f32 %v293, %v817
      %v819 = vpop.f32.mrf.mxu0
      %820 = vmatprep.mubr.bf16.mxu0 0
      %821 = vmatmul.mubr.bf16.gmra.mxu0 %v509
      %v822 = vpop.f32.mrf.mxu0
      %v823 = vadd.f32 %v293, %v822
      %v824 = vpop.f32.mrf.mxu0
      %v825 = vpop.f32.mrf.mxu0
      %v826 = vadd.f32 %v293, %v825
      %v827 = vpop.f32.mrf.mxu0
      %828 = vmatprep.mubr.bf16.mxu0 0
      %829 = vmatmul.mubr.bf16.gmra.mxu0 %v510
      %v830 = vpop.f32.mrf.mxu0
      %v831 = vadd.f32 %v293, %v830
      %v832 = vpop.f32.mrf.mxu0
      %v833 = vpop.f32.mrf.mxu0
      %v834 = vadd.f32 %v293, %v833
      %v835 = vpop.f32.mrf.mxu0
      %836 = vmatprep.mubr.bf16.mxu0 0
      %837 = vmatmul.mubr.bf16.gmra.mxu0 %v511
      %v838 = vpop.f32.mrf.mxu0
      %v839 = vadd.f32 %v293, %v838
      %v840 = vpop.f32.mrf.mxu0
      %v841 = vpop.f32.mrf.mxu0
      %v842 = vadd.f32 %v293, %v841
      %v843 = vpop.f32.mrf.mxu0
      %844 = vmatprep.mubr.bf16.mxu0 0
      %845 = vmatmul.mubr.bf16.gmra.mxu0 %v512
      %v846 = vpop.f32.mrf.mxu0
      %v847 = vadd.f32 %v293, %v846
      %v848 = vpop.f32.mrf.mxu0
      %v849 = vpop.f32.mrf.mxu0
      %v850 = vadd.f32 %v293, %v849
      %v851 = vpop.f32.mrf.mxu0
      %852 = vmatprep.mubr.bf16.mxu0 0
      %853 = vmatmul.mubr.bf16.gmra.mxu0 %v513
      %v854 = vpop.f32.mrf.mxu0
      %v855 = vadd.f32 %v293, %v854
      %v856 = vpop.f32.mrf.mxu0
      %v857 = vpop.f32.mrf.mxu0
      %v858 = vadd.f32 %v293, %v857
      %v859 = vpop.f32.mrf.mxu0
      %860 = vmatprep.mubr.bf16.mxu0 0
      %861 = vmatmul.mubr.bf16.gmra.mxu0 %v514
      %v862 = vpop.f32.mrf.mxu0
      %v863 = vadd.f32 %v293, %v862
      %v864 = vpop.f32.mrf.mxu0
      %v865 = vpop.f32.mrf.mxu0
      %v866 = vadd.f32 %v293, %v865
      %v867 = vpop.f32.mrf.mxu0
      %868 = vmatprep.mubr.bf16.mxu0 0
      %869 = vmatmul.mubr.bf16.gmra.mxu0 %v515
      %v870 = vpop.f32.mrf.mxu0
      %v871 = vadd.f32 %v293, %v870
      %v872 = vpop.f32.mrf.mxu0
      %v873 = vpop.f32.mrf.mxu0
      %v874 = vadd.f32 %v293, %v873
      %v875 = vpop.f32.mrf.mxu0
      %876 = vmatprep.mubr.bf16.mxu0 0
      %877 = vmatmul.mubr.bf16.gmra.mxu0 %v516
      %v878 = vpop.f32.mrf.mxu0
      %v879 = vadd.f32 %v293, %v878
      %v880 = vpop.f32.mrf.mxu0
      %v881 = vpop.f32.mrf.mxu0
      %v882 = vadd.f32 %v293, %v881
      %v883 = vpop.f32.mrf.mxu0
      %884 = vmatprep.mubr.bf16.mxu0 0
      %885 = vmatmul.mubr.bf16.gmra.mxu0 %v517
      %v886 = vpop.f32.mrf.mxu0
      %v887 = vadd.f32 %v293, %v886
      %v888 = vpop.f32.mrf.mxu0
      %v889 = vpop.f32.mrf.mxu0
      %v890 = vadd.f32 %v293, %v889
      %v891 = vpop.f32.mrf.mxu0
      %892 = vmatprep.mubr.bf16.mxu0 0
      %893 = vmatmul.mubr.bf16.gmra.mxu0 %v518
      %v894 = vpop.f32.mrf.mxu0
      %v895 = vadd.f32 %v293, %v894
      %v896 = vpop.f32.mrf.mxu0
      %v897 = vpop.f32.mrf.mxu0
      %v898 = vadd.f32 %v293, %v897
      %v899 = vpop.f32.mrf.mxu0
      %900 = vmatprep.mubr.bf16.mxu0 0
      %901 = vmatmul.mubr.bf16.gmra.mxu0 %v519
      %v902 = vpop.f32.mrf.mxu0
      %v903 = vadd.f32 %v293, %v902
      %v904 = vpop.f32.mrf.mxu0
      %v905 = vpop.f32.mrf.mxu0
      %v906 = vadd.f32 %v293, %v905
      %v907 = vpop.f32.mrf.mxu0
      %908 = vmatprep.mubr.bf16.mxu0 0
      %909 = vmatmul.mubr.bf16.gmra.mxu0 %v520
      %v910 = vpop.f32.mrf.mxu0
      %v911 = vadd.f32 %v293, %v910
      %v912 = vpop.f32.mrf.mxu0
      %v913 = vpop.f32.mrf.mxu0
      %v914 = vadd.f32 %v293, %v913
      %v915 = vpop.f32.mrf.mxu0
      %916 = vmatprep.mubr.bf16.mxu0 0
      %917 = vmatmul.mubr.bf16.gmra.mxu0 %v521
      %v918 = vpop.f32.mrf.mxu0
      %v919 = vadd.f32 %v293, %v918
      %v920 = vpop.f32.mrf.mxu0
      %v921 = vpop.f32.mrf.mxu0
      %v922 = vadd.f32 %v293, %v921
      %v923 = vpop.f32.mrf.mxu0
      %924 = vmatprep.mubr.bf16.mxu0 0
      %925 = vmatmul.mubr.bf16.gmra.mxu0 %v522
      %v926 = vpop.f32.mrf.mxu0
      %v927 = vadd.f32 %v293, %v926
      %v928 = vpop.f32.mrf.mxu0
      %v929 = vpop.f32.mrf.mxu0
      %v930 = vadd.f32 %v293, %v929
      %v931 = vpop.f32.mrf.mxu0
      %932 = vmatprep.mubr.bf16.mxu0 0
      %933 = vmatmul.mubr.bf16.gmra.mxu0 %v523
      %v934 = vpop.f32.mrf.mxu0
      %v935 = vadd.f32 %v293, %v934
      %v936 = vpop.f32.mrf.mxu0
      %v937 = vpop.f32.mrf.mxu0
      %v938 = vadd.f32 %v293, %v937
      %v939 = vpop.f32.mrf.mxu0
      %940 = vmatprep.mubr.bf16.mxu0 0
      %941 = vmatmul.mubr.bf16.gmra.mxu0 %v524
      %v942 = vpop.f32.mrf.mxu0
      %v943 = vadd.f32 %v293, %v942
      %v944 = vpop.f32.mrf.mxu0
      %v945 = vpop.f32.mrf.mxu0
      %v946 = vadd.f32 %v293, %v945
      %v947 = vpop.f32.mrf.mxu0
      %948 = vmatprep.mubr.bf16.mxu0 0
      %949 = vmatmul.mubr.bf16.gmra.mxu0 %v525
      %v950 = vpop.f32.mrf.mxu0
      %v951 = vadd.f32 %v293, %v950
      %v952 = vpop.f32.mrf.mxu0
      %v953 = vpop.f32.mrf.mxu0
      %v954 = vadd.f32 %v293, %v953
      %v955 = vpop.f32.mrf.mxu0
      %956 = vmatprep.mubr.bf16.mxu0 0
      %957 = vmatmul.mubr.bf16.gmra.mxu0 %v526
      %v958 = vpop.f32.mrf.mxu0
      %v959 = vadd.f32 %v293, %v958
      %v960 = vpop.f32.mrf.mxu0
      %v961 = vpop.f32.mrf.mxu0
      %v962 = vadd.f32 %v293, %v961
      %v963 = vpop.f32.mrf.mxu0
      %964 = vmatprep.mubr.bf16.mxu0 0
      %965 = vmatmul.mubr.bf16.gmra.mxu0 %v527
      %v966 = vpop.f32.mrf.mxu0
      %v967 = vadd.f32 %v293, %v966
      %v968 = vpop.f32.mrf.mxu0
      %v969 = vpop.f32.mrf.mxu0
      %v970 = vadd.f32 %v293, %v969
      %v971 = vpop.f32.mrf.mxu0
      %972 = vmatprep.mubr.bf16.mxu0 0
      %973 = vmatmul.mubr.bf16.gmra.mxu0 %v528
      %v974 = vpop.f32.mrf.mxu0
      %v975 = vadd.f32 %v293, %v974
      %v976 = vpop.f32.mrf.mxu0
      %v977 = vpop.f32.mrf.mxu0
      %v978 = vadd.f32 %v293, %v977
      %v979 = vpop.f32.mrf.mxu0
      %980 = vmatprep.mubr.bf16.mxu0 0
      %981 = vmatmul.mubr.bf16.gmra.mxu0 %v529
      %v982 = vpop.f32.mrf.mxu0
      %v983 = vadd.f32 %v293, %v982
      %v984 = vpop.f32.mrf.mxu0
      %v985 = vpop.f32.mrf.mxu0
      %v986 = vadd.f32 %v293, %v985
      %v987 = vpop.f32.mrf.mxu0
      %988 = vmatprep.mubr.bf16.mxu0 0
      %989 = vmatmul.mubr.bf16.gmra.mxu0 %v530
      %v990 = vpop.f32.mrf.mxu0
      %v991 = vadd.f32 %v293, %v990
      %v992 = vpop.f32.mrf.mxu0
      %v993 = vpop.f32.mrf.mxu0
      %v994 = vadd.f32 %v293, %v993
      %v995 = vpop.f32.mrf.mxu0
      %996 = vmatprep.mubr.bf16.mxu0 0
      %997 = vmatmul.mubr.bf16.gmra.mxu0 %v531
      %v998 = vpop.f32.mrf.mxu0
      %v999 = vadd.f32 %v293, %v998
      %v1000 = vpop.f32.mrf.mxu0
      %v1001 = vpop.f32.mrf.mxu0
      %v1002 = vadd.f32 %v293, %v1001
      %v1003 = vpop.f32.mrf.mxu0
      %1004 = vmatprep.mubr.bf16.mxu0 0
      %1005 = vmatmul.mubr.bf16.gmra.mxu0 %v532
      %v1006 = vpop.f32.mrf.mxu0
      %v1007 = vadd.f32 %v293, %v1006
      %v1008 = vpop.f32.mrf.mxu0
      %v1009 = vpop.f32.mrf.mxu0
      %v1010 = vadd.f32 %v293, %v1009
      %v1011 = vpop.f32.mrf.mxu0
      %1012 = vmatprep.mubr.bf16.mxu0 0
      %1013 = vmatmul.mubr.bf16.gmra.mxu0 %v533
      %v1014 = vpop.f32.mrf.mxu0
      %v1015 = vadd.f32 %v293, %v1014
      %v1016 = vpop.f32.mrf.mxu0
      %v1017 = vpop.f32.mrf.mxu0
      %v1018 = vadd.f32 %v293, %v1017
      %v1019 = vpop.f32.mrf.mxu0
      %1020 = vmatprep.mubr.bf16.mxu0 0
      %1021 = vmatmul.mubr.bf16.gmra.mxu0 %v534
      %v1022 = vpop.f32.mrf.mxu0
      %v1023 = vadd.f32 %v293, %v1022
      %v1024 = vpop.f32.mrf.mxu0
      %v1025 = vpop.f32.mrf.mxu0
      %v1026 = vadd.f32 %v293, %v1025
      %v1027 = vpop.f32.mrf.mxu0
      %1028 = vmatprep.mubr.bf16.mxu0 0
      %1029 = vmatmul.mubr.bf16.gmra.mxu0 %v535
      %v1030 = vpop.f32.mrf.mxu0
      %v1031 = vadd.f32 %v293, %v1030
      %v1032 = vpop.f32.mrf.mxu0
      %v1033 = vpop.f32.mrf.mxu0
      %v1034 = vadd.f32 %v293, %v1033
      %v1035 = vpop.f32.mrf.mxu0
      %1036 = vmatprep.mubr.bf16.mxu0 0
      %1037 = vmatmul.mubr.bf16.gmra.mxu0 %v536
      %v1038 = vpop.f32.mrf.mxu0
      %v1039 = vadd.f32 %v293, %v1038
      %v1040 = vpop.f32.mrf.mxu0
      %v1041 = vpop.f32.mrf.mxu0
      %v1042 = vadd.f32 %v293, %v1041
      %v1043 = vpop.f32.mrf.mxu0
      %1044 = vmatprep.mubr.bf16.mxu0 0
      %1045 = vmatmul.mubr.bf16.gmra.mxu0 %v537
      %v1046 = vpop.f32.mrf.mxu0
      %v1047 = vadd.f32 %v293, %v1046
      %v1048 = vpop.f32.mrf.mxu0
      %v1049 = vpop.f32.mrf.mxu0
      %v1050 = vadd.f32 %v293, %v1049
      %v1051 = vpop.f32.mrf.mxu0
      %1052 = vmatprep.mubr.bf16.mxu0 0
      %1053 = vmatmul.mubr.bf16.gmra.mxu0 %v538
      %v1054 = vpop.f32.mrf.mxu0
      %v1055 = vadd.f32 %v293, %v1054
      %v1056 = vpop.f32.mrf.mxu0
      %v1057 = vpop.f32.mrf.mxu0
      %v1058 = vadd.f32 %v293, %v1057
      %v1059 = vpop.f32.mrf.mxu0
      %1060 = vdwg.mxu0
      %vm1061 = vcmask 31744
      %1062 = vst.msk [vmem:[%s172] sm:$0xff] %vm1061, %v671
      %1063 = vst.msk [vmem:[%s172 + $0x8] sm:$0xff] %vm1061, %v674
      %1064 = vst.msk [vmem:[%s172 + $0x10] sm:$0xff] %vm1061, %v679
      %1065 = vst.msk [vmem:[%s172 + $0x18] sm:$0xff] %vm1061, %v682
      %1066 = vst.msk [vmem:[%s172 + $0x20] sm:$0xff] %vm1061, %v687
      %1067 = vst.msk [vmem:[%s172 + $0x28] sm:$0xff] %vm1061, %v690
      %1068 = vst.msk [vmem:[%s172 + $0x30] sm:$0xff] %vm1061, %v695
      %1069 = vst.msk [vmem:[%s172 + $0x38] sm:$0xff] %vm1061, %v698
      %1070 = vst.msk [vmem:[%s172 + $0x40] sm:$0xff] %vm1061, %v703
      %1071 = vst.msk [vmem:[%s172 + $0x48] sm:$0xff] %vm1061, %v706
      %1072 = vst.msk [vmem:[%s172 + $0x50] sm:$0xff] %vm1061, %v711
      %1073 = vst.msk [vmem:[%s172 + $0x58] sm:$0xff] %vm1061, %v714
      %1074 = vst.msk [vmem:[%s172 + $0x60] sm:$0xff] %vm1061, %v719
      %1075 = vst.msk [vmem:[%s172 + $0x68] sm:$0xff] %vm1061, %v722
      %1076 = vst.msk [vmem:[%s172 + $0x70] sm:$0xff] %vm1061, %v727
      %1077 = vst.msk [vmem:[%s172 + $0x78] sm:$0xff] %vm1061, %v730
      %1078 = vst.msk [vmem:[%s172 + $0x80] sm:$0xff] %vm1061, %v735
      %1079 = vst.msk [vmem:[%s172 + $0x88] sm:$0xff] %vm1061, %v738
      %1080 = vst.msk [vmem:[%s172 + $0x90] sm:$0xff] %vm1061, %v743
      %1081 = vst.msk [vmem:[%s172 + $0x98] sm:$0xff] %vm1061, %v746
      %1082 = vst.msk [vmem:[%s172 + $0xa0] sm:$0xff] %vm1061, %v751
      %1083 = vst.msk [vmem:[%s172 + $0xa8] sm:$0xff] %vm1061, %v754
      %1084 = vst.msk [vmem:[%s172 + $0xb0] sm:$0xff] %vm1061, %v759
      %1085 = vst.msk [vmem:[%s172 + $0xb8] sm:$0xff] %vm1061, %v762
      %1086 = vst.msk [vmem:[%s172 + $0xc0] sm:$0xff] %vm1061, %v767
      %1087 = vst.msk [vmem:[%s172 + $0xc8] sm:$0xff] %vm1061, %v770
      %1088 = vst.msk [vmem:[%s172 + $0xd0] sm:$0xff] %vm1061, %v775
      %1089 = vst.msk [vmem:[%s172 + $0xd8] sm:$0xff] %vm1061, %v778
      %1090 = vst.msk [vmem:[%s172 + $0xe0] sm:$0xff] %vm1061, %v783
      %1091 = vst.msk [vmem:[%s172 + $0xe8] sm:$0xff] %vm1061, %v786
      %1092 = vst.msk [vmem:[%s172 + $0xf0] sm:$0xff] %vm1061, %v791
      %1093 = vst.msk [vmem:[%s172 + $0xf8] sm:$0xff] %vm1061, %v794
      %1094 = vst.msk [vmem:[%s172 + $0x100] sm:$0xff] %vm1061, %v799
      %1095 = vst.msk [vmem:[%s172 + $0x108] sm:$0xff] %vm1061, %v802
      %1096 = vst.msk [vmem:[%s172 + $0x110] sm:$0xff] %vm1061, %v807
      %1097 = vst.msk [vmem:[%s172 + $0x118] sm:$0xff] %vm1061, %v810
      %1098 = vst.msk [vmem:[%s172 + $0x120] sm:$0xff] %vm1061, %v815
      %1099 = vst.msk [vmem:[%s172 + $0x128] sm:$0xff] %vm1061, %v818
      %1100 = vst.msk [vmem:[%s172 + $0x130] sm:$0xff] %vm1061, %v823
      %1101 = vst.msk [vmem:[%s172 + $0x138] sm:$0xff] %vm1061, %v826
      %1102 = vst.msk [vmem:[%s172 + $0x140] sm:$0xff] %vm1061, %v831
      %1103 = vst.msk [vmem:[%s172 + $0x148] sm:$0xff] %vm1061, %v834
      %1104 = vst.msk [vmem:[%s172 + $0x150] sm:$0xff] %vm1061, %v839
      %1105 = vst.msk [vmem:[%s172 + $0x158] sm:$0xff] %vm1061, %v842
      %1106 = vst.msk [vmem:[%s172 + $0x160] sm:$0xff] %vm1061, %v847
      %1107 = vst.msk [vmem:[%s172 + $0x168] sm:$0xff] %vm1061, %v850
      %1108 = vst.msk [vmem:[%s172 + $0x170] sm:$0xff] %vm1061, %v855
      %1109 = vst.msk [vmem:[%s172 + $0x178] sm:$0xff] %vm1061, %v858
      %1110 = vst.msk [vmem:[%s172 + $0x180] sm:$0xff] %vm1061, %v863
      %1111 = vst.msk [vmem:[%s172 + $0x188] sm:$0xff] %vm1061, %v866
      %1112 = vst.msk [vmem:[%s172 + $0x190] sm:$0xff] %vm1061, %v871
      %1113 = vst.msk [vmem:[%s172 + $0x198] sm:$0xff] %vm1061, %v874
      %1114 = vst.msk [vmem:[%s172 + $0x1a0] sm:$0xff] %vm1061, %v879
      %1115 = vst.msk [vmem:[%s172 + $0x1a8] sm:$0xff] %vm1061, %v882
      %1116 = vst.msk [vmem:[%s172 + $0x1b0] sm:$0xff] %vm1061, %v887
      %1117 = vst.msk [vmem:[%s172 + $0x1b8] sm:$0xff] %vm1061, %v890
      %1118 = vst.msk [vmem:[%s172 + $0x1c0] sm:$0xff] %vm1061, %v895
      %1119 = vst.msk [vmem:[%s172 + $0x1c8] sm:$0xff] %vm1061, %v898
      %1120 = vst.msk [vmem:[%s172 + $0x1d0] sm:$0xff] %vm1061, %v903
      %1121 = vst.msk [vmem:[%s172 + $0x1d8] sm:$0xff] %vm1061, %v906
      %1122 = vst.msk [vmem:[%s172 + $0x1e0] sm:$0xff] %vm1061, %v911
      %1123 = vst.msk [vmem:[%s172 + $0x1e8] sm:$0xff] %vm1061, %v914
      %1124 = vst.msk [vmem:[%s172 + $0x1f0] sm:$0xff] %vm1061, %v919
      %1125 = vst.msk [vmem:[%s172 + $0x1f8] sm:$0xff] %vm1061, %v922
      %1126 = vst.msk [vmem:[%s172 + $0x200] sm:$0xff] %vm1061, %v927
      %1127 = vst.msk [vmem:[%s172 + $0x208] sm:$0xff] %vm1061, %v930
      %1128 = vst.msk [vmem:[%s172 + $0x210] sm:$0xff] %vm1061, %v935
      %1129 = vst.msk [vmem:[%s172 + $0x218] sm:$0xff] %vm1061, %v938
      %1130 = vst.msk [vmem:[%s172 + $0x220] sm:$0xff] %vm1061, %v943
      %1131 = vst.msk [vmem:[%s172 + $0x228] sm:$0xff] %vm1061, %v946
      %1132 = vst.msk [vmem:[%s172 + $0x230] sm:$0xff] %vm1061, %v951
      %1133 = vst.msk [vmem:[%s172 + $0x238] sm:$0xff] %vm1061, %v954
      %1134 = vst.msk [vmem:[%s172 + $0x240] sm:$0xff] %vm1061, %v959
      %1135 = vst.msk [vmem:[%s172 + $0x248] sm:$0xff] %vm1061, %v962
      %1136 = vst.msk [vmem:[%s172 + $0x250] sm:$0xff] %vm1061, %v967
      %1137 = vst.msk [vmem:[%s172 + $0x258] sm:$0xff] %vm1061, %v970
      %1138 = vst.msk [vmem:[%s172 + $0x260] sm:$0xff] %vm1061, %v975
      %1139 = vst.msk [vmem:[%s172 + $0x268] sm:$0xff] %vm1061, %v978
      %1140 = vst.msk [vmem:[%s172 + $0x270] sm:$0xff] %vm1061, %v983
      %1141 = vst.msk [vmem:[%s172 + $0x278] sm:$0xff] %vm1061, %v986
      %1142 = vst.msk [vmem:[%s172 + $0x280] sm:$0xff] %vm1061, %v991
      %1143 = vst.msk [vmem:[%s172 + $0x288] sm:$0xff] %vm1061, %v994
      %1144 = vst.msk [vmem:[%s172 + $0x290] sm:$0xff] %vm1061, %v999
      %1145 = vst.msk [vmem:[%s172 + $0x298] sm:$0xff] %vm1061, %v1002
      %1146 = vst.msk [vmem:[%s172 + $0x2a0] sm:$0xff] %vm1061, %v1007
      %1147 = vst.msk [vmem:[%s172 + $0x2a8] sm:$0xff] %vm1061, %v1010
      %1148 = vst.msk [vmem:[%s172 + $0x2b0] sm:$0xff] %vm1061, %v1015
      %1149 = vst.msk [vmem:[%s172 + $0x2b8] sm:$0xff] %vm1061, %v1018
      %1150 = vst.msk [vmem:[%s172 + $0x2c0] sm:$0xff] %vm1061, %v1023
      %1151 = vst.msk [vmem:[%s172 + $0x2c8] sm:$0xff] %vm1061, %v1026
      %1152 = vst.msk [vmem:[%s172 + $0x2d0] sm:$0xff] %vm1061, %v1031
      %1153 = vst.msk [vmem:[%s172 + $0x2d8] sm:$0xff] %vm1061, %v1034
      %1154 = vst.msk [vmem:[%s172 + $0x2e0] sm:$0xff] %vm1061, %v1039
      %1155 = vst.msk [vmem:[%s172 + $0x2e8] sm:$0xff] %vm1061, %v1042
      %1156 = vst.msk [vmem:[%s172 + $0x2f0] sm:$0xff] %vm1061, %v1047
      %1157 = vst.msk [vmem:[%s172 + $0x2f8] sm:$0xff] %vm1061, %v1050
      %1158 = vst.msk [vmem:[%s172 + $0x300] sm:$0xff] %vm1061, %v1055
      %1159 = vst.msk [vmem:[%s172 + $0x308] sm:$0xff] %vm1061, %v1058
      %s1160 = smul.u32 98, %s14
      %p1161 = scmp.lt.s32.totalorder %s1160, 195
      %s1162 = scalar_select %p1161, %s1160, 195
      %s1163 = smul.addr %s1162, 8
      %s1164 = scalar_lea.vmem %s3, %s1163
      // Predicated region
      $region33: #{autoencoder_forward.15} parent=31 // pred_check
        %p1165 = pneg %p100
      $region34: #{autoencoder_forward.15} parent=31 // pred_check_branch
        %1167 = sbr.rel (%p1165) target = $region36
      $region35: #{autoencoder_forward.15} parent=31 // pred_region
        %s1168 = smul.u32 98, %s14
      $region36: #{autoencoder_forward.15} parent=31 // pred_fallthru
        _
    $region32: #{autoencoder_forward.15} parent=5 // pred_fallthru
      _
    %p1169 = scmp.le.s32.totalorder 2, %s9
    // Predicated region
    $region37: #{autoencoder_forward.15} parent=5 // pred_check
      %p1170 = pneg %p1169
    $region38: #{autoencoder_forward.15} parent=5 // pred_check_branch
      %1172 = sbr.rel (%p1170) target = $region40
    $region39: #{autoencoder_forward.15} parent=5 // pred_region
      %s1173 = ssub.s32 %s9, 2
      // Predicated region
      $region41: #{autoencoder_forward.15} parent=39 // pred_check
        %p1174 = pneg %p106
      $region42: #{autoencoder_forward.15} parent=39 // pred_check_branch
        %1176 = sbr.rel (%p1174) target = $region44
      $region43: #{autoencoder_forward.15} parent=39 // pred_region
        %s1177 = smul.u32 98, %s15
        %p1178 = scmp.lt.s32.totalorder %s1177, 195
        %s1179 = scalar_select %p1178, %s1177, 195
        %s1180 = smul.addr %s1179, 8
        %s1181 = scalar_lea.vmem %s3, %s1180
      $region44: #{autoencoder_forward.15} parent=39 // pred_fallthru
        _
    $region40: #{autoencoder_forward.15} parent=5 // pred_fallthru
      _
  $region6: #{autoencoder_forward.15} parent=0 // loop_footer
    %s13 = sadd.s32 1, %s9
  $region7: #{autoencoder_forward.15} parent=0 // loop_footer_branch
    %8 = sbr.rel target = $region3
  $region8: #{autoencoder_forward.15} parent=0 // loop_exit
    _

</llo_original>
